<compile_context>
chip_gen: v7x
topology: tpu7x:2x2x1
jax: 0.10.0
libtpu: 0.0.40
codegen_flags: <defaults>
</compile_context>

<pallas_src>
import jax
import jax.numpy as jnp
from jax.experimental import pallas as pl
from jax.experimental.pallas import tpu as pltpu


def _mlp_kernel(xs_ref, xd_ref,
                w1a_ref, w1b_ref, b1_ref,
                w2_ref, b2_ref,
                w3_ref, b3_ref,
                w4_ref, b4_ref,
                out_ref):
    # xs/xd: [TE, H] bf16 ; W* : bf16 ; b1..b3, w4 row: f32 ; b4: SMEM f32[1]
    xs = xs_ref[...]
    xd = xd_ref[...]

    # Layer 1: split-W1 form of relu(concat(xs, xd) @ W1 + b1).
    h1 = jnp.dot(xs, w1a_ref[...], preferred_element_type=jnp.float32)
    h1 = h1 + jnp.dot(xd, w1b_ref[...], preferred_element_type=jnp.float32)
    h1 = jnp.maximum(h1 + b1_ref[...], 0.0)                      # f32 [TE, H]

    h2 = jnp.maximum(
        jnp.dot(h1.astype(jnp.bfloat16), w2_ref[...],
                preferred_element_type=jnp.float32) + b2_ref[...], 0.0)

    h3 = jnp.maximum(
        jnp.dot(h2.astype(jnp.bfloat16), w3_ref[...],
                preferred_element_type=jnp.float32) + b3_ref[...], 0.0)

    # Final N=1 layer: keep it off the MXU (VPU multiply + lane reduction),
    # producing a lane-dense row of scores for this edge tile.
    score = jnp.sum(h3 * w4_ref[...], axis=-1) + b4_ref[0]       # f32 [TE]
    out_ref[...] = score[None, None, :]                          # (1, 1, TE)


def mlp_predictor_scores(src, dst, h, params, *, edge_tile=512):
    """Per-edge scores. src/dst: int32 [E]; h: [N, h_feats] float."""
    w1, b1, w2, b2, w3, b3, w4, b4 = params
    H = h.shape[1]
    E = src.shape[0]

    # Pad edges up to a tile multiple (padded scores are sliced off below).
    num_tiles = pl.cdiv(E, edge_tile)
    E_pad = num_tiles * edge_tile
    if E_pad != E:
        pad = E_pad - E
        src = jnp.concatenate([src, jnp.zeros((pad,), src.dtype)])
        dst = jnp.concatenate([dst, jnp.zeros((pad,), dst.dtype)])

    # Gather endpoint features (glue, stays in XLA); bf16 for HBM transfer.
    h_b = h.astype(jnp.bfloat16)
    xs = h_b[src]                                                # [E_pad, H]
    xd = h_b[dst]                                                # [E_pad, H]

    # Weights as [in, out]; W1 split into the src / dst halves; bf16 for MXU.
    w1a = w1[:H].astype(jnp.bfloat16)                            # [H, H]
    w1b = w1[H:].astype(jnp.bfloat16)                            # [H, H]
    w2b = w2.astype(jnp.bfloat16)
    w3b = w3.astype(jnp.bfloat16)
    w4r = w4.reshape(1, H).astype(jnp.float32)                   # row for VPU
    # Biases as f32 rows so they broadcast over the edge tile.
    b1r = b1.reshape(1, H).astype(jnp.float32)
    b2r = b2.reshape(1, H).astype(jnp.float32)
    b3r = b3.reshape(1, H).astype(jnp.float32)
    b4s = b4.reshape(1).astype(jnp.float32)                      # SMEM scalar

    full = lambda i: (0, 0)

    scores3d = pl.pallas_call(
        _mlp_kernel,
        out_shape=jax.ShapeDtypeStruct((num_tiles, 1, edge_tile), jnp.float32),
        grid_spec=pl.GridSpec(
            grid=(num_tiles,),
            in_specs=[
                pl.BlockSpec((edge_tile, H), lambda i: (i, 0)),   # xs tile
                pl.BlockSpec((edge_tile, H), lambda i: (i, 0)),   # xd tile
                pl.BlockSpec((H, H), full),                       # W1a
                pl.BlockSpec((H, H), full),                       # W1b
                pl.BlockSpec((1, H), full),                       # b1
                pl.BlockSpec((H, H), full),                       # W2
                pl.BlockSpec((1, H), full),                       # b2
                pl.BlockSpec((H, H), full),                       # W3
                pl.BlockSpec((1, H), full),                       # b3
                pl.BlockSpec((1, H), full),                       # W4 row
                pl.BlockSpec(memory_space=pltpu.MemorySpace.SMEM),  # b4
            ],
            out_specs=pl.BlockSpec((1, 1, edge_tile), lambda i: (i, 0, 0)),
        ),
        compiler_params=pltpu.CompilerParams(
            dimension_semantics=("parallel",),       # shards edge tiles on v7x megacore
            vmem_limit_bytes=32 * 1024 * 1024,
        ),
    )(xs, xd, w1a, w1b, b1r, w2b, b2r, w3b, b3r, w4r, b4s)

    return scores3d.reshape(E_pad)[:E]


def init_params(key, h_feats):
    """Deterministic init matching nn.Linear shapes; stored as [in, out]."""
    ks = jax.random.split(key, 8)

    def linear(kw, kb, fan_in, fan_out):
        bound = 1.0 / jnp.sqrt(fan_in)
        w = jax.random.uniform(kw, (fan_in, fan_out), jnp.float32, -bound, bound)
        b = jax.random.uniform(kb, (fan_out,), jnp.float32, -bound, bound)
        return w, b

    w1, b1 = linear(ks[0], ks[1], 2 * h_feats, h_feats)
    w2, b2 = linear(ks[2], ks[3], h_feats, h_feats)
    w3, b3 = linear(ks[4], ks[5], h_feats, h_feats)
    w4, b4 = linear(ks[6], ks[7], h_feats, 1)
    return (w1, b1, w2, b2, w3, b3, w4, b4)


def reference_scores(src, dst, h, params):
    w1, b1, w2, b2, w3, b3, w4, b4 = params
    x = jnp.concatenate([h[src], h[dst]], axis=1)
    x = jnp.maximum(x @ w1 + b1, 0.0)
    x = jnp.maximum(x @ w2 + b2, 0.0)
    x = jnp.maximum(x @ w3 + b3, 0.0)
    return (x @ w4 + b4)[:, 0]


if __name__ == "__main__":
    key = jax.random.PRNGKey(0)
    k_param, k_h, k_src, k_dst = jax.random.split(key, 4)

    h_feats = 32       # hidden size
    num_nodes = 16
    num_edges = 64     # will be padded to the edge tile inside the wrapper

    params = init_params(k_param, h_feats)
    h = jax.random.normal(k_h, (num_nodes, h_feats), jnp.float32)
    src = jax.random.randint(k_src, (num_edges,), 0, num_nodes, jnp.int32)
    dst = jax.random.randint(k_dst, (num_edges,), 0, num_nodes, jnp.int32)

    scores = mlp_predictor_scores(src, dst, h, params)
    scores = jax.block_until_ready(scores)

    ref = reference_scores(src, dst, h, params)
    assert scores.shape == (num_edges,)
    # bf16 activation / matmul-input path -> looser tolerance than pure f32.
    assert jnp.allclose(scores, ref, atol=3e-2, rtol=3e-2), (
        float(jnp.max(jnp.abs(scores - ref))))

    print("KERNEL_OK")
</pallas_src>

<mosaic_0001>
module attributes {stable_mosaic.version = 11 : i64} {
  func.func @_mlp_kernel(%arg0: i32, %arg1: memref<512x32xbf16, #tpu.memory_space<vmem>>, %arg2: memref<512x32xbf16, #tpu.memory_space<vmem>>, %arg3: memref<32x32xbf16, #tpu.memory_space<vmem>>, %arg4: memref<32x32xbf16, #tpu.memory_space<vmem>>, %arg5: memref<1x32xf32, #tpu.memory_space<vmem>>, %arg6: memref<32x32xbf16, #tpu.memory_space<vmem>>, %arg7: memref<1x32xf32, #tpu.memory_space<vmem>>, %arg8: memref<32x32xbf16, #tpu.memory_space<vmem>>, %arg9: memref<1x32xf32, #tpu.memory_space<vmem>>, %arg10: memref<1x32xf32, #tpu.memory_space<vmem>>, %arg11: memref<1xf32, #tpu.memory_space<smem>>, %arg12: memref<1x1x512xf32, #tpu.memory_space<vmem>>) attributes {dimension_semantics = [#tpu.dimension_semantics<parallel>], iteration_bounds = array<i64: 1>, scalar_prefetch = 0 : i64, scratch_operands = 0 : i64, tpu.core_type = #tpu.core_type<tc>, window_params = [{transform_indices = @transform_0, window_bounds = array<i64: 512, 32>}, {transform_indices = @transform_1, window_bounds = array<i64: 512, 32>}, {pipeline_mode = #tpu.pipeline_mode<synchronous>, transform_indices = @transform_2, window_bounds = array<i64: 32, 32>}, {pipeline_mode = #tpu.pipeline_mode<synchronous>, transform_indices = @transform_3, window_bounds = array<i64: 32, 32>}, {pipeline_mode = #tpu.pipeline_mode<synchronous>, transform_indices = @transform_4, window_bounds = array<i64: 1, 32>}, {pipeline_mode = #tpu.pipeline_mode<synchronous>, transform_indices = @transform_5, window_bounds = array<i64: 32, 32>}, {pipeline_mode = #tpu.pipeline_mode<synchronous>, transform_indices = @transform_6, window_bounds = array<i64: 1, 32>}, {pipeline_mode = #tpu.pipeline_mode<synchronous>, transform_indices = @transform_7, window_bounds = array<i64: 32, 32>}, {pipeline_mode = #tpu.pipeline_mode<synchronous>, transform_indices = @transform_8, window_bounds = array<i64: 1, 32>}, {pipeline_mode = #tpu.pipeline_mode<synchronous>, transform_indices = @transform_9, window_bounds = array<i64: 1, 32>}, {transform_indices = @transform_10, window_bounds = array<i64: 1>}, {transform_indices = @transform_11, window_bounds = array<i64: 1, 1, 512>}]} {
    %c0 = arith.constant 0 : index
    %c0_0 = arith.constant 0 : index
    %0 = vector.load %arg1[%c0, %c0_0] : memref<512x32xbf16, #tpu.memory_space<vmem>>, vector<512x32xbf16>
    %c0_1 = arith.constant 0 : index
    %c0_2 = arith.constant 0 : index
    %1 = vector.load %arg2[%c0_1, %c0_2] : memref<512x32xbf16, #tpu.memory_space<vmem>>, vector<512x32xbf16>
    %c0_3 = arith.constant 0 : index
    %c0_4 = arith.constant 0 : index
    %2 = vector.load %arg3[%c0_3, %c0_4] : memref<32x32xbf16, #tpu.memory_space<vmem>>, vector<32x32xbf16>
    %cst = arith.constant dense<0.000000e+00> : vector<512x32xf32>
    %3 = tpu.matmul %0, %2, %cst {dimension_numbers = #tpu.dot_dimension_numbers<[1], [0], [0], [1], [0, 0, 1, 1], [], []>} : vector<512x32xbf16>, vector<32x32xbf16>, vector<512x32xf32> -> vector<512x32xf32>
    %c0_5 = arith.constant 0 : index
    %c0_6 = arith.constant 0 : index
    %4 = vector.load %arg4[%c0_5, %c0_6] : memref<32x32xbf16, #tpu.memory_space<vmem>>, vector<32x32xbf16>
    %cst_7 = arith.constant dense<0.000000e+00> : vector<512x32xf32>
    %5 = tpu.matmul %1, %4, %cst_7 {dimension_numbers = #tpu.dot_dimension_numbers<[1], [0], [0], [1], [0, 0, 1, 1], [], []>} : vector<512x32xbf16>, vector<32x32xbf16>, vector<512x32xf32> -> vector<512x32xf32>
    %6 = arith.addf %3, %5 : vector<512x32xf32>
    %c0_8 = arith.constant 0 : index
    %c0_9 = arith.constant 0 : index
    %7 = vector.load %arg5[%c0_8, %c0_9] : memref<1x32xf32, #tpu.memory_space<vmem>>, vector<1x32xf32>
    %8 = vector.broadcast %7 : vector<1x32xf32> to vector<512x32xf32>
    %9 = arith.addf %6, %8 : vector<512x32xf32>
    %cst_10 = arith.constant 0.000000e+00 : f32
    %10 = vector.broadcast %cst_10 : f32 to vector<512x32xf32>
    %11 = arith.maximumf %9, %10 : vector<512x32xf32>
    %12 = arith.truncf %11 : vector<512x32xf32> to vector<512x32xbf16>
    %c0_11 = arith.constant 0 : index
    %c0_12 = arith.constant 0 : index
    %13 = vector.load %arg6[%c0_11, %c0_12] : memref<32x32xbf16, #tpu.memory_space<vmem>>, vector<32x32xbf16>
    %cst_13 = arith.constant dense<0.000000e+00> : vector<512x32xf32>
    %14 = tpu.matmul %12, %13, %cst_13 {dimension_numbers = #tpu.dot_dimension_numbers<[1], [0], [0], [1], [0, 0, 1, 1], [], []>} : vector<512x32xbf16>, vector<32x32xbf16>, vector<512x32xf32> -> vector<512x32xf32>
    %c0_14 = arith.constant 0 : index
    %c0_15 = arith.constant 0 : index
    %15 = vector.load %arg7[%c0_14, %c0_15] : memref<1x32xf32, #tpu.memory_space<vmem>>, vector<1x32xf32>
    %16 = vector.broadcast %15 : vector<1x32xf32> to vector<512x32xf32>
    %17 = arith.addf %14, %16 : vector<512x32xf32>
    %cst_16 = arith.constant 0.000000e+00 : f32
    %18 = vector.broadcast %cst_16 : f32 to vector<512x32xf32>
    %19 = arith.maximumf %17, %18 : vector<512x32xf32>
    %20 = arith.truncf %19 : vector<512x32xf32> to vector<512x32xbf16>
    %c0_17 = arith.constant 0 : index
    %c0_18 = arith.constant 0 : index
    %21 = vector.load %arg8[%c0_17, %c0_18] : memref<32x32xbf16, #tpu.memory_space<vmem>>, vector<32x32xbf16>
    %cst_19 = arith.constant dense<0.000000e+00> : vector<512x32xf32>
    %22 = tpu.matmul %20, %21, %cst_19 {dimension_numbers = #tpu.dot_dimension_numbers<[1], [0], [0], [1], [0, 0, 1, 1], [], []>} : vector<512x32xbf16>, vector<32x32xbf16>, vector<512x32xf32> -> vector<512x32xf32>
    %c0_20 = arith.constant 0 : index
    %c0_21 = arith.constant 0 : index
    %23 = vector.load %arg9[%c0_20, %c0_21] : memref<1x32xf32, #tpu.memory_space<vmem>>, vector<1x32xf32>
    %24 = vector.broadcast %23 : vector<1x32xf32> to vector<512x32xf32>
    %25 = arith.addf %22, %24 : vector<512x32xf32>
    %cst_22 = arith.constant 0.000000e+00 : f32
    %26 = vector.broadcast %cst_22 : f32 to vector<512x32xf32>
    %27 = arith.maximumf %25, %26 : vector<512x32xf32>
    %c0_23 = arith.constant 0 : index
    %c0_24 = arith.constant 0 : index
    %28 = vector.load %arg10[%c0_23, %c0_24] : memref<1x32xf32, #tpu.memory_space<vmem>>, vector<1x32xf32>
    %29 = vector.broadcast %28 : vector<1x32xf32> to vector<512x32xf32>
    %30 = arith.mulf %27, %29 : vector<512x32xf32>
    %cst_25 = arith.constant dense<0.000000e+00> : vector<512xf32>
    %31 = vector.multi_reduction <add>, %30, %cst_25 [1] : vector<512x32xf32> to vector<512xf32>
    %c0_26 = arith.constant 0 : index
    %32 = memref.load %arg11[%c0_26] : memref<1xf32, #tpu.memory_space<smem>>
    %33 = vector.broadcast %32 : f32 to vector<512xf32>
    %34 = arith.addf %31, %33 : vector<512xf32>
    %35 = vector.shape_cast %34 : vector<512xf32> to vector<1x1x512xf32>
    %c0_27 = arith.constant 0 : index
    %c0_28 = arith.constant 0 : index
    %c0_29 = arith.constant 0 : index
    %36 = vector.load %arg12[%c0_27, %c0_28, %c0_29] : memref<1x1x512xf32, #tpu.memory_space<vmem>>, vector<1x1x512xf32>
    tpu.vector_store %arg12[%c0_27, %c0_28, %c0_29], %35 {strides = array<i32>} : memref<1x1x512xf32, #tpu.memory_space<vmem>>, vector<1x1x512xf32>,
    return
  }
  func.func @transform_0(%arg0: i32) -> (i32, i32) {
    %c0_i32 = arith.constant 0 : i32
    %c0_i32_0 = arith.constant 0 : i32
    return %arg0, %c0_i32 : i32, i32
  }
  func.func @transform_1(%arg0: i32) -> (i32, i32) {
    %c0_i32 = arith.constant 0 : i32
    %c0_i32_0 = arith.constant 0 : i32
    return %arg0, %c0_i32 : i32, i32
  }
  func.func @transform_2(%arg0: i32) -> (i32, i32) {
    %c0_i32 = arith.constant 0 : i32
    %c0_i32_0 = arith.constant 0 : i32
    %c0_i32_1 = arith.constant 0 : i32
    return %c0_i32, %c0_i32_0 : i32, i32
  }
  func.func @transform_3(%arg0: i32) -> (i32, i32) {
    %c0_i32 = arith.constant 0 : i32
    %c0_i32_0 = arith.constant 0 : i32
    %c0_i32_1 = arith.constant 0 : i32
    return %c0_i32, %c0_i32_0 : i32, i32
  }
  func.func @transform_4(%arg0: i32) -> (i32, i32) {
    %c0_i32 = arith.constant 0 : i32
    %c0_i32_0 = arith.constant 0 : i32
    %c0_i32_1 = arith.constant 0 : i32
    return %c0_i32, %c0_i32_0 : i32, i32
  }
  func.func @transform_5(%arg0: i32) -> (i32, i32) {
    %c0_i32 = arith.constant 0 : i32
    %c0_i32_0 = arith.constant 0 : i32
    %c0_i32_1 = arith.constant 0 : i32
    return %c0_i32, %c0_i32_0 : i32, i32
  }
  func.func @transform_6(%arg0: i32) -> (i32, i32) {
    %c0_i32 = arith.constant 0 : i32
    %c0_i32_0 = arith.constant 0 : i32
    %c0_i32_1 = arith.constant 0 : i32
    return %c0_i32, %c0_i32_0 : i32, i32
  }
  func.func @transform_7(%arg0: i32) -> (i32, i32) {
    %c0_i32 = arith.constant 0 : i32
    %c0_i32_0 = arith.constant 0 : i32
    %c0_i32_1 = arith.constant 0 : i32
    return %c0_i32, %c0_i32_0 : i32, i32
  }
  func.func @transform_8(%arg0: i32) -> (i32, i32) {
    %c0_i32 = arith.constant 0 : i32
    %c0_i32_0 = arith.constant 0 : i32
    %c0_i32_1 = arith.constant 0 : i32
    return %c0_i32, %c0_i32_0 : i32, i32
  }
  func.func @transform_9(%arg0: i32) -> (i32, i32) {
    %c0_i32 = arith.constant 0 : i32
    %c0_i32_0 = arith.constant 0 : i32
    %c0_i32_1 = arith.constant 0 : i32
    return %c0_i32, %c0_i32_0 : i32, i32
  }
  func.func @transform_10(%arg0: i32) -> i32 {
    %c0_i32 = arith.constant 0 : i32
    %c0_i32_0 = arith.constant 0 : i32
    return %c0_i32 : i32
  }
  func.func @transform_11(%arg0: i32) -> (i32, i32, i32) {
    %c0_i32 = arith.constant 0 : i32
    %c0_i32_0 = arith.constant 0 : i32
    %c0_i32_1 = arith.constant 0 : i32
    return %arg0, %c0_i32, %c0_i32_0 : i32, i32, i32
  }
}

</mosaic_0001>

<llo_original>
// kernel: tpu_custom_call.1
$region0: #{tpu_custom_call.1}
  #allocation0 [shape = 'u32[]', space=smem, size = 0x4, offset = 0x4, fixed_abs, tag = 'smem constant byte address 0x4 - core index']
  #allocation1 [shape = 'u32[144,128]{1,0:T(1,128)}', space=vmem, size = 0x12000, scoped, tag = 'internal scratch']
  #allocation2 [shape = 'f32[1]{0:T(128)S(6)}', space=smem, size = 0x200, scoped, tag = 'scoped memory for tpu_custom_call.1']
  %s0 = inlined_call_operand.vmem [shape: bf16[512,32], index: 0, kind: input, shape index: {}]
  %s1 = inlined_call_operand.vmem [shape: bf16[512,32], index: 1, kind: input, shape index: {}]
  %s2 = inlined_call_operand.vmem [shape: bf16[32,32], index: 2, kind: input, shape index: {}]
  %s3 = inlined_call_operand.vmem [shape: bf16[32,32], index: 3, kind: input, shape index: {}]
  %s4 = inlined_call_operand.vmem [shape: f32[1,32], index: 4, kind: input, shape index: {}]
  %s5 = inlined_call_operand.vmem [shape: bf16[32,32], index: 5, kind: input, shape index: {}]
  %s6 = inlined_call_operand.vmem [shape: f32[1,32], index: 6, kind: input, shape index: {}]
  %s7 = inlined_call_operand.vmem [shape: bf16[32,32], index: 7, kind: input, shape index: {}]
  %s8 = inlined_call_operand.vmem [shape: f32[1,32], index: 8, kind: input, shape index: {}]
  %s9 = inlined_call_operand.vmem [shape: f32[1,32], index: 9, kind: input, shape index: {}]
  %s10 = inlined_call_operand.<no memory space> [shape: f32[1], index: 10, kind: input, shape index: {}]
  %s11 = inlined_call_operand.hbm [shape: f32[1,1,512], index: 11, kind: output, shape index: {}]
  %s12 = sld [smem:[#allocation0]]
  $region54: #{tpu_custom_call.1} parent=0
    _
  %s14 = ssub.s32 1, %s12
  %s15 = scalar_select 0, %s14, %s12
  %16 = sst [smem:[#allocation2]] %s10
  $region1: #{tpu_custom_call.1} parent=0
    #allocation3 [shape = 'u8[2048]{0}', space=vmem, size = 0x800, scoped, tag = 'output window, operand 0, single buffered']
    #allocation4 [shape = 's32[1]{0}', space=sflag, size = 0x4, scoped, tag = 'scoped memory for tpu_custom_call.1']
    %17 = vsyncpa [#allocation4], 0
    // Predicated region
    $region2: #{tpu_custom_call.1} parent=1 // pred_check
      _
    $region3: #{tpu_custom_call.1} parent=1 // pred_check_branch
      %19 = sbr.rel (0) target = $region5
    $region4: #{tpu_custom_call.1} parent=1 // pred_region
      _
    $region5: #{tpu_custom_call.1} parent=1 // pred_fallthru
      _
    // Predicated region
    $region6: #{tpu_custom_call.1} parent=1 // pred_check
      _
    $region7: #{tpu_custom_call.1} parent=1 // pred_check_branch
      %21 = sbr.rel (0) target = $region9
    $region8: #{tpu_custom_call.1} parent=1 // pred_region
      _
    $region9: #{tpu_custom_call.1} parent=1 // pred_fallthru
      _
    // Predicated region
    $region10: #{tpu_custom_call.1} parent=1 // pred_check
      _
    $region11: #{tpu_custom_call.1} parent=1 // pred_check_branch
      %23 = sbr.rel (0) target = $region13
    $region12: #{tpu_custom_call.1} parent=1 // pred_region
      _
    $region13: #{tpu_custom_call.1} parent=1 // pred_fallthru
      _
    // Predicated region
    $region14: #{tpu_custom_call.1} parent=1 // pred_check
      _
    $region15: #{tpu_custom_call.1} parent=1 // pred_check_branch
      %25 = sbr.rel (0) target = $region17
    $region16: #{tpu_custom_call.1} parent=1 // pred_region
      _
    $region17: #{tpu_custom_call.1} parent=1 // pred_fallthru
      _
    // Predicated region
    $region18: #{tpu_custom_call.1} parent=1 // pred_check
      _
    $region19: #{tpu_custom_call.1} parent=1 // pred_check_branch
      %27 = sbr.rel (0) target = $region21
    $region20: #{tpu_custom_call.1} parent=1 // pred_region
      _
    $region21: #{tpu_custom_call.1} parent=1 // pred_fallthru
      _
    // Predicated region
    $region22: #{tpu_custom_call.1} parent=1 // pred_check
      _
    $region23: #{tpu_custom_call.1} parent=1 // pred_check_branch
      %29 = sbr.rel (0) target = $region25
    $region24: #{tpu_custom_call.1} parent=1 // pred_region
      _
    $region25: #{tpu_custom_call.1} parent=1 // pred_fallthru
      _
    // Predicated region
    $region26: #{tpu_custom_call.1} parent=1 // pred_check
      _
    $region27: #{tpu_custom_call.1} parent=1 // pred_check_branch
      %31 = sbr.rel (0) target = $region29
    $region28: #{tpu_custom_call.1} parent=1 // pred_region
      _
    $region29: #{tpu_custom_call.1} parent=1 // pred_fallthru
      _
    // Predicated region
    $region30: #{tpu_custom_call.1} parent=1 // pred_check
      _
    $region31: #{tpu_custom_call.1} parent=1 // pred_check_branch
      %33 = sbr.rel (0) target = $region33
    $region32: #{tpu_custom_call.1} parent=1 // pred_region
      _
    $region33: #{tpu_custom_call.1} parent=1 // pred_fallthru
      _
    // Predicated region
    $region34: #{tpu_custom_call.1} parent=1 // pred_check
      _
    $region35: #{tpu_custom_call.1} parent=1 // pred_check_branch
      %35 = sbr.rel (0) target = $region37
    $region36: #{tpu_custom_call.1} parent=1 // pred_region
      _
    $region37: #{tpu_custom_call.1} parent=1 // pred_fallthru
      _
    // Predicated region
    $region38: #{tpu_custom_call.1} parent=1 // pred_check
      _
    $region39: #{tpu_custom_call.1} parent=1 // pred_check_branch
      %37 = sbr.rel (0) target = $region41
    $region40: #{tpu_custom_call.1} parent=1 // pred_region
      _
    $region41: #{tpu_custom_call.1} parent=1 // pred_fallthru
      _
    // Predicated region
    $region42: #{tpu_custom_call.1} parent=1 // pred_check
      _
    $region43: #{tpu_custom_call.1} parent=1 // pred_check_branch
      %39 = sbr.rel (0) target = $region45
    $region44: #{tpu_custom_call.1} parent=1 // pred_region
      _
    $region45: #{tpu_custom_call.1} parent=1 // pred_fallthru
      _
    %v41 = vld [vmem:[%s0] sm:$0xf]
    %v42 = vld [vmem:[%s0 + $0x4] sm:$0xf]
    %v43 = vld [vmem:[%s0 + $0x8] sm:$0xf]
    %v44 = vld [vmem:[%s0 + $0xc] sm:$0xf]
    %v45 = vld [vmem:[%s0 + $0x10] sm:$0xf]
    %v46 = vld [vmem:[%s0 + $0x14] sm:$0xf]
    %v47 = vld [vmem:[%s0 + $0x18] sm:$0xf]
    %v48 = vld [vmem:[%s0 + $0x1c] sm:$0xf]
    %v49 = vld [vmem:[%s0 + $0x20] sm:$0xf]
    %v50 = vld [vmem:[%s0 + $0x24] sm:$0xf]
    %v51 = vld [vmem:[%s0 + $0x28] sm:$0xf]
    %v52 = vld [vmem:[%s0 + $0x2c] sm:$0xf]
    %v53 = vld [vmem:[%s0 + $0x30] sm:$0xf]
    %v54 = vld [vmem:[%s0 + $0x34] sm:$0xf]
    %v55 = vld [vmem:[%s0 + $0x38] sm:$0xf]
    %v56 = vld [vmem:[%s0 + $0x3c] sm:$0xf]
    %v57 = vld [vmem:[%s0 + $0x40] sm:$0xf]
    %v58 = vld [vmem:[%s0 + $0x44] sm:$0xf]
    %v59 = vld [vmem:[%s0 + $0x48] sm:$0xf]
    %v60 = vld [vmem:[%s0 + $0x4c] sm:$0xf]
    %v61 = vld [vmem:[%s0 + $0x50] sm:$0xf]
    %v62 = vld [vmem:[%s0 + $0x54] sm:$0xf]
    %v63 = vld [vmem:[%s0 + $0x58] sm:$0xf]
    %v64 = vld [vmem:[%s0 + $0x5c] sm:$0xf]
    %v65 = vld [vmem:[%s0 + $0x60] sm:$0xf]
    %v66 = vld [vmem:[%s0 + $0x64] sm:$0xf]
    %v67 = vld [vmem:[%s0 + $0x68] sm:$0xf]
    %v68 = vld [vmem:[%s0 + $0x6c] sm:$0xf]
    %v69 = vld [vmem:[%s0 + $0x70] sm:$0xf]
    %v70 = vld [vmem:[%s0 + $0x74] sm:$0xf]
    %v71 = vld [vmem:[%s0 + $0x78] sm:$0xf]
    %v72 = vld [vmem:[%s0 + $0x7c] sm:$0xf]
    %v73 = vld [vmem:[%s0 + $0x80] sm:$0xf]
    %v74 = vld [vmem:[%s0 + $0x84] sm:$0xf]
    %v75 = vld [vmem:[%s0 + $0x88] sm:$0xf]
    %v76 = vld [vmem:[%s0 + $0x8c] sm:$0xf]
    %v77 = vld [vmem:[%s0 + $0x90] sm:$0xf]
    %v78 = vld [vmem:[%s0 + $0x94] sm:$0xf]
    %v79 = vld [vmem:[%s0 + $0x98] sm:$0xf]
    %v80 = vld [vmem:[%s0 + $0x9c] sm:$0xf]
    %v81 = vld [vmem:[%s0 + $0xa0] sm:$0xf]
    %v82 = vld [vmem:[%s0 + $0xa4] sm:$0xf]
    %v83 = vld [vmem:[%s0 + $0xa8] sm:$0xf]
    %v84 = vld [vmem:[%s0 + $0xac] sm:$0xf]
    %v85 = vld [vmem:[%s0 + $0xb0] sm:$0xf]
    %v86 = vld [vmem:[%s0 + $0xb4] sm:$0xf]
    %v87 = vld [vmem:[%s0 + $0xb8] sm:$0xf]
    %v88 = vld [vmem:[%s0 + $0xbc] sm:$0xf]
    %v89 = vld [vmem:[%s0 + $0xc0] sm:$0xf]
    %v90 = vld [vmem:[%s0 + $0xc4] sm:$0xf]
    %v91 = vld [vmem:[%s0 + $0xc8] sm:$0xf]
    %v92 = vld [vmem:[%s0 + $0xcc] sm:$0xf]
    %v93 = vld [vmem:[%s0 + $0xd0] sm:$0xf]
    %v94 = vld [vmem:[%s0 + $0xd4] sm:$0xf]
    %v95 = vld [vmem:[%s0 + $0xd8] sm:$0xf]
    %v96 = vld [vmem:[%s0 + $0xdc] sm:$0xf]
    %v97 = vld [vmem:[%s0 + $0xe0] sm:$0xf]
    %v98 = vld [vmem:[%s0 + $0xe4] sm:$0xf]
    %v99 = vld [vmem:[%s0 + $0xe8] sm:$0xf]
    %v100 = vld [vmem:[%s0 + $0xec] sm:$0xf]
    %v101 = vld [vmem:[%s0 + $0xf0] sm:$0xf]
    %v102 = vld [vmem:[%s0 + $0xf4] sm:$0xf]
    %v103 = vld [vmem:[%s0 + $0xf8] sm:$0xf]
    %v104 = vld [vmem:[%s0 + $0xfc] sm:$0xf]
    %v105 = vld [vmem:[%s1] sm:$0xf]
    %v106 = vld [vmem:[%s1 + $0x4] sm:$0xf]
    %v107 = vld [vmem:[%s1 + $0x8] sm:$0xf]
    %v108 = vld [vmem:[%s1 + $0xc] sm:$0xf]
    %v109 = vld [vmem:[%s1 + $0x10] sm:$0xf]
    %v110 = vld [vmem:[%s1 + $0x14] sm:$0xf]
    %v111 = vld [vmem:[%s1 + $0x18] sm:$0xf]
    %v112 = vld [vmem:[%s1 + $0x1c] sm:$0xf]
    %v113 = vld [vmem:[%s1 + $0x20] sm:$0xf]
    %v114 = vld [vmem:[%s1 + $0x24] sm:$0xf]
    %v115 = vld [vmem:[%s1 + $0x28] sm:$0xf]
    %v116 = vld [vmem:[%s1 + $0x2c] sm:$0xf]
    %v117 = vld [vmem:[%s1 + $0x30] sm:$0xf]
    %v118 = vld [vmem:[%s1 + $0x34] sm:$0xf]
    %v119 = vld [vmem:[%s1 + $0x38] sm:$0xf]
    %v120 = vld [vmem:[%s1 + $0x3c] sm:$0xf]
    %v121 = vld [vmem:[%s1 + $0x40] sm:$0xf]
    %v122 = vld [vmem:[%s1 + $0x44] sm:$0xf]
    %v123 = vld [vmem:[%s1 + $0x48] sm:$0xf]
    %v124 = vld [vmem:[%s1 + $0x4c] sm:$0xf]
    %v125 = vld [vmem:[%s1 + $0x50] sm:$0xf]
    %v126 = vld [vmem:[%s1 + $0x54] sm:$0xf]
    %v127 = vld [vmem:[%s1 + $0x58] sm:$0xf]
    %v128 = vld [vmem:[%s1 + $0x5c] sm:$0xf]
    %v129 = vld [vmem:[%s1 + $0x60] sm:$0xf]
    %v130 = vld [vmem:[%s1 + $0x64] sm:$0xf]
    %v131 = vld [vmem:[%s1 + $0x68] sm:$0xf]
    %v132 = vld [vmem:[%s1 + $0x6c] sm:$0xf]
    %v133 = vld [vmem:[%s1 + $0x70] sm:$0xf]
    %v134 = vld [vmem:[%s1 + $0x74] sm:$0xf]
    %v135 = vld [vmem:[%s1 + $0x78] sm:$0xf]
    %v136 = vld [vmem:[%s1 + $0x7c] sm:$0xf]
    %v137 = vld [vmem:[%s1 + $0x80] sm:$0xf]
    %v138 = vld [vmem:[%s1 + $0x84] sm:$0xf]
    %v139 = vld [vmem:[%s1 + $0x88] sm:$0xf]
    %v140 = vld [vmem:[%s1 + $0x8c] sm:$0xf]
    %v141 = vld [vmem:[%s1 + $0x90] sm:$0xf]
    %v142 = vld [vmem:[%s1 + $0x94] sm:$0xf]
    %v143 = vld [vmem:[%s1 + $0x98] sm:$0xf]
    %v144 = vld [vmem:[%s1 + $0x9c] sm:$0xf]
    %v145 = vld [vmem:[%s1 + $0xa0] sm:$0xf]
    %v146 = vld [vmem:[%s1 + $0xa4] sm:$0xf]
    %v147 = vld [vmem:[%s1 + $0xa8] sm:$0xf]
    %v148 = vld [vmem:[%s1 + $0xac] sm:$0xf]
    %v149 = vld [vmem:[%s1 + $0xb0] sm:$0xf]
    %v150 = vld [vmem:[%s1 + $0xb4] sm:$0xf]
    %v151 = vld [vmem:[%s1 + $0xb8] sm:$0xf]
    %v152 = vld [vmem:[%s1 + $0xbc] sm:$0xf]
    %v153 = vld [vmem:[%s1 + $0xc0] sm:$0xf]
    %v154 = vld [vmem:[%s1 + $0xc4] sm:$0xf]
    %v155 = vld [vmem:[%s1 + $0xc8] sm:$0xf]
    %v156 = vld [vmem:[%s1 + $0xcc] sm:$0xf]
    %v157 = vld [vmem:[%s1 + $0xd0] sm:$0xf]
    %v158 = vld [vmem:[%s1 + $0xd4] sm:$0xf]
    %v159 = vld [vmem:[%s1 + $0xd8] sm:$0xf]
    %v160 = vld [vmem:[%s1 + $0xdc] sm:$0xf]
    %v161 = vld [vmem:[%s1 + $0xe0] sm:$0xf]
    %v162 = vld [vmem:[%s1 + $0xe4] sm:$0xf]
    %v163 = vld [vmem:[%s1 + $0xe8] sm:$0xf]
    %v164 = vld [vmem:[%s1 + $0xec] sm:$0xf]
    %v165 = vld [vmem:[%s1 + $0xf0] sm:$0xf]
    %v166 = vld [vmem:[%s1 + $0xf4] sm:$0xf]
    %v167 = vld [vmem:[%s1 + $0xf8] sm:$0xf]
    %v168 = vld [vmem:[%s1 + $0xfc] sm:$0xf]
    %v169 = vld [vmem:[%s2] sm:$0xf]
    %v170 = vld [vmem:[%s2 + $0x4] sm:$0xf]
    %v171 = vld [vmem:[%s2 + $0x8] sm:$0xf]
    %v172 = vld [vmem:[%s2 + $0xc] sm:$0xf]
    %v173 = vld [vmem:[%s3] sm:$0xf]
    %v174 = vld [vmem:[%s3 + $0x4] sm:$0xf]
    %v175 = vld [vmem:[%s3 + $0x8] sm:$0xf]
    %v176 = vld [vmem:[%s3 + $0xc] sm:$0xf]
    %v241 = vunpack.c.l.b16 %v105
    %v242 = vunpack.c.l.b16 %v106
    %v243 = vunpack.c.l.b16 %v107
    %v244 = vunpack.c.l.b16 %v108
    %v245 = vunpack.c.l.b16 %v109
    %v246 = vunpack.c.l.b16 %v110
    %v247 = vunpack.c.l.b16 %v111
    %v248 = vunpack.c.l.b16 %v112
    %v249 = vunpack.c.l.b16 %v113
    %v250 = vunpack.c.l.b16 %v114
    %v251 = vunpack.c.l.b16 %v115
    %v252 = vunpack.c.l.b16 %v116
    %v253 = vunpack.c.l.b16 %v117
    %v254 = vunpack.c.l.b16 %v118
    %v255 = vunpack.c.l.b16 %v119
    %v256 = vunpack.c.l.b16 %v120
    %v257 = vunpack.c.l.b16 %v121
    %v258 = vunpack.c.l.b16 %v122
    %v259 = vunpack.c.l.b16 %v123
    %v260 = vunpack.c.l.b16 %v124
    %v261 = vunpack.c.l.b16 %v125
    %v262 = vunpack.c.l.b16 %v126
    %v263 = vunpack.c.l.b16 %v127
    %v264 = vunpack.c.l.b16 %v128
    %v265 = vunpack.c.l.b16 %v129
    %v266 = vunpack.c.l.b16 %v130
    %v267 = vunpack.c.l.b16 %v131
    %v268 = vunpack.c.l.b16 %v132
    %v269 = vunpack.c.l.b16 %v133
    %v270 = vunpack.c.l.b16 %v134
    %v271 = vunpack.c.l.b16 %v135
    %v272 = vunpack.c.l.b16 %v136
    %v273 = vunpack.c.l.b16 %v137
    %v274 = vunpack.c.l.b16 %v138
    %v275 = vunpack.c.l.b16 %v139
    %v276 = vunpack.c.l.b16 %v140
    %v277 = vunpack.c.l.b16 %v141
    %v278 = vunpack.c.l.b16 %v142
    %v279 = vunpack.c.l.b16 %v143
    %v280 = vunpack.c.l.b16 %v144
    %v281 = vunpack.c.l.b16 %v145
    %v282 = vunpack.c.l.b16 %v146
    %v283 = vunpack.c.l.b16 %v147
    %v284 = vunpack.c.l.b16 %v148
    %v285 = vunpack.c.l.b16 %v149
    %v286 = vunpack.c.l.b16 %v150
    %v287 = vunpack.c.l.b16 %v151
    %v288 = vunpack.c.l.b16 %v152
    %v289 = vunpack.c.l.b16 %v153
    %v290 = vunpack.c.l.b16 %v154
    %v291 = vunpack.c.l.b16 %v155
    %v292 = vunpack.c.l.b16 %v156
    %v293 = vunpack.c.l.b16 %v157
    %v294 = vunpack.c.l.b16 %v158
    %v295 = vunpack.c.l.b16 %v159
    %v296 = vunpack.c.l.b16 %v160
    %v297 = vunpack.c.l.b16 %v161
    %v298 = vunpack.c.l.b16 %v162
    %v299 = vunpack.c.l.b16 %v163
    %v300 = vunpack.c.l.b16 %v164
    %v301 = vunpack.c.l.b16 %v165
    %v302 = vunpack.c.l.b16 %v166
    %v303 = vunpack.c.l.b16 %v167
    %v304 = vunpack.c.l.b16 %v168
    %v305 = vpack.c.b16 %v242, %v241
    %v306 = vpack.c.b16 %v244, %v243
    %v307 = vpack.c.b16 %v246, %v245
    %v308 = vpack.c.b16 %v248, %v247
    %v309 = vpack.c.b16 %v250, %v249
    %v310 = vpack.c.b16 %v252, %v251
    %v311 = vpack.c.b16 %v254, %v253
    %v312 = vpack.c.b16 %v256, %v255
    %v313 = vpack.c.b16 %v258, %v257
    %v314 = vpack.c.b16 %v260, %v259
    %v315 = vpack.c.b16 %v262, %v261
    %v316 = vpack.c.b16 %v264, %v263
    %v317 = vpack.c.b16 %v266, %v265
    %v318 = vpack.c.b16 %v268, %v267
    %v319 = vpack.c.b16 %v270, %v269
    %v320 = vpack.c.b16 %v272, %v271
    %v321 = vpack.c.b16 %v274, %v273
    %v322 = vpack.c.b16 %v276, %v275
    %v323 = vpack.c.b16 %v278, %v277
    %v324 = vpack.c.b16 %v280, %v279
    %v325 = vpack.c.b16 %v282, %v281
    %v326 = vpack.c.b16 %v284, %v283
    %v327 = vpack.c.b16 %v286, %v285
    %v328 = vpack.c.b16 %v288, %v287
    %v329 = vpack.c.b16 %v290, %v289
    %v330 = vpack.c.b16 %v292, %v291
    %v331 = vpack.c.b16 %v294, %v293
    %v332 = vpack.c.b16 %v296, %v295
    %v333 = vpack.c.b16 %v298, %v297
    %v334 = vpack.c.b16 %v300, %v299
    %v335 = vpack.c.b16 %v302, %v301
    %v336 = vpack.c.b16 %v304, %v303
    %v341 = vunpack.c.l.b16 %v173
    %v342 = vunpack.c.l.b16 %v174
    %v343 = vunpack.c.l.b16 %v175
    %v344 = vunpack.c.l.b16 %v176
    %v345 = vpack.c.b16 %v342, %v341
    %v346 = vpack.c.b16 %v344, %v343
    %vm349 = vcmask 261120
    %v351 = vsel %vm349, %v305, 0
    %v354 = vsel %vm349, %v306, 0
    %v357 = vsel %vm349, %v307, 0
    %v360 = vsel %vm349, %v308, 0
    %v363 = vsel %vm349, %v309, 0
    %v366 = vsel %vm349, %v310, 0
    %v369 = vsel %vm349, %v311, 0
    %v372 = vsel %vm349, %v312, 0
    %v375 = vsel %vm349, %v313, 0
    %v378 = vsel %vm349, %v314, 0
    %v381 = vsel %vm349, %v315, 0
    %v384 = vsel %vm349, %v316, 0
    %v387 = vsel %vm349, %v317, 0
    %v390 = vsel %vm349, %v318, 0
    %v393 = vsel %vm349, %v319, 0
    %v396 = vsel %vm349, %v320, 0
    %v399 = vsel %vm349, %v321, 0
    %v402 = vsel %vm349, %v322, 0
    %v405 = vsel %vm349, %v323, 0
    %v408 = vsel %vm349, %v324, 0
    %v411 = vsel %vm349, %v325, 0
    %v414 = vsel %vm349, %v326, 0
    %v417 = vsel %vm349, %v327, 0
    %v420 = vsel %vm349, %v328, 0
    %v423 = vsel %vm349, %v329, 0
    %v426 = vsel %vm349, %v330, 0
    %v429 = vsel %vm349, %v331, 0
    %v432 = vsel %vm349, %v332, 0
    %v435 = vsel %vm349, %v333, 0
    %v438 = vsel %vm349, %v334, 0
    %v441 = vsel %vm349, %v335, 0
    %v444 = vsel %vm349, %v336, 0
    %446 = vmatprep.subr.bf16.mxu0 0
    %447 = vmatpush1.bf16.msra.mxu0 %v345
    %448 = vmatprep.subr.bf16.mxu0 0
    %449 = vmatpush1.bf16.msra.mxu0 %v346
    %450 = vmatprep.subr.bf16.mxu0 0
    %451 = vmatpush1.bf16.msra.mxu0 0
    %452 = vmatprep.subr.bf16.mxu0 0
    %453 = vmatpush1.bf16.msra.mxu0 0
    %454 = vmatprep.subr.bf16.mxu0 0
    %455 = vmatpush1.bf16.msra.mxu0 0
    %456 = vmatprep.subr.bf16.mxu0 0
    %457 = vmatpush1.bf16.msra.mxu0 0
    %458 = vmatprep.subr.bf16.mxu0 0
    %459 = vmatpush1.bf16.msra.mxu0 0
    %460 = vmatprep.subr.bf16.mxu0 0
    %461 = vmatpush1.bf16.msra.mxu0 0
    %462 = vmatprep.subr.bf16.mxu0 0
    %463 = vmatpush1.bf16.msra.mxu0 0
    %464 = vmatprep.subr.bf16.mxu0 0
    %465 = vmatpush1.bf16.msra.mxu0 0
    %466 = vmatprep.subr.bf16.mxu0 0
    %467 = vmatpush1.bf16.msra.mxu0 0
    %468 = vmatprep.subr.bf16.mxu0 0
    %469 = vmatpush1.bf16.msra.mxu0 0
    %470 = vmatprep.subr.bf16.mxu0 0
    %471 = vmatpush1.bf16.msra.mxu0 0
    %472 = vmatprep.subr.bf16.mxu0 0
    %473 = vmatpush1.bf16.msra.mxu0 0
    %474 = vmatprep.subr.bf16.mxu0 0
    %475 = vmatpush1.bf16.msra.mxu0 0
    %476 = vmatprep.subr.bf16.mxu0 0
    %477 = vmatpush1.bf16.msra.mxu0 0
    %478 = vmatprep.mubr.bf16.mxu0 0
    %479 = vmatmul.mubr.bf16.gmra.mrb[0].mxu0 %v351
    %v480 = vpop.f32.mrb[0].mxu0
    %v481 = vadd.f32 0.0, %v480
    %v482 = vpop.f32.mrb[0].mxu0
    %v483 = vpop.f32.mrb[0].mxu0
    %v484 = vadd.f32 0.0, %v483
    %v485 = vpop.f32.mrb[0].mxu0
    %486 = vmatprep.mubr.bf16.mxu0 0
    %487 = vmatmul.mubr.bf16.gmra.mrb[0].mxu0 %v354
    %v488 = vpop.f32.mrb[0].mxu0
    %v489 = vadd.f32 0.0, %v488
    %v490 = vpop.f32.mrb[0].mxu0
    %v491 = vpop.f32.mrb[0].mxu0
    %v492 = vadd.f32 0.0, %v491
    %v493 = vpop.f32.mrb[0].mxu0
    %494 = vmatprep.mubr.bf16.mxu0 0
    %495 = vmatmul.mubr.bf16.gmra.mrb[0].mxu0 %v357
    %v496 = vpop.f32.mrb[0].mxu0
    %v497 = vadd.f32 0.0, %v496
    %v498 = vpop.f32.mrb[0].mxu0
    %v499 = vpop.f32.mrb[0].mxu0
    %v500 = vadd.f32 0.0, %v499
    %v501 = vpop.f32.mrb[0].mxu0
    %502 = vmatprep.mubr.bf16.mxu0 0
    %503 = vmatmul.mubr.bf16.gmra.mrb[0].mxu0 %v360
    %v504 = vpop.f32.mrb[0].mxu0
    %v505 = vadd.f32 0.0, %v504
    %v506 = vpop.f32.mrb[0].mxu0
    %v507 = vpop.f32.mrb[0].mxu0
    %v508 = vadd.f32 0.0, %v507
    %v509 = vpop.f32.mrb[0].mxu0
    %510 = vmatprep.mubr.bf16.mxu0 0
    %511 = vmatmul.mubr.bf16.gmra.mrb[0].mxu0 %v363
    %v512 = vpop.f32.mrb[0].mxu0
    %v513 = vadd.f32 0.0, %v512
    %v514 = vpop.f32.mrb[0].mxu0
    %v515 = vpop.f32.mrb[0].mxu0
    %v516 = vadd.f32 0.0, %v515
    %v517 = vpop.f32.mrb[0].mxu0
    %518 = vmatprep.mubr.bf16.mxu0 0
    %519 = vmatmul.mubr.bf16.gmra.mrb[0].mxu0 %v366
    %v520 = vpop.f32.mrb[0].mxu0
    %v521 = vadd.f32 0.0, %v520
    %v522 = vpop.f32.mrb[0].mxu0
    %v523 = vpop.f32.mrb[0].mxu0
    %v524 = vadd.f32 0.0, %v523
    %v525 = vpop.f32.mrb[0].mxu0
    %526 = vmatprep.mubr.bf16.mxu0 0
    %527 = vmatmul.mubr.bf16.gmra.mrb[0].mxu0 %v369
    %v528 = vpop.f32.mrb[0].mxu0
    %v529 = vadd.f32 0.0, %v528
    %v530 = vpop.f32.mrb[0].mxu0
    %v531 = vpop.f32.mrb[0].mxu0
    %v532 = vadd.f32 0.0, %v531
    %v533 = vpop.f32.mrb[0].mxu0
    %534 = vmatprep.mubr.bf16.mxu0 0
    %535 = vmatmul.mubr.bf16.gmra.mrb[0].mxu0 %v372
    %v536 = vpop.f32.mrb[0].mxu0
    %v537 = vadd.f32 0.0, %v536
    %v538 = vpop.f32.mrb[0].mxu0
    %v539 = vpop.f32.mrb[0].mxu0
    %v540 = vadd.f32 0.0, %v539
    %v541 = vpop.f32.mrb[0].mxu0
    %542 = vmatprep.mubr.bf16.mxu0 0
    %543 = vmatmul.mubr.bf16.gmra.mrb[0].mxu0 %v375
    %v544 = vpop.f32.mrb[0].mxu0
    %v545 = vadd.f32 0.0, %v544
    %v546 = vpop.f32.mrb[0].mxu0
    %v547 = vpop.f32.mrb[0].mxu0
    %v548 = vadd.f32 0.0, %v547
    %v549 = vpop.f32.mrb[0].mxu0
    %550 = vmatprep.mubr.bf16.mxu0 0
    %551 = vmatmul.mubr.bf16.gmra.mrb[0].mxu0 %v378
    %v552 = vpop.f32.mrb[0].mxu0
    %v553 = vadd.f32 0.0, %v552
    %v554 = vpop.f32.mrb[0].mxu0
    %v555 = vpop.f32.mrb[0].mxu0
    %v556 = vadd.f32 0.0, %v555
    %v557 = vpop.f32.mrb[0].mxu0
    %558 = vmatprep.mubr.bf16.mxu0 0
    %559 = vmatmul.mubr.bf16.gmra.mrb[0].mxu0 %v381
    %v560 = vpop.f32.mrb[0].mxu0
    %v561 = vadd.f32 0.0, %v560
    %v562 = vpop.f32.mrb[0].mxu0
    %v563 = vpop.f32.mrb[0].mxu0
    %v564 = vadd.f32 0.0, %v563
    %v565 = vpop.f32.mrb[0].mxu0
    %566 = vmatprep.mubr.bf16.mxu0 0
    %567 = vmatmul.mubr.bf16.gmra.mrb[0].mxu0 %v384
    %v568 = vpop.f32.mrb[0].mxu0
    %v569 = vadd.f32 0.0, %v568
    %v570 = vpop.f32.mrb[0].mxu0
    %v571 = vpop.f32.mrb[0].mxu0
    %v572 = vadd.f32 0.0, %v571
    %v573 = vpop.f32.mrb[0].mxu0
    %574 = vmatprep.mubr.bf16.mxu0 0
    %575 = vmatmul.mubr.bf16.gmra.mrb[0].mxu0 %v387
    %v576 = vpop.f32.mrb[0].mxu0
    %v577 = vadd.f32 0.0, %v576
    %v578 = vpop.f32.mrb[0].mxu0
    %v579 = vpop.f32.mrb[0].mxu0
    %v580 = vadd.f32 0.0, %v579
    %v581 = vpop.f32.mrb[0].mxu0
    %582 = vmatprep.mubr.bf16.mxu0 0
    %583 = vmatmul.mubr.bf16.gmra.mrb[0].mxu0 %v390
    %v584 = vpop.f32.mrb[0].mxu0
    %v585 = vadd.f32 0.0, %v584
    %v586 = vpop.f32.mrb[0].mxu0
    %v587 = vpop.f32.mrb[0].mxu0
    %v588 = vadd.f32 0.0, %v587
    %v589 = vpop.f32.mrb[0].mxu0
    %590 = vmatprep.mubr.bf16.mxu0 0
    %591 = vmatmul.mubr.bf16.gmra.mrb[0].mxu0 %v393
    %v592 = vpop.f32.mrb[0].mxu0
    %v593 = vadd.f32 0.0, %v592
    %v594 = vpop.f32.mrb[0].mxu0
    %v595 = vpop.f32.mrb[0].mxu0
    %v596 = vadd.f32 0.0, %v595
    %v597 = vpop.f32.mrb[0].mxu0
    %598 = vmatprep.mubr.bf16.mxu0 0
    %599 = vmatmul.mubr.bf16.gmra.mrb[0].mxu0 %v396
    %v600 = vpop.f32.mrb[0].mxu0
    %v601 = vadd.f32 0.0, %v600
    %v602 = vpop.f32.mrb[0].mxu0
    %v603 = vpop.f32.mrb[0].mxu0
    %v604 = vadd.f32 0.0, %v603
    %v605 = vpop.f32.mrb[0].mxu0
    %606 = vmatprep.mubr.bf16.mxu0 0
    %607 = vmatmul.mubr.bf16.gmra.mrb[0].mxu0 %v399
    %v608 = vpop.f32.mrb[0].mxu0
    %v609 = vadd.f32 0.0, %v608
    %v610 = vpop.f32.mrb[0].mxu0
    %v611 = vpop.f32.mrb[0].mxu0
    %v612 = vadd.f32 0.0, %v611
    %v613 = vpop.f32.mrb[0].mxu0
    %614 = vmatprep.mubr.bf16.mxu0 0
    %615 = vmatmul.mubr.bf16.gmra.mrb[0].mxu0 %v402
    %v616 = vpop.f32.mrb[0].mxu0
    %v617 = vadd.f32 0.0, %v616
    %v618 = vpop.f32.mrb[0].mxu0
    %v619 = vpop.f32.mrb[0].mxu0
    %v620 = vadd.f32 0.0, %v619
    %v621 = vpop.f32.mrb[0].mxu0
    %622 = vmatprep.mubr.bf16.mxu0 0
    %623 = vmatmul.mubr.bf16.gmra.mrb[0].mxu0 %v405
    %v624 = vpop.f32.mrb[0].mxu0
    %v625 = vadd.f32 0.0, %v624
    %v626 = vpop.f32.mrb[0].mxu0
    %v627 = vpop.f32.mrb[0].mxu0
    %v628 = vadd.f32 0.0, %v627
    %v629 = vpop.f32.mrb[0].mxu0
    %630 = vmatprep.mubr.bf16.mxu0 0
    %631 = vmatmul.mubr.bf16.gmra.mrb[0].mxu0 %v408
    %v632 = vpop.f32.mrb[0].mxu0
    %v633 = vadd.f32 0.0, %v632
    %v634 = vpop.f32.mrb[0].mxu0
    %v635 = vpop.f32.mrb[0].mxu0
    %v636 = vadd.f32 0.0, %v635
    %v637 = vpop.f32.mrb[0].mxu0
    %638 = vmatprep.mubr.bf16.mxu0 0
    %639 = vmatmul.mubr.bf16.gmra.mrb[0].mxu0 %v411
    %v640 = vpop.f32.mrb[0].mxu0
    %v641 = vadd.f32 0.0, %v640
    %v642 = vpop.f32.mrb[0].mxu0
    %v643 = vpop.f32.mrb[0].mxu0
    %v644 = vadd.f32 0.0, %v643
    %v645 = vpop.f32.mrb[0].mxu0
    %646 = vmatprep.mubr.bf16.mxu0 0
    %647 = vmatmul.mubr.bf16.gmra.mrb[0].mxu0 %v414
    %v648 = vpop.f32.mrb[0].mxu0
    %v649 = vadd.f32 0.0, %v648
    %v650 = vpop.f32.mrb[0].mxu0
    %v651 = vpop.f32.mrb[0].mxu0
    %v652 = vadd.f32 0.0, %v651
    %v653 = vpop.f32.mrb[0].mxu0
    %654 = vmatprep.mubr.bf16.mxu0 0
    %655 = vmatmul.mubr.bf16.gmra.mrb[0].mxu0 %v417
    %v656 = vpop.f32.mrb[0].mxu0
    %v657 = vadd.f32 0.0, %v656
    %v658 = vpop.f32.mrb[0].mxu0
    %v659 = vpop.f32.mrb[0].mxu0
    %v660 = vadd.f32 0.0, %v659
    %v661 = vpop.f32.mrb[0].mxu0
    %662 = vmatprep.mubr.bf16.mxu0 0
    %663 = vmatmul.mubr.bf16.gmra.mrb[0].mxu0 %v420
    %v664 = vpop.f32.mrb[0].mxu0
    %v665 = vadd.f32 0.0, %v664
    %v666 = vpop.f32.mrb[0].mxu0
    %v667 = vpop.f32.mrb[0].mxu0
    %v668 = vadd.f32 0.0, %v667
    %v669 = vpop.f32.mrb[0].mxu0
    %670 = vmatprep.mubr.bf16.mxu0 0
    %671 = vmatmul.mubr.bf16.gmra.mrb[0].mxu0 %v423
    %v672 = vpop.f32.mrb[0].mxu0
    %v673 = vadd.f32 0.0, %v672
    %v674 = vpop.f32.mrb[0].mxu0
    %v675 = vpop.f32.mrb[0].mxu0
    %v676 = vadd.f32 0.0, %v675
    %v677 = vpop.f32.mrb[0].mxu0
    %678 = vmatprep.mubr.bf16.mxu0 0
    %679 = vmatmul.mubr.bf16.gmra.mrb[0].mxu0 %v426
    %v680 = vpop.f32.mrb[0].mxu0
    %v681 = vadd.f32 0.0, %v680
    %v682 = vpop.f32.mrb[0].mxu0
    %v683 = vpop.f32.mrb[0].mxu0
    %v684 = vadd.f32 0.0, %v683
    %v685 = vpop.f32.mrb[0].mxu0
    %686 = vmatprep.mubr.bf16.mxu0 0
    %687 = vmatmul.mubr.bf16.gmra.mrb[0].mxu0 %v429
    %v688 = vpop.f32.mrb[0].mxu0
    %v689 = vadd.f32 0.0, %v688
    %v690 = vpop.f32.mrb[0].mxu0
    %v691 = vpop.f32.mrb[0].mxu0
    %v692 = vadd.f32 0.0, %v691
    %v693 = vpop.f32.mrb[0].mxu0
    %694 = vmatprep.mubr.bf16.mxu0 0
    %695 = vmatmul.mubr.bf16.gmra.mrb[0].mxu0 %v432
    %v696 = vpop.f32.mrb[0].mxu0
    %v697 = vadd.f32 0.0, %v696
    %v698 = vpop.f32.mrb[0].mxu0
    %v699 = vpop.f32.mrb[0].mxu0
    %v700 = vadd.f32 0.0, %v699
    %v701 = vpop.f32.mrb[0].mxu0
    %702 = vmatprep.mubr.bf16.mxu0 0
    %703 = vmatmul.mubr.bf16.gmra.mrb[0].mxu0 %v435
    %v704 = vpop.f32.mrb[0].mxu0
    %v705 = vadd.f32 0.0, %v704
    %v706 = vpop.f32.mrb[0].mxu0
    %v707 = vpop.f32.mrb[0].mxu0
    %v708 = vadd.f32 0.0, %v707
    %v709 = vpop.f32.mrb[0].mxu0
    %710 = vmatprep.mubr.bf16.mxu0 0
    %711 = vmatmul.mubr.bf16.gmra.mrb[0].mxu0 %v438
    %v712 = vpop.f32.mrb[0].mxu0
    %v713 = vadd.f32 0.0, %v712
    %v714 = vpop.f32.mrb[0].mxu0
    %v715 = vpop.f32.mrb[0].mxu0
    %v716 = vadd.f32 0.0, %v715
    %v717 = vpop.f32.mrb[0].mxu0
    %718 = vmatprep.mubr.bf16.mxu0 0
    %719 = vmatmul.mubr.bf16.gmra.mrb[0].mxu0 %v441
    %v720 = vpop.f32.mrb[0].mxu0
    %v721 = vadd.f32 0.0, %v720
    %v722 = vpop.f32.mrb[0].mxu0
    %v723 = vpop.f32.mrb[0].mxu0
    %v724 = vadd.f32 0.0, %v723
    %v725 = vpop.f32.mrb[0].mxu0
    %726 = vmatprep.mubr.bf16.mxu0 0
    %727 = vmatmul.mubr.bf16.gmra.mrb[0].mxu0 %v444
    %v728 = vpop.f32.mrb[0].mxu0
    %v729 = vadd.f32 0.0, %v728
    %v730 = vpop.f32.mrb[0].mxu0
    %v731 = vpop.f32.mrb[0].mxu0
    %v732 = vadd.f32 0.0, %v731
    %v733 = vpop.f32.mrb[0].mxu0
    %734 = vdwg.mxu0
    %v799 = vunpack.c.l.b16 %v41
    %v800 = vunpack.c.l.b16 %v42
    %v801 = vunpack.c.l.b16 %v43
    %v802 = vunpack.c.l.b16 %v44
    %v803 = vunpack.c.l.b16 %v45
    %v804 = vunpack.c.l.b16 %v46
    %v805 = vunpack.c.l.b16 %v47
    %v806 = vunpack.c.l.b16 %v48
    %v807 = vunpack.c.l.b16 %v49
    %v808 = vunpack.c.l.b16 %v50
    %v809 = vunpack.c.l.b16 %v51
    %v810 = vunpack.c.l.b16 %v52
    %v811 = vunpack.c.l.b16 %v53
    %v812 = vunpack.c.l.b16 %v54
    %v813 = vunpack.c.l.b16 %v55
    %v814 = vunpack.c.l.b16 %v56
    %v815 = vunpack.c.l.b16 %v57
    %v816 = vunpack.c.l.b16 %v58
    %v817 = vunpack.c.l.b16 %v59
    %v818 = vunpack.c.l.b16 %v60
    %v819 = vunpack.c.l.b16 %v61
    %v820 = vunpack.c.l.b16 %v62
    %v821 = vunpack.c.l.b16 %v63
    %v822 = vunpack.c.l.b16 %v64
    %v823 = vunpack.c.l.b16 %v65
    %v824 = vunpack.c.l.b16 %v66
    %v825 = vunpack.c.l.b16 %v67
    %v826 = vunpack.c.l.b16 %v68
    %v827 = vunpack.c.l.b16 %v69
    %v828 = vunpack.c.l.b16 %v70
    %v829 = vunpack.c.l.b16 %v71
    %v830 = vunpack.c.l.b16 %v72
    %v831 = vunpack.c.l.b16 %v73
    %v832 = vunpack.c.l.b16 %v74
    %v833 = vunpack.c.l.b16 %v75
    %v834 = vunpack.c.l.b16 %v76
    %v835 = vunpack.c.l.b16 %v77
    %v836 = vunpack.c.l.b16 %v78
    %v837 = vunpack.c.l.b16 %v79
    %v838 = vunpack.c.l.b16 %v80
    %v839 = vunpack.c.l.b16 %v81
    %v840 = vunpack.c.l.b16 %v82
    %v841 = vunpack.c.l.b16 %v83
    %v842 = vunpack.c.l.b16 %v84
    %v843 = vunpack.c.l.b16 %v85
    %v844 = vunpack.c.l.b16 %v86
    %v845 = vunpack.c.l.b16 %v87
    %v846 = vunpack.c.l.b16 %v88
    %v847 = vunpack.c.l.b16 %v89
    %v848 = vunpack.c.l.b16 %v90
    %v849 = vunpack.c.l.b16 %v91
    %v850 = vunpack.c.l.b16 %v92
    %v851 = vunpack.c.l.b16 %v93
    %v852 = vunpack.c.l.b16 %v94
    %v853 = vunpack.c.l.b16 %v95
    %v854 = vunpack.c.l.b16 %v96
    %v855 = vunpack.c.l.b16 %v97
    %v856 = vunpack.c.l.b16 %v98
    %v857 = vunpack.c.l.b16 %v99
    %v858 = vunpack.c.l.b16 %v100
    %v859 = vunpack.c.l.b16 %v101
    %v860 = vunpack.c.l.b16 %v102
    %v861 = vunpack.c.l.b16 %v103
    %v862 = vunpack.c.l.b16 %v104
    %v863 = vpack.c.b16 %v800, %v799
    %v864 = vpack.c.b16 %v802, %v801
    %v865 = vpack.c.b16 %v804, %v803
    %v866 = vpack.c.b16 %v806, %v805
    %v867 = vpack.c.b16 %v808, %v807
    %v868 = vpack.c.b16 %v810, %v809
    %v869 = vpack.c.b16 %v812, %v811
    %v870 = vpack.c.b16 %v814, %v813
    %v871 = vpack.c.b16 %v816, %v815
    %v872 = vpack.c.b16 %v818, %v817
    %v873 = vpack.c.b16 %v820, %v819
    %v874 = vpack.c.b16 %v822, %v821
    %v875 = vpack.c.b16 %v824, %v823
    %v876 = vpack.c.b16 %v826, %v825
    %v877 = vpack.c.b16 %v828, %v827
    %v878 = vpack.c.b16 %v830, %v829
    %v879 = vpack.c.b16 %v832, %v831
    %v880 = vpack.c.b16 %v834, %v833
    %v881 = vpack.c.b16 %v836, %v835
    %v882 = vpack.c.b16 %v838, %v837
    %v883 = vpack.c.b16 %v840, %v839
    %v884 = vpack.c.b16 %v842, %v841
    %v885 = vpack.c.b16 %v844, %v843
    %v886 = vpack.c.b16 %v846, %v845
    %v887 = vpack.c.b16 %v848, %v847
    %v888 = vpack.c.b16 %v850, %v849
    %v889 = vpack.c.b16 %v852, %v851
    %v890 = vpack.c.b16 %v854, %v853
    %v891 = vpack.c.b16 %v856, %v855
    %v892 = vpack.c.b16 %v858, %v857
    %v893 = vpack.c.b16 %v860, %v859
    %v894 = vpack.c.b16 %v862, %v861
    %v899 = vunpack.c.l.b16 %v169
    %v900 = vunpack.c.l.b16 %v170
    %v901 = vunpack.c.l.b16 %v171
    %v902 = vunpack.c.l.b16 %v172
    %v903 = vpack.c.b16 %v900, %v899
    %v904 = vpack.c.b16 %v902, %v901
    %v908 = vsel %vm349, %v863, 0
    %v911 = vsel %vm349, %v864, 0
    %v914 = vsel %vm349, %v865, 0
    %v917 = vsel %vm349, %v866, 0
    %v920 = vsel %vm349, %v867, 0
    %v923 = vsel %vm349, %v868, 0
    %v926 = vsel %vm349, %v869, 0
    %v929 = vsel %vm349, %v870, 0
    %v932 = vsel %vm349, %v871, 0
    %v935 = vsel %vm349, %v872, 0
    %v938 = vsel %vm349, %v873, 0
    %v941 = vsel %vm349, %v874, 0
    %v944 = vsel %vm349, %v875, 0
    %v947 = vsel %vm349, %v876, 0
    %v950 = vsel %vm349, %v877, 0
    %v953 = vsel %vm349, %v878, 0
    %v956 = vsel %vm349, %v879, 0
    %v959 = vsel %vm349, %v880, 0
    %v962 = vsel %vm349, %v881, 0
    %v965 = vsel %vm349, %v882, 0
    %v968 = vsel %vm349, %v883, 0
    %v971 = vsel %vm349, %v884, 0
    %v974 = vsel %vm349, %v885, 0
    %v977 = vsel %vm349, %v886, 0
    %v980 = vsel %vm349, %v887, 0
    %v983 = vsel %vm349, %v888, 0
    %v986 = vsel %vm349, %v889, 0
    %v989 = vsel %vm349, %v890, 0
    %v992 = vsel %vm349, %v891, 0
    %v995 = vsel %vm349, %v892, 0
    %v998 = vsel %vm349, %v893, 0
    %v1001 = vsel %vm349, %v894, 0
    %1003 = vmatprep.subr.bf16.mxu0 0
    %1004 = vmatpush1.bf16.msra.mxu0 %v903
    %1005 = vmatprep.subr.bf16.mxu0 0
    %1006 = vmatpush1.bf16.msra.mxu0 %v904
    %1007 = vmatprep.subr.bf16.mxu0 0
    %1008 = vmatpush1.bf16.msra.mxu0 0
    %1009 = vmatprep.subr.bf16.mxu0 0
    %1010 = vmatpush1.bf16.msra.mxu0 0
    %1011 = vmatprep.subr.bf16.mxu0 0
    %1012 = vmatpush1.bf16.msra.mxu0 0
    %1013 = vmatprep.subr.bf16.mxu0 0
    %1014 = vmatpush1.bf16.msra.mxu0 0
    %1015 = vmatprep.subr.bf16.mxu0 0
    %1016 = vmatpush1.bf16.msra.mxu0 0
    %1017 = vmatprep.subr.bf16.mxu0 0
    %1018 = vmatpush1.bf16.msra.mxu0 0
    %1019 = vmatprep.subr.bf16.mxu0 0
    %1020 = vmatpush1.bf16.msra.mxu0 0
    %1021 = vmatprep.subr.bf16.mxu0 0
    %1022 = vmatpush1.bf16.msra.mxu0 0
    %1023 = vmatprep.subr.bf16.mxu0 0
    %1024 = vmatpush1.bf16.msra.mxu0 0
    %1025 = vmatprep.subr.bf16.mxu0 0
    %1026 = vmatpush1.bf16.msra.mxu0 0
    %1027 = vmatprep.subr.bf16.mxu0 0
    %1028 = vmatpush1.bf16.msra.mxu0 0
    %1029 = vmatprep.subr.bf16.mxu0 0
    %1030 = vmatpush1.bf16.msra.mxu0 0
    %1031 = vmatprep.subr.bf16.mxu0 0
    %1032 = vmatpush1.bf16.msra.mxu0 0
    %1033 = vmatprep.subr.bf16.mxu0 0
    %1034 = vmatpush1.bf16.msra.mxu0 0
    %1035 = vmatprep.mubr.bf16.mxu0 0
    %1036 = vmatmul.mubr.bf16.gmra.mrb[0].mxu0 %v908
    %v1037 = vpop.f32.mrb[0].mxu0
    %v1038 = vadd.f32 %v481, %v1037
    %v1039 = vpop.f32.mrb[0].mxu0
    %v1040 = vpop.f32.mrb[0].mxu0
    %v1041 = vadd.f32 %v484, %v1040
    %v1042 = vpop.f32.mrb[0].mxu0
    %1043 = vmatprep.mubr.bf16.mxu0 0
    %1044 = vmatmul.mubr.bf16.gmra.mrb[0].mxu0 %v911
    %v1045 = vpop.f32.mrb[0].mxu0
    %v1046 = vadd.f32 %v489, %v1045
    %v1047 = vpop.f32.mrb[0].mxu0
    %v1048 = vpop.f32.mrb[0].mxu0
    %v1049 = vadd.f32 %v492, %v1048
    %v1050 = vpop.f32.mrb[0].mxu0
    %1051 = vmatprep.mubr.bf16.mxu0 0
    %1052 = vmatmul.mubr.bf16.gmra.mrb[0].mxu0 %v914
    %v1053 = vpop.f32.mrb[0].mxu0
    %v1054 = vadd.f32 %v497, %v1053
    %v1055 = vpop.f32.mrb[0].mxu0
    %v1056 = vpop.f32.mrb[0].mxu0
    %v1057 = vadd.f32 %v500, %v1056
    %v1058 = vpop.f32.mrb[0].mxu0
    %1059 = vmatprep.mubr.bf16.mxu0 0
    %1060 = vmatmul.mubr.bf16.gmra.mrb[0].mxu0 %v917
    %v1061 = vpop.f32.mrb[0].mxu0
    %v1062 = vadd.f32 %v505, %v1061
    %v1063 = vpop.f32.mrb[0].mxu0
    %v1064 = vpop.f32.mrb[0].mxu0
    %v1065 = vadd.f32 %v508, %v1064
    %v1066 = vpop.f32.mrb[0].mxu0
    %1067 = vmatprep.mubr.bf16.mxu0 0
    %1068 = vmatmul.mubr.bf16.gmra.mrb[0].mxu0 %v920
    %v1069 = vpop.f32.mrb[0].mxu0
    %v1070 = vadd.f32 %v513, %v1069
    %v1071 = vpop.f32.mrb[0].mxu0
    %v1072 = vpop.f32.mrb[0].mxu0
    %v1073 = vadd.f32 %v516, %v1072
    %v1074 = vpop.f32.mrb[0].mxu0
    %1075 = vmatprep.mubr.bf16.mxu0 0
    %1076 = vmatmul.mubr.bf16.gmra.mrb[0].mxu0 %v923
    %v1077 = vpop.f32.mrb[0].mxu0
    %v1078 = vadd.f32 %v521, %v1077
    %v1079 = vpop.f32.mrb[0].mxu0
    %v1080 = vpop.f32.mrb[0].mxu0
    %v1081 = vadd.f32 %v524, %v1080
    %v1082 = vpop.f32.mrb[0].mxu0
    %1083 = vmatprep.mubr.bf16.mxu0 0
    %1084 = vmatmul.mubr.bf16.gmra.mrb[0].mxu0 %v926
    %v1085 = vpop.f32.mrb[0].mxu0
    %v1086 = vadd.f32 %v529, %v1085
    %v1087 = vpop.f32.mrb[0].mxu0
    %v1088 = vpop.f32.mrb[0].mxu0
    %v1089 = vadd.f32 %v532, %v1088
    %v1090 = vpop.f32.mrb[0].mxu0
    %1091 = vmatprep.mubr.bf16.mxu0 0
    %1092 = vmatmul.mubr.bf16.gmra.mrb[0].mxu0 %v929
    %v1093 = vpop.f32.mrb[0].mxu0
    %v1094 = vadd.f32 %v537, %v1093
    %v1095 = vpop.f32.mrb[0].mxu0
    %v1096 = vpop.f32.mrb[0].mxu0
    %v1097 = vadd.f32 %v540, %v1096
    %v1098 = vpop.f32.mrb[0].mxu0
    %1099 = vmatprep.mubr.bf16.mxu0 0
    %1100 = vmatmul.mubr.bf16.gmra.mrb[0].mxu0 %v932
    %v1101 = vpop.f32.mrb[0].mxu0
    %v1102 = vadd.f32 %v545, %v1101
    %v1103 = vpop.f32.mrb[0].mxu0
    %v1104 = vpop.f32.mrb[0].mxu0
    %v1105 = vadd.f32 %v548, %v1104
    %v1106 = vpop.f32.mrb[0].mxu0
    %1107 = vmatprep.mubr.bf16.mxu0 0
    %1108 = vmatmul.mubr.bf16.gmra.mrb[0].mxu0 %v935
    %v1109 = vpop.f32.mrb[0].mxu0
    %v1110 = vadd.f32 %v553, %v1109
    %v1111 = vpop.f32.mrb[0].mxu0
    %v1112 = vpop.f32.mrb[0].mxu0
    %v1113 = vadd.f32 %v556, %v1112
    %v1114 = vpop.f32.mrb[0].mxu0
    %1115 = vmatprep.mubr.bf16.mxu0 0
    %1116 = vmatmul.mubr.bf16.gmra.mrb[0].mxu0 %v938
    %v1117 = vpop.f32.mrb[0].mxu0
    %v1118 = vadd.f32 %v561, %v1117
    %v1119 = vpop.f32.mrb[0].mxu0
    %v1120 = vpop.f32.mrb[0].mxu0
    %v1121 = vadd.f32 %v564, %v1120
    %v1122 = vpop.f32.mrb[0].mxu0
    %1123 = vmatprep.mubr.bf16.mxu0 0
    %1124 = vmatmul.mubr.bf16.gmra.mrb[0].mxu0 %v941
    %v1125 = vpop.f32.mrb[0].mxu0
    %v1126 = vadd.f32 %v569, %v1125
    %v1127 = vpop.f32.mrb[0].mxu0
    %v1128 = vpop.f32.mrb[0].mxu0
    %v1129 = vadd.f32 %v572, %v1128
    %v1130 = vpop.f32.mrb[0].mxu0
    %1131 = vmatprep.mubr.bf16.mxu0 0
    %1132 = vmatmul.mubr.bf16.gmra.mrb[0].mxu0 %v944
    %v1133 = vpop.f32.mrb[0].mxu0
    %v1134 = vadd.f32 %v577, %v1133
    %v1135 = vpop.f32.mrb[0].mxu0
    %v1136 = vpop.f32.mrb[0].mxu0
    %v1137 = vadd.f32 %v580, %v1136
    %v1138 = vpop.f32.mrb[0].mxu0
    %1139 = vmatprep.mubr.bf16.mxu0 0
    %1140 = vmatmul.mubr.bf16.gmra.mrb[0].mxu0 %v947
    %v1141 = vpop.f32.mrb[0].mxu0
    %v1142 = vadd.f32 %v585, %v1141
    %v1143 = vpop.f32.mrb[0].mxu0
    %v1144 = vpop.f32.mrb[0].mxu0
    %v1145 = vadd.f32 %v588, %v1144
    %v1146 = vpop.f32.mrb[0].mxu0
    %1147 = vmatprep.mubr.bf16.mxu0 0
    %1148 = vmatmul.mubr.bf16.gmra.mrb[0].mxu0 %v950
    %v1149 = vpop.f32.mrb[0].mxu0
    %v1150 = vadd.f32 %v593, %v1149
    %v1151 = vpop.f32.mrb[0].mxu0
    %v1152 = vpop.f32.mrb[0].mxu0
    %v1153 = vadd.f32 %v596, %v1152
    %v1154 = vpop.f32.mrb[0].mxu0
    %1155 = vmatprep.mubr.bf16.mxu0 0
    %1156 = vmatmul.mubr.bf16.gmra.mrb[0].mxu0 %v953
    %v1157 = vpop.f32.mrb[0].mxu0
    %v1158 = vadd.f32 %v601, %v1157
    %v1159 = vpop.f32.mrb[0].mxu0
    %v1160 = vpop.f32.mrb[0].mxu0
    %v1161 = vadd.f32 %v604, %v1160
    %v1162 = vpop.f32.mrb[0].mxu0
    %1163 = vmatprep.mubr.bf16.mxu0 0
    %1164 = vmatmul.mubr.bf16.gmra.mrb[0].mxu0 %v956
    %v1165 = vpop.f32.mrb[0].mxu0
    %v1166 = vadd.f32 %v609, %v1165
    %v1167 = vpop.f32.mrb[0].mxu0
    %v1168 = vpop.f32.mrb[0].mxu0
    %v1169 = vadd.f32 %v612, %v1168
    %v1170 = vpop.f32.mrb[0].mxu0
    %1171 = vmatprep.mubr.bf16.mxu0 0
    %1172 = vmatmul.mubr.bf16.gmra.mrb[0].mxu0 %v959
    %v1173 = vpop.f32.mrb[0].mxu0
    %v1174 = vadd.f32 %v617, %v1173
    %v1175 = vpop.f32.mrb[0].mxu0
    %v1176 = vpop.f32.mrb[0].mxu0
    %v1177 = vadd.f32 %v620, %v1176
    %v1178 = vpop.f32.mrb[0].mxu0
    %1179 = vmatprep.mubr.bf16.mxu0 0
    %1180 = vmatmul.mubr.bf16.gmra.mrb[0].mxu0 %v962
    %v1181 = vpop.f32.mrb[0].mxu0
    %v1182 = vadd.f32 %v625, %v1181
    %v1183 = vpop.f32.mrb[0].mxu0
    %v1184 = vpop.f32.mrb[0].mxu0
    %v1185 = vadd.f32 %v628, %v1184
    %v1186 = vpop.f32.mrb[0].mxu0
    %1187 = vmatprep.mubr.bf16.mxu0 0
    %1188 = vmatmul.mubr.bf16.gmra.mrb[0].mxu0 %v965
    %v1189 = vpop.f32.mrb[0].mxu0
    %v1190 = vadd.f32 %v633, %v1189
    %v1191 = vpop.f32.mrb[0].mxu0
    %v1192 = vpop.f32.mrb[0].mxu0
    %v1193 = vadd.f32 %v636, %v1192
    %v1194 = vpop.f32.mrb[0].mxu0
    %1195 = vmatprep.mubr.bf16.mxu0 0
    %1196 = vmatmul.mubr.bf16.gmra.mrb[0].mxu0 %v968
    %v1197 = vpop.f32.mrb[0].mxu0
    %v1198 = vadd.f32 %v641, %v1197
    %v1199 = vpop.f32.mrb[0].mxu0
    %v1200 = vpop.f32.mrb[0].mxu0
    %v1201 = vadd.f32 %v644, %v1200
    %v1202 = vpop.f32.mrb[0].mxu0
    %1203 = vmatprep.mubr.bf16.mxu0 0
    %1204 = vmatmul.mubr.bf16.gmra.mrb[0].mxu0 %v971
    %v1205 = vpop.f32.mrb[0].mxu0
    %v1206 = vadd.f32 %v649, %v1205
    %v1207 = vpop.f32.mrb[0].mxu0
    %v1208 = vpop.f32.mrb[0].mxu0
    %v1209 = vadd.f32 %v652, %v1208
    %v1210 = vpop.f32.mrb[0].mxu0
    %1211 = vmatprep.mubr.bf16.mxu0 0
    %1212 = vmatmul.mubr.bf16.gmra.mrb[0].mxu0 %v974
    %v1213 = vpop.f32.mrb[0].mxu0
    %v1214 = vadd.f32 %v657, %v1213
    %v1215 = vpop.f32.mrb[0].mxu0
    %v1216 = vpop.f32.mrb[0].mxu0
    %v1217 = vadd.f32 %v660, %v1216
    %v1218 = vpop.f32.mrb[0].mxu0
    %1219 = vmatprep.mubr.bf16.mxu0 0
    %1220 = vmatmul.mubr.bf16.gmra.mrb[0].mxu0 %v977
    %v1221 = vpop.f32.mrb[0].mxu0
    %v1222 = vadd.f32 %v665, %v1221
    %v1223 = vpop.f32.mrb[0].mxu0
    %v1224 = vpop.f32.mrb[0].mxu0
    %v1225 = vadd.f32 %v668, %v1224
    %v1226 = vpop.f32.mrb[0].mxu0
    %1227 = vmatprep.mubr.bf16.mxu0 0
    %1228 = vmatmul.mubr.bf16.gmra.mrb[0].mxu0 %v980
    %v1229 = vpop.f32.mrb[0].mxu0
    %v1230 = vadd.f32 %v673, %v1229
    %v1231 = vpop.f32.mrb[0].mxu0
    %v1232 = vpop.f32.mrb[0].mxu0
    %v1233 = vadd.f32 %v676, %v1232
    %v1234 = vpop.f32.mrb[0].mxu0
    %1235 = vmatprep.mubr.bf16.mxu0 0
    %1236 = vmatmul.mubr.bf16.gmra.mrb[0].mxu0 %v983
    %v1237 = vpop.f32.mrb[0].mxu0
    %v1238 = vadd.f32 %v681, %v1237
    %v1239 = vpop.f32.mrb[0].mxu0
    %v1240 = vpop.f32.mrb[0].mxu0
    %v1241 = vadd.f32 %v684, %v1240
    %v1242 = vpop.f32.mrb[0].mxu0
    %1243 = vmatprep.mubr.bf16.mxu0 0
    %1244 = vmatmul.mubr.bf16.gmra.mrb[0].mxu0 %v986
    %v1245 = vpop.f32.mrb[0].mxu0
    %v1246 = vadd.f32 %v689, %v1245
    %v1247 = vpop.f32.mrb[0].mxu0
    %v1248 = vpop.f32.mrb[0].mxu0
    %v1249 = vadd.f32 %v692, %v1248
    %v1250 = vpop.f32.mrb[0].mxu0
    %1251 = vmatprep.mubr.bf16.mxu0 0
    %1252 = vmatmul.mubr.bf16.gmra.mrb[0].mxu0 %v989
    %v1253 = vpop.f32.mrb[0].mxu0
    %v1254 = vadd.f32 %v697, %v1253
    %v1255 = vpop.f32.mrb[0].mxu0
    %v1256 = vpop.f32.mrb[0].mxu0
    %v1257 = vadd.f32 %v700, %v1256
    %v1258 = vpop.f32.mrb[0].mxu0
    %1259 = vmatprep.mubr.bf16.mxu0 0
    %1260 = vmatmul.mubr.bf16.gmra.mrb[0].mxu0 %v992
    %v1261 = vpop.f32.mrb[0].mxu0
    %v1262 = vadd.f32 %v705, %v1261
    %v1263 = vpop.f32.mrb[0].mxu0
    %v1264 = vpop.f32.mrb[0].mxu0
    %v1265 = vadd.f32 %v708, %v1264
    %v1266 = vpop.f32.mrb[0].mxu0
    %1267 = vmatprep.mubr.bf16.mxu0 0
    %1268 = vmatmul.mubr.bf16.gmra.mrb[0].mxu0 %v995
    %v1269 = vpop.f32.mrb[0].mxu0
    %v1270 = vadd.f32 %v713, %v1269
    %v1271 = vpop.f32.mrb[0].mxu0
    %v1272 = vpop.f32.mrb[0].mxu0
    %v1273 = vadd.f32 %v716, %v1272
    %v1274 = vpop.f32.mrb[0].mxu0
    %1275 = vmatprep.mubr.bf16.mxu0 0
    %1276 = vmatmul.mubr.bf16.gmra.mrb[0].mxu0 %v998
    %v1277 = vpop.f32.mrb[0].mxu0
    %v1278 = vadd.f32 %v721, %v1277
    %v1279 = vpop.f32.mrb[0].mxu0
    %v1280 = vpop.f32.mrb[0].mxu0
    %v1281 = vadd.f32 %v724, %v1280
    %v1282 = vpop.f32.mrb[0].mxu0
    %1283 = vmatprep.mubr.bf16.mxu0 0
    %1284 = vmatmul.mubr.bf16.gmra.mrb[0].mxu0 %v1001
    %v1285 = vpop.f32.mrb[0].mxu0
    %v1286 = vadd.f32 %v729, %v1285
    %v1287 = vpop.f32.mrb[0].mxu0
    %v1288 = vpop.f32.mrb[0].mxu0
    %v1289 = vadd.f32 %v732, %v1288
    %v1290 = vpop.f32.mrb[0].mxu0
    %1291 = vdwg.mxu0
    %v1292 = vld [vmem:[%s4] sm:$0x1]
    %v1294 = vlaneseq
    %v1295 = vshrl.u32 %v1294, 7
    %v1296 = vsub.s32 0, %v1295
    %v1297 = vrot.slane %v1292, %v1296
    %v1299 = vadd.f32 %v1038, %v1297
    %v1300 = vadd.f32 %v1041, %v1297
    %v1301 = vadd.f32 %v1046, %v1297
    %v1302 = vadd.f32 %v1049, %v1297
    %v1303 = vadd.f32 %v1054, %v1297
    %v1304 = vadd.f32 %v1057, %v1297
    %v1305 = vadd.f32 %v1062, %v1297
    %v1306 = vadd.f32 %v1065, %v1297
    %v1307 = vadd.f32 %v1070, %v1297
    %v1308 = vadd.f32 %v1073, %v1297
    %v1309 = vadd.f32 %v1078, %v1297
    %v1310 = vadd.f32 %v1081, %v1297
    %v1311 = vadd.f32 %v1086, %v1297
    %v1312 = vadd.f32 %v1089, %v1297
    %v1313 = vadd.f32 %v1094, %v1297
    %v1314 = vadd.f32 %v1097, %v1297
    %v1315 = vadd.f32 %v1102, %v1297
    %v1316 = vadd.f32 %v1105, %v1297
    %v1317 = vadd.f32 %v1110, %v1297
    %v1318 = vadd.f32 %v1113, %v1297
    %v1319 = vadd.f32 %v1118, %v1297
    %v1320 = vadd.f32 %v1121, %v1297
    %v1321 = vadd.f32 %v1126, %v1297
    %v1322 = vadd.f32 %v1129, %v1297
    %v1323 = vadd.f32 %v1134, %v1297
    %v1324 = vadd.f32 %v1137, %v1297
    %v1325 = vadd.f32 %v1142, %v1297
    %v1326 = vadd.f32 %v1145, %v1297
    %v1327 = vadd.f32 %v1150, %v1297
    %v1328 = vadd.f32 %v1153, %v1297
    %v1329 = vadd.f32 %v1158, %v1297
    %v1330 = vadd.f32 %v1161, %v1297
    %v1331 = vadd.f32 %v1166, %v1297
    %v1332 = vadd.f32 %v1169, %v1297
    %v1333 = vadd.f32 %v1174, %v1297
    %v1334 = vadd.f32 %v1177, %v1297
    %v1335 = vadd.f32 %v1182, %v1297
    %v1336 = vadd.f32 %v1185, %v1297
    %v1337 = vadd.f32 %v1190, %v1297
    %v1338 = vadd.f32 %v1193, %v1297
    %v1339 = vadd.f32 %v1198, %v1297
    %v1340 = vadd.f32 %v1201, %v1297
    %v1341 = vadd.f32 %v1206, %v1297
    %v1342 = vadd.f32 %v1209, %v1297
    %v1343 = vadd.f32 %v1214, %v1297
    %v1344 = vadd.f32 %v1217, %v1297
    %v1345 = vadd.f32 %v1222, %v1297
    %v1346 = vadd.f32 %v1225, %v1297
    %v1347 = vadd.f32 %v1230, %v1297
    %v1348 = vadd.f32 %v1233, %v1297
    %v1349 = vadd.f32 %v1238, %v1297
    %v1350 = vadd.f32 %v1241, %v1297
    %v1351 = vadd.f32 %v1246, %v1297
    %v1352 = vadd.f32 %v1249, %v1297
    %v1353 = vadd.f32 %v1254, %v1297
    %v1354 = vadd.f32 %v1257, %v1297
    %v1355 = vadd.f32 %v1262, %v1297
    %v1356 = vadd.f32 %v1265, %v1297
    %v1357 = vadd.f32 %v1270, %v1297
    %v1358 = vadd.f32 %v1273, %v1297
    %v1359 = vadd.f32 %v1278, %v1297
    %v1360 = vadd.f32 %v1281, %v1297
    %v1361 = vadd.f32 %v1286, %v1297
    %v1362 = vadd.f32 %v1289, %v1297
    %v1363 = vmax.f32 %v1299, 0.0
    %v1364 = vmax.f32 %v1300, 0.0
    %v1365 = vmax.f32 %v1301, 0.0
    %v1366 = vmax.f32 %v1302, 0.0
    %v1367 = vmax.f32 %v1303, 0.0
    %v1368 = vmax.f32 %v1304, 0.0
    %v1369 = vmax.f32 %v1305, 0.0
    %v1370 = vmax.f32 %v1306, 0.0
    %v1371 = vmax.f32 %v1307, 0.0
    %v1372 = vmax.f32 %v1308, 0.0
    %v1373 = vmax.f32 %v1309, 0.0
    %v1374 = vmax.f32 %v1310, 0.0
    %v1375 = vmax.f32 %v1311, 0.0
    %v1376 = vmax.f32 %v1312, 0.0
    %v1377 = vmax.f32 %v1313, 0.0
    %v1378 = vmax.f32 %v1314, 0.0
    %v1379 = vmax.f32 %v1315, 0.0
    %v1380 = vmax.f32 %v1316, 0.0
    %v1381 = vmax.f32 %v1317, 0.0
    %v1382 = vmax.f32 %v1318, 0.0
    %v1383 = vmax.f32 %v1319, 0.0
    %v1384 = vmax.f32 %v1320, 0.0
    %v1385 = vmax.f32 %v1321, 0.0
    %v1386 = vmax.f32 %v1322, 0.0
    %v1387 = vmax.f32 %v1323, 0.0
    %v1388 = vmax.f32 %v1324, 0.0
    %v1389 = vmax.f32 %v1325, 0.0
    %v1390 = vmax.f32 %v1326, 0.0
    %v1391 = vmax.f32 %v1327, 0.0
    %v1392 = vmax.f32 %v1328, 0.0
    %v1393 = vmax.f32 %v1329, 0.0
    %v1394 = vmax.f32 %v1330, 0.0
    %v1395 = vmax.f32 %v1331, 0.0
    %v1396 = vmax.f32 %v1332, 0.0
    %v1397 = vmax.f32 %v1333, 0.0
    %v1398 = vmax.f32 %v1334, 0.0
    %v1399 = vmax.f32 %v1335, 0.0
    %v1400 = vmax.f32 %v1336, 0.0
    %v1401 = vmax.f32 %v1337, 0.0
    %v1402 = vmax.f32 %v1338, 0.0
    %v1403 = vmax.f32 %v1339, 0.0
    %v1404 = vmax.f32 %v1340, 0.0
    %v1405 = vmax.f32 %v1341, 0.0
    %v1406 = vmax.f32 %v1342, 0.0
    %v1407 = vmax.f32 %v1343, 0.0
    %v1408 = vmax.f32 %v1344, 0.0
    %v1409 = vmax.f32 %v1345, 0.0
    %v1410 = vmax.f32 %v1346, 0.0
    %v1411 = vmax.f32 %v1347, 0.0
    %v1412 = vmax.f32 %v1348, 0.0
    %v1413 = vmax.f32 %v1349, 0.0
    %v1414 = vmax.f32 %v1350, 0.0
    %v1415 = vmax.f32 %v1351, 0.0
    %v1416 = vmax.f32 %v1352, 0.0
    %v1417 = vmax.f32 %v1353, 0.0
    %v1418 = vmax.f32 %v1354, 0.0
    %v1419 = vmax.f32 %v1355, 0.0
    %v1420 = vmax.f32 %v1356, 0.0
    %v1421 = vmax.f32 %v1357, 0.0
    %v1422 = vmax.f32 %v1358, 0.0
    %v1423 = vmax.f32 %v1359, 0.0
    %v1424 = vmax.f32 %v1360, 0.0
    %v1425 = vmax.f32 %v1361, 0.0
    %v1426 = vmax.f32 %v1362, 0.0
    %v1427 = vpack.c.bf16 %v1364, %v1363
    %v1428 = vpack.c.bf16 %v1366, %v1365
    %v1429 = vpack.c.bf16 %v1368, %v1367
    %v1430 = vpack.c.bf16 %v1370, %v1369
    %v1431 = vpack.c.bf16 %v1372, %v1371
    %v1432 = vpack.c.bf16 %v1374, %v1373
    %v1433 = vpack.c.bf16 %v1376, %v1375
    %v1434 = vpack.c.bf16 %v1378, %v1377
    %v1435 = vpack.c.bf16 %v1380, %v1379
    %v1436 = vpack.c.bf16 %v1382, %v1381
    %v1437 = vpack.c.bf16 %v1384, %v1383
    %v1438 = vpack.c.bf16 %v1386, %v1385
    %v1439 = vpack.c.bf16 %v1388, %v1387
    %v1440 = vpack.c.bf16 %v1390, %v1389
    %v1441 = vpack.c.bf16 %v1392, %v1391
    %v1442 = vpack.c.bf16 %v1394, %v1393
    %v1443 = vpack.c.bf16 %v1396, %v1395
    %v1444 = vpack.c.bf16 %v1398, %v1397
    %v1445 = vpack.c.bf16 %v1400, %v1399
    %v1446 = vpack.c.bf16 %v1402, %v1401
    %v1447 = vpack.c.bf16 %v1404, %v1403
    %v1448 = vpack.c.bf16 %v1406, %v1405
    %v1449 = vpack.c.bf16 %v1408, %v1407
    %v1450 = vpack.c.bf16 %v1410, %v1409
    %v1451 = vpack.c.bf16 %v1412, %v1411
    %v1452 = vpack.c.bf16 %v1414, %v1413
    %v1453 = vpack.c.bf16 %v1416, %v1415
    %v1454 = vpack.c.bf16 %v1418, %v1417
    %v1455 = vpack.c.bf16 %v1420, %v1419
    %v1456 = vpack.c.bf16 %v1422, %v1421
    %v1457 = vpack.c.bf16 %v1424, %v1423
    %v1458 = vpack.c.bf16 %v1426, %v1425
    %v1459 = vld [vmem:[%s5] sm:$0xf]
    %v1460 = vld [vmem:[%s5 + $0x4] sm:$0xf]
    %v1461 = vld [vmem:[%s5 + $0x8] sm:$0xf]
    %v1462 = vld [vmem:[%s5 + $0xc] sm:$0xf]
    %v1463 = vld [vmem:[%s6] sm:$0x1]
    %v1465 = vlaneseq
    %v1466 = vshrl.u32 %v1465, 7
    %v1467 = vsub.s32 0, %v1466
    %v1468 = vrot.slane %v1463, %v1467
    %v1474 = vunpack.c.l.b16 %v1459
    %v1475 = vunpack.c.l.b16 %v1460
    %v1476 = vunpack.c.l.b16 %v1461
    %v1477 = vunpack.c.l.b16 %v1462
    %v1478 = vpack.c.b16 %v1475, %v1474
    %v1479 = vpack.c.b16 %v1477, %v1476
    %v1483 = vsel %vm349, %v1427, 0
    %v1486 = vsel %vm349, %v1428, 0
    %v1489 = vsel %vm349, %v1429, 0
    %v1492 = vsel %vm349, %v1430, 0
    %v1495 = vsel %vm349, %v1431, 0
    %v1498 = vsel %vm349, %v1432, 0
    %v1501 = vsel %vm349, %v1433, 0
    %v1504 = vsel %vm349, %v1434, 0
    %v1507 = vsel %vm349, %v1435, 0
    %v1510 = vsel %vm349, %v1436, 0
    %v1513 = vsel %vm349, %v1437, 0
    %v1516 = vsel %vm349, %v1438, 0
    %v1519 = vsel %vm349, %v1439, 0
    %v1522 = vsel %vm349, %v1440, 0
    %v1525 = vsel %vm349, %v1441, 0
    %v1528 = vsel %vm349, %v1442, 0
    %v1531 = vsel %vm349, %v1443, 0
    %v1534 = vsel %vm349, %v1444, 0
    %v1537 = vsel %vm349, %v1445, 0
    %v1540 = vsel %vm349, %v1446, 0
    %v1543 = vsel %vm349, %v1447, 0
    %v1546 = vsel %vm349, %v1448, 0
    %v1549 = vsel %vm349, %v1449, 0
    %v1552 = vsel %vm349, %v1450, 0
    %v1555 = vsel %vm349, %v1451, 0
    %v1558 = vsel %vm349, %v1452, 0
    %v1561 = vsel %vm349, %v1453, 0
    %v1564 = vsel %vm349, %v1454, 0
    %v1567 = vsel %vm349, %v1455, 0
    %v1570 = vsel %vm349, %v1456, 0
    %v1573 = vsel %vm349, %v1457, 0
    %v1576 = vsel %vm349, %v1458, 0
    %1578 = vmatprep.subr.bf16.mxu0 0
    %1579 = vmatpush1.bf16.msra.mxu0 %v1478
    %1580 = vmatprep.subr.bf16.mxu0 0
    %1581 = vmatpush1.bf16.msra.mxu0 %v1479
    %1582 = vmatprep.subr.bf16.mxu0 0
    %1583 = vmatpush1.bf16.msra.mxu0 0
    %1584 = vmatprep.subr.bf16.mxu0 0
    %1585 = vmatpush1.bf16.msra.mxu0 0
    %1586 = vmatprep.subr.bf16.mxu0 0
    %1587 = vmatpush1.bf16.msra.mxu0 0
    %1588 = vmatprep.subr.bf16.mxu0 0
    %1589 = vmatpush1.bf16.msra.mxu0 0
    %1590 = vmatprep.subr.bf16.mxu0 0
    %1591 = vmatpush1.bf16.msra.mxu0 0
    %1592 = vmatprep.subr.bf16.mxu0 0
    %1593 = vmatpush1.bf16.msra.mxu0 0
    %1594 = vmatprep.subr.bf16.mxu0 0
    %1595 = vmatpush1.bf16.msra.mxu0 0
    %1596 = vmatprep.subr.bf16.mxu0 0
    %1597 = vmatpush1.bf16.msra.mxu0 0
    %1598 = vmatprep.subr.bf16.mxu0 0
    %1599 = vmatpush1.bf16.msra.mxu0 0
    %1600 = vmatprep.subr.bf16.mxu0 0
    %1601 = vmatpush1.bf16.msra.mxu0 0
    %1602 = vmatprep.subr.bf16.mxu0 0
    %1603 = vmatpush1.bf16.msra.mxu0 0
    %1604 = vmatprep.subr.bf16.mxu0 0
    %1605 = vmatpush1.bf16.msra.mxu0 0
    %1606 = vmatprep.subr.bf16.mxu0 0
    %1607 = vmatpush1.bf16.msra.mxu0 0
    %1608 = vmatprep.subr.bf16.mxu0 0
    %1609 = vmatpush1.bf16.msra.mxu0 0
    %1610 = vmatprep.mubr.bf16.mxu0 0
    %1611 = vmatmul.mubr.bf16.gmra.mrb[0].mxu0 %v1483
    %v1612 = vpop.f32.mrb[0].mxu0
    %v1613 = vadd.f32 %v1468, %v1612
    %v1614 = vpop.f32.mrb[0].mxu0
    %v1615 = vpop.f32.mrb[0].mxu0
    %v1616 = vadd.f32 %v1468, %v1615
    %v1617 = vpop.f32.mrb[0].mxu0
    %1618 = vmatprep.mubr.bf16.mxu0 0
    %1619 = vmatmul.mubr.bf16.gmra.mrb[0].mxu0 %v1486
    %v1620 = vpop.f32.mrb[0].mxu0
    %v1621 = vadd.f32 %v1468, %v1620
    %v1622 = vpop.f32.mrb[0].mxu0
    %v1623 = vpop.f32.mrb[0].mxu0
    %v1624 = vadd.f32 %v1468, %v1623
    %v1625 = vpop.f32.mrb[0].mxu0
    %1626 = vmatprep.mubr.bf16.mxu0 0
    %1627 = vmatmul.mubr.bf16.gmra.mrb[0].mxu0 %v1489
    %v1628 = vpop.f32.mrb[0].mxu0
    %v1629 = vadd.f32 %v1468, %v1628
    %v1630 = vpop.f32.mrb[0].mxu0
    %v1631 = vpop.f32.mrb[0].mxu0
    %v1632 = vadd.f32 %v1468, %v1631
    %v1633 = vpop.f32.mrb[0].mxu0
    %1634 = vmatprep.mubr.bf16.mxu0 0
    %1635 = vmatmul.mubr.bf16.gmra.mrb[0].mxu0 %v1492
    %v1636 = vpop.f32.mrb[0].mxu0
    %v1637 = vadd.f32 %v1468, %v1636
    %v1638 = vpop.f32.mrb[0].mxu0
    %v1639 = vpop.f32.mrb[0].mxu0
    %v1640 = vadd.f32 %v1468, %v1639
    %v1641 = vpop.f32.mrb[0].mxu0
    %1642 = vmatprep.mubr.bf16.mxu0 0
    %1643 = vmatmul.mubr.bf16.gmra.mrb[0].mxu0 %v1495
    %v1644 = vpop.f32.mrb[0].mxu0
    %v1645 = vadd.f32 %v1468, %v1644
    %v1646 = vpop.f32.mrb[0].mxu0
    %v1647 = vpop.f32.mrb[0].mxu0
    %v1648 = vadd.f32 %v1468, %v1647
    %v1649 = vpop.f32.mrb[0].mxu0
    %1650 = vmatprep.mubr.bf16.mxu0 0
    %1651 = vmatmul.mubr.bf16.gmra.mrb[0].mxu0 %v1498
    %v1652 = vpop.f32.mrb[0].mxu0
    %v1653 = vadd.f32 %v1468, %v1652
    %v1654 = vpop.f32.mrb[0].mxu0
    %v1655 = vpop.f32.mrb[0].mxu0
    %v1656 = vadd.f32 %v1468, %v1655
    %v1657 = vpop.f32.mrb[0].mxu0
    %1658 = vmatprep.mubr.bf16.mxu0 0
    %1659 = vmatmul.mubr.bf16.gmra.mrb[0].mxu0 %v1501
    %v1660 = vpop.f32.mrb[0].mxu0
    %v1661 = vadd.f32 %v1468, %v1660
    %v1662 = vpop.f32.mrb[0].mxu0
    %v1663 = vpop.f32.mrb[0].mxu0
    %v1664 = vadd.f32 %v1468, %v1663
    %v1665 = vpop.f32.mrb[0].mxu0
    %1666 = vmatprep.mubr.bf16.mxu0 0
    %1667 = vmatmul.mubr.bf16.gmra.mrb[0].mxu0 %v1504
    %v1668 = vpop.f32.mrb[0].mxu0
    %v1669 = vadd.f32 %v1468, %v1668
    %v1670 = vpop.f32.mrb[0].mxu0
    %v1671 = vpop.f32.mrb[0].mxu0
    %v1672 = vadd.f32 %v1468, %v1671
    %v1673 = vpop.f32.mrb[0].mxu0
    %1674 = vmatprep.mubr.bf16.mxu0 0
    %1675 = vmatmul.mubr.bf16.gmra.mrb[0].mxu0 %v1507
    %v1676 = vpop.f32.mrb[0].mxu0
    %v1677 = vadd.f32 %v1468, %v1676
    %v1678 = vpop.f32.mrb[0].mxu0
    %v1679 = vpop.f32.mrb[0].mxu0
    %v1680 = vadd.f32 %v1468, %v1679
    %v1681 = vpop.f32.mrb[0].mxu0
    %1682 = vmatprep.mubr.bf16.mxu0 0
    %1683 = vmatmul.mubr.bf16.gmra.mrb[0].mxu0 %v1510
    %v1684 = vpop.f32.mrb[0].mxu0
    %v1685 = vadd.f32 %v1468, %v1684
    %v1686 = vpop.f32.mrb[0].mxu0
    %v1687 = vpop.f32.mrb[0].mxu0
    %v1688 = vadd.f32 %v1468, %v1687
    %v1689 = vpop.f32.mrb[0].mxu0
    %1690 = vmatprep.mubr.bf16.mxu0 0
    %1691 = vmatmul.mubr.bf16.gmra.mrb[0].mxu0 %v1513
    %v1692 = vpop.f32.mrb[0].mxu0
    %v1693 = vadd.f32 %v1468, %v1692
    %v1694 = vpop.f32.mrb[0].mxu0
    %v1695 = vpop.f32.mrb[0].mxu0
    %v1696 = vadd.f32 %v1468, %v1695
    %v1697 = vpop.f32.mrb[0].mxu0
    %1698 = vmatprep.mubr.bf16.mxu0 0
    %1699 = vmatmul.mubr.bf16.gmra.mrb[0].mxu0 %v1516
    %v1700 = vpop.f32.mrb[0].mxu0
    %v1701 = vadd.f32 %v1468, %v1700
    %v1702 = vpop.f32.mrb[0].mxu0
    %v1703 = vpop.f32.mrb[0].mxu0
    %v1704 = vadd.f32 %v1468, %v1703
    %v1705 = vpop.f32.mrb[0].mxu0
    %1706 = vmatprep.mubr.bf16.mxu0 0
    %1707 = vmatmul.mubr.bf16.gmra.mrb[0].mxu0 %v1519
    %v1708 = vpop.f32.mrb[0].mxu0
    %v1709 = vadd.f32 %v1468, %v1708
    %v1710 = vpop.f32.mrb[0].mxu0
    %v1711 = vpop.f32.mrb[0].mxu0
    %v1712 = vadd.f32 %v1468, %v1711
    %v1713 = vpop.f32.mrb[0].mxu0
    %1714 = vmatprep.mubr.bf16.mxu0 0
    %1715 = vmatmul.mubr.bf16.gmra.mrb[0].mxu0 %v1522
    %v1716 = vpop.f32.mrb[0].mxu0
    %v1717 = vadd.f32 %v1468, %v1716
    %v1718 = vpop.f32.mrb[0].mxu0
    %v1719 = vpop.f32.mrb[0].mxu0
    %v1720 = vadd.f32 %v1468, %v1719
    %v1721 = vpop.f32.mrb[0].mxu0
    %1722 = vmatprep.mubr.bf16.mxu0 0
    %1723 = vmatmul.mubr.bf16.gmra.mrb[0].mxu0 %v1525
    %v1724 = vpop.f32.mrb[0].mxu0
    %v1725 = vadd.f32 %v1468, %v1724
    %v1726 = vpop.f32.mrb[0].mxu0
    %v1727 = vpop.f32.mrb[0].mxu0
    %v1728 = vadd.f32 %v1468, %v1727
    %v1729 = vpop.f32.mrb[0].mxu0
    %1730 = vmatprep.mubr.bf16.mxu0 0
    %1731 = vmatmul.mubr.bf16.gmra.mrb[0].mxu0 %v1528
    %v1732 = vpop.f32.mrb[0].mxu0
    %v1733 = vadd.f32 %v1468, %v1732
    %v1734 = vpop.f32.mrb[0].mxu0
    %v1735 = vpop.f32.mrb[0].mxu0
    %v1736 = vadd.f32 %v1468, %v1735
    %v1737 = vpop.f32.mrb[0].mxu0
    %1738 = vmatprep.mubr.bf16.mxu0 0
    %1739 = vmatmul.mubr.bf16.gmra.mrb[0].mxu0 %v1531
    %v1740 = vpop.f32.mrb[0].mxu0
    %v1741 = vadd.f32 %v1468, %v1740
    %v1742 = vpop.f32.mrb[0].mxu0
    %v1743 = vpop.f32.mrb[0].mxu0
    %v1744 = vadd.f32 %v1468, %v1743
    %v1745 = vpop.f32.mrb[0].mxu0
    %1746 = vmatprep.mubr.bf16.mxu0 0
    %1747 = vmatmul.mubr.bf16.gmra.mrb[0].mxu0 %v1534
    %v1748 = vpop.f32.mrb[0].mxu0
    %v1749 = vadd.f32 %v1468, %v1748
    %v1750 = vpop.f32.mrb[0].mxu0
    %v1751 = vpop.f32.mrb[0].mxu0
    %v1752 = vadd.f32 %v1468, %v1751
    %v1753 = vpop.f32.mrb[0].mxu0
    %1754 = vmatprep.mubr.bf16.mxu0 0
    %1755 = vmatmul.mubr.bf16.gmra.mrb[0].mxu0 %v1537
    %v1756 = vpop.f32.mrb[0].mxu0
    %v1757 = vadd.f32 %v1468, %v1756
    %v1758 = vpop.f32.mrb[0].mxu0
    %v1759 = vpop.f32.mrb[0].mxu0
    %v1760 = vadd.f32 %v1468, %v1759
    %v1761 = vpop.f32.mrb[0].mxu0
    %1762 = vmatprep.mubr.bf16.mxu0 0
    %1763 = vmatmul.mubr.bf16.gmra.mrb[0].mxu0 %v1540
    %v1764 = vpop.f32.mrb[0].mxu0
    %v1765 = vadd.f32 %v1468, %v1764
    %v1766 = vpop.f32.mrb[0].mxu0
    %v1767 = vpop.f32.mrb[0].mxu0
    %v1768 = vadd.f32 %v1468, %v1767
    %v1769 = vpop.f32.mrb[0].mxu0
    %1770 = vmatprep.mubr.bf16.mxu0 0
    %1771 = vmatmul.mubr.bf16.gmra.mrb[0].mxu0 %v1543
    %v1772 = vpop.f32.mrb[0].mxu0
    %v1773 = vadd.f32 %v1468, %v1772
    %v1774 = vpop.f32.mrb[0].mxu0
    %v1775 = vpop.f32.mrb[0].mxu0
    %v1776 = vadd.f32 %v1468, %v1775
    %v1777 = vpop.f32.mrb[0].mxu0
    %1778 = vmatprep.mubr.bf16.mxu0 0
    %1779 = vmatmul.mubr.bf16.gmra.mrb[0].mxu0 %v1546
    %v1780 = vpop.f32.mrb[0].mxu0
    %v1781 = vadd.f32 %v1468, %v1780
    %v1782 = vpop.f32.mrb[0].mxu0
    %v1783 = vpop.f32.mrb[0].mxu0
    %v1784 = vadd.f32 %v1468, %v1783
    %v1785 = vpop.f32.mrb[0].mxu0
    %1786 = vmatprep.mubr.bf16.mxu0 0
    %1787 = vmatmul.mubr.bf16.gmra.mrb[0].mxu0 %v1549
    %v1788 = vpop.f32.mrb[0].mxu0
    %v1789 = vadd.f32 %v1468, %v1788
    %v1790 = vpop.f32.mrb[0].mxu0
    %v1791 = vpop.f32.mrb[0].mxu0
    %v1792 = vadd.f32 %v1468, %v1791
    %v1793 = vpop.f32.mrb[0].mxu0
    %1794 = vmatprep.mubr.bf16.mxu0 0
    %1795 = vmatmul.mubr.bf16.gmra.mrb[0].mxu0 %v1552
    %v1796 = vpop.f32.mrb[0].mxu0
    %v1797 = vadd.f32 %v1468, %v1796
    %v1798 = vpop.f32.mrb[0].mxu0
    %v1799 = vpop.f32.mrb[0].mxu0
    %v1800 = vadd.f32 %v1468, %v1799
    %v1801 = vpop.f32.mrb[0].mxu0
    %1802 = vmatprep.mubr.bf16.mxu0 0
    %1803 = vmatmul.mubr.bf16.gmra.mrb[0].mxu0 %v1555
    %v1804 = vpop.f32.mrb[0].mxu0
    %v1805 = vadd.f32 %v1468, %v1804
    %v1806 = vpop.f32.mrb[0].mxu0
    %v1807 = vpop.f32.mrb[0].mxu0
    %v1808 = vadd.f32 %v1468, %v1807
    %v1809 = vpop.f32.mrb[0].mxu0
    %1810 = vmatprep.mubr.bf16.mxu0 0
    %1811 = vmatmul.mubr.bf16.gmra.mrb[0].mxu0 %v1558
    %v1812 = vpop.f32.mrb[0].mxu0
    %v1813 = vadd.f32 %v1468, %v1812
    %v1814 = vpop.f32.mrb[0].mxu0
    %v1815 = vpop.f32.mrb[0].mxu0
    %v1816 = vadd.f32 %v1468, %v1815
    %v1817 = vpop.f32.mrb[0].mxu0
    %1818 = vmatprep.mubr.bf16.mxu0 0
    %1819 = vmatmul.mubr.bf16.gmra.mrb[0].mxu0 %v1561
    %v1820 = vpop.f32.mrb[0].mxu0
    %v1821 = vadd.f32 %v1468, %v1820
    %v1822 = vpop.f32.mrb[0].mxu0
    %v1823 = vpop.f32.mrb[0].mxu0
    %v1824 = vadd.f32 %v1468, %v1823
    %v1825 = vpop.f32.mrb[0].mxu0
    %1826 = vmatprep.mubr.bf16.mxu0 0
    %1827 = vmatmul.mubr.bf16.gmra.mrb[0].mxu0 %v1564
    %v1828 = vpop.f32.mrb[0].mxu0
    %v1829 = vadd.f32 %v1468, %v1828
    %v1830 = vpop.f32.mrb[0].mxu0
    %v1831 = vpop.f32.mrb[0].mxu0
    %v1832 = vadd.f32 %v1468, %v1831
    %v1833 = vpop.f32.mrb[0].mxu0
    %1834 = vmatprep.mubr.bf16.mxu0 0
    %1835 = vmatmul.mubr.bf16.gmra.mrb[0].mxu0 %v1567
    %v1836 = vpop.f32.mrb[0].mxu0
    %v1837 = vadd.f32 %v1468, %v1836
    %v1838 = vpop.f32.mrb[0].mxu0
    %v1839 = vpop.f32.mrb[0].mxu0
    %v1840 = vadd.f32 %v1468, %v1839
    %v1841 = vpop.f32.mrb[0].mxu0
    %1842 = vmatprep.mubr.bf16.mxu0 0
    %1843 = vmatmul.mubr.bf16.gmra.mrb[0].mxu0 %v1570
    %v1844 = vpop.f32.mrb[0].mxu0
    %v1845 = vadd.f32 %v1468, %v1844
    %v1846 = vpop.f32.mrb[0].mxu0
    %v1847 = vpop.f32.mrb[0].mxu0
    %v1848 = vadd.f32 %v1468, %v1847
    %v1849 = vpop.f32.mrb[0].mxu0
    %1850 = vmatprep.mubr.bf16.mxu0 0
    %1851 = vmatmul.mubr.bf16.gmra.mrb[0].mxu0 %v1573
    %v1852 = vpop.f32.mrb[0].mxu0
    %v1853 = vadd.f32 %v1468, %v1852
    %v1854 = vpop.f32.mrb[0].mxu0
    %v1855 = vpop.f32.mrb[0].mxu0
    %v1856 = vadd.f32 %v1468, %v1855
    %v1857 = vpop.f32.mrb[0].mxu0
    %1858 = vmatprep.mubr.bf16.mxu0 0
    %1859 = vmatmul.mubr.bf16.gmra.mrb[0].mxu0 %v1576
    %v1860 = vpop.f32.mrb[0].mxu0
    %v1861 = vadd.f32 %v1468, %v1860
    %v1862 = vpop.f32.mrb[0].mxu0
    %v1863 = vpop.f32.mrb[0].mxu0
    %v1864 = vadd.f32 %v1468, %v1863
    %v1865 = vpop.f32.mrb[0].mxu0
    %1866 = vdwg.mxu0
    %v1867 = vmax.f32 %v1613, 0.0
    %v1868 = vmax.f32 %v1616, 0.0
    %v1869 = vmax.f32 %v1621, 0.0
    %v1870 = vmax.f32 %v1624, 0.0
    %v1871 = vmax.f32 %v1629, 0.0
    %v1872 = vmax.f32 %v1632, 0.0
    %v1873 = vmax.f32 %v1637, 0.0
    %v1874 = vmax.f32 %v1640, 0.0
    %v1875 = vmax.f32 %v1645, 0.0
    %v1876 = vmax.f32 %v1648, 0.0
    %v1877 = vmax.f32 %v1653, 0.0
    %v1878 = vmax.f32 %v1656, 0.0
    %v1879 = vmax.f32 %v1661, 0.0
    %v1880 = vmax.f32 %v1664, 0.0
    %v1881 = vmax.f32 %v1669, 0.0
    %v1882 = vmax.f32 %v1672, 0.0
    %v1883 = vmax.f32 %v1677, 0.0
    %v1884 = vmax.f32 %v1680, 0.0
    %v1885 = vmax.f32 %v1685, 0.0
    %v1886 = vmax.f32 %v1688, 0.0
    %v1887 = vmax.f32 %v1693, 0.0
    %v1888 = vmax.f32 %v1696, 0.0
    %v1889 = vmax.f32 %v1701, 0.0
    %v1890 = vmax.f32 %v1704, 0.0
    %v1891 = vmax.f32 %v1709, 0.0
    %v1892 = vmax.f32 %v1712, 0.0
    %v1893 = vmax.f32 %v1717, 0.0
    %v1894 = vmax.f32 %v1720, 0.0
    %v1895 = vmax.f32 %v1725, 0.0
    %v1896 = vmax.f32 %v1728, 0.0
    %v1897 = vmax.f32 %v1733, 0.0
    %v1898 = vmax.f32 %v1736, 0.0
    %v1899 = vmax.f32 %v1741, 0.0
    %v1900 = vmax.f32 %v1744, 0.0
    %v1901 = vmax.f32 %v1749, 0.0
    %v1902 = vmax.f32 %v1752, 0.0
    %v1903 = vmax.f32 %v1757, 0.0
    %v1904 = vmax.f32 %v1760, 0.0
    %v1905 = vmax.f32 %v1765, 0.0
    %v1906 = vmax.f32 %v1768, 0.0
    %v1907 = vmax.f32 %v1773, 0.0
    %v1908 = vmax.f32 %v1776, 0.0
    %v1909 = vmax.f32 %v1781, 0.0
    %v1910 = vmax.f32 %v1784, 0.0
    %v1911 = vmax.f32 %v1789, 0.0
    %v1912 = vmax.f32 %v1792, 0.0
    %v1913 = vmax.f32 %v1797, 0.0
    %v1914 = vmax.f32 %v1800, 0.0
    %v1915 = vmax.f32 %v1805, 0.0
    %v1916 = vmax.f32 %v1808, 0.0
    %v1917 = vmax.f32 %v1813, 0.0
    %v1918 = vmax.f32 %v1816, 0.0
    %v1919 = vmax.f32 %v1821, 0.0
    %v1920 = vmax.f32 %v1824, 0.0
    %v1921 = vmax.f32 %v1829, 0.0
    %v1922 = vmax.f32 %v1832, 0.0
    %v1923 = vmax.f32 %v1837, 0.0
    %v1924 = vmax.f32 %v1840, 0.0
    %v1925 = vmax.f32 %v1845, 0.0
    %v1926 = vmax.f32 %v1848, 0.0
    %v1927 = vmax.f32 %v1853, 0.0
    %v1928 = vmax.f32 %v1856, 0.0
    %v1929 = vmax.f32 %v1861, 0.0
    %v1930 = vmax.f32 %v1864, 0.0
    %v1931 = vpack.c.bf16 %v1868, %v1867
    %v1932 = vpack.c.bf16 %v1870, %v1869
    %v1933 = vpack.c.bf16 %v1872, %v1871
    %v1934 = vpack.c.bf16 %v1874, %v1873
    %v1935 = vpack.c.bf16 %v1876, %v1875
    %v1936 = vpack.c.bf16 %v1878, %v1877
    %v1937 = vpack.c.bf16 %v1880, %v1879
    %v1938 = vpack.c.bf16 %v1882, %v1881
    %v1939 = vpack.c.bf16 %v1884, %v1883
    %v1940 = vpack.c.bf16 %v1886, %v1885
    %v1941 = vpack.c.bf16 %v1888, %v1887
    %v1942 = vpack.c.bf16 %v1890, %v1889
    %v1943 = vpack.c.bf16 %v1892, %v1891
    %v1944 = vpack.c.bf16 %v1894, %v1893
    %v1945 = vpack.c.bf16 %v1896, %v1895
    %v1946 = vpack.c.bf16 %v1898, %v1897
    %v1947 = vpack.c.bf16 %v1900, %v1899
    %v1948 = vpack.c.bf16 %v1902, %v1901
    %v1949 = vpack.c.bf16 %v1904, %v1903
    %v1950 = vpack.c.bf16 %v1906, %v1905
    %v1951 = vpack.c.bf16 %v1908, %v1907
    %v1952 = vpack.c.bf16 %v1910, %v1909
    %v1953 = vpack.c.bf16 %v1912, %v1911
    %v1954 = vpack.c.bf16 %v1914, %v1913
    %v1955 = vpack.c.bf16 %v1916, %v1915
    %v1956 = vpack.c.bf16 %v1918, %v1917
    %v1957 = vpack.c.bf16 %v1920, %v1919
    %v1958 = vpack.c.bf16 %v1922, %v1921
    %v1959 = vpack.c.bf16 %v1924, %v1923
    %v1960 = vpack.c.bf16 %v1926, %v1925
    %v1961 = vpack.c.bf16 %v1928, %v1927
    %v1962 = vpack.c.bf16 %v1930, %v1929
    %v1963 = vld [vmem:[%s7] sm:$0xf]
    %v1964 = vld [vmem:[%s7 + $0x4] sm:$0xf]
    %v1965 = vld [vmem:[%s7 + $0x8] sm:$0xf]
    %v1966 = vld [vmem:[%s7 + $0xc] sm:$0xf]
    %v1967 = vld [vmem:[%s8] sm:$0x1]
    %v1969 = vlaneseq
    %v1970 = vshrl.u32 %v1969, 7
    %v1971 = vsub.s32 0, %v1970
    %v1972 = vrot.slane %v1967, %v1971
    %v1978 = vunpack.c.l.b16 %v1963
    %v1979 = vunpack.c.l.b16 %v1964
    %v1980 = vunpack.c.l.b16 %v1965
    %v1981 = vunpack.c.l.b16 %v1966
    %v1982 = vpack.c.b16 %v1979, %v1978
    %v1983 = vpack.c.b16 %v1981, %v1980
    %v1987 = vsel %vm349, %v1931, 0
    %v1990 = vsel %vm349, %v1932, 0
    %v1993 = vsel %vm349, %v1933, 0
    %v1996 = vsel %vm349, %v1934, 0
    %v1999 = vsel %vm349, %v1935, 0
    %v2002 = vsel %vm349, %v1936, 0
    %v2005 = vsel %vm349, %v1937, 0
    %v2008 = vsel %vm349, %v1938, 0
    %v2011 = vsel %vm349, %v1939, 0
    %v2014 = vsel %vm349, %v1940, 0
    %v2017 = vsel %vm349, %v1941, 0
    %v2020 = vsel %vm349, %v1942, 0
    %v2023 = vsel %vm349, %v1943, 0
    %v2026 = vsel %vm349, %v1944, 0
    %v2029 = vsel %vm349, %v1945, 0
    %v2032 = vsel %vm349, %v1946, 0
    %v2035 = vsel %vm349, %v1947, 0
    %v2038 = vsel %vm349, %v1948, 0
    %v2041 = vsel %vm349, %v1949, 0
    %v2044 = vsel %vm349, %v1950, 0
    %v2047 = vsel %vm349, %v1951, 0
    %v2050 = vsel %vm349, %v1952, 0
    %v2053 = vsel %vm349, %v1953, 0
    %v2056 = vsel %vm349, %v1954, 0
    %v2059 = vsel %vm349, %v1955, 0
    %v2062 = vsel %vm349, %v1956, 0
    %v2065 = vsel %vm349, %v1957, 0
    %v2068 = vsel %vm349, %v1958, 0
    %v2071 = vsel %vm349, %v1959, 0
    %v2074 = vsel %vm349, %v1960, 0
    %v2077 = vsel %vm349, %v1961, 0
    %v2080 = vsel %vm349, %v1962, 0
    %2082 = vmatprep.subr.bf16.mxu0 0
    %2083 = vmatpush1.bf16.msra.mxu0 %v1982
    %2084 = vmatprep.subr.bf16.mxu0 0
    %2085 = vmatpush1.bf16.msra.mxu0 %v1983
    %2086 = vmatprep.subr.bf16.mxu0 0
    %2087 = vmatpush1.bf16.msra.mxu0 0
    %2088 = vmatprep.subr.bf16.mxu0 0
    %2089 = vmatpush1.bf16.msra.mxu0 0
    %2090 = vmatprep.subr.bf16.mxu0 0
    %2091 = vmatpush1.bf16.msra.mxu0 0
    %2092 = vmatprep.subr.bf16.mxu0 0
    %2093 = vmatpush1.bf16.msra.mxu0 0
    %2094 = vmatprep.subr.bf16.mxu0 0
    %2095 = vmatpush1.bf16.msra.mxu0 0
    %2096 = vmatprep.subr.bf16.mxu0 0
    %2097 = vmatpush1.bf16.msra.mxu0 0
    %2098 = vmatprep.subr.bf16.mxu0 0
    %2099 = vmatpush1.bf16.msra.mxu0 0
    %2100 = vmatprep.subr.bf16.mxu0 0
    %2101 = vmatpush1.bf16.msra.mxu0 0
    %2102 = vmatprep.subr.bf16.mxu0 0
    %2103 = vmatpush1.bf16.msra.mxu0 0
    %2104 = vmatprep.subr.bf16.mxu0 0
    %2105 = vmatpush1.bf16.msra.mxu0 0
    %2106 = vmatprep.subr.bf16.mxu0 0
    %2107 = vmatpush1.bf16.msra.mxu0 0
    %2108 = vmatprep.subr.bf16.mxu0 0
    %2109 = vmatpush1.bf16.msra.mxu0 0
    %2110 = vmatprep.subr.bf16.mxu0 0
    %2111 = vmatpush1.bf16.msra.mxu0 0
    %2112 = vmatprep.subr.bf16.mxu0 0
    %2113 = vmatpush1.bf16.msra.mxu0 0
    %2114 = vmatprep.mubr.bf16.mxu0 0
    %2115 = vmatmul.mubr.bf16.gmra.mrb[0].mxu0 %v1987
    %v2116 = vpop.f32.mrb[0].mxu0
    %v2117 = vadd.f32 %v1972, %v2116
    %v2118 = vpop.f32.mrb[0].mxu0
    %v2119 = vpop.f32.mrb[0].mxu0
    %v2120 = vadd.f32 %v1972, %v2119
    %v2121 = vpop.f32.mrb[0].mxu0
    %2122 = vmatprep.mubr.bf16.mxu0 0
    %2123 = vmatmul.mubr.bf16.gmra.mrb[0].mxu0 %v1990
    %v2124 = vpop.f32.mrb[0].mxu0
    %v2125 = vadd.f32 %v1972, %v2124
    %v2126 = vpop.f32.mrb[0].mxu0
    %v2127 = vpop.f32.mrb[0].mxu0
    %v2128 = vadd.f32 %v1972, %v2127
    %v2129 = vpop.f32.mrb[0].mxu0
    %2130 = vmatprep.mubr.bf16.mxu0 0
    %2131 = vmatmul.mubr.bf16.gmra.mrb[0].mxu0 %v1993
    %v2132 = vpop.f32.mrb[0].mxu0
    %v2133 = vadd.f32 %v1972, %v2132
    %v2134 = vpop.f32.mrb[0].mxu0
    %v2135 = vpop.f32.mrb[0].mxu0
    %v2136 = vadd.f32 %v1972, %v2135
    %v2137 = vpop.f32.mrb[0].mxu0
    %2138 = vmatprep.mubr.bf16.mxu0 0
    %2139 = vmatmul.mubr.bf16.gmra.mrb[0].mxu0 %v1996
    %v2140 = vpop.f32.mrb[0].mxu0
    %v2141 = vadd.f32 %v1972, %v2140
    %v2142 = vpop.f32.mrb[0].mxu0
    %v2143 = vpop.f32.mrb[0].mxu0
    %v2144 = vadd.f32 %v1972, %v2143
    %v2145 = vpop.f32.mrb[0].mxu0
    %2146 = vmatprep.mubr.bf16.mxu0 0
    %2147 = vmatmul.mubr.bf16.gmra.mrb[0].mxu0 %v1999
    %v2148 = vpop.f32.mrb[0].mxu0
    %v2149 = vadd.f32 %v1972, %v2148
    %v2150 = vpop.f32.mrb[0].mxu0
    %v2151 = vpop.f32.mrb[0].mxu0
    %v2152 = vadd.f32 %v1972, %v2151
    %v2153 = vpop.f32.mrb[0].mxu0
    %2154 = vmatprep.mubr.bf16.mxu0 0
    %2155 = vmatmul.mubr.bf16.gmra.mrb[0].mxu0 %v2002
    %v2156 = vpop.f32.mrb[0].mxu0
    %v2157 = vadd.f32 %v1972, %v2156
    %v2158 = vpop.f32.mrb[0].mxu0
    %v2159 = vpop.f32.mrb[0].mxu0
    %v2160 = vadd.f32 %v1972, %v2159
    %v2161 = vpop.f32.mrb[0].mxu0
    %2162 = vmatprep.mubr.bf16.mxu0 0
    %2163 = vmatmul.mubr.bf16.gmra.mrb[0].mxu0 %v2005
    %v2164 = vpop.f32.mrb[0].mxu0
    %v2165 = vadd.f32 %v1972, %v2164
    %v2166 = vpop.f32.mrb[0].mxu0
    %v2167 = vpop.f32.mrb[0].mxu0
    %v2168 = vadd.f32 %v1972, %v2167
    %v2169 = vpop.f32.mrb[0].mxu0
    %2170 = vmatprep.mubr.bf16.mxu0 0
    %2171 = vmatmul.mubr.bf16.gmra.mrb[0].mxu0 %v2008
    %v2172 = vpop.f32.mrb[0].mxu0
    %v2173 = vadd.f32 %v1972, %v2172
    %v2174 = vpop.f32.mrb[0].mxu0
    %v2175 = vpop.f32.mrb[0].mxu0
    %v2176 = vadd.f32 %v1972, %v2175
    %v2177 = vpop.f32.mrb[0].mxu0
    %2178 = vmatprep.mubr.bf16.mxu0 0
    %2179 = vmatmul.mubr.bf16.gmra.mrb[0].mxu0 %v2011
    %v2180 = vpop.f32.mrb[0].mxu0
    %v2181 = vadd.f32 %v1972, %v2180
    %v2182 = vpop.f32.mrb[0].mxu0
    %v2183 = vpop.f32.mrb[0].mxu0
    %v2184 = vadd.f32 %v1972, %v2183
    %v2185 = vpop.f32.mrb[0].mxu0
    %2186 = vmatprep.mubr.bf16.mxu0 0
    %2187 = vmatmul.mubr.bf16.gmra.mrb[0].mxu0 %v2014
    %v2188 = vpop.f32.mrb[0].mxu0
    %v2189 = vadd.f32 %v1972, %v2188
    %v2190 = vpop.f32.mrb[0].mxu0
    %v2191 = vpop.f32.mrb[0].mxu0
    %v2192 = vadd.f32 %v1972, %v2191
    %v2193 = vpop.f32.mrb[0].mxu0
    %2194 = vmatprep.mubr.bf16.mxu0 0
    %2195 = vmatmul.mubr.bf16.gmra.mrb[0].mxu0 %v2017
    %v2196 = vpop.f32.mrb[0].mxu0
    %v2197 = vadd.f32 %v1972, %v2196
    %v2198 = vpop.f32.mrb[0].mxu0
    %v2199 = vpop.f32.mrb[0].mxu0
    %v2200 = vadd.f32 %v1972, %v2199
    %v2201 = vpop.f32.mrb[0].mxu0
    %2202 = vmatprep.mubr.bf16.mxu0 0
    %2203 = vmatmul.mubr.bf16.gmra.mrb[0].mxu0 %v2020
    %v2204 = vpop.f32.mrb[0].mxu0
    %v2205 = vadd.f32 %v1972, %v2204
    %v2206 = vpop.f32.mrb[0].mxu0
    %v2207 = vpop.f32.mrb[0].mxu0
    %v2208 = vadd.f32 %v1972, %v2207
    %v2209 = vpop.f32.mrb[0].mxu0
    %2210 = vmatprep.mubr.bf16.mxu0 0
    %2211 = vmatmul.mubr.bf16.gmra.mrb[0].mxu0 %v2023
    %v2212 = vpop.f32.mrb[0].mxu0
    %v2213 = vadd.f32 %v1972, %v2212
    %v2214 = vpop.f32.mrb[0].mxu0
    %v2215 = vpop.f32.mrb[0].mxu0
    %v2216 = vadd.f32 %v1972, %v2215
    %v2217 = vpop.f32.mrb[0].mxu0
    %2218 = vmatprep.mubr.bf16.mxu0 0
    %2219 = vmatmul.mubr.bf16.gmra.mrb[0].mxu0 %v2026
    %v2220 = vpop.f32.mrb[0].mxu0
    %v2221 = vadd.f32 %v1972, %v2220
    %v2222 = vpop.f32.mrb[0].mxu0
    %v2223 = vpop.f32.mrb[0].mxu0
    %v2224 = vadd.f32 %v1972, %v2223
    %v2225 = vpop.f32.mrb[0].mxu0
    %2226 = vmatprep.mubr.bf16.mxu0 0
    %2227 = vmatmul.mubr.bf16.gmra.mrb[0].mxu0 %v2029
    %v2228 = vpop.f32.mrb[0].mxu0
    %v2229 = vadd.f32 %v1972, %v2228
    %v2230 = vpop.f32.mrb[0].mxu0
    %v2231 = vpop.f32.mrb[0].mxu0
    %v2232 = vadd.f32 %v1972, %v2231
    %v2233 = vpop.f32.mrb[0].mxu0
    %2234 = vmatprep.mubr.bf16.mxu0 0
    %2235 = vmatmul.mubr.bf16.gmra.mrb[0].mxu0 %v2032
    %v2236 = vpop.f32.mrb[0].mxu0
    %v2237 = vadd.f32 %v1972, %v2236
    %v2238 = vpop.f32.mrb[0].mxu0
    %v2239 = vpop.f32.mrb[0].mxu0
    %v2240 = vadd.f32 %v1972, %v2239
    %v2241 = vpop.f32.mrb[0].mxu0
    %2242 = vmatprep.mubr.bf16.mxu0 0
    %2243 = vmatmul.mubr.bf16.gmra.mrb[0].mxu0 %v2035
    %v2244 = vpop.f32.mrb[0].mxu0
    %v2245 = vadd.f32 %v1972, %v2244
    %v2246 = vpop.f32.mrb[0].mxu0
    %v2247 = vpop.f32.mrb[0].mxu0
    %v2248 = vadd.f32 %v1972, %v2247
    %v2249 = vpop.f32.mrb[0].mxu0
    %2250 = vmatprep.mubr.bf16.mxu0 0
    %2251 = vmatmul.mubr.bf16.gmra.mrb[0].mxu0 %v2038
    %v2252 = vpop.f32.mrb[0].mxu0
    %v2253 = vadd.f32 %v1972, %v2252
    %v2254 = vpop.f32.mrb[0].mxu0
    %v2255 = vpop.f32.mrb[0].mxu0
    %v2256 = vadd.f32 %v1972, %v2255
    %v2257 = vpop.f32.mrb[0].mxu0
    %2258 = vmatprep.mubr.bf16.mxu0 0
    %2259 = vmatmul.mubr.bf16.gmra.mrb[0].mxu0 %v2041
    %v2260 = vpop.f32.mrb[0].mxu0
    %v2261 = vadd.f32 %v1972, %v2260
    %v2262 = vpop.f32.mrb[0].mxu0
    %v2263 = vpop.f32.mrb[0].mxu0
    %v2264 = vadd.f32 %v1972, %v2263
    %v2265 = vpop.f32.mrb[0].mxu0
    %2266 = vmatprep.mubr.bf16.mxu0 0
    %2267 = vmatmul.mubr.bf16.gmra.mrb[0].mxu0 %v2044
    %v2268 = vpop.f32.mrb[0].mxu0
    %v2269 = vadd.f32 %v1972, %v2268
    %v2270 = vpop.f32.mrb[0].mxu0
    %v2271 = vpop.f32.mrb[0].mxu0
    %v2272 = vadd.f32 %v1972, %v2271
    %v2273 = vpop.f32.mrb[0].mxu0
    %2274 = vmatprep.mubr.bf16.mxu0 0
    %2275 = vmatmul.mubr.bf16.gmra.mrb[0].mxu0 %v2047
    %v2276 = vpop.f32.mrb[0].mxu0
    %v2277 = vadd.f32 %v1972, %v2276
    %v2278 = vpop.f32.mrb[0].mxu0
    %v2279 = vpop.f32.mrb[0].mxu0
    %v2280 = vadd.f32 %v1972, %v2279
    %v2281 = vpop.f32.mrb[0].mxu0
    %2282 = vmatprep.mubr.bf16.mxu0 0
    %2283 = vmatmul.mubr.bf16.gmra.mrb[0].mxu0 %v2050
    %v2284 = vpop.f32.mrb[0].mxu0
    %v2285 = vadd.f32 %v1972, %v2284
    %v2286 = vpop.f32.mrb[0].mxu0
    %v2287 = vpop.f32.mrb[0].mxu0
    %v2288 = vadd.f32 %v1972, %v2287
    %v2289 = vpop.f32.mrb[0].mxu0
    %2290 = vmatprep.mubr.bf16.mxu0 0
    %2291 = vmatmul.mubr.bf16.gmra.mrb[0].mxu0 %v2053
    %v2292 = vpop.f32.mrb[0].mxu0
    %v2293 = vadd.f32 %v1972, %v2292
    %v2294 = vpop.f32.mrb[0].mxu0
    %v2295 = vpop.f32.mrb[0].mxu0
    %v2296 = vadd.f32 %v1972, %v2295
    %v2297 = vpop.f32.mrb[0].mxu0
    %2298 = vmatprep.mubr.bf16.mxu0 0
    %2299 = vmatmul.mubr.bf16.gmra.mrb[0].mxu0 %v2056
    %v2300 = vpop.f32.mrb[0].mxu0
    %v2301 = vadd.f32 %v1972, %v2300
    %v2302 = vpop.f32.mrb[0].mxu0
    %v2303 = vpop.f32.mrb[0].mxu0
    %v2304 = vadd.f32 %v1972, %v2303
    %v2305 = vpop.f32.mrb[0].mxu0
    %2306 = vmatprep.mubr.bf16.mxu0 0
    %2307 = vmatmul.mubr.bf16.gmra.mrb[0].mxu0 %v2059
    %v2308 = vpop.f32.mrb[0].mxu0
    %v2309 = vadd.f32 %v1972, %v2308
    %v2310 = vpop.f32.mrb[0].mxu0
    %v2311 = vpop.f32.mrb[0].mxu0
    %v2312 = vadd.f32 %v1972, %v2311
    %v2313 = vpop.f32.mrb[0].mxu0
    %2314 = vmatprep.mubr.bf16.mxu0 0
    %2315 = vmatmul.mubr.bf16.gmra.mrb[0].mxu0 %v2062
    %v2316 = vpop.f32.mrb[0].mxu0
    %v2317 = vadd.f32 %v1972, %v2316
    %v2318 = vpop.f32.mrb[0].mxu0
    %v2319 = vpop.f32.mrb[0].mxu0
    %v2320 = vadd.f32 %v1972, %v2319
    %v2321 = vpop.f32.mrb[0].mxu0
    %2322 = vmatprep.mubr.bf16.mxu0 0
    %2323 = vmatmul.mubr.bf16.gmra.mrb[0].mxu0 %v2065
    %v2324 = vpop.f32.mrb[0].mxu0
    %v2325 = vadd.f32 %v1972, %v2324
    %v2326 = vpop.f32.mrb[0].mxu0
    %v2327 = vpop.f32.mrb[0].mxu0
    %v2328 = vadd.f32 %v1972, %v2327
    %v2329 = vpop.f32.mrb[0].mxu0
    %2330 = vmatprep.mubr.bf16.mxu0 0
    %2331 = vmatmul.mubr.bf16.gmra.mrb[0].mxu0 %v2068
    %v2332 = vpop.f32.mrb[0].mxu0
    %v2333 = vadd.f32 %v1972, %v2332
    %v2334 = vpop.f32.mrb[0].mxu0
    %v2335 = vpop.f32.mrb[0].mxu0
    %v2336 = vadd.f32 %v1972, %v2335
    %v2337 = vpop.f32.mrb[0].mxu0
    %2338 = vmatprep.mubr.bf16.mxu0 0
    %2339 = vmatmul.mubr.bf16.gmra.mrb[0].mxu0 %v2071
    %v2340 = vpop.f32.mrb[0].mxu0
    %v2341 = vadd.f32 %v1972, %v2340
    %v2342 = vpop.f32.mrb[0].mxu0
    %v2343 = vpop.f32.mrb[0].mxu0
    %v2344 = vadd.f32 %v1972, %v2343
    %v2345 = vpop.f32.mrb[0].mxu0
    %2346 = vmatprep.mubr.bf16.mxu0 0
    %2347 = vmatmul.mubr.bf16.gmra.mrb[0].mxu0 %v2074
    %v2348 = vpop.f32.mrb[0].mxu0
    %v2349 = vadd.f32 %v1972, %v2348
    %v2350 = vpop.f32.mrb[0].mxu0
    %v2351 = vpop.f32.mrb[0].mxu0
    %v2352 = vadd.f32 %v1972, %v2351
    %v2353 = vpop.f32.mrb[0].mxu0
    %2354 = vmatprep.mubr.bf16.mxu0 0
    %2355 = vmatmul.mubr.bf16.gmra.mrb[0].mxu0 %v2077
    %v2356 = vpop.f32.mrb[0].mxu0
    %v2357 = vadd.f32 %v1972, %v2356
    %v2358 = vpop.f32.mrb[0].mxu0
    %v2359 = vpop.f32.mrb[0].mxu0
    %v2360 = vadd.f32 %v1972, %v2359
    %v2361 = vpop.f32.mrb[0].mxu0
    %2362 = vmatprep.mubr.bf16.mxu0 0
    %2363 = vmatmul.mubr.bf16.gmra.mrb[0].mxu0 %v2080
    %v2364 = vpop.f32.mrb[0].mxu0
    %v2365 = vadd.f32 %v1972, %v2364
    %v2366 = vpop.f32.mrb[0].mxu0
    %v2367 = vpop.f32.mrb[0].mxu0
    %v2368 = vadd.f32 %v1972, %v2367
    %v2369 = vpop.f32.mrb[0].mxu0
    %2370 = vdwg.mxu0
    %v2371 = vmax.f32 %v2117, 0.0
    %v2372 = vmax.f32 %v2120, 0.0
    %v2373 = vmax.f32 %v2125, 0.0
    %v2374 = vmax.f32 %v2128, 0.0
    %v2375 = vmax.f32 %v2133, 0.0
    %v2376 = vmax.f32 %v2136, 0.0
    %v2377 = vmax.f32 %v2141, 0.0
    %v2378 = vmax.f32 %v2144, 0.0
    %v2379 = vmax.f32 %v2149, 0.0
    %v2380 = vmax.f32 %v2152, 0.0
    %v2381 = vmax.f32 %v2157, 0.0
    %v2382 = vmax.f32 %v2160, 0.0
    %v2383 = vmax.f32 %v2165, 0.0
    %v2384 = vmax.f32 %v2168, 0.0
    %v2385 = vmax.f32 %v2173, 0.0
    %v2386 = vmax.f32 %v2176, 0.0
    %v2387 = vmax.f32 %v2181, 0.0
    %v2388 = vmax.f32 %v2184, 0.0
    %v2389 = vmax.f32 %v2189, 0.0
    %v2390 = vmax.f32 %v2192, 0.0
    %v2391 = vmax.f32 %v2197, 0.0
    %v2392 = vmax.f32 %v2200, 0.0
    %v2393 = vmax.f32 %v2205, 0.0
    %v2394 = vmax.f32 %v2208, 0.0
    %v2395 = vmax.f32 %v2213, 0.0
    %v2396 = vmax.f32 %v2216, 0.0
    %v2397 = vmax.f32 %v2221, 0.0
    %v2398 = vmax.f32 %v2224, 0.0
    %v2399 = vmax.f32 %v2229, 0.0
    %v2400 = vmax.f32 %v2232, 0.0
    %v2401 = vmax.f32 %v2237, 0.0
    %v2402 = vmax.f32 %v2240, 0.0
    %v2403 = vmax.f32 %v2245, 0.0
    %v2404 = vmax.f32 %v2248, 0.0
    %v2405 = vmax.f32 %v2253, 0.0
    %v2406 = vmax.f32 %v2256, 0.0
    %v2407 = vmax.f32 %v2261, 0.0
    %v2408 = vmax.f32 %v2264, 0.0
    %v2409 = vmax.f32 %v2269, 0.0
    %v2410 = vmax.f32 %v2272, 0.0
    %v2411 = vmax.f32 %v2277, 0.0
    %v2412 = vmax.f32 %v2280, 0.0
    %v2413 = vmax.f32 %v2285, 0.0
    %v2414 = vmax.f32 %v2288, 0.0
    %v2415 = vmax.f32 %v2293, 0.0
    %v2416 = vmax.f32 %v2296, 0.0
    %v2417 = vmax.f32 %v2301, 0.0
    %v2418 = vmax.f32 %v2304, 0.0
    %v2419 = vmax.f32 %v2309, 0.0
    %v2420 = vmax.f32 %v2312, 0.0
    %v2421 = vmax.f32 %v2317, 0.0
    %v2422 = vmax.f32 %v2320, 0.0
    %v2423 = vmax.f32 %v2325, 0.0
    %v2424 = vmax.f32 %v2328, 0.0
    %v2425 = vmax.f32 %v2333, 0.0
    %v2426 = vmax.f32 %v2336, 0.0
    %v2427 = vmax.f32 %v2341, 0.0
    %v2428 = vmax.f32 %v2344, 0.0
    %v2429 = vmax.f32 %v2349, 0.0
    %v2430 = vmax.f32 %v2352, 0.0
    %v2431 = vmax.f32 %v2357, 0.0
    %v2432 = vmax.f32 %v2360, 0.0
    %v2433 = vmax.f32 %v2365, 0.0
    %v2434 = vmax.f32 %v2368, 0.0
    %v2435 = vld [vmem:[%s9] sm:$0x1]
    %v2437 = vlaneseq
    %v2438 = vshrl.u32 %v2437, 7
    %v2439 = vsub.s32 0, %v2438
    %v2440 = vrot.slane %v2435, %v2439
    %v2442 = vmul.f32 %v2371, %v2440
    %v2443 = vmul.f32 %v2372, %v2440
    %v2444 = vmul.f32 %v2373, %v2440
    %v2445 = vmul.f32 %v2374, %v2440
    %v2446 = vmul.f32 %v2375, %v2440
    %v2447 = vmul.f32 %v2376, %v2440
    %v2448 = vmul.f32 %v2377, %v2440
    %v2449 = vmul.f32 %v2378, %v2440
    %v2450 = vmul.f32 %v2379, %v2440
    %v2451 = vmul.f32 %v2380, %v2440
    %v2452 = vmul.f32 %v2381, %v2440
    %v2453 = vmul.f32 %v2382, %v2440
    %v2454 = vmul.f32 %v2383, %v2440
    %v2455 = vmul.f32 %v2384, %v2440
    %v2456 = vmul.f32 %v2385, %v2440
    %v2457 = vmul.f32 %v2386, %v2440
    %v2458 = vmul.f32 %v2387, %v2440
    %v2459 = vmul.f32 %v2388, %v2440
    %v2460 = vmul.f32 %v2389, %v2440
    %v2461 = vmul.f32 %v2390, %v2440
    %v2462 = vmul.f32 %v2391, %v2440
    %v2463 = vmul.f32 %v2392, %v2440
    %v2464 = vmul.f32 %v2393, %v2440
    %v2465 = vmul.f32 %v2394, %v2440
    %v2466 = vmul.f32 %v2395, %v2440
    %v2467 = vmul.f32 %v2396, %v2440
    %v2468 = vmul.f32 %v2397, %v2440
    %v2469 = vmul.f32 %v2398, %v2440
    %v2470 = vmul.f32 %v2399, %v2440
    %v2471 = vmul.f32 %v2400, %v2440
    %v2472 = vmul.f32 %v2401, %v2440
    %v2473 = vmul.f32 %v2402, %v2440
    %v2474 = vmul.f32 %v2403, %v2440
    %v2475 = vmul.f32 %v2404, %v2440
    %v2476 = vmul.f32 %v2405, %v2440
    %v2477 = vmul.f32 %v2406, %v2440
    %v2478 = vmul.f32 %v2407, %v2440
    %v2479 = vmul.f32 %v2408, %v2440
    %v2480 = vmul.f32 %v2409, %v2440
    %v2481 = vmul.f32 %v2410, %v2440
    %v2482 = vmul.f32 %v2411, %v2440
    %v2483 = vmul.f32 %v2412, %v2440
    %v2484 = vmul.f32 %v2413, %v2440
    %v2485 = vmul.f32 %v2414, %v2440
    %v2486 = vmul.f32 %v2415, %v2440
    %v2487 = vmul.f32 %v2416, %v2440
    %v2488 = vmul.f32 %v2417, %v2440
    %v2489 = vmul.f32 %v2418, %v2440
    %v2490 = vmul.f32 %v2419, %v2440
    %v2491 = vmul.f32 %v2420, %v2440
    %v2492 = vmul.f32 %v2421, %v2440
    %v2493 = vmul.f32 %v2422, %v2440
    %v2494 = vmul.f32 %v2423, %v2440
    %v2495 = vmul.f32 %v2424, %v2440
    %v2496 = vmul.f32 %v2425, %v2440
    %v2497 = vmul.f32 %v2426, %v2440
    %v2498 = vmul.f32 %v2427, %v2440
    %v2499 = vmul.f32 %v2428, %v2440
    %v2500 = vmul.f32 %v2429, %v2440
    %v2501 = vmul.f32 %v2430, %v2440
    %v2502 = vmul.f32 %v2431, %v2440
    %v2503 = vmul.f32 %v2432, %v2440
    %v2504 = vmul.f32 %v2433, %v2440
    %v2505 = vmul.f32 %v2434, %v2440
    %v2506 = vsel %vm349, %v2442, 0.0
    %2507 = vadd.xlane.f32.xlu0 %v2506
    %v2508 = vpop.xlane.xlu0 %2507
    %v2509 = vsel %vm349, %v2443, 0.0
    %2510 = vadd.xlane.f32.xlu0 %v2509
    %v2511 = vpop.xlane.xlu0 %2510
    %v2512 = vsel %vm349, %v2444, 0.0
    %2513 = vadd.xlane.f32.xlu0 %v2512
    %v2514 = vpop.xlane.xlu0 %2513
    %v2515 = vsel %vm349, %v2445, 0.0
    %2516 = vadd.xlane.f32.xlu0 %v2515
    %v2517 = vpop.xlane.xlu0 %2516
    %v2518 = vsel %vm349, %v2446, 0.0
    %2519 = vadd.xlane.f32.xlu0 %v2518
    %v2520 = vpop.xlane.xlu0 %2519
    %v2521 = vsel %vm349, %v2447, 0.0
    %2522 = vadd.xlane.f32.xlu0 %v2521
    %v2523 = vpop.xlane.xlu0 %2522
    %v2524 = vsel %vm349, %v2448, 0.0
    %2525 = vadd.xlane.f32.xlu0 %v2524
    %v2526 = vpop.xlane.xlu0 %2525
    %v2527 = vsel %vm349, %v2449, 0.0
    %2528 = vadd.xlane.f32.xlu0 %v2527
    %v2529 = vpop.xlane.xlu0 %2528
    %v2530 = vsel %vm349, %v2450, 0.0
    %2531 = vadd.xlane.f32.xlu0 %v2530
    %v2532 = vpop.xlane.xlu0 %2531
    %v2533 = vsel %vm349, %v2451, 0.0
    %2534 = vadd.xlane.f32.xlu0 %v2533
    %v2535 = vpop.xlane.xlu0 %2534
    %v2536 = vsel %vm349, %v2452, 0.0
    %2537 = vadd.xlane.f32.xlu0 %v2536
    %v2538 = vpop.xlane.xlu0 %2537
    %v2539 = vsel %vm349, %v2453, 0.0
    %2540 = vadd.xlane.f32.xlu0 %v2539
    %v2541 = vpop.xlane.xlu0 %2540
    %v2542 = vsel %vm349, %v2454, 0.0
    %2543 = vadd.xlane.f32.xlu0 %v2542
    %v2544 = vpop.xlane.xlu0 %2543
    %v2545 = vsel %vm349, %v2455, 0.0
    %2546 = vadd.xlane.f32.xlu0 %v2545
    %v2547 = vpop.xlane.xlu0 %2546
    %v2548 = vsel %vm349, %v2456, 0.0
    %2549 = vadd.xlane.f32.xlu0 %v2548
    %v2550 = vpop.xlane.xlu0 %2549
    %v2551 = vsel %vm349, %v2457, 0.0
    %2552 = vadd.xlane.f32.xlu0 %v2551
    %v2553 = vpop.xlane.xlu0 %2552
    %v2554 = vsel %vm349, %v2458, 0.0
    %2555 = vadd.xlane.f32.xlu0 %v2554
    %v2556 = vpop.xlane.xlu0 %2555
    %v2557 = vsel %vm349, %v2459, 0.0
    %2558 = vadd.xlane.f32.xlu0 %v2557
    %v2559 = vpop.xlane.xlu0 %2558
    %v2560 = vsel %vm349, %v2460, 0.0
    %2561 = vadd.xlane.f32.xlu0 %v2560
    %v2562 = vpop.xlane.xlu0 %2561
    %v2563 = vsel %vm349, %v2461, 0.0
    %2564 = vadd.xlane.f32.xlu0 %v2563
    %v2565 = vpop.xlane.xlu0 %2564
    %v2566 = vsel %vm349, %v2462, 0.0
    %2567 = vadd.xlane.f32.xlu0 %v2566
    %v2568 = vpop.xlane.xlu0 %2567
    %v2569 = vsel %vm349, %v2463, 0.0
    %2570 = vadd.xlane.f32.xlu0 %v2569
    %v2571 = vpop.xlane.xlu0 %2570
    %v2572 = vsel %vm349, %v2464, 0.0
    %2573 = vadd.xlane.f32.xlu0 %v2572
    %v2574 = vpop.xlane.xlu0 %2573
    %v2575 = vsel %vm349, %v2465, 0.0
    %2576 = vadd.xlane.f32.xlu0 %v2575
    %v2577 = vpop.xlane.xlu0 %2576
    %v2578 = vsel %vm349, %v2466, 0.0
    %2579 = vadd.xlane.f32.xlu0 %v2578
    %v2580 = vpop.xlane.xlu0 %2579
    %v2581 = vsel %vm349, %v2467, 0.0
    %2582 = vadd.xlane.f32.xlu0 %v2581
    %v2583 = vpop.xlane.xlu0 %2582
    %v2584 = vsel %vm349, %v2468, 0.0
    %2585 = vadd.xlane.f32.xlu0 %v2584
    %v2586 = vpop.xlane.xlu0 %2585
    %v2587 = vsel %vm349, %v2469, 0.0
    %2588 = vadd.xlane.f32.xlu0 %v2587
    %v2589 = vpop.xlane.xlu0 %2588
    %v2590 = vsel %vm349, %v2470, 0.0
    %2591 = vadd.xlane.f32.xlu0 %v2590
    %v2592 = vpop.xlane.xlu0 %2591
    %v2593 = vsel %vm349, %v2471, 0.0
    %2594 = vadd.xlane.f32.xlu0 %v2593
    %v2595 = vpop.xlane.xlu0 %2594
    %v2596 = vsel %vm349, %v2472, 0.0
    %2597 = vadd.xlane.f32.xlu0 %v2596
    %v2598 = vpop.xlane.xlu0 %2597
    %v2599 = vsel %vm349, %v2473, 0.0
    %2600 = vadd.xlane.f32.xlu0 %v2599
    %v2601 = vpop.xlane.xlu0 %2600
    %v2602 = vsel %vm349, %v2474, 0.0
    %2603 = vadd.xlane.f32.xlu0 %v2602
    %v2604 = vpop.xlane.xlu0 %2603
    %v2605 = vsel %vm349, %v2475, 0.0
    %2606 = vadd.xlane.f32.xlu0 %v2605
    %v2607 = vpop.xlane.xlu0 %2606
    %v2608 = vsel %vm349, %v2476, 0.0
    %2609 = vadd.xlane.f32.xlu0 %v2608
    %v2610 = vpop.xlane.xlu0 %2609
    %v2611 = vsel %vm349, %v2477, 0.0
    %2612 = vadd.xlane.f32.xlu0 %v2611
    %v2613 = vpop.xlane.xlu0 %2612
    %v2614 = vsel %vm349, %v2478, 0.0
    %2615 = vadd.xlane.f32.xlu0 %v2614
    %v2616 = vpop.xlane.xlu0 %2615
    %v2617 = vsel %vm349, %v2479, 0.0
    %2618 = vadd.xlane.f32.xlu0 %v2617
    %v2619 = vpop.xlane.xlu0 %2618
    %v2620 = vsel %vm349, %v2480, 0.0
    %2621 = vadd.xlane.f32.xlu0 %v2620
    %v2622 = vpop.xlane.xlu0 %2621
    %v2623 = vsel %vm349, %v2481, 0.0
    %2624 = vadd.xlane.f32.xlu0 %v2623
    %v2625 = vpop.xlane.xlu0 %2624
    %v2626 = vsel %vm349, %v2482, 0.0
    %2627 = vadd.xlane.f32.xlu0 %v2626
    %v2628 = vpop.xlane.xlu0 %2627
    %v2629 = vsel %vm349, %v2483, 0.0
    %2630 = vadd.xlane.f32.xlu0 %v2629
    %v2631 = vpop.xlane.xlu0 %2630
    %v2632 = vsel %vm349, %v2484, 0.0
    %2633 = vadd.xlane.f32.xlu0 %v2632
    %v2634 = vpop.xlane.xlu0 %2633
    %v2635 = vsel %vm349, %v2485, 0.0
    %2636 = vadd.xlane.f32.xlu0 %v2635
    %v2637 = vpop.xlane.xlu0 %2636
    %v2638 = vsel %vm349, %v2486, 0.0
    %2639 = vadd.xlane.f32.xlu0 %v2638
    %v2640 = vpop.xlane.xlu0 %2639
    %v2641 = vsel %vm349, %v2487, 0.0
    %2642 = vadd.xlane.f32.xlu0 %v2641
    %v2643 = vpop.xlane.xlu0 %2642
    %v2644 = vsel %vm349, %v2488, 0.0
    %2645 = vadd.xlane.f32.xlu0 %v2644
    %v2646 = vpop.xlane.xlu0 %2645
    %v2647 = vsel %vm349, %v2489, 0.0
    %2648 = vadd.xlane.f32.xlu0 %v2647
    %v2649 = vpop.xlane.xlu0 %2648
    %v2650 = vsel %vm349, %v2490, 0.0
    %2651 = vadd.xlane.f32.xlu0 %v2650
    %v2652 = vpop.xlane.xlu0 %2651
    %v2653 = vsel %vm349, %v2491, 0.0
    %2654 = vadd.xlane.f32.xlu0 %v2653
    %v2655 = vpop.xlane.xlu0 %2654
    %v2656 = vsel %vm349, %v2492, 0.0
    %2657 = vadd.xlane.f32.xlu0 %v2656
    %v2658 = vpop.xlane.xlu0 %2657
    %v2659 = vsel %vm349, %v2493, 0.0
    %2660 = vadd.xlane.f32.xlu0 %v2659
    %v2661 = vpop.xlane.xlu0 %2660
    %v2662 = vsel %vm349, %v2494, 0.0
    %2663 = vadd.xlane.f32.xlu0 %v2662
    %v2664 = vpop.xlane.xlu0 %2663
    %v2665 = vsel %vm349, %v2495, 0.0
    %2666 = vadd.xlane.f32.xlu0 %v2665
    %v2667 = vpop.xlane.xlu0 %2666
    %v2668 = vsel %vm349, %v2496, 0.0
    %2669 = vadd.xlane.f32.xlu0 %v2668
    %v2670 = vpop.xlane.xlu0 %2669
    %v2671 = vsel %vm349, %v2497, 0.0
    %2672 = vadd.xlane.f32.xlu0 %v2671
    %v2673 = vpop.xlane.xlu0 %2672
    %v2674 = vsel %vm349, %v2498, 0.0
    %2675 = vadd.xlane.f32.xlu0 %v2674
    %v2676 = vpop.xlane.xlu0 %2675
    %v2677 = vsel %vm349, %v2499, 0.0
    %2678 = vadd.xlane.f32.xlu0 %v2677
    %v2679 = vpop.xlane.xlu0 %2678
    %v2680 = vsel %vm349, %v2500, 0.0
    %2681 = vadd.xlane.f32.xlu0 %v2680
    %v2682 = vpop.xlane.xlu0 %2681
    %v2683 = vsel %vm349, %v2501, 0.0
    %2684 = vadd.xlane.f32.xlu0 %v2683
    %v2685 = vpop.xlane.xlu0 %2684
    %v2686 = vsel %vm349, %v2502, 0.0
    %2687 = vadd.xlane.f32.xlu0 %v2686
    %v2688 = vpop.xlane.xlu0 %2687
    %v2689 = vsel %vm349, %v2503, 0.0
    %2690 = vadd.xlane.f32.xlu0 %v2689
    %v2691 = vpop.xlane.xlu0 %2690
    %v2692 = vsel %vm349, %v2504, 0.0
    %2693 = vadd.xlane.f32.xlu0 %v2692
    %v2694 = vpop.xlane.xlu0 %2693
    %v2695 = vsel %vm349, %v2505, 0.0
    %2696 = vadd.xlane.f32.xlu0 %v2695
    %v2697 = vpop.xlane.xlu0 %2696
    %s2698 = sld [smem:[#allocation2]]
    %v2699 = vstv %s2698
    %v2700 = vadd.f32 %v2508, %v2699
    %v2701 = vadd.f32 %v2511, %v2699
    %v2702 = vadd.f32 %v2514, %v2699
    %v2703 = vadd.f32 %v2517, %v2699
    %v2704 = vadd.f32 %v2520, %v2699
    %v2705 = vadd.f32 %v2523, %v2699
    %v2706 = vadd.f32 %v2526, %v2699
    %v2707 = vadd.f32 %v2529, %v2699
    %v2708 = vadd.f32 %v2532, %v2699
    %v2709 = vadd.f32 %v2535, %v2699
    %v2710 = vadd.f32 %v2538, %v2699
    %v2711 = vadd.f32 %v2541, %v2699
    %v2712 = vadd.f32 %v2544, %v2699
    %v2713 = vadd.f32 %v2547, %v2699
    %v2714 = vadd.f32 %v2550, %v2699
    %v2715 = vadd.f32 %v2553, %v2699
    %v2716 = vadd.f32 %v2556, %v2699
    %v2717 = vadd.f32 %v2559, %v2699
    %v2718 = vadd.f32 %v2562, %v2699
    %v2719 = vadd.f32 %v2565, %v2699
    %v2720 = vadd.f32 %v2568, %v2699
    %v2721 = vadd.f32 %v2571, %v2699
    %v2722 = vadd.f32 %v2574, %v2699
    %v2723 = vadd.f32 %v2577, %v2699
    %v2724 = vadd.f32 %v2580, %v2699
    %v2725 = vadd.f32 %v2583, %v2699
    %v2726 = vadd.f32 %v2586, %v2699
    %v2727 = vadd.f32 %v2589, %v2699
    %v2728 = vadd.f32 %v2592, %v2699
    %v2729 = vadd.f32 %v2595, %v2699
    %v2730 = vadd.f32 %v2598, %v2699
    %v2731 = vadd.f32 %v2601, %v2699
    %v2732 = vadd.f32 %v2604, %v2699
    %v2733 = vadd.f32 %v2607, %v2699
    %v2734 = vadd.f32 %v2610, %v2699
    %v2735 = vadd.f32 %v2613, %v2699
    %v2736 = vadd.f32 %v2616, %v2699
    %v2737 = vadd.f32 %v2619, %v2699
    %v2738 = vadd.f32 %v2622, %v2699
    %v2739 = vadd.f32 %v2625, %v2699
    %v2740 = vadd.f32 %v2628, %v2699
    %v2741 = vadd.f32 %v2631, %v2699
    %v2742 = vadd.f32 %v2634, %v2699
    %v2743 = vadd.f32 %v2637, %v2699
    %v2744 = vadd.f32 %v2640, %v2699
    %v2745 = vadd.f32 %v2643, %v2699
    %v2746 = vadd.f32 %v2646, %v2699
    %v2747 = vadd.f32 %v2649, %v2699
    %v2748 = vadd.f32 %v2652, %v2699
    %v2749 = vadd.f32 %v2655, %v2699
    %v2750 = vadd.f32 %v2658, %v2699
    %v2751 = vadd.f32 %v2661, %v2699
    %v2752 = vadd.f32 %v2664, %v2699
    %v2753 = vadd.f32 %v2667, %v2699
    %v2754 = vadd.f32 %v2670, %v2699
    %v2755 = vadd.f32 %v2673, %v2699
    %v2756 = vadd.f32 %v2676, %v2699
    %v2757 = vadd.f32 %v2679, %v2699
    %v2758 = vadd.f32 %v2682, %v2699
    %v2759 = vadd.f32 %v2685, %v2699
    %v2760 = vadd.f32 %v2688, %v2699
    %v2761 = vadd.f32 %v2691, %v2699
    %v2762 = vadd.f32 %v2694, %v2699
    %v2763 = vadd.f32 %v2697, %v2699
    %v2828 = vlaneseq
    %v2829 = vshrl.u32 %v2828, 7
    %v2830 = vsub.s32 0, %v2829
    %v2831 = vrot.slane %v2700, %v2830
    %v2832 = vlaneseq
    %v2833 = vshrl.u32 %v2832, 7
    %v2834 = vsub.s32 1, %v2833
    %v2835 = vrot.slane %v2700, %v2834
    %v2836 = vlaneseq
    %v2837 = vshrl.u32 %v2836, 7
    %v2838 = vsub.s32 2, %v2837
    %v2839 = vrot.slane %v2700, %v2838
    %v2840 = vlaneseq
    %v2841 = vshrl.u32 %v2840, 7
    %v2842 = vsub.s32 3, %v2841
    %v2843 = vrot.slane %v2700, %v2842
    %v2844 = vlaneseq
    %v2845 = vshrl.u32 %v2844, 7
    %v2846 = vsub.s32 4, %v2845
    %v2847 = vrot.slane %v2700, %v2846
    %v2848 = vlaneseq
    %v2849 = vshrl.u32 %v2848, 7
    %v2850 = vsub.s32 5, %v2849
    %v2851 = vrot.slane %v2700, %v2850
    %v2852 = vlaneseq
    %v2853 = vshrl.u32 %v2852, 7
    %v2854 = vsub.s32 6, %v2853
    %v2855 = vrot.slane %v2700, %v2854
    %v2856 = vlaneseq
    %v2857 = vshrl.u32 %v2856, 7
    %v2858 = vsub.s32 7, %v2857
    %v2859 = vrot.slane %v2700, %v2858
    %v2860 = vlaneseq
    %v2861 = vshrl.u32 %v2860, 7
    %v2862 = vsub.s32 0, %v2861
    %v2863 = vrot.slane %v2701, %v2862
    %v2864 = vlaneseq
    %v2865 = vshrl.u32 %v2864, 7
    %v2866 = vsub.s32 1, %v2865
    %v2867 = vrot.slane %v2701, %v2866
    %v2868 = vlaneseq
    %v2869 = vshrl.u32 %v2868, 7
    %v2870 = vsub.s32 2, %v2869
    %v2871 = vrot.slane %v2701, %v2870
    %v2872 = vlaneseq
    %v2873 = vshrl.u32 %v2872, 7
    %v2874 = vsub.s32 3, %v2873
    %v2875 = vrot.slane %v2701, %v2874
    %v2876 = vlaneseq
    %v2877 = vshrl.u32 %v2876, 7
    %v2878 = vsub.s32 4, %v2877
    %v2879 = vrot.slane %v2701, %v2878
    %v2880 = vlaneseq
    %v2881 = vshrl.u32 %v2880, 7
    %v2882 = vsub.s32 5, %v2881
    %v2883 = vrot.slane %v2701, %v2882
    %v2884 = vlaneseq
    %v2885 = vshrl.u32 %v2884, 7
    %v2886 = vsub.s32 6, %v2885
    %v2887 = vrot.slane %v2701, %v2886
    %v2888 = vlaneseq
    %v2889 = vshrl.u32 %v2888, 7
    %v2890 = vsub.s32 7, %v2889
    %v2891 = vrot.slane %v2701, %v2890
    %v2892 = vlaneseq
    %v2893 = vshrl.u32 %v2892, 7
    %v2894 = vsub.s32 0, %v2893
    %v2895 = vrot.slane %v2702, %v2894
    %v2896 = vlaneseq
    %v2897 = vshrl.u32 %v2896, 7
    %v2898 = vsub.s32 1, %v2897
    %v2899 = vrot.slane %v2702, %v2898
    %v2900 = vlaneseq
    %v2901 = vshrl.u32 %v2900, 7
    %v2902 = vsub.s32 2, %v2901
    %v2903 = vrot.slane %v2702, %v2902
    %v2904 = vlaneseq
    %v2905 = vshrl.u32 %v2904, 7
    %v2906 = vsub.s32 3, %v2905
    %v2907 = vrot.slane %v2702, %v2906
    %v2908 = vlaneseq
    %v2909 = vshrl.u32 %v2908, 7
    %v2910 = vsub.s32 4, %v2909
    %v2911 = vrot.slane %v2702, %v2910
    %v2912 = vlaneseq
    %v2913 = vshrl.u32 %v2912, 7
    %v2914 = vsub.s32 5, %v2913
    %v2915 = vrot.slane %v2702, %v2914
    %v2916 = vlaneseq
    %v2917 = vshrl.u32 %v2916, 7
    %v2918 = vsub.s32 6, %v2917
    %v2919 = vrot.slane %v2702, %v2918
    %v2920 = vlaneseq
    %v2921 = vshrl.u32 %v2920, 7
    %v2922 = vsub.s32 7, %v2921
    %v2923 = vrot.slane %v2702, %v2922
    %v2924 = vlaneseq
    %v2925 = vshrl.u32 %v2924, 7
    %v2926 = vsub.s32 0, %v2925
    %v2927 = vrot.slane %v2703, %v2926
    %v2928 = vlaneseq
    %v2929 = vshrl.u32 %v2928, 7
    %v2930 = vsub.s32 1, %v2929
    %v2931 = vrot.slane %v2703, %v2930
    %v2932 = vlaneseq
    %v2933 = vshrl.u32 %v2932, 7
    %v2934 = vsub.s32 2, %v2933
    %v2935 = vrot.slane %v2703, %v2934
    %v2936 = vlaneseq
    %v2937 = vshrl.u32 %v2936, 7
    %v2938 = vsub.s32 3, %v2937
    %v2939 = vrot.slane %v2703, %v2938
    %v2940 = vlaneseq
    %v2941 = vshrl.u32 %v2940, 7
    %v2942 = vsub.s32 4, %v2941
    %v2943 = vrot.slane %v2703, %v2942
    %v2944 = vlaneseq
    %v2945 = vshrl.u32 %v2944, 7
    %v2946 = vsub.s32 5, %v2945
    %v2947 = vrot.slane %v2703, %v2946
    %v2948 = vlaneseq
    %v2949 = vshrl.u32 %v2948, 7
    %v2950 = vsub.s32 6, %v2949
    %v2951 = vrot.slane %v2703, %v2950
    %v2952 = vlaneseq
    %v2953 = vshrl.u32 %v2952, 7
    %v2954 = vsub.s32 7, %v2953
    %v2955 = vrot.slane %v2703, %v2954
    %v2956 = vlaneseq
    %v2957 = vshrl.u32 %v2956, 7
    %v2958 = vsub.s32 0, %v2957
    %v2959 = vrot.slane %v2704, %v2958
    %v2960 = vlaneseq
    %v2961 = vshrl.u32 %v2960, 7
    %v2962 = vsub.s32 1, %v2961
    %v2963 = vrot.slane %v2704, %v2962
    %v2964 = vlaneseq
    %v2965 = vshrl.u32 %v2964, 7
    %v2966 = vsub.s32 2, %v2965
    %v2967 = vrot.slane %v2704, %v2966
    %v2968 = vlaneseq
    %v2969 = vshrl.u32 %v2968, 7
    %v2970 = vsub.s32 3, %v2969
    %v2971 = vrot.slane %v2704, %v2970
    %v2972 = vlaneseq
    %v2973 = vshrl.u32 %v2972, 7
    %v2974 = vsub.s32 4, %v2973
    %v2975 = vrot.slane %v2704, %v2974
    %v2976 = vlaneseq
    %v2977 = vshrl.u32 %v2976, 7
    %v2978 = vsub.s32 5, %v2977
    %v2979 = vrot.slane %v2704, %v2978
    %v2980 = vlaneseq
    %v2981 = vshrl.u32 %v2980, 7
    %v2982 = vsub.s32 6, %v2981
    %v2983 = vrot.slane %v2704, %v2982
    %v2984 = vlaneseq
    %v2985 = vshrl.u32 %v2984, 7
    %v2986 = vsub.s32 7, %v2985
    %v2987 = vrot.slane %v2704, %v2986
    %v2988 = vlaneseq
    %v2989 = vshrl.u32 %v2988, 7
    %v2990 = vsub.s32 0, %v2989
    %v2991 = vrot.slane %v2705, %v2990
    %v2992 = vlaneseq
    %v2993 = vshrl.u32 %v2992, 7
    %v2994 = vsub.s32 1, %v2993
    %v2995 = vrot.slane %v2705, %v2994
    %v2996 = vlaneseq
    %v2997 = vshrl.u32 %v2996, 7
    %v2998 = vsub.s32 2, %v2997
    %v2999 = vrot.slane %v2705, %v2998
    %v3000 = vlaneseq
    %v3001 = vshrl.u32 %v3000, 7
    %v3002 = vsub.s32 3, %v3001
    %v3003 = vrot.slane %v2705, %v3002
    %v3004 = vlaneseq
    %v3005 = vshrl.u32 %v3004, 7
    %v3006 = vsub.s32 4, %v3005
    %v3007 = vrot.slane %v2705, %v3006
    %v3008 = vlaneseq
    %v3009 = vshrl.u32 %v3008, 7
    %v3010 = vsub.s32 5, %v3009
    %v3011 = vrot.slane %v2705, %v3010
    %v3012 = vlaneseq
    %v3013 = vshrl.u32 %v3012, 7
    %v3014 = vsub.s32 6, %v3013
    %v3015 = vrot.slane %v2705, %v3014
    %v3016 = vlaneseq
    %v3017 = vshrl.u32 %v3016, 7
    %v3018 = vsub.s32 7, %v3017
    %v3019 = vrot.slane %v2705, %v3018
    %v3020 = vlaneseq
    %v3021 = vshrl.u32 %v3020, 7
    %v3022 = vsub.s32 0, %v3021
    %v3023 = vrot.slane %v2706, %v3022
    %v3024 = vlaneseq
    %v3025 = vshrl.u32 %v3024, 7
    %v3026 = vsub.s32 1, %v3025
    %v3027 = vrot.slane %v2706, %v3026
    %v3028 = vlaneseq
    %v3029 = vshrl.u32 %v3028, 7
    %v3030 = vsub.s32 2, %v3029
    %v3031 = vrot.slane %v2706, %v3030
    %v3032 = vlaneseq
    %v3033 = vshrl.u32 %v3032, 7
    %v3034 = vsub.s32 3, %v3033
    %v3035 = vrot.slane %v2706, %v3034
    %v3036 = vlaneseq
    %v3037 = vshrl.u32 %v3036, 7
    %v3038 = vsub.s32 4, %v3037
    %v3039 = vrot.slane %v2706, %v3038
    %v3040 = vlaneseq
    %v3041 = vshrl.u32 %v3040, 7
    %v3042 = vsub.s32 5, %v3041
    %v3043 = vrot.slane %v2706, %v3042
    %v3044 = vlaneseq
    %v3045 = vshrl.u32 %v3044, 7
    %v3046 = vsub.s32 6, %v3045
    %v3047 = vrot.slane %v2706, %v3046
    %v3048 = vlaneseq
    %v3049 = vshrl.u32 %v3048, 7
    %v3050 = vsub.s32 7, %v3049
    %v3051 = vrot.slane %v2706, %v3050
    %v3052 = vlaneseq
    %v3053 = vshrl.u32 %v3052, 7
    %v3054 = vsub.s32 0, %v3053
    %v3055 = vrot.slane %v2707, %v3054
    %v3056 = vlaneseq
    %v3057 = vshrl.u32 %v3056, 7
    %v3058 = vsub.s32 1, %v3057
    %v3059 = vrot.slane %v2707, %v3058
    %v3060 = vlaneseq
    %v3061 = vshrl.u32 %v3060, 7
    %v3062 = vsub.s32 2, %v3061
    %v3063 = vrot.slane %v2707, %v3062
    %v3064 = vlaneseq
    %v3065 = vshrl.u32 %v3064, 7
    %v3066 = vsub.s32 3, %v3065
    %v3067 = vrot.slane %v2707, %v3066
    %v3068 = vlaneseq
    %v3069 = vshrl.u32 %v3068, 7
    %v3070 = vsub.s32 4, %v3069
    %v3071 = vrot.slane %v2707, %v3070
    %v3072 = vlaneseq
    %v3073 = vshrl.u32 %v3072, 7
    %v3074 = vsub.s32 5, %v3073
    %v3075 = vrot.slane %v2707, %v3074
    %v3076 = vlaneseq
    %v3077 = vshrl.u32 %v3076, 7
    %v3078 = vsub.s32 6, %v3077
    %v3079 = vrot.slane %v2707, %v3078
    %v3080 = vlaneseq
    %v3081 = vshrl.u32 %v3080, 7
    %v3082 = vsub.s32 7, %v3081
    %v3083 = vrot.slane %v2707, %v3082
    %v3084 = vlaneseq
    %v3085 = vshrl.u32 %v3084, 7
    %v3086 = vsub.s32 0, %v3085
    %v3087 = vrot.slane %v2708, %v3086
    %v3088 = vlaneseq
    %v3089 = vshrl.u32 %v3088, 7
    %v3090 = vsub.s32 1, %v3089
    %v3091 = vrot.slane %v2708, %v3090
    %v3092 = vlaneseq
    %v3093 = vshrl.u32 %v3092, 7
    %v3094 = vsub.s32 2, %v3093
    %v3095 = vrot.slane %v2708, %v3094
    %v3096 = vlaneseq
    %v3097 = vshrl.u32 %v3096, 7
    %v3098 = vsub.s32 3, %v3097
    %v3099 = vrot.slane %v2708, %v3098
    %v3100 = vlaneseq
    %v3101 = vshrl.u32 %v3100, 7
    %v3102 = vsub.s32 4, %v3101
    %v3103 = vrot.slane %v2708, %v3102
    %v3104 = vlaneseq
    %v3105 = vshrl.u32 %v3104, 7
    %v3106 = vsub.s32 5, %v3105
    %v3107 = vrot.slane %v2708, %v3106
    %v3108 = vlaneseq
    %v3109 = vshrl.u32 %v3108, 7
    %v3110 = vsub.s32 6, %v3109
    %v3111 = vrot.slane %v2708, %v3110
    %v3112 = vlaneseq
    %v3113 = vshrl.u32 %v3112, 7
    %v3114 = vsub.s32 7, %v3113
    %v3115 = vrot.slane %v2708, %v3114
    %v3116 = vlaneseq
    %v3117 = vshrl.u32 %v3116, 7
    %v3118 = vsub.s32 0, %v3117
    %v3119 = vrot.slane %v2709, %v3118
    %v3120 = vlaneseq
    %v3121 = vshrl.u32 %v3120, 7
    %v3122 = vsub.s32 1, %v3121
    %v3123 = vrot.slane %v2709, %v3122
    %v3124 = vlaneseq
    %v3125 = vshrl.u32 %v3124, 7
    %v3126 = vsub.s32 2, %v3125
    %v3127 = vrot.slane %v2709, %v3126
    %v3128 = vlaneseq
    %v3129 = vshrl.u32 %v3128, 7
    %v3130 = vsub.s32 3, %v3129
    %v3131 = vrot.slane %v2709, %v3130
    %v3132 = vlaneseq
    %v3133 = vshrl.u32 %v3132, 7
    %v3134 = vsub.s32 4, %v3133
    %v3135 = vrot.slane %v2709, %v3134
    %v3136 = vlaneseq
    %v3137 = vshrl.u32 %v3136, 7
    %v3138 = vsub.s32 5, %v3137
    %v3139 = vrot.slane %v2709, %v3138
    %v3140 = vlaneseq
    %v3141 = vshrl.u32 %v3140, 7
    %v3142 = vsub.s32 6, %v3141
    %v3143 = vrot.slane %v2709, %v3142
    %v3144 = vlaneseq
    %v3145 = vshrl.u32 %v3144, 7
    %v3146 = vsub.s32 7, %v3145
    %v3147 = vrot.slane %v2709, %v3146
    %v3148 = vlaneseq
    %v3149 = vshrl.u32 %v3148, 7
    %v3150 = vsub.s32 0, %v3149
    %v3151 = vrot.slane %v2710, %v3150
    %v3152 = vlaneseq
    %v3153 = vshrl.u32 %v3152, 7
    %v3154 = vsub.s32 1, %v3153
    %v3155 = vrot.slane %v2710, %v3154
    %v3156 = vlaneseq
    %v3157 = vshrl.u32 %v3156, 7
    %v3158 = vsub.s32 2, %v3157
    %v3159 = vrot.slane %v2710, %v3158
    %v3160 = vlaneseq
    %v3161 = vshrl.u32 %v3160, 7
    %v3162 = vsub.s32 3, %v3161
    %v3163 = vrot.slane %v2710, %v3162
    %v3164 = vlaneseq
    %v3165 = vshrl.u32 %v3164, 7
    %v3166 = vsub.s32 4, %v3165
    %v3167 = vrot.slane %v2710, %v3166
    %v3168 = vlaneseq
    %v3169 = vshrl.u32 %v3168, 7
    %v3170 = vsub.s32 5, %v3169
    %v3171 = vrot.slane %v2710, %v3170
    %v3172 = vlaneseq
    %v3173 = vshrl.u32 %v3172, 7
    %v3174 = vsub.s32 6, %v3173
    %v3175 = vrot.slane %v2710, %v3174
    %v3176 = vlaneseq
    %v3177 = vshrl.u32 %v3176, 7
    %v3178 = vsub.s32 7, %v3177
    %v3179 = vrot.slane %v2710, %v3178
    %v3180 = vlaneseq
    %v3181 = vshrl.u32 %v3180, 7
    %v3182 = vsub.s32 0, %v3181
    %v3183 = vrot.slane %v2711, %v3182
    %v3184 = vlaneseq
    %v3185 = vshrl.u32 %v3184, 7
    %v3186 = vsub.s32 1, %v3185
    %v3187 = vrot.slane %v2711, %v3186
    %v3188 = vlaneseq
    %v3189 = vshrl.u32 %v3188, 7
    %v3190 = vsub.s32 2, %v3189
    %v3191 = vrot.slane %v2711, %v3190
    %v3192 = vlaneseq
    %v3193 = vshrl.u32 %v3192, 7
    %v3194 = vsub.s32 3, %v3193
    %v3195 = vrot.slane %v2711, %v3194
    %v3196 = vlaneseq
    %v3197 = vshrl.u32 %v3196, 7
    %v3198 = vsub.s32 4, %v3197
    %v3199 = vrot.slane %v2711, %v3198
    %v3200 = vlaneseq
    %v3201 = vshrl.u32 %v3200, 7
    %v3202 = vsub.s32 5, %v3201
    %v3203 = vrot.slane %v2711, %v3202
    %v3204 = vlaneseq
    %v3205 = vshrl.u32 %v3204, 7
    %v3206 = vsub.s32 6, %v3205
    %v3207 = vrot.slane %v2711, %v3206
    %v3208 = vlaneseq
    %v3209 = vshrl.u32 %v3208, 7
    %v3210 = vsub.s32 7, %v3209
    %v3211 = vrot.slane %v2711, %v3210
    %v3212 = vlaneseq
    %v3213 = vshrl.u32 %v3212, 7
    %v3214 = vsub.s32 0, %v3213
    %v3215 = vrot.slane %v2712, %v3214
    %v3216 = vlaneseq
    %v3217 = vshrl.u32 %v3216, 7
    %v3218 = vsub.s32 1, %v3217
    %v3219 = vrot.slane %v2712, %v3218
    %v3220 = vlaneseq
    %v3221 = vshrl.u32 %v3220, 7
    %v3222 = vsub.s32 2, %v3221
    %v3223 = vrot.slane %v2712, %v3222
    %v3224 = vlaneseq
    %v3225 = vshrl.u32 %v3224, 7
    %v3226 = vsub.s32 3, %v3225
    %v3227 = vrot.slane %v2712, %v3226
    %v3228 = vlaneseq
    %v3229 = vshrl.u32 %v3228, 7
    %v3230 = vsub.s32 4, %v3229
    %v3231 = vrot.slane %v2712, %v3230
    %v3232 = vlaneseq
    %v3233 = vshrl.u32 %v3232, 7
    %v3234 = vsub.s32 5, %v3233
    %v3235 = vrot.slane %v2712, %v3234
    %v3236 = vlaneseq
    %v3237 = vshrl.u32 %v3236, 7
    %v3238 = vsub.s32 6, %v3237
    %v3239 = vrot.slane %v2712, %v3238
    %v3240 = vlaneseq
    %v3241 = vshrl.u32 %v3240, 7
    %v3242 = vsub.s32 7, %v3241
    %v3243 = vrot.slane %v2712, %v3242
    %v3244 = vlaneseq
    %v3245 = vshrl.u32 %v3244, 7
    %v3246 = vsub.s32 0, %v3245
    %v3247 = vrot.slane %v2713, %v3246
    %v3248 = vlaneseq
    %v3249 = vshrl.u32 %v3248, 7
    %v3250 = vsub.s32 1, %v3249
    %v3251 = vrot.slane %v2713, %v3250
    %v3252 = vlaneseq
    %v3253 = vshrl.u32 %v3252, 7
    %v3254 = vsub.s32 2, %v3253
    %v3255 = vrot.slane %v2713, %v3254
    %v3256 = vlaneseq
    %v3257 = vshrl.u32 %v3256, 7
    %v3258 = vsub.s32 3, %v3257
    %v3259 = vrot.slane %v2713, %v3258
    %v3260 = vlaneseq
    %v3261 = vshrl.u32 %v3260, 7
    %v3262 = vsub.s32 4, %v3261
    %v3263 = vrot.slane %v2713, %v3262
    %v3264 = vlaneseq
    %v3265 = vshrl.u32 %v3264, 7
    %v3266 = vsub.s32 5, %v3265
    %v3267 = vrot.slane %v2713, %v3266
    %v3268 = vlaneseq
    %v3269 = vshrl.u32 %v3268, 7
    %v3270 = vsub.s32 6, %v3269
    %v3271 = vrot.slane %v2713, %v3270
    %v3272 = vlaneseq
    %v3273 = vshrl.u32 %v3272, 7
    %v3274 = vsub.s32 7, %v3273
    %v3275 = vrot.slane %v2713, %v3274
    %v3276 = vlaneseq
    %v3277 = vshrl.u32 %v3276, 7
    %v3278 = vsub.s32 0, %v3277
    %v3279 = vrot.slane %v2714, %v3278
    %v3280 = vlaneseq
    %v3281 = vshrl.u32 %v3280, 7
    %v3282 = vsub.s32 1, %v3281
    %v3283 = vrot.slane %v2714, %v3282
    %v3284 = vlaneseq
    %v3285 = vshrl.u32 %v3284, 7
    %v3286 = vsub.s32 2, %v3285
    %v3287 = vrot.slane %v2714, %v3286
    %v3288 = vlaneseq
    %v3289 = vshrl.u32 %v3288, 7
    %v3290 = vsub.s32 3, %v3289
    %v3291 = vrot.slane %v2714, %v3290
    %v3292 = vlaneseq
    %v3293 = vshrl.u32 %v3292, 7
    %v3294 = vsub.s32 4, %v3293
    %v3295 = vrot.slane %v2714, %v3294
    %v3296 = vlaneseq
    %v3297 = vshrl.u32 %v3296, 7
    %v3298 = vsub.s32 5, %v3297
    %v3299 = vrot.slane %v2714, %v3298
    %v3300 = vlaneseq
    %v3301 = vshrl.u32 %v3300, 7
    %v3302 = vsub.s32 6, %v3301
    %v3303 = vrot.slane %v2714, %v3302
    %v3304 = vlaneseq
    %v3305 = vshrl.u32 %v3304, 7
    %v3306 = vsub.s32 7, %v3305
    %v3307 = vrot.slane %v2714, %v3306
    %v3308 = vlaneseq
    %v3309 = vshrl.u32 %v3308, 7
    %v3310 = vsub.s32 0, %v3309
    %v3311 = vrot.slane %v2715, %v3310
    %v3312 = vlaneseq
    %v3313 = vshrl.u32 %v3312, 7
    %v3314 = vsub.s32 1, %v3313
    %v3315 = vrot.slane %v2715, %v3314
    %v3316 = vlaneseq
    %v3317 = vshrl.u32 %v3316, 7
    %v3318 = vsub.s32 2, %v3317
    %v3319 = vrot.slane %v2715, %v3318
    %v3320 = vlaneseq
    %v3321 = vshrl.u32 %v3320, 7
    %v3322 = vsub.s32 3, %v3321
    %v3323 = vrot.slane %v2715, %v3322
    %v3324 = vlaneseq
    %v3325 = vshrl.u32 %v3324, 7
    %v3326 = vsub.s32 4, %v3325
    %v3327 = vrot.slane %v2715, %v3326
    %v3328 = vlaneseq
    %v3329 = vshrl.u32 %v3328, 7
    %v3330 = vsub.s32 5, %v3329
    %v3331 = vrot.slane %v2715, %v3330
    %v3332 = vlaneseq
    %v3333 = vshrl.u32 %v3332, 7
    %v3334 = vsub.s32 6, %v3333
    %v3335 = vrot.slane %v2715, %v3334
    %v3336 = vlaneseq
    %v3337 = vshrl.u32 %v3336, 7
    %v3338 = vsub.s32 7, %v3337
    %v3339 = vrot.slane %v2715, %v3338
    %v3340 = vlaneseq
    %v3341 = vshrl.u32 %v3340, 7
    %v3342 = vsub.s32 0, %v3341
    %v3343 = vrot.slane %v2716, %v3342
    %v3344 = vlaneseq
    %v3345 = vshrl.u32 %v3344, 7
    %v3346 = vsub.s32 1, %v3345
    %v3347 = vrot.slane %v2716, %v3346
    %v3348 = vlaneseq
    %v3349 = vshrl.u32 %v3348, 7
    %v3350 = vsub.s32 2, %v3349
    %v3351 = vrot.slane %v2716, %v3350
    %v3352 = vlaneseq
    %v3353 = vshrl.u32 %v3352, 7
    %v3354 = vsub.s32 3, %v3353
    %v3355 = vrot.slane %v2716, %v3354
    %v3356 = vlaneseq
    %v3357 = vshrl.u32 %v3356, 7
    %v3358 = vsub.s32 4, %v3357
    %v3359 = vrot.slane %v2716, %v3358
    %v3360 = vlaneseq
    %v3361 = vshrl.u32 %v3360, 7
    %v3362 = vsub.s32 5, %v3361
    %v3363 = vrot.slane %v2716, %v3362
    %v3364 = vlaneseq
    %v3365 = vshrl.u32 %v3364, 7
    %v3366 = vsub.s32 6, %v3365
    %v3367 = vrot.slane %v2716, %v3366
    %v3368 = vlaneseq
    %v3369 = vshrl.u32 %v3368, 7
    %v3370 = vsub.s32 7, %v3369
    %v3371 = vrot.slane %v2716, %v3370
    %v3372 = vlaneseq
    %v3373 = vshrl.u32 %v3372, 7
    %v3374 = vsub.s32 0, %v3373
    %v3375 = vrot.slane %v2717, %v3374
    %v3376 = vlaneseq
    %v3377 = vshrl.u32 %v3376, 7
    %v3378 = vsub.s32 1, %v3377
    %v3379 = vrot.slane %v2717, %v3378
    %v3380 = vlaneseq
    %v3381 = vshrl.u32 %v3380, 7
    %v3382 = vsub.s32 2, %v3381
    %v3383 = vrot.slane %v2717, %v3382
    %v3384 = vlaneseq
    %v3385 = vshrl.u32 %v3384, 7
    %v3386 = vsub.s32 3, %v3385
    %v3387 = vrot.slane %v2717, %v3386
    %v3388 = vlaneseq
    %v3389 = vshrl.u32 %v3388, 7
    %v3390 = vsub.s32 4, %v3389
    %v3391 = vrot.slane %v2717, %v3390
    %v3392 = vlaneseq
    %v3393 = vshrl.u32 %v3392, 7
    %v3394 = vsub.s32 5, %v3393
    %v3395 = vrot.slane %v2717, %v3394
    %v3396 = vlaneseq
    %v3397 = vshrl.u32 %v3396, 7
    %v3398 = vsub.s32 6, %v3397
    %v3399 = vrot.slane %v2717, %v3398
    %v3400 = vlaneseq
    %v3401 = vshrl.u32 %v3400, 7
    %v3402 = vsub.s32 7, %v3401
    %v3403 = vrot.slane %v2717, %v3402
    %v3404 = vlaneseq
    %v3405 = vshrl.u32 %v3404, 7
    %v3406 = vsub.s32 0, %v3405
    %v3407 = vrot.slane %v2718, %v3406
    %v3408 = vlaneseq
    %v3409 = vshrl.u32 %v3408, 7
    %v3410 = vsub.s32 1, %v3409
    %v3411 = vrot.slane %v2718, %v3410
    %v3412 = vlaneseq
    %v3413 = vshrl.u32 %v3412, 7
    %v3414 = vsub.s32 2, %v3413
    %v3415 = vrot.slane %v2718, %v3414
    %v3416 = vlaneseq
    %v3417 = vshrl.u32 %v3416, 7
    %v3418 = vsub.s32 3, %v3417
    %v3419 = vrot.slane %v2718, %v3418
    %v3420 = vlaneseq
    %v3421 = vshrl.u32 %v3420, 7
    %v3422 = vsub.s32 4, %v3421
    %v3423 = vrot.slane %v2718, %v3422
    %v3424 = vlaneseq
    %v3425 = vshrl.u32 %v3424, 7
    %v3426 = vsub.s32 5, %v3425
    %v3427 = vrot.slane %v2718, %v3426
    %v3428 = vlaneseq
    %v3429 = vshrl.u32 %v3428, 7
    %v3430 = vsub.s32 6, %v3429
    %v3431 = vrot.slane %v2718, %v3430
    %v3432 = vlaneseq
    %v3433 = vshrl.u32 %v3432, 7
    %v3434 = vsub.s32 7, %v3433
    %v3435 = vrot.slane %v2718, %v3434
    %v3436 = vlaneseq
    %v3437 = vshrl.u32 %v3436, 7
    %v3438 = vsub.s32 0, %v3437
    %v3439 = vrot.slane %v2719, %v3438
    %v3440 = vlaneseq
    %v3441 = vshrl.u32 %v3440, 7
    %v3442 = vsub.s32 1, %v3441
    %v3443 = vrot.slane %v2719, %v3442
    %v3444 = vlaneseq
    %v3445 = vshrl.u32 %v3444, 7
    %v3446 = vsub.s32 2, %v3445
    %v3447 = vrot.slane %v2719, %v3446
    %v3448 = vlaneseq
    %v3449 = vshrl.u32 %v3448, 7
    %v3450 = vsub.s32 3, %v3449
    %v3451 = vrot.slane %v2719, %v3450
    %v3452 = vlaneseq
    %v3453 = vshrl.u32 %v3452, 7
    %v3454 = vsub.s32 4, %v3453
    %v3455 = vrot.slane %v2719, %v3454
    %v3456 = vlaneseq
    %v3457 = vshrl.u32 %v3456, 7
    %v3458 = vsub.s32 5, %v3457
    %v3459 = vrot.slane %v2719, %v3458
    %v3460 = vlaneseq
    %v3461 = vshrl.u32 %v3460, 7
    %v3462 = vsub.s32 6, %v3461
    %v3463 = vrot.slane %v2719, %v3462
    %v3464 = vlaneseq
    %v3465 = vshrl.u32 %v3464, 7
    %v3466 = vsub.s32 7, %v3465
    %v3467 = vrot.slane %v2719, %v3466
    %v3468 = vlaneseq
    %v3469 = vshrl.u32 %v3468, 7
    %v3470 = vsub.s32 0, %v3469
    %v3471 = vrot.slane %v2720, %v3470
    %v3472 = vlaneseq
    %v3473 = vshrl.u32 %v3472, 7
    %v3474 = vsub.s32 1, %v3473
    %v3475 = vrot.slane %v2720, %v3474
    %v3476 = vlaneseq
    %v3477 = vshrl.u32 %v3476, 7
    %v3478 = vsub.s32 2, %v3477
    %v3479 = vrot.slane %v2720, %v3478
    %v3480 = vlaneseq
    %v3481 = vshrl.u32 %v3480, 7
    %v3482 = vsub.s32 3, %v3481
    %v3483 = vrot.slane %v2720, %v3482
    %v3484 = vlaneseq
    %v3485 = vshrl.u32 %v3484, 7
    %v3486 = vsub.s32 4, %v3485
    %v3487 = vrot.slane %v2720, %v3486
    %v3488 = vlaneseq
    %v3489 = vshrl.u32 %v3488, 7
    %v3490 = vsub.s32 5, %v3489
    %v3491 = vrot.slane %v2720, %v3490
    %v3492 = vlaneseq
    %v3493 = vshrl.u32 %v3492, 7
    %v3494 = vsub.s32 6, %v3493
    %v3495 = vrot.slane %v2720, %v3494
    %v3496 = vlaneseq
    %v3497 = vshrl.u32 %v3496, 7
    %v3498 = vsub.s32 7, %v3497
    %v3499 = vrot.slane %v2720, %v3498
    %v3500 = vlaneseq
    %v3501 = vshrl.u32 %v3500, 7
    %v3502 = vsub.s32 0, %v3501
    %v3503 = vrot.slane %v2721, %v3502
    %v3504 = vlaneseq
    %v3505 = vshrl.u32 %v3504, 7
    %v3506 = vsub.s32 1, %v3505
    %v3507 = vrot.slane %v2721, %v3506
    %v3508 = vlaneseq
    %v3509 = vshrl.u32 %v3508, 7
    %v3510 = vsub.s32 2, %v3509
    %v3511 = vrot.slane %v2721, %v3510
    %v3512 = vlaneseq
    %v3513 = vshrl.u32 %v3512, 7
    %v3514 = vsub.s32 3, %v3513
    %v3515 = vrot.slane %v2721, %v3514
    %v3516 = vlaneseq
    %v3517 = vshrl.u32 %v3516, 7
    %v3518 = vsub.s32 4, %v3517
    %v3519 = vrot.slane %v2721, %v3518
    %v3520 = vlaneseq
    %v3521 = vshrl.u32 %v3520, 7
    %v3522 = vsub.s32 5, %v3521
    %v3523 = vrot.slane %v2721, %v3522
    %v3524 = vlaneseq
    %v3525 = vshrl.u32 %v3524, 7
    %v3526 = vsub.s32 6, %v3525
    %v3527 = vrot.slane %v2721, %v3526
    %v3528 = vlaneseq
    %v3529 = vshrl.u32 %v3528, 7
    %v3530 = vsub.s32 7, %v3529
    %v3531 = vrot.slane %v2721, %v3530
    %v3532 = vlaneseq
    %v3533 = vshrl.u32 %v3532, 7
    %v3534 = vsub.s32 0, %v3533
    %v3535 = vrot.slane %v2722, %v3534
    %v3536 = vlaneseq
    %v3537 = vshrl.u32 %v3536, 7
    %v3538 = vsub.s32 1, %v3537
    %v3539 = vrot.slane %v2722, %v3538
    %v3540 = vlaneseq
    %v3541 = vshrl.u32 %v3540, 7
    %v3542 = vsub.s32 2, %v3541
    %v3543 = vrot.slane %v2722, %v3542
    %v3544 = vlaneseq
    %v3545 = vshrl.u32 %v3544, 7
    %v3546 = vsub.s32 3, %v3545
    %v3547 = vrot.slane %v2722, %v3546
    %v3548 = vlaneseq
    %v3549 = vshrl.u32 %v3548, 7
    %v3550 = vsub.s32 4, %v3549
    %v3551 = vrot.slane %v2722, %v3550
    %v3552 = vlaneseq
    %v3553 = vshrl.u32 %v3552, 7
    %v3554 = vsub.s32 5, %v3553
    %v3555 = vrot.slane %v2722, %v3554
    %v3556 = vlaneseq
    %v3557 = vshrl.u32 %v3556, 7
    %v3558 = vsub.s32 6, %v3557
    %v3559 = vrot.slane %v2722, %v3558
    %v3560 = vlaneseq
    %v3561 = vshrl.u32 %v3560, 7
    %v3562 = vsub.s32 7, %v3561
    %v3563 = vrot.slane %v2722, %v3562
    %v3564 = vlaneseq
    %v3565 = vshrl.u32 %v3564, 7
    %v3566 = vsub.s32 0, %v3565
    %v3567 = vrot.slane %v2723, %v3566
    %v3568 = vlaneseq
    %v3569 = vshrl.u32 %v3568, 7
    %v3570 = vsub.s32 1, %v3569
    %v3571 = vrot.slane %v2723, %v3570
    %v3572 = vlaneseq
    %v3573 = vshrl.u32 %v3572, 7
    %v3574 = vsub.s32 2, %v3573
    %v3575 = vrot.slane %v2723, %v3574
    %v3576 = vlaneseq
    %v3577 = vshrl.u32 %v3576, 7
    %v3578 = vsub.s32 3, %v3577
    %v3579 = vrot.slane %v2723, %v3578
    %v3580 = vlaneseq
    %v3581 = vshrl.u32 %v3580, 7
    %v3582 = vsub.s32 4, %v3581
    %v3583 = vrot.slane %v2723, %v3582
    %v3584 = vlaneseq
    %v3585 = vshrl.u32 %v3584, 7
    %v3586 = vsub.s32 5, %v3585
    %v3587 = vrot.slane %v2723, %v3586
    %v3588 = vlaneseq
    %v3589 = vshrl.u32 %v3588, 7
    %v3590 = vsub.s32 6, %v3589
    %v3591 = vrot.slane %v2723, %v3590
    %v3592 = vlaneseq
    %v3593 = vshrl.u32 %v3592, 7
    %v3594 = vsub.s32 7, %v3593
    %v3595 = vrot.slane %v2723, %v3594
    %v3596 = vlaneseq
    %v3597 = vshrl.u32 %v3596, 7
    %v3598 = vsub.s32 0, %v3597
    %v3599 = vrot.slane %v2724, %v3598
    %v3600 = vlaneseq
    %v3601 = vshrl.u32 %v3600, 7
    %v3602 = vsub.s32 1, %v3601
    %v3603 = vrot.slane %v2724, %v3602
    %v3604 = vlaneseq
    %v3605 = vshrl.u32 %v3604, 7
    %v3606 = vsub.s32 2, %v3605
    %v3607 = vrot.slane %v2724, %v3606
    %v3608 = vlaneseq
    %v3609 = vshrl.u32 %v3608, 7
    %v3610 = vsub.s32 3, %v3609
    %v3611 = vrot.slane %v2724, %v3610
    %v3612 = vlaneseq
    %v3613 = vshrl.u32 %v3612, 7
    %v3614 = vsub.s32 4, %v3613
    %v3615 = vrot.slane %v2724, %v3614
    %v3616 = vlaneseq
    %v3617 = vshrl.u32 %v3616, 7
    %v3618 = vsub.s32 5, %v3617
    %v3619 = vrot.slane %v2724, %v3618
    %v3620 = vlaneseq
    %v3621 = vshrl.u32 %v3620, 7
    %v3622 = vsub.s32 6, %v3621
    %v3623 = vrot.slane %v2724, %v3622
    %v3624 = vlaneseq
    %v3625 = vshrl.u32 %v3624, 7
    %v3626 = vsub.s32 7, %v3625
    %v3627 = vrot.slane %v2724, %v3626
    %v3628 = vlaneseq
    %v3629 = vshrl.u32 %v3628, 7
    %v3630 = vsub.s32 0, %v3629
    %v3631 = vrot.slane %v2725, %v3630
    %v3632 = vlaneseq
    %v3633 = vshrl.u32 %v3632, 7
    %v3634 = vsub.s32 1, %v3633
    %v3635 = vrot.slane %v2725, %v3634
    %v3636 = vlaneseq
    %v3637 = vshrl.u32 %v3636, 7
    %v3638 = vsub.s32 2, %v3637
    %v3639 = vrot.slane %v2725, %v3638
    %v3640 = vlaneseq
    %v3641 = vshrl.u32 %v3640, 7
    %v3642 = vsub.s32 3, %v3641
    %v3643 = vrot.slane %v2725, %v3642
    %v3644 = vlaneseq
    %v3645 = vshrl.u32 %v3644, 7
    %v3646 = vsub.s32 4, %v3645
    %v3647 = vrot.slane %v2725, %v3646
    %v3648 = vlaneseq
    %v3649 = vshrl.u32 %v3648, 7
    %v3650 = vsub.s32 5, %v3649
    %v3651 = vrot.slane %v2725, %v3650
    %v3652 = vlaneseq
    %v3653 = vshrl.u32 %v3652, 7
    %v3654 = vsub.s32 6, %v3653
    %v3655 = vrot.slane %v2725, %v3654
    %v3656 = vlaneseq
    %v3657 = vshrl.u32 %v3656, 7
    %v3658 = vsub.s32 7, %v3657
    %v3659 = vrot.slane %v2725, %v3658
    %v3660 = vlaneseq
    %v3661 = vshrl.u32 %v3660, 7
    %v3662 = vsub.s32 0, %v3661
    %v3663 = vrot.slane %v2726, %v3662
    %v3664 = vlaneseq
    %v3665 = vshrl.u32 %v3664, 7
    %v3666 = vsub.s32 1, %v3665
    %v3667 = vrot.slane %v2726, %v3666
    %v3668 = vlaneseq
    %v3669 = vshrl.u32 %v3668, 7
    %v3670 = vsub.s32 2, %v3669
    %v3671 = vrot.slane %v2726, %v3670
    %v3672 = vlaneseq
    %v3673 = vshrl.u32 %v3672, 7
    %v3674 = vsub.s32 3, %v3673
    %v3675 = vrot.slane %v2726, %v3674
    %v3676 = vlaneseq
    %v3677 = vshrl.u32 %v3676, 7
    %v3678 = vsub.s32 4, %v3677
    %v3679 = vrot.slane %v2726, %v3678
    %v3680 = vlaneseq
    %v3681 = vshrl.u32 %v3680, 7
    %v3682 = vsub.s32 5, %v3681
    %v3683 = vrot.slane %v2726, %v3682
    %v3684 = vlaneseq
    %v3685 = vshrl.u32 %v3684, 7
    %v3686 = vsub.s32 6, %v3685
    %v3687 = vrot.slane %v2726, %v3686
    %v3688 = vlaneseq
    %v3689 = vshrl.u32 %v3688, 7
    %v3690 = vsub.s32 7, %v3689
    %v3691 = vrot.slane %v2726, %v3690
    %v3692 = vlaneseq
    %v3693 = vshrl.u32 %v3692, 7
    %v3694 = vsub.s32 0, %v3693
    %v3695 = vrot.slane %v2727, %v3694
    %v3696 = vlaneseq
    %v3697 = vshrl.u32 %v3696, 7
    %v3698 = vsub.s32 1, %v3697
    %v3699 = vrot.slane %v2727, %v3698
    %v3700 = vlaneseq
    %v3701 = vshrl.u32 %v3700, 7
    %v3702 = vsub.s32 2, %v3701
    %v3703 = vrot.slane %v2727, %v3702
    %v3704 = vlaneseq
    %v3705 = vshrl.u32 %v3704, 7
    %v3706 = vsub.s32 3, %v3705
    %v3707 = vrot.slane %v2727, %v3706
    %v3708 = vlaneseq
    %v3709 = vshrl.u32 %v3708, 7
    %v3710 = vsub.s32 4, %v3709
    %v3711 = vrot.slane %v2727, %v3710
    %v3712 = vlaneseq
    %v3713 = vshrl.u32 %v3712, 7
    %v3714 = vsub.s32 5, %v3713
    %v3715 = vrot.slane %v2727, %v3714
    %v3716 = vlaneseq
    %v3717 = vshrl.u32 %v3716, 7
    %v3718 = vsub.s32 6, %v3717
    %v3719 = vrot.slane %v2727, %v3718
    %v3720 = vlaneseq
    %v3721 = vshrl.u32 %v3720, 7
    %v3722 = vsub.s32 7, %v3721
    %v3723 = vrot.slane %v2727, %v3722
    %v3724 = vlaneseq
    %v3725 = vshrl.u32 %v3724, 7
    %v3726 = vsub.s32 0, %v3725
    %v3727 = vrot.slane %v2728, %v3726
    %v3728 = vlaneseq
    %v3729 = vshrl.u32 %v3728, 7
    %v3730 = vsub.s32 1, %v3729
    %v3731 = vrot.slane %v2728, %v3730
    %v3732 = vlaneseq
    %v3733 = vshrl.u32 %v3732, 7
    %v3734 = vsub.s32 2, %v3733
    %v3735 = vrot.slane %v2728, %v3734
    %v3736 = vlaneseq
    %v3737 = vshrl.u32 %v3736, 7
    %v3738 = vsub.s32 3, %v3737
    %v3739 = vrot.slane %v2728, %v3738
    %v3740 = vlaneseq
    %v3741 = vshrl.u32 %v3740, 7
    %v3742 = vsub.s32 4, %v3741
    %v3743 = vrot.slane %v2728, %v3742
    %v3744 = vlaneseq
    %v3745 = vshrl.u32 %v3744, 7
    %v3746 = vsub.s32 5, %v3745
    %v3747 = vrot.slane %v2728, %v3746
    %v3748 = vlaneseq
    %v3749 = vshrl.u32 %v3748, 7
    %v3750 = vsub.s32 6, %v3749
    %v3751 = vrot.slane %v2728, %v3750
    %v3752 = vlaneseq
    %v3753 = vshrl.u32 %v3752, 7
    %v3754 = vsub.s32 7, %v3753
    %v3755 = vrot.slane %v2728, %v3754
    %v3756 = vlaneseq
    %v3757 = vshrl.u32 %v3756, 7
    %v3758 = vsub.s32 0, %v3757
    %v3759 = vrot.slane %v2729, %v3758
    %v3760 = vlaneseq
    %v3761 = vshrl.u32 %v3760, 7
    %v3762 = vsub.s32 1, %v3761
    %v3763 = vrot.slane %v2729, %v3762
    %v3764 = vlaneseq
    %v3765 = vshrl.u32 %v3764, 7
    %v3766 = vsub.s32 2, %v3765
    %v3767 = vrot.slane %v2729, %v3766
    %v3768 = vlaneseq
    %v3769 = vshrl.u32 %v3768, 7
    %v3770 = vsub.s32 3, %v3769
    %v3771 = vrot.slane %v2729, %v3770
    %v3772 = vlaneseq
    %v3773 = vshrl.u32 %v3772, 7
    %v3774 = vsub.s32 4, %v3773
    %v3775 = vrot.slane %v2729, %v3774
    %v3776 = vlaneseq
    %v3777 = vshrl.u32 %v3776, 7
    %v3778 = vsub.s32 5, %v3777
    %v3779 = vrot.slane %v2729, %v3778
    %v3780 = vlaneseq
    %v3781 = vshrl.u32 %v3780, 7
    %v3782 = vsub.s32 6, %v3781
    %v3783 = vrot.slane %v2729, %v3782
    %v3784 = vlaneseq
    %v3785 = vshrl.u32 %v3784, 7
    %v3786 = vsub.s32 7, %v3785
    %v3787 = vrot.slane %v2729, %v3786
    %v3788 = vlaneseq
    %v3789 = vshrl.u32 %v3788, 7
    %v3790 = vsub.s32 0, %v3789
    %v3791 = vrot.slane %v2730, %v3790
    %v3792 = vlaneseq
    %v3793 = vshrl.u32 %v3792, 7
    %v3794 = vsub.s32 1, %v3793
    %v3795 = vrot.slane %v2730, %v3794
    %v3796 = vlaneseq
    %v3797 = vshrl.u32 %v3796, 7
    %v3798 = vsub.s32 2, %v3797
    %v3799 = vrot.slane %v2730, %v3798
    %v3800 = vlaneseq
    %v3801 = vshrl.u32 %v3800, 7
    %v3802 = vsub.s32 3, %v3801
    %v3803 = vrot.slane %v2730, %v3802
    %v3804 = vlaneseq
    %v3805 = vshrl.u32 %v3804, 7
    %v3806 = vsub.s32 4, %v3805
    %v3807 = vrot.slane %v2730, %v3806
    %v3808 = vlaneseq
    %v3809 = vshrl.u32 %v3808, 7
    %v3810 = vsub.s32 5, %v3809
    %v3811 = vrot.slane %v2730, %v3810
    %v3812 = vlaneseq
    %v3813 = vshrl.u32 %v3812, 7
    %v3814 = vsub.s32 6, %v3813
    %v3815 = vrot.slane %v2730, %v3814
    %v3816 = vlaneseq
    %v3817 = vshrl.u32 %v3816, 7
    %v3818 = vsub.s32 7, %v3817
    %v3819 = vrot.slane %v2730, %v3818
    %v3820 = vlaneseq
    %v3821 = vshrl.u32 %v3820, 7
    %v3822 = vsub.s32 0, %v3821
    %v3823 = vrot.slane %v2731, %v3822
    %v3824 = vlaneseq
    %v3825 = vshrl.u32 %v3824, 7
    %v3826 = vsub.s32 1, %v3825
    %v3827 = vrot.slane %v2731, %v3826
    %v3828 = vlaneseq
    %v3829 = vshrl.u32 %v3828, 7
    %v3830 = vsub.s32 2, %v3829
    %v3831 = vrot.slane %v2731, %v3830
    %v3832 = vlaneseq
    %v3833 = vshrl.u32 %v3832, 7
    %v3834 = vsub.s32 3, %v3833
    %v3835 = vrot.slane %v2731, %v3834
    %v3836 = vlaneseq
    %v3837 = vshrl.u32 %v3836, 7
    %v3838 = vsub.s32 4, %v3837
    %v3839 = vrot.slane %v2731, %v3838
    %v3840 = vlaneseq
    %v3841 = vshrl.u32 %v3840, 7
    %v3842 = vsub.s32 5, %v3841
    %v3843 = vrot.slane %v2731, %v3842
    %v3844 = vlaneseq
    %v3845 = vshrl.u32 %v3844, 7
    %v3846 = vsub.s32 6, %v3845
    %v3847 = vrot.slane %v2731, %v3846
    %v3848 = vlaneseq
    %v3849 = vshrl.u32 %v3848, 7
    %v3850 = vsub.s32 7, %v3849
    %v3851 = vrot.slane %v2731, %v3850
    %v3852 = vlaneseq
    %v3853 = vshrl.u32 %v3852, 7
    %v3854 = vsub.s32 0, %v3853
    %v3855 = vrot.slane %v2732, %v3854
    %v3856 = vlaneseq
    %v3857 = vshrl.u32 %v3856, 7
    %v3858 = vsub.s32 1, %v3857
    %v3859 = vrot.slane %v2732, %v3858
    %v3860 = vlaneseq
    %v3861 = vshrl.u32 %v3860, 7
    %v3862 = vsub.s32 2, %v3861
    %v3863 = vrot.slane %v2732, %v3862
    %v3864 = vlaneseq
    %v3865 = vshrl.u32 %v3864, 7
    %v3866 = vsub.s32 3, %v3865
    %v3867 = vrot.slane %v2732, %v3866
    %v3868 = vlaneseq
    %v3869 = vshrl.u32 %v3868, 7
    %v3870 = vsub.s32 4, %v3869
    %v3871 = vrot.slane %v2732, %v3870
    %v3872 = vlaneseq
    %v3873 = vshrl.u32 %v3872, 7
    %v3874 = vsub.s32 5, %v3873
    %v3875 = vrot.slane %v2732, %v3874
    %v3876 = vlaneseq
    %v3877 = vshrl.u32 %v3876, 7
    %v3878 = vsub.s32 6, %v3877
    %v3879 = vrot.slane %v2732, %v3878
    %v3880 = vlaneseq
    %v3881 = vshrl.u32 %v3880, 7
    %v3882 = vsub.s32 7, %v3881
    %v3883 = vrot.slane %v2732, %v3882
    %v3884 = vlaneseq
    %v3885 = vshrl.u32 %v3884, 7
    %v3886 = vsub.s32 0, %v3885
    %v3887 = vrot.slane %v2733, %v3886
    %v3888 = vlaneseq
    %v3889 = vshrl.u32 %v3888, 7
    %v3890 = vsub.s32 1, %v3889
    %v3891 = vrot.slane %v2733, %v3890
    %v3892 = vlaneseq
    %v3893 = vshrl.u32 %v3892, 7
    %v3894 = vsub.s32 2, %v3893
    %v3895 = vrot.slane %v2733, %v3894
    %v3896 = vlaneseq
    %v3897 = vshrl.u32 %v3896, 7
    %v3898 = vsub.s32 3, %v3897
    %v3899 = vrot.slane %v2733, %v3898
    %v3900 = vlaneseq
    %v3901 = vshrl.u32 %v3900, 7
    %v3902 = vsub.s32 4, %v3901
    %v3903 = vrot.slane %v2733, %v3902
    %v3904 = vlaneseq
    %v3905 = vshrl.u32 %v3904, 7
    %v3906 = vsub.s32 5, %v3905
    %v3907 = vrot.slane %v2733, %v3906
    %v3908 = vlaneseq
    %v3909 = vshrl.u32 %v3908, 7
    %v3910 = vsub.s32 6, %v3909
    %v3911 = vrot.slane %v2733, %v3910
    %v3912 = vlaneseq
    %v3913 = vshrl.u32 %v3912, 7
    %v3914 = vsub.s32 7, %v3913
    %v3915 = vrot.slane %v2733, %v3914
    %v3916 = vlaneseq
    %v3917 = vshrl.u32 %v3916, 7
    %v3918 = vsub.s32 0, %v3917
    %v3919 = vrot.slane %v2734, %v3918
    %v3920 = vlaneseq
    %v3921 = vshrl.u32 %v3920, 7
    %v3922 = vsub.s32 1, %v3921
    %v3923 = vrot.slane %v2734, %v3922
    %v3924 = vlaneseq
    %v3925 = vshrl.u32 %v3924, 7
    %v3926 = vsub.s32 2, %v3925
    %v3927 = vrot.slane %v2734, %v3926
    %v3928 = vlaneseq
    %v3929 = vshrl.u32 %v3928, 7
    %v3930 = vsub.s32 3, %v3929
    %v3931 = vrot.slane %v2734, %v3930
    %v3932 = vlaneseq
    %v3933 = vshrl.u32 %v3932, 7
    %v3934 = vsub.s32 4, %v3933
    %v3935 = vrot.slane %v2734, %v3934
    %v3936 = vlaneseq
    %v3937 = vshrl.u32 %v3936, 7
    %v3938 = vsub.s32 5, %v3937
    %v3939 = vrot.slane %v2734, %v3938
    %v3940 = vlaneseq
    %v3941 = vshrl.u32 %v3940, 7
    %v3942 = vsub.s32 6, %v3941
    %v3943 = vrot.slane %v2734, %v3942
    %v3944 = vlaneseq
    %v3945 = vshrl.u32 %v3944, 7
    %v3946 = vsub.s32 7, %v3945
    %v3947 = vrot.slane %v2734, %v3946
    %v3948 = vlaneseq
    %v3949 = vshrl.u32 %v3948, 7
    %v3950 = vsub.s32 0, %v3949
    %v3951 = vrot.slane %v2735, %v3950
    %v3952 = vlaneseq
    %v3953 = vshrl.u32 %v3952, 7
    %v3954 = vsub.s32 1, %v3953
    %v3955 = vrot.slane %v2735, %v3954
    %v3956 = vlaneseq
    %v3957 = vshrl.u32 %v3956, 7
    %v3958 = vsub.s32 2, %v3957
    %v3959 = vrot.slane %v2735, %v3958
    %v3960 = vlaneseq
    %v3961 = vshrl.u32 %v3960, 7
    %v3962 = vsub.s32 3, %v3961
    %v3963 = vrot.slane %v2735, %v3962
    %v3964 = vlaneseq
    %v3965 = vshrl.u32 %v3964, 7
    %v3966 = vsub.s32 4, %v3965
    %v3967 = vrot.slane %v2735, %v3966
    %v3968 = vlaneseq
    %v3969 = vshrl.u32 %v3968, 7
    %v3970 = vsub.s32 5, %v3969
    %v3971 = vrot.slane %v2735, %v3970
    %v3972 = vlaneseq
    %v3973 = vshrl.u32 %v3972, 7
    %v3974 = vsub.s32 6, %v3973
    %v3975 = vrot.slane %v2735, %v3974
    %v3976 = vlaneseq
    %v3977 = vshrl.u32 %v3976, 7
    %v3978 = vsub.s32 7, %v3977
    %v3979 = vrot.slane %v2735, %v3978
    %v3980 = vlaneseq
    %v3981 = vshrl.u32 %v3980, 7
    %v3982 = vsub.s32 0, %v3981
    %v3983 = vrot.slane %v2736, %v3982
    %v3984 = vlaneseq
    %v3985 = vshrl.u32 %v3984, 7
    %v3986 = vsub.s32 1, %v3985
    %v3987 = vrot.slane %v2736, %v3986
    %v3988 = vlaneseq
    %v3989 = vshrl.u32 %v3988, 7
    %v3990 = vsub.s32 2, %v3989
    %v3991 = vrot.slane %v2736, %v3990
    %v3992 = vlaneseq
    %v3993 = vshrl.u32 %v3992, 7
    %v3994 = vsub.s32 3, %v3993
    %v3995 = vrot.slane %v2736, %v3994
    %v3996 = vlaneseq
    %v3997 = vshrl.u32 %v3996, 7
    %v3998 = vsub.s32 4, %v3997
    %v3999 = vrot.slane %v2736, %v3998
    %v4000 = vlaneseq
    %v4001 = vshrl.u32 %v4000, 7
    %v4002 = vsub.s32 5, %v4001
    %v4003 = vrot.slane %v2736, %v4002
    %v4004 = vlaneseq
    %v4005 = vshrl.u32 %v4004, 7
    %v4006 = vsub.s32 6, %v4005
    %v4007 = vrot.slane %v2736, %v4006
    %v4008 = vlaneseq
    %v4009 = vshrl.u32 %v4008, 7
    %v4010 = vsub.s32 7, %v4009
    %v4011 = vrot.slane %v2736, %v4010
    %v4012 = vlaneseq
    %v4013 = vshrl.u32 %v4012, 7
    %v4014 = vsub.s32 0, %v4013
    %v4015 = vrot.slane %v2737, %v4014
    %v4016 = vlaneseq
    %v4017 = vshrl.u32 %v4016, 7
    %v4018 = vsub.s32 1, %v4017
    %v4019 = vrot.slane %v2737, %v4018
    %v4020 = vlaneseq
    %v4021 = vshrl.u32 %v4020, 7
    %v4022 = vsub.s32 2, %v4021
    %v4023 = vrot.slane %v2737, %v4022
    %v4024 = vlaneseq
    %v4025 = vshrl.u32 %v4024, 7
    %v4026 = vsub.s32 3, %v4025
    %v4027 = vrot.slane %v2737, %v4026
    %v4028 = vlaneseq
    %v4029 = vshrl.u32 %v4028, 7
    %v4030 = vsub.s32 4, %v4029
    %v4031 = vrot.slane %v2737, %v4030
    %v4032 = vlaneseq
    %v4033 = vshrl.u32 %v4032, 7
    %v4034 = vsub.s32 5, %v4033
    %v4035 = vrot.slane %v2737, %v4034
    %v4036 = vlaneseq
    %v4037 = vshrl.u32 %v4036, 7
    %v4038 = vsub.s32 6, %v4037
    %v4039 = vrot.slane %v2737, %v4038
    %v4040 = vlaneseq
    %v4041 = vshrl.u32 %v4040, 7
    %v4042 = vsub.s32 7, %v4041
    %v4043 = vrot.slane %v2737, %v4042
    %v4044 = vlaneseq
    %v4045 = vshrl.u32 %v4044, 7
    %v4046 = vsub.s32 0, %v4045
    %v4047 = vrot.slane %v2738, %v4046
    %v4048 = vlaneseq
    %v4049 = vshrl.u32 %v4048, 7
    %v4050 = vsub.s32 1, %v4049
    %v4051 = vrot.slane %v2738, %v4050
    %v4052 = vlaneseq
    %v4053 = vshrl.u32 %v4052, 7
    %v4054 = vsub.s32 2, %v4053
    %v4055 = vrot.slane %v2738, %v4054
    %v4056 = vlaneseq
    %v4057 = vshrl.u32 %v4056, 7
    %v4058 = vsub.s32 3, %v4057
    %v4059 = vrot.slane %v2738, %v4058
    %v4060 = vlaneseq
    %v4061 = vshrl.u32 %v4060, 7
    %v4062 = vsub.s32 4, %v4061
    %v4063 = vrot.slane %v2738, %v4062
    %v4064 = vlaneseq
    %v4065 = vshrl.u32 %v4064, 7
    %v4066 = vsub.s32 5, %v4065
    %v4067 = vrot.slane %v2738, %v4066
    %v4068 = vlaneseq
    %v4069 = vshrl.u32 %v4068, 7
    %v4070 = vsub.s32 6, %v4069
    %v4071 = vrot.slane %v2738, %v4070
    %v4072 = vlaneseq
    %v4073 = vshrl.u32 %v4072, 7
    %v4074 = vsub.s32 7, %v4073
    %v4075 = vrot.slane %v2738, %v4074
    %v4076 = vlaneseq
    %v4077 = vshrl.u32 %v4076, 7
    %v4078 = vsub.s32 0, %v4077
    %v4079 = vrot.slane %v2739, %v4078
    %v4080 = vlaneseq
    %v4081 = vshrl.u32 %v4080, 7
    %v4082 = vsub.s32 1, %v4081
    %v4083 = vrot.slane %v2739, %v4082
    %v4084 = vlaneseq
    %v4085 = vshrl.u32 %v4084, 7
    %v4086 = vsub.s32 2, %v4085
    %v4087 = vrot.slane %v2739, %v4086
    %v4088 = vlaneseq
    %v4089 = vshrl.u32 %v4088, 7
    %v4090 = vsub.s32 3, %v4089
    %v4091 = vrot.slane %v2739, %v4090
    %v4092 = vlaneseq
    %v4093 = vshrl.u32 %v4092, 7
    %v4094 = vsub.s32 4, %v4093
    %v4095 = vrot.slane %v2739, %v4094
    %v4096 = vlaneseq
    %v4097 = vshrl.u32 %v4096, 7
    %v4098 = vsub.s32 5, %v4097
    %v4099 = vrot.slane %v2739, %v4098
    %v4100 = vlaneseq
    %v4101 = vshrl.u32 %v4100, 7
    %v4102 = vsub.s32 6, %v4101
    %v4103 = vrot.slane %v2739, %v4102
    %v4104 = vlaneseq
    %v4105 = vshrl.u32 %v4104, 7
    %v4106 = vsub.s32 7, %v4105
    %v4107 = vrot.slane %v2739, %v4106
    %v4108 = vlaneseq
    %v4109 = vshrl.u32 %v4108, 7
    %v4110 = vsub.s32 0, %v4109
    %v4111 = vrot.slane %v2740, %v4110
    %v4112 = vlaneseq
    %v4113 = vshrl.u32 %v4112, 7
    %v4114 = vsub.s32 1, %v4113
    %v4115 = vrot.slane %v2740, %v4114
    %v4116 = vlaneseq
    %v4117 = vshrl.u32 %v4116, 7
    %v4118 = vsub.s32 2, %v4117
    %v4119 = vrot.slane %v2740, %v4118
    %v4120 = vlaneseq
    %v4121 = vshrl.u32 %v4120, 7
    %v4122 = vsub.s32 3, %v4121
    %v4123 = vrot.slane %v2740, %v4122
    %v4124 = vlaneseq
    %v4125 = vshrl.u32 %v4124, 7
    %v4126 = vsub.s32 4, %v4125
    %v4127 = vrot.slane %v2740, %v4126
    %v4128 = vlaneseq
    %v4129 = vshrl.u32 %v4128, 7
    %v4130 = vsub.s32 5, %v4129
    %v4131 = vrot.slane %v2740, %v4130
    %v4132 = vlaneseq
    %v4133 = vshrl.u32 %v4132, 7
    %v4134 = vsub.s32 6, %v4133
    %v4135 = vrot.slane %v2740, %v4134
    %v4136 = vlaneseq
    %v4137 = vshrl.u32 %v4136, 7
    %v4138 = vsub.s32 7, %v4137
    %v4139 = vrot.slane %v2740, %v4138
    %v4140 = vlaneseq
    %v4141 = vshrl.u32 %v4140, 7
    %v4142 = vsub.s32 0, %v4141
    %v4143 = vrot.slane %v2741, %v4142
    %v4144 = vlaneseq
    %v4145 = vshrl.u32 %v4144, 7
    %v4146 = vsub.s32 1, %v4145
    %v4147 = vrot.slane %v2741, %v4146
    %v4148 = vlaneseq
    %v4149 = vshrl.u32 %v4148, 7
    %v4150 = vsub.s32 2, %v4149
    %v4151 = vrot.slane %v2741, %v4150
    %v4152 = vlaneseq
    %v4153 = vshrl.u32 %v4152, 7
    %v4154 = vsub.s32 3, %v4153
    %v4155 = vrot.slane %v2741, %v4154
    %v4156 = vlaneseq
    %v4157 = vshrl.u32 %v4156, 7
    %v4158 = vsub.s32 4, %v4157
    %v4159 = vrot.slane %v2741, %v4158
    %v4160 = vlaneseq
    %v4161 = vshrl.u32 %v4160, 7
    %v4162 = vsub.s32 5, %v4161
    %v4163 = vrot.slane %v2741, %v4162
    %v4164 = vlaneseq
    %v4165 = vshrl.u32 %v4164, 7
    %v4166 = vsub.s32 6, %v4165
    %v4167 = vrot.slane %v2741, %v4166
    %v4168 = vlaneseq
    %v4169 = vshrl.u32 %v4168, 7
    %v4170 = vsub.s32 7, %v4169
    %v4171 = vrot.slane %v2741, %v4170
    %v4172 = vlaneseq
    %v4173 = vshrl.u32 %v4172, 7
    %v4174 = vsub.s32 0, %v4173
    %v4175 = vrot.slane %v2742, %v4174
    %v4176 = vlaneseq
    %v4177 = vshrl.u32 %v4176, 7
    %v4178 = vsub.s32 1, %v4177
    %v4179 = vrot.slane %v2742, %v4178
    %v4180 = vlaneseq
    %v4181 = vshrl.u32 %v4180, 7
    %v4182 = vsub.s32 2, %v4181
    %v4183 = vrot.slane %v2742, %v4182
    %v4184 = vlaneseq
    %v4185 = vshrl.u32 %v4184, 7
    %v4186 = vsub.s32 3, %v4185
    %v4187 = vrot.slane %v2742, %v4186
    %v4188 = vlaneseq
    %v4189 = vshrl.u32 %v4188, 7
    %v4190 = vsub.s32 4, %v4189
    %v4191 = vrot.slane %v2742, %v4190
    %v4192 = vlaneseq
    %v4193 = vshrl.u32 %v4192, 7
    %v4194 = vsub.s32 5, %v4193
    %v4195 = vrot.slane %v2742, %v4194
    %v4196 = vlaneseq
    %v4197 = vshrl.u32 %v4196, 7
    %v4198 = vsub.s32 6, %v4197
    %v4199 = vrot.slane %v2742, %v4198
    %v4200 = vlaneseq
    %v4201 = vshrl.u32 %v4200, 7
    %v4202 = vsub.s32 7, %v4201
    %v4203 = vrot.slane %v2742, %v4202
    %v4204 = vlaneseq
    %v4205 = vshrl.u32 %v4204, 7
    %v4206 = vsub.s32 0, %v4205
    %v4207 = vrot.slane %v2743, %v4206
    %v4208 = vlaneseq
    %v4209 = vshrl.u32 %v4208, 7
    %v4210 = vsub.s32 1, %v4209
    %v4211 = vrot.slane %v2743, %v4210
    %v4212 = vlaneseq
    %v4213 = vshrl.u32 %v4212, 7
    %v4214 = vsub.s32 2, %v4213
    %v4215 = vrot.slane %v2743, %v4214
    %v4216 = vlaneseq
    %v4217 = vshrl.u32 %v4216, 7
    %v4218 = vsub.s32 3, %v4217
    %v4219 = vrot.slane %v2743, %v4218
    %v4220 = vlaneseq
    %v4221 = vshrl.u32 %v4220, 7
    %v4222 = vsub.s32 4, %v4221
    %v4223 = vrot.slane %v2743, %v4222
    %v4224 = vlaneseq
    %v4225 = vshrl.u32 %v4224, 7
    %v4226 = vsub.s32 5, %v4225
    %v4227 = vrot.slane %v2743, %v4226
    %v4228 = vlaneseq
    %v4229 = vshrl.u32 %v4228, 7
    %v4230 = vsub.s32 6, %v4229
    %v4231 = vrot.slane %v2743, %v4230
    %v4232 = vlaneseq
    %v4233 = vshrl.u32 %v4232, 7
    %v4234 = vsub.s32 7, %v4233
    %v4235 = vrot.slane %v2743, %v4234
    %v4236 = vlaneseq
    %v4237 = vshrl.u32 %v4236, 7
    %v4238 = vsub.s32 0, %v4237
    %v4239 = vrot.slane %v2744, %v4238
    %v4240 = vlaneseq
    %v4241 = vshrl.u32 %v4240, 7
    %v4242 = vsub.s32 1, %v4241
    %v4243 = vrot.slane %v2744, %v4242
    %v4244 = vlaneseq
    %v4245 = vshrl.u32 %v4244, 7
    %v4246 = vsub.s32 2, %v4245
    %v4247 = vrot.slane %v2744, %v4246
    %v4248 = vlaneseq
    %v4249 = vshrl.u32 %v4248, 7
    %v4250 = vsub.s32 3, %v4249
    %v4251 = vrot.slane %v2744, %v4250
    %v4252 = vlaneseq
    %v4253 = vshrl.u32 %v4252, 7
    %v4254 = vsub.s32 4, %v4253
    %v4255 = vrot.slane %v2744, %v4254
    %v4256 = vlaneseq
    %v4257 = vshrl.u32 %v4256, 7
    %v4258 = vsub.s32 5, %v4257
    %v4259 = vrot.slane %v2744, %v4258
    %v4260 = vlaneseq
    %v4261 = vshrl.u32 %v4260, 7
    %v4262 = vsub.s32 6, %v4261
    %v4263 = vrot.slane %v2744, %v4262
    %v4264 = vlaneseq
    %v4265 = vshrl.u32 %v4264, 7
    %v4266 = vsub.s32 7, %v4265
    %v4267 = vrot.slane %v2744, %v4266
    %v4268 = vlaneseq
    %v4269 = vshrl.u32 %v4268, 7
    %v4270 = vsub.s32 0, %v4269
    %v4271 = vrot.slane %v2745, %v4270
    %v4272 = vlaneseq
    %v4273 = vshrl.u32 %v4272, 7
    %v4274 = vsub.s32 1, %v4273
    %v4275 = vrot.slane %v2745, %v4274
    %v4276 = vlaneseq
    %v4277 = vshrl.u32 %v4276, 7
    %v4278 = vsub.s32 2, %v4277
    %v4279 = vrot.slane %v2745, %v4278
    %v4280 = vlaneseq
    %v4281 = vshrl.u32 %v4280, 7
    %v4282 = vsub.s32 3, %v4281
    %v4283 = vrot.slane %v2745, %v4282
    %v4284 = vlaneseq
    %v4285 = vshrl.u32 %v4284, 7
    %v4286 = vsub.s32 4, %v4285
    %v4287 = vrot.slane %v2745, %v4286
    %v4288 = vlaneseq
    %v4289 = vshrl.u32 %v4288, 7
    %v4290 = vsub.s32 5, %v4289
    %v4291 = vrot.slane %v2745, %v4290
    %v4292 = vlaneseq
    %v4293 = vshrl.u32 %v4292, 7
    %v4294 = vsub.s32 6, %v4293
    %v4295 = vrot.slane %v2745, %v4294
    %v4296 = vlaneseq
    %v4297 = vshrl.u32 %v4296, 7
    %v4298 = vsub.s32 7, %v4297
    %v4299 = vrot.slane %v2745, %v4298
    %v4300 = vlaneseq
    %v4301 = vshrl.u32 %v4300, 7
    %v4302 = vsub.s32 0, %v4301
    %v4303 = vrot.slane %v2746, %v4302
    %v4304 = vlaneseq
    %v4305 = vshrl.u32 %v4304, 7
    %v4306 = vsub.s32 1, %v4305
    %v4307 = vrot.slane %v2746, %v4306
    %v4308 = vlaneseq
    %v4309 = vshrl.u32 %v4308, 7
    %v4310 = vsub.s32 2, %v4309
    %v4311 = vrot.slane %v2746, %v4310
    %v4312 = vlaneseq
    %v4313 = vshrl.u32 %v4312, 7
    %v4314 = vsub.s32 3, %v4313
    %v4315 = vrot.slane %v2746, %v4314
    %v4316 = vlaneseq
    %v4317 = vshrl.u32 %v4316, 7
    %v4318 = vsub.s32 4, %v4317
    %v4319 = vrot.slane %v2746, %v4318
    %v4320 = vlaneseq
    %v4321 = vshrl.u32 %v4320, 7
    %v4322 = vsub.s32 5, %v4321
    %v4323 = vrot.slane %v2746, %v4322
    %v4324 = vlaneseq
    %v4325 = vshrl.u32 %v4324, 7
    %v4326 = vsub.s32 6, %v4325
    %v4327 = vrot.slane %v2746, %v4326
    %v4328 = vlaneseq
    %v4329 = vshrl.u32 %v4328, 7
    %v4330 = vsub.s32 7, %v4329
    %v4331 = vrot.slane %v2746, %v4330
    %v4332 = vlaneseq
    %v4333 = vshrl.u32 %v4332, 7
    %v4334 = vsub.s32 0, %v4333
    %v4335 = vrot.slane %v2747, %v4334
    %v4336 = vlaneseq
    %v4337 = vshrl.u32 %v4336, 7
    %v4338 = vsub.s32 1, %v4337
    %v4339 = vrot.slane %v2747, %v4338
    %v4340 = vlaneseq
    %v4341 = vshrl.u32 %v4340, 7
    %v4342 = vsub.s32 2, %v4341
    %v4343 = vrot.slane %v2747, %v4342
    %v4344 = vlaneseq
    %v4345 = vshrl.u32 %v4344, 7
    %v4346 = vsub.s32 3, %v4345
    %v4347 = vrot.slane %v2747, %v4346
    %v4348 = vlaneseq
    %v4349 = vshrl.u32 %v4348, 7
    %v4350 = vsub.s32 4, %v4349
    %v4351 = vrot.slane %v2747, %v4350
    %v4352 = vlaneseq
    %v4353 = vshrl.u32 %v4352, 7
    %v4354 = vsub.s32 5, %v4353
    %v4355 = vrot.slane %v2747, %v4354
    %v4356 = vlaneseq
    %v4357 = vshrl.u32 %v4356, 7
    %v4358 = vsub.s32 6, %v4357
    %v4359 = vrot.slane %v2747, %v4358
    %v4360 = vlaneseq
    %v4361 = vshrl.u32 %v4360, 7
    %v4362 = vsub.s32 7, %v4361
    %v4363 = vrot.slane %v2747, %v4362
    %v4364 = vlaneseq
    %v4365 = vshrl.u32 %v4364, 7
    %v4366 = vsub.s32 0, %v4365
    %v4367 = vrot.slane %v2748, %v4366
    %v4368 = vlaneseq
    %v4369 = vshrl.u32 %v4368, 7
    %v4370 = vsub.s32 1, %v4369
    %v4371 = vrot.slane %v2748, %v4370
    %v4372 = vlaneseq
    %v4373 = vshrl.u32 %v4372, 7
    %v4374 = vsub.s32 2, %v4373
    %v4375 = vrot.slane %v2748, %v4374
    %v4376 = vlaneseq
    %v4377 = vshrl.u32 %v4376, 7
    %v4378 = vsub.s32 3, %v4377
    %v4379 = vrot.slane %v2748, %v4378
    %v4380 = vlaneseq
    %v4381 = vshrl.u32 %v4380, 7
    %v4382 = vsub.s32 4, %v4381
    %v4383 = vrot.slane %v2748, %v4382
    %v4384 = vlaneseq
    %v4385 = vshrl.u32 %v4384, 7
    %v4386 = vsub.s32 5, %v4385
    %v4387 = vrot.slane %v2748, %v4386
    %v4388 = vlaneseq
    %v4389 = vshrl.u32 %v4388, 7
    %v4390 = vsub.s32 6, %v4389
    %v4391 = vrot.slane %v2748, %v4390
    %v4392 = vlaneseq
    %v4393 = vshrl.u32 %v4392, 7
    %v4394 = vsub.s32 7, %v4393
    %v4395 = vrot.slane %v2748, %v4394
    %v4396 = vlaneseq
    %v4397 = vshrl.u32 %v4396, 7
    %v4398 = vsub.s32 0, %v4397
    %v4399 = vrot.slane %v2749, %v4398
    %v4400 = vlaneseq
    %v4401 = vshrl.u32 %v4400, 7
    %v4402 = vsub.s32 1, %v4401
    %v4403 = vrot.slane %v2749, %v4402
    %v4404 = vlaneseq
    %v4405 = vshrl.u32 %v4404, 7
    %v4406 = vsub.s32 2, %v4405
    %v4407 = vrot.slane %v2749, %v4406
    %v4408 = vlaneseq
    %v4409 = vshrl.u32 %v4408, 7
    %v4410 = vsub.s32 3, %v4409
    %v4411 = vrot.slane %v2749, %v4410
    %v4412 = vlaneseq
    %v4413 = vshrl.u32 %v4412, 7
    %v4414 = vsub.s32 4, %v4413
    %v4415 = vrot.slane %v2749, %v4414
    %v4416 = vlaneseq
    %v4417 = vshrl.u32 %v4416, 7
    %v4418 = vsub.s32 5, %v4417
    %v4419 = vrot.slane %v2749, %v4418
    %v4420 = vlaneseq
    %v4421 = vshrl.u32 %v4420, 7
    %v4422 = vsub.s32 6, %v4421
    %v4423 = vrot.slane %v2749, %v4422
    %v4424 = vlaneseq
    %v4425 = vshrl.u32 %v4424, 7
    %v4426 = vsub.s32 7, %v4425
    %v4427 = vrot.slane %v2749, %v4426
    %v4428 = vlaneseq
    %v4429 = vshrl.u32 %v4428, 7
    %v4430 = vsub.s32 0, %v4429
    %v4431 = vrot.slane %v2750, %v4430
    %v4432 = vlaneseq
    %v4433 = vshrl.u32 %v4432, 7
    %v4434 = vsub.s32 1, %v4433
    %v4435 = vrot.slane %v2750, %v4434
    %v4436 = vlaneseq
    %v4437 = vshrl.u32 %v4436, 7
    %v4438 = vsub.s32 2, %v4437
    %v4439 = vrot.slane %v2750, %v4438
    %v4440 = vlaneseq
    %v4441 = vshrl.u32 %v4440, 7
    %v4442 = vsub.s32 3, %v4441
    %v4443 = vrot.slane %v2750, %v4442
    %v4444 = vlaneseq
    %v4445 = vshrl.u32 %v4444, 7
    %v4446 = vsub.s32 4, %v4445
    %v4447 = vrot.slane %v2750, %v4446
    %v4448 = vlaneseq
    %v4449 = vshrl.u32 %v4448, 7
    %v4450 = vsub.s32 5, %v4449
    %v4451 = vrot.slane %v2750, %v4450
    %v4452 = vlaneseq
    %v4453 = vshrl.u32 %v4452, 7
    %v4454 = vsub.s32 6, %v4453
    %v4455 = vrot.slane %v2750, %v4454
    %v4456 = vlaneseq
    %v4457 = vshrl.u32 %v4456, 7
    %v4458 = vsub.s32 7, %v4457
    %v4459 = vrot.slane %v2750, %v4458
    %v4460 = vlaneseq
    %v4461 = vshrl.u32 %v4460, 7
    %v4462 = vsub.s32 0, %v4461
    %v4463 = vrot.slane %v2751, %v4462
    %v4464 = vlaneseq
    %v4465 = vshrl.u32 %v4464, 7
    %v4466 = vsub.s32 1, %v4465
    %v4467 = vrot.slane %v2751, %v4466
    %v4468 = vlaneseq
    %v4469 = vshrl.u32 %v4468, 7
    %v4470 = vsub.s32 2, %v4469
    %v4471 = vrot.slane %v2751, %v4470
    %v4472 = vlaneseq
    %v4473 = vshrl.u32 %v4472, 7
    %v4474 = vsub.s32 3, %v4473
    %v4475 = vrot.slane %v2751, %v4474
    %v4476 = vlaneseq
    %v4477 = vshrl.u32 %v4476, 7
    %v4478 = vsub.s32 4, %v4477
    %v4479 = vrot.slane %v2751, %v4478
    %v4480 = vlaneseq
    %v4481 = vshrl.u32 %v4480, 7
    %v4482 = vsub.s32 5, %v4481
    %v4483 = vrot.slane %v2751, %v4482
    %v4484 = vlaneseq
    %v4485 = vshrl.u32 %v4484, 7
    %v4486 = vsub.s32 6, %v4485
    %v4487 = vrot.slane %v2751, %v4486
    %v4488 = vlaneseq
    %v4489 = vshrl.u32 %v4488, 7
    %v4490 = vsub.s32 7, %v4489
    %v4491 = vrot.slane %v2751, %v4490
    %v4492 = vlaneseq
    %v4493 = vshrl.u32 %v4492, 7
    %v4494 = vsub.s32 0, %v4493
    %v4495 = vrot.slane %v2752, %v4494
    %v4496 = vlaneseq
    %v4497 = vshrl.u32 %v4496, 7
    %v4498 = vsub.s32 1, %v4497
    %v4499 = vrot.slane %v2752, %v4498
    %v4500 = vlaneseq
    %v4501 = vshrl.u32 %v4500, 7
    %v4502 = vsub.s32 2, %v4501
    %v4503 = vrot.slane %v2752, %v4502
    %v4504 = vlaneseq
    %v4505 = vshrl.u32 %v4504, 7
    %v4506 = vsub.s32 3, %v4505
    %v4507 = vrot.slane %v2752, %v4506
    %v4508 = vlaneseq
    %v4509 = vshrl.u32 %v4508, 7
    %v4510 = vsub.s32 4, %v4509
    %v4511 = vrot.slane %v2752, %v4510
    %v4512 = vlaneseq
    %v4513 = vshrl.u32 %v4512, 7
    %v4514 = vsub.s32 5, %v4513
    %v4515 = vrot.slane %v2752, %v4514
    %v4516 = vlaneseq
    %v4517 = vshrl.u32 %v4516, 7
    %v4518 = vsub.s32 6, %v4517
    %v4519 = vrot.slane %v2752, %v4518
    %v4520 = vlaneseq
    %v4521 = vshrl.u32 %v4520, 7
    %v4522 = vsub.s32 7, %v4521
    %v4523 = vrot.slane %v2752, %v4522
    %v4524 = vlaneseq
    %v4525 = vshrl.u32 %v4524, 7
    %v4526 = vsub.s32 0, %v4525
    %v4527 = vrot.slane %v2753, %v4526
    %v4528 = vlaneseq
    %v4529 = vshrl.u32 %v4528, 7
    %v4530 = vsub.s32 1, %v4529
    %v4531 = vrot.slane %v2753, %v4530
    %v4532 = vlaneseq
    %v4533 = vshrl.u32 %v4532, 7
    %v4534 = vsub.s32 2, %v4533
    %v4535 = vrot.slane %v2753, %v4534
    %v4536 = vlaneseq
    %v4537 = vshrl.u32 %v4536, 7
    %v4538 = vsub.s32 3, %v4537
    %v4539 = vrot.slane %v2753, %v4538
    %v4540 = vlaneseq
    %v4541 = vshrl.u32 %v4540, 7
    %v4542 = vsub.s32 4, %v4541
    %v4543 = vrot.slane %v2753, %v4542
    %v4544 = vlaneseq
    %v4545 = vshrl.u32 %v4544, 7
    %v4546 = vsub.s32 5, %v4545
    %v4547 = vrot.slane %v2753, %v4546
    %v4548 = vlaneseq
    %v4549 = vshrl.u32 %v4548, 7
    %v4550 = vsub.s32 6, %v4549
    %v4551 = vrot.slane %v2753, %v4550
    %v4552 = vlaneseq
    %v4553 = vshrl.u32 %v4552, 7
    %v4554 = vsub.s32 7, %v4553
    %v4555 = vrot.slane %v2753, %v4554
    %v4556 = vlaneseq
    %v4557 = vshrl.u32 %v4556, 7
    %v4558 = vsub.s32 0, %v4557
    %v4559 = vrot.slane %v2754, %v4558
    %v4560 = vlaneseq
    %v4561 = vshrl.u32 %v4560, 7
    %v4562 = vsub.s32 1, %v4561
    %v4563 = vrot.slane %v2754, %v4562
    %v4564 = vlaneseq
    %v4565 = vshrl.u32 %v4564, 7
    %v4566 = vsub.s32 2, %v4565
    %v4567 = vrot.slane %v2754, %v4566
    %v4568 = vlaneseq
    %v4569 = vshrl.u32 %v4568, 7
    %v4570 = vsub.s32 3, %v4569
    %v4571 = vrot.slane %v2754, %v4570
    %v4572 = vlaneseq
    %v4573 = vshrl.u32 %v4572, 7
    %v4574 = vsub.s32 4, %v4573
    %v4575 = vrot.slane %v2754, %v4574
    %v4576 = vlaneseq
    %v4577 = vshrl.u32 %v4576, 7
    %v4578 = vsub.s32 5, %v4577
    %v4579 = vrot.slane %v2754, %v4578
    %v4580 = vlaneseq
    %v4581 = vshrl.u32 %v4580, 7
    %v4582 = vsub.s32 6, %v4581
    %v4583 = vrot.slane %v2754, %v4582
    %v4584 = vlaneseq
    %v4585 = vshrl.u32 %v4584, 7
    %v4586 = vsub.s32 7, %v4585
    %v4587 = vrot.slane %v2754, %v4586
    %v4588 = vlaneseq
    %v4589 = vshrl.u32 %v4588, 7
    %v4590 = vsub.s32 0, %v4589
    %v4591 = vrot.slane %v2755, %v4590
    %v4592 = vlaneseq
    %v4593 = vshrl.u32 %v4592, 7
    %v4594 = vsub.s32 1, %v4593
    %v4595 = vrot.slane %v2755, %v4594
    %v4596 = vlaneseq
    %v4597 = vshrl.u32 %v4596, 7
    %v4598 = vsub.s32 2, %v4597
    %v4599 = vrot.slane %v2755, %v4598
    %v4600 = vlaneseq
    %v4601 = vshrl.u32 %v4600, 7
    %v4602 = vsub.s32 3, %v4601
    %v4603 = vrot.slane %v2755, %v4602
    %v4604 = vlaneseq
    %v4605 = vshrl.u32 %v4604, 7
    %v4606 = vsub.s32 4, %v4605
    %v4607 = vrot.slane %v2755, %v4606
    %v4608 = vlaneseq
    %v4609 = vshrl.u32 %v4608, 7
    %v4610 = vsub.s32 5, %v4609
    %v4611 = vrot.slane %v2755, %v4610
    %v4612 = vlaneseq
    %v4613 = vshrl.u32 %v4612, 7
    %v4614 = vsub.s32 6, %v4613
    %v4615 = vrot.slane %v2755, %v4614
    %v4616 = vlaneseq
    %v4617 = vshrl.u32 %v4616, 7
    %v4618 = vsub.s32 7, %v4617
    %v4619 = vrot.slane %v2755, %v4618
    %v4620 = vlaneseq
    %v4621 = vshrl.u32 %v4620, 7
    %v4622 = vsub.s32 0, %v4621
    %v4623 = vrot.slane %v2756, %v4622
    %v4624 = vlaneseq
    %v4625 = vshrl.u32 %v4624, 7
    %v4626 = vsub.s32 1, %v4625
    %v4627 = vrot.slane %v2756, %v4626
    %v4628 = vlaneseq
    %v4629 = vshrl.u32 %v4628, 7
    %v4630 = vsub.s32 2, %v4629
    %v4631 = vrot.slane %v2756, %v4630
    %v4632 = vlaneseq
    %v4633 = vshrl.u32 %v4632, 7
    %v4634 = vsub.s32 3, %v4633
    %v4635 = vrot.slane %v2756, %v4634
    %v4636 = vlaneseq
    %v4637 = vshrl.u32 %v4636, 7
    %v4638 = vsub.s32 4, %v4637
    %v4639 = vrot.slane %v2756, %v4638
    %v4640 = vlaneseq
    %v4641 = vshrl.u32 %v4640, 7
    %v4642 = vsub.s32 5, %v4641
    %v4643 = vrot.slane %v2756, %v4642
    %v4644 = vlaneseq
    %v4645 = vshrl.u32 %v4644, 7
    %v4646 = vsub.s32 6, %v4645
    %v4647 = vrot.slane %v2756, %v4646
    %v4648 = vlaneseq
    %v4649 = vshrl.u32 %v4648, 7
    %v4650 = vsub.s32 7, %v4649
    %v4651 = vrot.slane %v2756, %v4650
    %v4652 = vlaneseq
    %v4653 = vshrl.u32 %v4652, 7
    %v4654 = vsub.s32 0, %v4653
    %v4655 = vrot.slane %v2757, %v4654
    %v4656 = vlaneseq
    %v4657 = vshrl.u32 %v4656, 7
    %v4658 = vsub.s32 1, %v4657
    %v4659 = vrot.slane %v2757, %v4658
    %v4660 = vlaneseq
    %v4661 = vshrl.u32 %v4660, 7
    %v4662 = vsub.s32 2, %v4661
    %v4663 = vrot.slane %v2757, %v4662
    %v4664 = vlaneseq
    %v4665 = vshrl.u32 %v4664, 7
    %v4666 = vsub.s32 3, %v4665
    %v4667 = vrot.slane %v2757, %v4666
    %v4668 = vlaneseq
    %v4669 = vshrl.u32 %v4668, 7
    %v4670 = vsub.s32 4, %v4669
    %v4671 = vrot.slane %v2757, %v4670
    %v4672 = vlaneseq
    %v4673 = vshrl.u32 %v4672, 7
    %v4674 = vsub.s32 5, %v4673
    %v4675 = vrot.slane %v2757, %v4674
    %v4676 = vlaneseq
    %v4677 = vshrl.u32 %v4676, 7
    %v4678 = vsub.s32 6, %v4677
    %v4679 = vrot.slane %v2757, %v4678
    %v4680 = vlaneseq
    %v4681 = vshrl.u32 %v4680, 7
    %v4682 = vsub.s32 7, %v4681
    %v4683 = vrot.slane %v2757, %v4682
    %v4684 = vlaneseq
    %v4685 = vshrl.u32 %v4684, 7
    %v4686 = vsub.s32 0, %v4685
    %v4687 = vrot.slane %v2758, %v4686
    %v4688 = vlaneseq
    %v4689 = vshrl.u32 %v4688, 7
    %v4690 = vsub.s32 1, %v4689
    %v4691 = vrot.slane %v2758, %v4690
    %v4692 = vlaneseq
    %v4693 = vshrl.u32 %v4692, 7
    %v4694 = vsub.s32 2, %v4693
    %v4695 = vrot.slane %v2758, %v4694
    %v4696 = vlaneseq
    %v4697 = vshrl.u32 %v4696, 7
    %v4698 = vsub.s32 3, %v4697
    %v4699 = vrot.slane %v2758, %v4698
    %v4700 = vlaneseq
    %v4701 = vshrl.u32 %v4700, 7
    %v4702 = vsub.s32 4, %v4701
    %v4703 = vrot.slane %v2758, %v4702
    %v4704 = vlaneseq
    %v4705 = vshrl.u32 %v4704, 7
    %v4706 = vsub.s32 5, %v4705
    %v4707 = vrot.slane %v2758, %v4706
    %v4708 = vlaneseq
    %v4709 = vshrl.u32 %v4708, 7
    %v4710 = vsub.s32 6, %v4709
    %v4711 = vrot.slane %v2758, %v4710
    %v4712 = vlaneseq
    %v4713 = vshrl.u32 %v4712, 7
    %v4714 = vsub.s32 7, %v4713
    %v4715 = vrot.slane %v2758, %v4714
    %v4716 = vlaneseq
    %v4717 = vshrl.u32 %v4716, 7
    %v4718 = vsub.s32 0, %v4717
    %v4719 = vrot.slane %v2759, %v4718
    %v4720 = vlaneseq
    %v4721 = vshrl.u32 %v4720, 7
    %v4722 = vsub.s32 1, %v4721
    %v4723 = vrot.slane %v2759, %v4722
    %v4724 = vlaneseq
    %v4725 = vshrl.u32 %v4724, 7
    %v4726 = vsub.s32 2, %v4725
    %v4727 = vrot.slane %v2759, %v4726
    %v4728 = vlaneseq
    %v4729 = vshrl.u32 %v4728, 7
    %v4730 = vsub.s32 3, %v4729
    %v4731 = vrot.slane %v2759, %v4730
    %v4732 = vlaneseq
    %v4733 = vshrl.u32 %v4732, 7
    %v4734 = vsub.s32 4, %v4733
    %v4735 = vrot.slane %v2759, %v4734
    %v4736 = vlaneseq
    %v4737 = vshrl.u32 %v4736, 7
    %v4738 = vsub.s32 5, %v4737
    %v4739 = vrot.slane %v2759, %v4738
    %v4740 = vlaneseq
    %v4741 = vshrl.u32 %v4740, 7
    %v4742 = vsub.s32 6, %v4741
    %v4743 = vrot.slane %v2759, %v4742
    %v4744 = vlaneseq
    %v4745 = vshrl.u32 %v4744, 7
    %v4746 = vsub.s32 7, %v4745
    %v4747 = vrot.slane %v2759, %v4746
    %v4748 = vlaneseq
    %v4749 = vshrl.u32 %v4748, 7
    %v4750 = vsub.s32 0, %v4749
    %v4751 = vrot.slane %v2760, %v4750
    %v4752 = vlaneseq
    %v4753 = vshrl.u32 %v4752, 7
    %v4754 = vsub.s32 1, %v4753
    %v4755 = vrot.slane %v2760, %v4754
    %v4756 = vlaneseq
    %v4757 = vshrl.u32 %v4756, 7
    %v4758 = vsub.s32 2, %v4757
    %v4759 = vrot.slane %v2760, %v4758
    %v4760 = vlaneseq
    %v4761 = vshrl.u32 %v4760, 7
    %v4762 = vsub.s32 3, %v4761
    %v4763 = vrot.slane %v2760, %v4762
    %v4764 = vlaneseq
    %v4765 = vshrl.u32 %v4764, 7
    %v4766 = vsub.s32 4, %v4765
    %v4767 = vrot.slane %v2760, %v4766
    %v4768 = vlaneseq
    %v4769 = vshrl.u32 %v4768, 7
    %v4770 = vsub.s32 5, %v4769
    %v4771 = vrot.slane %v2760, %v4770
    %v4772 = vlaneseq
    %v4773 = vshrl.u32 %v4772, 7
    %v4774 = vsub.s32 6, %v4773
    %v4775 = vrot.slane %v2760, %v4774
    %v4776 = vlaneseq
    %v4777 = vshrl.u32 %v4776, 7
    %v4778 = vsub.s32 7, %v4777
    %v4779 = vrot.slane %v2760, %v4778
    %v4780 = vlaneseq
    %v4781 = vshrl.u32 %v4780, 7
    %v4782 = vsub.s32 0, %v4781
    %v4783 = vrot.slane %v2761, %v4782
    %v4784 = vlaneseq
    %v4785 = vshrl.u32 %v4784, 7
    %v4786 = vsub.s32 1, %v4785
    %v4787 = vrot.slane %v2761, %v4786
    %v4788 = vlaneseq
    %v4789 = vshrl.u32 %v4788, 7
    %v4790 = vsub.s32 2, %v4789
    %v4791 = vrot.slane %v2761, %v4790
    %v4792 = vlaneseq
    %v4793 = vshrl.u32 %v4792, 7
    %v4794 = vsub.s32 3, %v4793
    %v4795 = vrot.slane %v2761, %v4794
    %v4796 = vlaneseq
    %v4797 = vshrl.u32 %v4796, 7
    %v4798 = vsub.s32 4, %v4797
    %v4799 = vrot.slane %v2761, %v4798
    %v4800 = vlaneseq
    %v4801 = vshrl.u32 %v4800, 7
    %v4802 = vsub.s32 5, %v4801
    %v4803 = vrot.slane %v2761, %v4802
    %v4804 = vlaneseq
    %v4805 = vshrl.u32 %v4804, 7
    %v4806 = vsub.s32 6, %v4805
    %v4807 = vrot.slane %v2761, %v4806
    %v4808 = vlaneseq
    %v4809 = vshrl.u32 %v4808, 7
    %v4810 = vsub.s32 7, %v4809
    %v4811 = vrot.slane %v2761, %v4810
    %v4812 = vlaneseq
    %v4813 = vshrl.u32 %v4812, 7
    %v4814 = vsub.s32 0, %v4813
    %v4815 = vrot.slane %v2762, %v4814
    %v4816 = vlaneseq
    %v4817 = vshrl.u32 %v4816, 7
    %v4818 = vsub.s32 1, %v4817
    %v4819 = vrot.slane %v2762, %v4818
    %v4820 = vlaneseq
    %v4821 = vshrl.u32 %v4820, 7
    %v4822 = vsub.s32 2, %v4821
    %v4823 = vrot.slane %v2762, %v4822
    %v4824 = vlaneseq
    %v4825 = vshrl.u32 %v4824, 7
    %v4826 = vsub.s32 3, %v4825
    %v4827 = vrot.slane %v2762, %v4826
    %v4828 = vlaneseq
    %v4829 = vshrl.u32 %v4828, 7
    %v4830 = vsub.s32 4, %v4829
    %v4831 = vrot.slane %v2762, %v4830
    %v4832 = vlaneseq
    %v4833 = vshrl.u32 %v4832, 7
    %v4834 = vsub.s32 5, %v4833
    %v4835 = vrot.slane %v2762, %v4834
    %v4836 = vlaneseq
    %v4837 = vshrl.u32 %v4836, 7
    %v4838 = vsub.s32 6, %v4837
    %v4839 = vrot.slane %v2762, %v4838
    %v4840 = vlaneseq
    %v4841 = vshrl.u32 %v4840, 7
    %v4842 = vsub.s32 7, %v4841
    %v4843 = vrot.slane %v2762, %v4842
    %v4844 = vlaneseq
    %v4845 = vshrl.u32 %v4844, 7
    %v4846 = vsub.s32 0, %v4845
    %v4847 = vrot.slane %v2763, %v4846
    %v4848 = vlaneseq
    %v4849 = vshrl.u32 %v4848, 7
    %v4850 = vsub.s32 1, %v4849
    %v4851 = vrot.slane %v2763, %v4850
    %v4852 = vlaneseq
    %v4853 = vshrl.u32 %v4852, 7
    %v4854 = vsub.s32 2, %v4853
    %v4855 = vrot.slane %v2763, %v4854
    %v4856 = vlaneseq
    %v4857 = vshrl.u32 %v4856, 7
    %v4858 = vsub.s32 3, %v4857
    %v4859 = vrot.slane %v2763, %v4858
    %v4860 = vlaneseq
    %v4861 = vshrl.u32 %v4860, 7
    %v4862 = vsub.s32 4, %v4861
    %v4863 = vrot.slane %v2763, %v4862
    %v4864 = vlaneseq
    %v4865 = vshrl.u32 %v4864, 7
    %v4866 = vsub.s32 5, %v4865
    %v4867 = vrot.slane %v2763, %v4866
    %v4868 = vlaneseq
    %v4869 = vshrl.u32 %v4868, 7
    %v4870 = vsub.s32 6, %v4869
    %v4871 = vrot.slane %v2763, %v4870
    %v4872 = vlaneseq
    %v4873 = vshrl.u32 %v4872, 7
    %v4874 = vsub.s32 7, %v4873
    %v4875 = vrot.slane %v2763, %v4874
    %v4876 = vcombine.low %v2831, %v2835
    %v4877 = vcombine.low %v2839, %v2843
    %v4878 = vcombine.low %v2847, %v2851
    %v4879 = vcombine.low %v2855, %v2859
    %v4881 = vunpack.c.l.s4 1966171168
    %v4882 = vunpack.c.0.s8 %v4881
    %v4883 = vlaneseq
    %v4884 = vshrl.u32 %v4883, 7
    %v4885 = vsub.s32 %v4882, %v4884
    %v4886 = vrot.slane %v4876, %v4885
    %v4888 = vunpack.c.l.s4 1966171168
    %v4889 = vunpack.c.0.s8 %v4888
    %v4890 = vlaneseq
    %v4891 = vshrl.u32 %v4890, 7
    %v4892 = vsub.s32 %v4889, %v4891
    %v4893 = vrot.slane %v4877, %v4892
    %v4895 = vunpack.c.l.s4 1966171168
    %v4896 = vunpack.c.0.s8 %v4895
    %v4897 = vlaneseq
    %v4898 = vshrl.u32 %v4897, 7
    %v4899 = vsub.s32 %v4896, %v4898
    %v4900 = vrot.slane %v4878, %v4899
    %v4902 = vunpack.c.l.s4 1966171168
    %v4903 = vunpack.c.0.s8 %v4902
    %v4904 = vlaneseq
    %v4905 = vshrl.u32 %v4904, 7
    %v4906 = vsub.s32 %v4903, %v4905
    %v4907 = vrot.slane %v4879, %v4906
    %v4908 = vcombine.low %v4886, %v4893
    %v4909 = vcombine.low %v4900, %v4907
    %v4911 = vunpack.c.l.s4 1966171168
    %v4912 = vunpack.c.0.s8 %v4911
    %v4913 = vlaneseq
    %v4914 = vshrl.u32 %v4913, 7
    %v4915 = vsub.s32 %v4912, %v4914
    %v4916 = vrot.slane %v4908, %v4915
    %v4918 = vunpack.c.l.s4 1966171168
    %v4919 = vunpack.c.0.s8 %v4918
    %v4920 = vlaneseq
    %v4921 = vshrl.u32 %v4920, 7
    %v4922 = vsub.s32 %v4919, %v4921
    %v4923 = vrot.slane %v4909, %v4922
    %v4924 = vcombine.low %v4916, %v4923
    %v4925 = vcombine.low %v2863, %v2867
    %v4926 = vcombine.low %v2871, %v2875
    %v4927 = vcombine.low %v2879, %v2883
    %v4928 = vcombine.low %v2887, %v2891
    %v4930 = vunpack.c.l.s4 1966171168
    %v4931 = vunpack.c.0.s8 %v4930
    %v4932 = vlaneseq
    %v4933 = vshrl.u32 %v4932, 7
    %v4934 = vsub.s32 %v4931, %v4933
    %v4935 = vrot.slane %v4925, %v4934
    %v4937 = vunpack.c.l.s4 1966171168
    %v4938 = vunpack.c.0.s8 %v4937
    %v4939 = vlaneseq
    %v4940 = vshrl.u32 %v4939, 7
    %v4941 = vsub.s32 %v4938, %v4940
    %v4942 = vrot.slane %v4926, %v4941
    %v4944 = vunpack.c.l.s4 1966171168
    %v4945 = vunpack.c.0.s8 %v4944
    %v4946 = vlaneseq
    %v4947 = vshrl.u32 %v4946, 7
    %v4948 = vsub.s32 %v4945, %v4947
    %v4949 = vrot.slane %v4927, %v4948
    %v4951 = vunpack.c.l.s4 1966171168
    %v4952 = vunpack.c.0.s8 %v4951
    %v4953 = vlaneseq
    %v4954 = vshrl.u32 %v4953, 7
    %v4955 = vsub.s32 %v4952, %v4954
    %v4956 = vrot.slane %v4928, %v4955
    %v4957 = vcombine.low %v4935, %v4942
    %v4958 = vcombine.low %v4949, %v4956
    %v4960 = vunpack.c.l.s4 1966171168
    %v4961 = vunpack.c.0.s8 %v4960
    %v4962 = vlaneseq
    %v4963 = vshrl.u32 %v4962, 7
    %v4964 = vsub.s32 %v4961, %v4963
    %v4965 = vrot.slane %v4957, %v4964
    %v4967 = vunpack.c.l.s4 1966171168
    %v4968 = vunpack.c.0.s8 %v4967
    %v4969 = vlaneseq
    %v4970 = vshrl.u32 %v4969, 7
    %v4971 = vsub.s32 %v4968, %v4970
    %v4972 = vrot.slane %v4958, %v4971
    %v4973 = vcombine.low %v4965, %v4972
    %v4974 = vcombine.low %v2895, %v2899
    %v4975 = vcombine.low %v2903, %v2907
    %v4976 = vcombine.low %v2911, %v2915
    %v4977 = vcombine.low %v2919, %v2923
    %v4979 = vunpack.c.l.s4 1966171168
    %v4980 = vunpack.c.0.s8 %v4979
    %v4981 = vlaneseq
    %v4982 = vshrl.u32 %v4981, 7
    %v4983 = vsub.s32 %v4980, %v4982
    %v4984 = vrot.slane %v4974, %v4983
    %v4986 = vunpack.c.l.s4 1966171168
    %v4987 = vunpack.c.0.s8 %v4986
    %v4988 = vlaneseq
    %v4989 = vshrl.u32 %v4988, 7
    %v4990 = vsub.s32 %v4987, %v4989
    %v4991 = vrot.slane %v4975, %v4990
    %v4993 = vunpack.c.l.s4 1966171168
    %v4994 = vunpack.c.0.s8 %v4993
    %v4995 = vlaneseq
    %v4996 = vshrl.u32 %v4995, 7
    %v4997 = vsub.s32 %v4994, %v4996
    %v4998 = vrot.slane %v4976, %v4997
    %v5000 = vunpack.c.l.s4 1966171168
    %v5001 = vunpack.c.0.s8 %v5000
    %v5002 = vlaneseq
    %v5003 = vshrl.u32 %v5002, 7
    %v5004 = vsub.s32 %v5001, %v5003
    %v5005 = vrot.slane %v4977, %v5004
    %v5006 = vcombine.low %v4984, %v4991
    %v5007 = vcombine.low %v4998, %v5005
    %v5009 = vunpack.c.l.s4 1966171168
    %v5010 = vunpack.c.0.s8 %v5009
    %v5011 = vlaneseq
    %v5012 = vshrl.u32 %v5011, 7
    %v5013 = vsub.s32 %v5010, %v5012
    %v5014 = vrot.slane %v5006, %v5013
    %v5016 = vunpack.c.l.s4 1966171168
    %v5017 = vunpack.c.0.s8 %v5016
    %v5018 = vlaneseq
    %v5019 = vshrl.u32 %v5018, 7
    %v5020 = vsub.s32 %v5017, %v5019
    %v5021 = vrot.slane %v5007, %v5020
    %v5022 = vcombine.low %v5014, %v5021
    %v5023 = vcombine.low %v2927, %v2931
    %v5024 = vcombine.low %v2935, %v2939
    %v5025 = vcombine.low %v2943, %v2947
    %v5026 = vcombine.low %v2951, %v2955
    %v5028 = vunpack.c.l.s4 1966171168
    %v5029 = vunpack.c.0.s8 %v5028
    %v5030 = vlaneseq
    %v5031 = vshrl.u32 %v5030, 7
    %v5032 = vsub.s32 %v5029, %v5031
    %v5033 = vrot.slane %v5023, %v5032
    %v5035 = vunpack.c.l.s4 1966171168
    %v5036 = vunpack.c.0.s8 %v5035
    %v5037 = vlaneseq
    %v5038 = vshrl.u32 %v5037, 7
    %v5039 = vsub.s32 %v5036, %v5038
    %v5040 = vrot.slane %v5024, %v5039
    %v5042 = vunpack.c.l.s4 1966171168
    %v5043 = vunpack.c.0.s8 %v5042
    %v5044 = vlaneseq
    %v5045 = vshrl.u32 %v5044, 7
    %v5046 = vsub.s32 %v5043, %v5045
    %v5047 = vrot.slane %v5025, %v5046
    %v5049 = vunpack.c.l.s4 1966171168
    %v5050 = vunpack.c.0.s8 %v5049
    %v5051 = vlaneseq
    %v5052 = vshrl.u32 %v5051, 7
    %v5053 = vsub.s32 %v5050, %v5052
    %v5054 = vrot.slane %v5026, %v5053
    %v5055 = vcombine.low %v5033, %v5040
    %v5056 = vcombine.low %v5047, %v5054
    %v5058 = vunpack.c.l.s4 1966171168
    %v5059 = vunpack.c.0.s8 %v5058
    %v5060 = vlaneseq
    %v5061 = vshrl.u32 %v5060, 7
    %v5062 = vsub.s32 %v5059, %v5061
    %v5063 = vrot.slane %v5055, %v5062
    %v5065 = vunpack.c.l.s4 1966171168
    %v5066 = vunpack.c.0.s8 %v5065
    %v5067 = vlaneseq
    %v5068 = vshrl.u32 %v5067, 7
    %v5069 = vsub.s32 %v5066, %v5068
    %v5070 = vrot.slane %v5056, %v5069
    %v5071 = vcombine.low %v5063, %v5070
    %v5072 = vcombine.low %v2959, %v2963
    %v5073 = vcombine.low %v2967, %v2971
    %v5074 = vcombine.low %v2975, %v2979
    %v5075 = vcombine.low %v2983, %v2987
    %v5077 = vunpack.c.l.s4 1966171168
    %v5078 = vunpack.c.0.s8 %v5077
    %v5079 = vlaneseq
    %v5080 = vshrl.u32 %v5079, 7
    %v5081 = vsub.s32 %v5078, %v5080
    %v5082 = vrot.slane %v5072, %v5081
    %v5084 = vunpack.c.l.s4 1966171168
    %v5085 = vunpack.c.0.s8 %v5084
    %v5086 = vlaneseq
    %v5087 = vshrl.u32 %v5086, 7
    %v5088 = vsub.s32 %v5085, %v5087
    %v5089 = vrot.slane %v5073, %v5088
    %v5091 = vunpack.c.l.s4 1966171168
    %v5092 = vunpack.c.0.s8 %v5091
    %v5093 = vlaneseq
    %v5094 = vshrl.u32 %v5093, 7
    %v5095 = vsub.s32 %v5092, %v5094
    %v5096 = vrot.slane %v5074, %v5095
    %v5098 = vunpack.c.l.s4 1966171168
    %v5099 = vunpack.c.0.s8 %v5098
    %v5100 = vlaneseq
    %v5101 = vshrl.u32 %v5100, 7
    %v5102 = vsub.s32 %v5099, %v5101
    %v5103 = vrot.slane %v5075, %v5102
    %v5104 = vcombine.low %v5082, %v5089
    %v5105 = vcombine.low %v5096, %v5103
    %v5107 = vunpack.c.l.s4 1966171168
    %v5108 = vunpack.c.0.s8 %v5107
    %v5109 = vlaneseq
    %v5110 = vshrl.u32 %v5109, 7
    %v5111 = vsub.s32 %v5108, %v5110
    %v5112 = vrot.slane %v5104, %v5111
    %v5114 = vunpack.c.l.s4 1966171168
    %v5115 = vunpack.c.0.s8 %v5114
    %v5116 = vlaneseq
    %v5117 = vshrl.u32 %v5116, 7
    %v5118 = vsub.s32 %v5115, %v5117
    %v5119 = vrot.slane %v5105, %v5118
    %v5120 = vcombine.low %v5112, %v5119
    %v5121 = vcombine.low %v2991, %v2995
    %v5122 = vcombine.low %v2999, %v3003
    %v5123 = vcombine.low %v3007, %v3011
    %v5124 = vcombine.low %v3015, %v3019
    %v5126 = vunpack.c.l.s4 1966171168
    %v5127 = vunpack.c.0.s8 %v5126
    %v5128 = vlaneseq
    %v5129 = vshrl.u32 %v5128, 7
    %v5130 = vsub.s32 %v5127, %v5129
    %v5131 = vrot.slane %v5121, %v5130
    %v5133 = vunpack.c.l.s4 1966171168
    %v5134 = vunpack.c.0.s8 %v5133
    %v5135 = vlaneseq
    %v5136 = vshrl.u32 %v5135, 7
    %v5137 = vsub.s32 %v5134, %v5136
    %v5138 = vrot.slane %v5122, %v5137
    %v5140 = vunpack.c.l.s4 1966171168
    %v5141 = vunpack.c.0.s8 %v5140
    %v5142 = vlaneseq
    %v5143 = vshrl.u32 %v5142, 7
    %v5144 = vsub.s32 %v5141, %v5143
    %v5145 = vrot.slane %v5123, %v5144
    %v5147 = vunpack.c.l.s4 1966171168
    %v5148 = vunpack.c.0.s8 %v5147
    %v5149 = vlaneseq
    %v5150 = vshrl.u32 %v5149, 7
    %v5151 = vsub.s32 %v5148, %v5150
    %v5152 = vrot.slane %v5124, %v5151
    %v5153 = vcombine.low %v5131, %v5138
    %v5154 = vcombine.low %v5145, %v5152
    %v5156 = vunpack.c.l.s4 1966171168
    %v5157 = vunpack.c.0.s8 %v5156
    %v5158 = vlaneseq
    %v5159 = vshrl.u32 %v5158, 7
    %v5160 = vsub.s32 %v5157, %v5159
    %v5161 = vrot.slane %v5153, %v5160
    %v5163 = vunpack.c.l.s4 1966171168
    %v5164 = vunpack.c.0.s8 %v5163
    %v5165 = vlaneseq
    %v5166 = vshrl.u32 %v5165, 7
    %v5167 = vsub.s32 %v5164, %v5166
    %v5168 = vrot.slane %v5154, %v5167
    %v5169 = vcombine.low %v5161, %v5168
    %v5170 = vcombine.low %v3023, %v3027
    %v5171 = vcombine.low %v3031, %v3035
    %v5172 = vcombine.low %v3039, %v3043
    %v5173 = vcombine.low %v3047, %v3051
    %v5175 = vunpack.c.l.s4 1966171168
    %v5176 = vunpack.c.0.s8 %v5175
    %v5177 = vlaneseq
    %v5178 = vshrl.u32 %v5177, 7
    %v5179 = vsub.s32 %v5176, %v5178
    %v5180 = vrot.slane %v5170, %v5179
    %v5182 = vunpack.c.l.s4 1966171168
    %v5183 = vunpack.c.0.s8 %v5182
    %v5184 = vlaneseq
    %v5185 = vshrl.u32 %v5184, 7
    %v5186 = vsub.s32 %v5183, %v5185
    %v5187 = vrot.slane %v5171, %v5186
    %v5189 = vunpack.c.l.s4 1966171168
    %v5190 = vunpack.c.0.s8 %v5189
    %v5191 = vlaneseq
    %v5192 = vshrl.u32 %v5191, 7
    %v5193 = vsub.s32 %v5190, %v5192
    %v5194 = vrot.slane %v5172, %v5193
    %v5196 = vunpack.c.l.s4 1966171168
    %v5197 = vunpack.c.0.s8 %v5196
    %v5198 = vlaneseq
    %v5199 = vshrl.u32 %v5198, 7
    %v5200 = vsub.s32 %v5197, %v5199
    %v5201 = vrot.slane %v5173, %v5200
    %v5202 = vcombine.low %v5180, %v5187
    %v5203 = vcombine.low %v5194, %v5201
    %v5205 = vunpack.c.l.s4 1966171168
    %v5206 = vunpack.c.0.s8 %v5205
    %v5207 = vlaneseq
    %v5208 = vshrl.u32 %v5207, 7
    %v5209 = vsub.s32 %v5206, %v5208
    %v5210 = vrot.slane %v5202, %v5209
    %v5212 = vunpack.c.l.s4 1966171168
    %v5213 = vunpack.c.0.s8 %v5212
    %v5214 = vlaneseq
    %v5215 = vshrl.u32 %v5214, 7
    %v5216 = vsub.s32 %v5213, %v5215
    %v5217 = vrot.slane %v5203, %v5216
    %v5218 = vcombine.low %v5210, %v5217
    %v5219 = vcombine.low %v3055, %v3059
    %v5220 = vcombine.low %v3063, %v3067
    %v5221 = vcombine.low %v3071, %v3075
    %v5222 = vcombine.low %v3079, %v3083
    %v5224 = vunpack.c.l.s4 1966171168
    %v5225 = vunpack.c.0.s8 %v5224
    %v5226 = vlaneseq
    %v5227 = vshrl.u32 %v5226, 7
    %v5228 = vsub.s32 %v5225, %v5227
    %v5229 = vrot.slane %v5219, %v5228
    %v5231 = vunpack.c.l.s4 1966171168
    %v5232 = vunpack.c.0.s8 %v5231
    %v5233 = vlaneseq
    %v5234 = vshrl.u32 %v5233, 7
    %v5235 = vsub.s32 %v5232, %v5234
    %v5236 = vrot.slane %v5220, %v5235
    %v5238 = vunpack.c.l.s4 1966171168
    %v5239 = vunpack.c.0.s8 %v5238
    %v5240 = vlaneseq
    %v5241 = vshrl.u32 %v5240, 7
    %v5242 = vsub.s32 %v5239, %v5241
    %v5243 = vrot.slane %v5221, %v5242
    %v5245 = vunpack.c.l.s4 1966171168
    %v5246 = vunpack.c.0.s8 %v5245
    %v5247 = vlaneseq
    %v5248 = vshrl.u32 %v5247, 7
    %v5249 = vsub.s32 %v5246, %v5248
    %v5250 = vrot.slane %v5222, %v5249
    %v5251 = vcombine.low %v5229, %v5236
    %v5252 = vcombine.low %v5243, %v5250
    %v5254 = vunpack.c.l.s4 1966171168
    %v5255 = vunpack.c.0.s8 %v5254
    %v5256 = vlaneseq
    %v5257 = vshrl.u32 %v5256, 7
    %v5258 = vsub.s32 %v5255, %v5257
    %v5259 = vrot.slane %v5251, %v5258
    %v5261 = vunpack.c.l.s4 1966171168
    %v5262 = vunpack.c.0.s8 %v5261
    %v5263 = vlaneseq
    %v5264 = vshrl.u32 %v5263, 7
    %v5265 = vsub.s32 %v5262, %v5264
    %v5266 = vrot.slane %v5252, %v5265
    %v5267 = vcombine.low %v5259, %v5266
    %v5268 = vcombine.low %v3087, %v3091
    %v5269 = vcombine.low %v3095, %v3099
    %v5270 = vcombine.low %v3103, %v3107
    %v5271 = vcombine.low %v3111, %v3115
    %v5273 = vunpack.c.l.s4 1966171168
    %v5274 = vunpack.c.0.s8 %v5273
    %v5275 = vlaneseq
    %v5276 = vshrl.u32 %v5275, 7
    %v5277 = vsub.s32 %v5274, %v5276
    %v5278 = vrot.slane %v5268, %v5277
    %v5280 = vunpack.c.l.s4 1966171168
    %v5281 = vunpack.c.0.s8 %v5280
    %v5282 = vlaneseq
    %v5283 = vshrl.u32 %v5282, 7
    %v5284 = vsub.s32 %v5281, %v5283
    %v5285 = vrot.slane %v5269, %v5284
    %v5287 = vunpack.c.l.s4 1966171168
    %v5288 = vunpack.c.0.s8 %v5287
    %v5289 = vlaneseq
    %v5290 = vshrl.u32 %v5289, 7
    %v5291 = vsub.s32 %v5288, %v5290
    %v5292 = vrot.slane %v5270, %v5291
    %v5294 = vunpack.c.l.s4 1966171168
    %v5295 = vunpack.c.0.s8 %v5294
    %v5296 = vlaneseq
    %v5297 = vshrl.u32 %v5296, 7
    %v5298 = vsub.s32 %v5295, %v5297
    %v5299 = vrot.slane %v5271, %v5298
    %v5300 = vcombine.low %v5278, %v5285
    %v5301 = vcombine.low %v5292, %v5299
    %v5303 = vunpack.c.l.s4 1966171168
    %v5304 = vunpack.c.0.s8 %v5303
    %v5305 = vlaneseq
    %v5306 = vshrl.u32 %v5305, 7
    %v5307 = vsub.s32 %v5304, %v5306
    %v5308 = vrot.slane %v5300, %v5307
    %v5310 = vunpack.c.l.s4 1966171168
    %v5311 = vunpack.c.0.s8 %v5310
    %v5312 = vlaneseq
    %v5313 = vshrl.u32 %v5312, 7
    %v5314 = vsub.s32 %v5311, %v5313
    %v5315 = vrot.slane %v5301, %v5314
    %v5316 = vcombine.low %v5308, %v5315
    %v5317 = vcombine.low %v3119, %v3123
    %v5318 = vcombine.low %v3127, %v3131
    %v5319 = vcombine.low %v3135, %v3139
    %v5320 = vcombine.low %v3143, %v3147
    %v5322 = vunpack.c.l.s4 1966171168
    %v5323 = vunpack.c.0.s8 %v5322
    %v5324 = vlaneseq
    %v5325 = vshrl.u32 %v5324, 7
    %v5326 = vsub.s32 %v5323, %v5325
    %v5327 = vrot.slane %v5317, %v5326
    %v5329 = vunpack.c.l.s4 1966171168
    %v5330 = vunpack.c.0.s8 %v5329
    %v5331 = vlaneseq
    %v5332 = vshrl.u32 %v5331, 7
    %v5333 = vsub.s32 %v5330, %v5332
    %v5334 = vrot.slane %v5318, %v5333
    %v5336 = vunpack.c.l.s4 1966171168
    %v5337 = vunpack.c.0.s8 %v5336
    %v5338 = vlaneseq
    %v5339 = vshrl.u32 %v5338, 7
    %v5340 = vsub.s32 %v5337, %v5339
    %v5341 = vrot.slane %v5319, %v5340
    %v5343 = vunpack.c.l.s4 1966171168
    %v5344 = vunpack.c.0.s8 %v5343
    %v5345 = vlaneseq
    %v5346 = vshrl.u32 %v5345, 7
    %v5347 = vsub.s32 %v5344, %v5346
    %v5348 = vrot.slane %v5320, %v5347
    %v5349 = vcombine.low %v5327, %v5334
    %v5350 = vcombine.low %v5341, %v5348
    %v5352 = vunpack.c.l.s4 1966171168
    %v5353 = vunpack.c.0.s8 %v5352
    %v5354 = vlaneseq
    %v5355 = vshrl.u32 %v5354, 7
    %v5356 = vsub.s32 %v5353, %v5355
    %v5357 = vrot.slane %v5349, %v5356
    %v5359 = vunpack.c.l.s4 1966171168
    %v5360 = vunpack.c.0.s8 %v5359
    %v5361 = vlaneseq
    %v5362 = vshrl.u32 %v5361, 7
    %v5363 = vsub.s32 %v5360, %v5362
    %v5364 = vrot.slane %v5350, %v5363
    %v5365 = vcombine.low %v5357, %v5364
    %v5366 = vcombine.low %v3151, %v3155
    %v5367 = vcombine.low %v3159, %v3163
    %v5368 = vcombine.low %v3167, %v3171
    %v5369 = vcombine.low %v3175, %v3179
    %v5371 = vunpack.c.l.s4 1966171168
    %v5372 = vunpack.c.0.s8 %v5371
    %v5373 = vlaneseq
    %v5374 = vshrl.u32 %v5373, 7
    %v5375 = vsub.s32 %v5372, %v5374
    %v5376 = vrot.slane %v5366, %v5375
    %v5378 = vunpack.c.l.s4 1966171168
    %v5379 = vunpack.c.0.s8 %v5378
    %v5380 = vlaneseq
    %v5381 = vshrl.u32 %v5380, 7
    %v5382 = vsub.s32 %v5379, %v5381
    %v5383 = vrot.slane %v5367, %v5382
    %v5385 = vunpack.c.l.s4 1966171168
    %v5386 = vunpack.c.0.s8 %v5385
    %v5387 = vlaneseq
    %v5388 = vshrl.u32 %v5387, 7
    %v5389 = vsub.s32 %v5386, %v5388
    %v5390 = vrot.slane %v5368, %v5389
    %v5392 = vunpack.c.l.s4 1966171168
    %v5393 = vunpack.c.0.s8 %v5392
    %v5394 = vlaneseq
    %v5395 = vshrl.u32 %v5394, 7
    %v5396 = vsub.s32 %v5393, %v5395
    %v5397 = vrot.slane %v5369, %v5396
    %v5398 = vcombine.low %v5376, %v5383
    %v5399 = vcombine.low %v5390, %v5397
    %v5401 = vunpack.c.l.s4 1966171168
    %v5402 = vunpack.c.0.s8 %v5401
    %v5403 = vlaneseq
    %v5404 = vshrl.u32 %v5403, 7
    %v5405 = vsub.s32 %v5402, %v5404
    %v5406 = vrot.slane %v5398, %v5405
    %v5408 = vunpack.c.l.s4 1966171168
    %v5409 = vunpack.c.0.s8 %v5408
    %v5410 = vlaneseq
    %v5411 = vshrl.u32 %v5410, 7
    %v5412 = vsub.s32 %v5409, %v5411
    %v5413 = vrot.slane %v5399, %v5412
    %v5414 = vcombine.low %v5406, %v5413
    %v5415 = vcombine.low %v3183, %v3187
    %v5416 = vcombine.low %v3191, %v3195
    %v5417 = vcombine.low %v3199, %v3203
    %v5418 = vcombine.low %v3207, %v3211
    %v5420 = vunpack.c.l.s4 1966171168
    %v5421 = vunpack.c.0.s8 %v5420
    %v5422 = vlaneseq
    %v5423 = vshrl.u32 %v5422, 7
    %v5424 = vsub.s32 %v5421, %v5423
    %v5425 = vrot.slane %v5415, %v5424
    %v5427 = vunpack.c.l.s4 1966171168
    %v5428 = vunpack.c.0.s8 %v5427
    %v5429 = vlaneseq
    %v5430 = vshrl.u32 %v5429, 7
    %v5431 = vsub.s32 %v5428, %v5430
    %v5432 = vrot.slane %v5416, %v5431
    %v5434 = vunpack.c.l.s4 1966171168
    %v5435 = vunpack.c.0.s8 %v5434
    %v5436 = vlaneseq
    %v5437 = vshrl.u32 %v5436, 7
    %v5438 = vsub.s32 %v5435, %v5437
    %v5439 = vrot.slane %v5417, %v5438
    %v5441 = vunpack.c.l.s4 1966171168
    %v5442 = vunpack.c.0.s8 %v5441
    %v5443 = vlaneseq
    %v5444 = vshrl.u32 %v5443, 7
    %v5445 = vsub.s32 %v5442, %v5444
    %v5446 = vrot.slane %v5418, %v5445
    %v5447 = vcombine.low %v5425, %v5432
    %v5448 = vcombine.low %v5439, %v5446
    %v5450 = vunpack.c.l.s4 1966171168
    %v5451 = vunpack.c.0.s8 %v5450
    %v5452 = vlaneseq
    %v5453 = vshrl.u32 %v5452, 7
    %v5454 = vsub.s32 %v5451, %v5453
    %v5455 = vrot.slane %v5447, %v5454
    %v5457 = vunpack.c.l.s4 1966171168
    %v5458 = vunpack.c.0.s8 %v5457
    %v5459 = vlaneseq
    %v5460 = vshrl.u32 %v5459, 7
    %v5461 = vsub.s32 %v5458, %v5460
    %v5462 = vrot.slane %v5448, %v5461
    %v5463 = vcombine.low %v5455, %v5462
    %v5464 = vcombine.low %v3215, %v3219
    %v5465 = vcombine.low %v3223, %v3227
    %v5466 = vcombine.low %v3231, %v3235
    %v5467 = vcombine.low %v3239, %v3243
    %v5469 = vunpack.c.l.s4 1966171168
    %v5470 = vunpack.c.0.s8 %v5469
    %v5471 = vlaneseq
    %v5472 = vshrl.u32 %v5471, 7
    %v5473 = vsub.s32 %v5470, %v5472
    %v5474 = vrot.slane %v5464, %v5473
    %v5476 = vunpack.c.l.s4 1966171168
    %v5477 = vunpack.c.0.s8 %v5476
    %v5478 = vlaneseq
    %v5479 = vshrl.u32 %v5478, 7
    %v5480 = vsub.s32 %v5477, %v5479
    %v5481 = vrot.slane %v5465, %v5480
    %v5483 = vunpack.c.l.s4 1966171168
    %v5484 = vunpack.c.0.s8 %v5483
    %v5485 = vlaneseq
    %v5486 = vshrl.u32 %v5485, 7
    %v5487 = vsub.s32 %v5484, %v5486
    %v5488 = vrot.slane %v5466, %v5487
    %v5490 = vunpack.c.l.s4 1966171168
    %v5491 = vunpack.c.0.s8 %v5490
    %v5492 = vlaneseq
    %v5493 = vshrl.u32 %v5492, 7
    %v5494 = vsub.s32 %v5491, %v5493
    %v5495 = vrot.slane %v5467, %v5494
    %v5496 = vcombine.low %v5474, %v5481
    %v5497 = vcombine.low %v5488, %v5495
    %v5499 = vunpack.c.l.s4 1966171168
    %v5500 = vunpack.c.0.s8 %v5499
    %v5501 = vlaneseq
    %v5502 = vshrl.u32 %v5501, 7
    %v5503 = vsub.s32 %v5500, %v5502
    %v5504 = vrot.slane %v5496, %v5503
    %v5506 = vunpack.c.l.s4 1966171168
    %v5507 = vunpack.c.0.s8 %v5506
    %v5508 = vlaneseq
    %v5509 = vshrl.u32 %v5508, 7
    %v5510 = vsub.s32 %v5507, %v5509
    %v5511 = vrot.slane %v5497, %v5510
    %v5512 = vcombine.low %v5504, %v5511
    %v5513 = vcombine.low %v3247, %v3251
    %v5514 = vcombine.low %v3255, %v3259
    %v5515 = vcombine.low %v3263, %v3267
    %v5516 = vcombine.low %v3271, %v3275
    %v5518 = vunpack.c.l.s4 1966171168
    %v5519 = vunpack.c.0.s8 %v5518
    %v5520 = vlaneseq
    %v5521 = vshrl.u32 %v5520, 7
    %v5522 = vsub.s32 %v5519, %v5521
    %v5523 = vrot.slane %v5513, %v5522
    %v5525 = vunpack.c.l.s4 1966171168
    %v5526 = vunpack.c.0.s8 %v5525
    %v5527 = vlaneseq
    %v5528 = vshrl.u32 %v5527, 7
    %v5529 = vsub.s32 %v5526, %v5528
    %v5530 = vrot.slane %v5514, %v5529
    %v5532 = vunpack.c.l.s4 1966171168
    %v5533 = vunpack.c.0.s8 %v5532
    %v5534 = vlaneseq
    %v5535 = vshrl.u32 %v5534, 7
    %v5536 = vsub.s32 %v5533, %v5535
    %v5537 = vrot.slane %v5515, %v5536
    %v5539 = vunpack.c.l.s4 1966171168
    %v5540 = vunpack.c.0.s8 %v5539
    %v5541 = vlaneseq
    %v5542 = vshrl.u32 %v5541, 7
    %v5543 = vsub.s32 %v5540, %v5542
    %v5544 = vrot.slane %v5516, %v5543
    %v5545 = vcombine.low %v5523, %v5530
    %v5546 = vcombine.low %v5537, %v5544
    %v5548 = vunpack.c.l.s4 1966171168
    %v5549 = vunpack.c.0.s8 %v5548
    %v5550 = vlaneseq
    %v5551 = vshrl.u32 %v5550, 7
    %v5552 = vsub.s32 %v5549, %v5551
    %v5553 = vrot.slane %v5545, %v5552
    %v5555 = vunpack.c.l.s4 1966171168
    %v5556 = vunpack.c.0.s8 %v5555
    %v5557 = vlaneseq
    %v5558 = vshrl.u32 %v5557, 7
    %v5559 = vsub.s32 %v5556, %v5558
    %v5560 = vrot.slane %v5546, %v5559
    %v5561 = vcombine.low %v5553, %v5560
    %v5562 = vcombine.low %v3279, %v3283
    %v5563 = vcombine.low %v3287, %v3291
    %v5564 = vcombine.low %v3295, %v3299
    %v5565 = vcombine.low %v3303, %v3307
    %v5567 = vunpack.c.l.s4 1966171168
    %v5568 = vunpack.c.0.s8 %v5567
    %v5569 = vlaneseq
    %v5570 = vshrl.u32 %v5569, 7
    %v5571 = vsub.s32 %v5568, %v5570
    %v5572 = vrot.slane %v5562, %v5571
    %v5574 = vunpack.c.l.s4 1966171168
    %v5575 = vunpack.c.0.s8 %v5574
    %v5576 = vlaneseq
    %v5577 = vshrl.u32 %v5576, 7
    %v5578 = vsub.s32 %v5575, %v5577
    %v5579 = vrot.slane %v5563, %v5578
    %v5581 = vunpack.c.l.s4 1966171168
    %v5582 = vunpack.c.0.s8 %v5581
    %v5583 = vlaneseq
    %v5584 = vshrl.u32 %v5583, 7
    %v5585 = vsub.s32 %v5582, %v5584
    %v5586 = vrot.slane %v5564, %v5585
    %v5588 = vunpack.c.l.s4 1966171168
    %v5589 = vunpack.c.0.s8 %v5588
    %v5590 = vlaneseq
    %v5591 = vshrl.u32 %v5590, 7
    %v5592 = vsub.s32 %v5589, %v5591
    %v5593 = vrot.slane %v5565, %v5592
    %v5594 = vcombine.low %v5572, %v5579
    %v5595 = vcombine.low %v5586, %v5593
    %v5597 = vunpack.c.l.s4 1966171168
    %v5598 = vunpack.c.0.s8 %v5597
    %v5599 = vlaneseq
    %v5600 = vshrl.u32 %v5599, 7
    %v5601 = vsub.s32 %v5598, %v5600
    %v5602 = vrot.slane %v5594, %v5601
    %v5604 = vunpack.c.l.s4 1966171168
    %v5605 = vunpack.c.0.s8 %v5604
    %v5606 = vlaneseq
    %v5607 = vshrl.u32 %v5606, 7
    %v5608 = vsub.s32 %v5605, %v5607
    %v5609 = vrot.slane %v5595, %v5608
    %v5610 = vcombine.low %v5602, %v5609
    %v5611 = vcombine.low %v3311, %v3315
    %v5612 = vcombine.low %v3319, %v3323
    %v5613 = vcombine.low %v3327, %v3331
    %v5614 = vcombine.low %v3335, %v3339
    %v5616 = vunpack.c.l.s4 1966171168
    %v5617 = vunpack.c.0.s8 %v5616
    %v5618 = vlaneseq
    %v5619 = vshrl.u32 %v5618, 7
    %v5620 = vsub.s32 %v5617, %v5619
    %v5621 = vrot.slane %v5611, %v5620
    %v5623 = vunpack.c.l.s4 1966171168
    %v5624 = vunpack.c.0.s8 %v5623
    %v5625 = vlaneseq
    %v5626 = vshrl.u32 %v5625, 7
    %v5627 = vsub.s32 %v5624, %v5626
    %v5628 = vrot.slane %v5612, %v5627
    %v5630 = vunpack.c.l.s4 1966171168
    %v5631 = vunpack.c.0.s8 %v5630
    %v5632 = vlaneseq
    %v5633 = vshrl.u32 %v5632, 7
    %v5634 = vsub.s32 %v5631, %v5633
    %v5635 = vrot.slane %v5613, %v5634
    %v5637 = vunpack.c.l.s4 1966171168
    %v5638 = vunpack.c.0.s8 %v5637
    %v5639 = vlaneseq
    %v5640 = vshrl.u32 %v5639, 7
    %v5641 = vsub.s32 %v5638, %v5640
    %v5642 = vrot.slane %v5614, %v5641
    %v5643 = vcombine.low %v5621, %v5628
    %v5644 = vcombine.low %v5635, %v5642
    %v5646 = vunpack.c.l.s4 1966171168
    %v5647 = vunpack.c.0.s8 %v5646
    %v5648 = vlaneseq
    %v5649 = vshrl.u32 %v5648, 7
    %v5650 = vsub.s32 %v5647, %v5649
    %v5651 = vrot.slane %v5643, %v5650
    %v5653 = vunpack.c.l.s4 1966171168
    %v5654 = vunpack.c.0.s8 %v5653
    %v5655 = vlaneseq
    %v5656 = vshrl.u32 %v5655, 7
    %v5657 = vsub.s32 %v5654, %v5656
    %v5658 = vrot.slane %v5644, %v5657
    %v5659 = vcombine.low %v5651, %v5658
    %v5660 = vcombine.low %v3343, %v3347
    %v5661 = vcombine.low %v3351, %v3355
    %v5662 = vcombine.low %v3359, %v3363
    %v5663 = vcombine.low %v3367, %v3371
    %v5665 = vunpack.c.l.s4 1966171168
    %v5666 = vunpack.c.0.s8 %v5665
    %v5667 = vlaneseq
    %v5668 = vshrl.u32 %v5667, 7
    %v5669 = vsub.s32 %v5666, %v5668
    %v5670 = vrot.slane %v5660, %v5669
    %v5672 = vunpack.c.l.s4 1966171168
    %v5673 = vunpack.c.0.s8 %v5672
    %v5674 = vlaneseq
    %v5675 = vshrl.u32 %v5674, 7
    %v5676 = vsub.s32 %v5673, %v5675
    %v5677 = vrot.slane %v5661, %v5676
    %v5679 = vunpack.c.l.s4 1966171168
    %v5680 = vunpack.c.0.s8 %v5679
    %v5681 = vlaneseq
    %v5682 = vshrl.u32 %v5681, 7
    %v5683 = vsub.s32 %v5680, %v5682
    %v5684 = vrot.slane %v5662, %v5683
    %v5686 = vunpack.c.l.s4 1966171168
    %v5687 = vunpack.c.0.s8 %v5686
    %v5688 = vlaneseq
    %v5689 = vshrl.u32 %v5688, 7
    %v5690 = vsub.s32 %v5687, %v5689
    %v5691 = vrot.slane %v5663, %v5690
    %v5692 = vcombine.low %v5670, %v5677
    %v5693 = vcombine.low %v5684, %v5691
    %v5695 = vunpack.c.l.s4 1966171168
    %v5696 = vunpack.c.0.s8 %v5695
    %v5697 = vlaneseq
    %v5698 = vshrl.u32 %v5697, 7
    %v5699 = vsub.s32 %v5696, %v5698
    %v5700 = vrot.slane %v5692, %v5699
    %v5702 = vunpack.c.l.s4 1966171168
    %v5703 = vunpack.c.0.s8 %v5702
    %v5704 = vlaneseq
    %v5705 = vshrl.u32 %v5704, 7
    %v5706 = vsub.s32 %v5703, %v5705
    %v5707 = vrot.slane %v5693, %v5706
    %v5708 = vcombine.low %v5700, %v5707
    %v5709 = vcombine.low %v3375, %v3379
    %v5710 = vcombine.low %v3383, %v3387
    %v5711 = vcombine.low %v3391, %v3395
    %v5712 = vcombine.low %v3399, %v3403
    %v5714 = vunpack.c.l.s4 1966171168
    %v5715 = vunpack.c.0.s8 %v5714
    %v5716 = vlaneseq
    %v5717 = vshrl.u32 %v5716, 7
    %v5718 = vsub.s32 %v5715, %v5717
    %v5719 = vrot.slane %v5709, %v5718
    %v5721 = vunpack.c.l.s4 1966171168
    %v5722 = vunpack.c.0.s8 %v5721
    %v5723 = vlaneseq
    %v5724 = vshrl.u32 %v5723, 7
    %v5725 = vsub.s32 %v5722, %v5724
    %v5726 = vrot.slane %v5710, %v5725
    %v5728 = vunpack.c.l.s4 1966171168
    %v5729 = vunpack.c.0.s8 %v5728
    %v5730 = vlaneseq
    %v5731 = vshrl.u32 %v5730, 7
    %v5732 = vsub.s32 %v5729, %v5731
    %v5733 = vrot.slane %v5711, %v5732
    %v5735 = vunpack.c.l.s4 1966171168
    %v5736 = vunpack.c.0.s8 %v5735
    %v5737 = vlaneseq
    %v5738 = vshrl.u32 %v5737, 7
    %v5739 = vsub.s32 %v5736, %v5738
    %v5740 = vrot.slane %v5712, %v5739
    %v5741 = vcombine.low %v5719, %v5726
    %v5742 = vcombine.low %v5733, %v5740
    %v5744 = vunpack.c.l.s4 1966171168
    %v5745 = vunpack.c.0.s8 %v5744
    %v5746 = vlaneseq
    %v5747 = vshrl.u32 %v5746, 7
    %v5748 = vsub.s32 %v5745, %v5747
    %v5749 = vrot.slane %v5741, %v5748
    %v5751 = vunpack.c.l.s4 1966171168
    %v5752 = vunpack.c.0.s8 %v5751
    %v5753 = vlaneseq
    %v5754 = vshrl.u32 %v5753, 7
    %v5755 = vsub.s32 %v5752, %v5754
    %v5756 = vrot.slane %v5742, %v5755
    %v5757 = vcombine.low %v5749, %v5756
    %v5758 = vcombine.low %v3407, %v3411
    %v5759 = vcombine.low %v3415, %v3419
    %v5760 = vcombine.low %v3423, %v3427
    %v5761 = vcombine.low %v3431, %v3435
    %v5763 = vunpack.c.l.s4 1966171168
    %v5764 = vunpack.c.0.s8 %v5763
    %v5765 = vlaneseq
    %v5766 = vshrl.u32 %v5765, 7
    %v5767 = vsub.s32 %v5764, %v5766
    %v5768 = vrot.slane %v5758, %v5767
    %v5770 = vunpack.c.l.s4 1966171168
    %v5771 = vunpack.c.0.s8 %v5770
    %v5772 = vlaneseq
    %v5773 = vshrl.u32 %v5772, 7
    %v5774 = vsub.s32 %v5771, %v5773
    %v5775 = vrot.slane %v5759, %v5774
    %v5777 = vunpack.c.l.s4 1966171168
    %v5778 = vunpack.c.0.s8 %v5777
    %v5779 = vlaneseq
    %v5780 = vshrl.u32 %v5779, 7
    %v5781 = vsub.s32 %v5778, %v5780
    %v5782 = vrot.slane %v5760, %v5781
    %v5784 = vunpack.c.l.s4 1966171168
    %v5785 = vunpack.c.0.s8 %v5784
    %v5786 = vlaneseq
    %v5787 = vshrl.u32 %v5786, 7
    %v5788 = vsub.s32 %v5785, %v5787
    %v5789 = vrot.slane %v5761, %v5788
    %v5790 = vcombine.low %v5768, %v5775
    %v5791 = vcombine.low %v5782, %v5789
    %v5793 = vunpack.c.l.s4 1966171168
    %v5794 = vunpack.c.0.s8 %v5793
    %v5795 = vlaneseq
    %v5796 = vshrl.u32 %v5795, 7
    %v5797 = vsub.s32 %v5794, %v5796
    %v5798 = vrot.slane %v5790, %v5797
    %v5800 = vunpack.c.l.s4 1966171168
    %v5801 = vunpack.c.0.s8 %v5800
    %v5802 = vlaneseq
    %v5803 = vshrl.u32 %v5802, 7
    %v5804 = vsub.s32 %v5801, %v5803
    %v5805 = vrot.slane %v5791, %v5804
    %v5806 = vcombine.low %v5798, %v5805
    %v5807 = vcombine.low %v3439, %v3443
    %v5808 = vcombine.low %v3447, %v3451
    %v5809 = vcombine.low %v3455, %v3459
    %v5810 = vcombine.low %v3463, %v3467
    %v5812 = vunpack.c.l.s4 1966171168
    %v5813 = vunpack.c.0.s8 %v5812
    %v5814 = vlaneseq
    %v5815 = vshrl.u32 %v5814, 7
    %v5816 = vsub.s32 %v5813, %v5815
    %v5817 = vrot.slane %v5807, %v5816
    %v5819 = vunpack.c.l.s4 1966171168
    %v5820 = vunpack.c.0.s8 %v5819
    %v5821 = vlaneseq
    %v5822 = vshrl.u32 %v5821, 7
    %v5823 = vsub.s32 %v5820, %v5822
    %v5824 = vrot.slane %v5808, %v5823
    %v5826 = vunpack.c.l.s4 1966171168
    %v5827 = vunpack.c.0.s8 %v5826
    %v5828 = vlaneseq
    %v5829 = vshrl.u32 %v5828, 7
    %v5830 = vsub.s32 %v5827, %v5829
    %v5831 = vrot.slane %v5809, %v5830
    %v5833 = vunpack.c.l.s4 1966171168
    %v5834 = vunpack.c.0.s8 %v5833
    %v5835 = vlaneseq
    %v5836 = vshrl.u32 %v5835, 7
    %v5837 = vsub.s32 %v5834, %v5836
    %v5838 = vrot.slane %v5810, %v5837
    %v5839 = vcombine.low %v5817, %v5824
    %v5840 = vcombine.low %v5831, %v5838
    %v5842 = vunpack.c.l.s4 1966171168
    %v5843 = vunpack.c.0.s8 %v5842
    %v5844 = vlaneseq
    %v5845 = vshrl.u32 %v5844, 7
    %v5846 = vsub.s32 %v5843, %v5845
    %v5847 = vrot.slane %v5839, %v5846
    %v5849 = vunpack.c.l.s4 1966171168
    %v5850 = vunpack.c.0.s8 %v5849
    %v5851 = vlaneseq
    %v5852 = vshrl.u32 %v5851, 7
    %v5853 = vsub.s32 %v5850, %v5852
    %v5854 = vrot.slane %v5840, %v5853
    %v5855 = vcombine.low %v5847, %v5854
    %v5856 = vcombine.low %v3471, %v3475
    %v5857 = vcombine.low %v3479, %v3483
    %v5858 = vcombine.low %v3487, %v3491
    %v5859 = vcombine.low %v3495, %v3499
    %v5861 = vunpack.c.l.s4 1966171168
    %v5862 = vunpack.c.0.s8 %v5861
    %v5863 = vlaneseq
    %v5864 = vshrl.u32 %v5863, 7
    %v5865 = vsub.s32 %v5862, %v5864
    %v5866 = vrot.slane %v5856, %v5865
    %v5868 = vunpack.c.l.s4 1966171168
    %v5869 = vunpack.c.0.s8 %v5868
    %v5870 = vlaneseq
    %v5871 = vshrl.u32 %v5870, 7
    %v5872 = vsub.s32 %v5869, %v5871
    %v5873 = vrot.slane %v5857, %v5872
    %v5875 = vunpack.c.l.s4 1966171168
    %v5876 = vunpack.c.0.s8 %v5875
    %v5877 = vlaneseq
    %v5878 = vshrl.u32 %v5877, 7
    %v5879 = vsub.s32 %v5876, %v5878
    %v5880 = vrot.slane %v5858, %v5879
    %v5882 = vunpack.c.l.s4 1966171168
    %v5883 = vunpack.c.0.s8 %v5882
    %v5884 = vlaneseq
    %v5885 = vshrl.u32 %v5884, 7
    %v5886 = vsub.s32 %v5883, %v5885
    %v5887 = vrot.slane %v5859, %v5886
    %v5888 = vcombine.low %v5866, %v5873
    %v5889 = vcombine.low %v5880, %v5887
    %v5891 = vunpack.c.l.s4 1966171168
    %v5892 = vunpack.c.0.s8 %v5891
    %v5893 = vlaneseq
    %v5894 = vshrl.u32 %v5893, 7
    %v5895 = vsub.s32 %v5892, %v5894
    %v5896 = vrot.slane %v5888, %v5895
    %v5898 = vunpack.c.l.s4 1966171168
    %v5899 = vunpack.c.0.s8 %v5898
    %v5900 = vlaneseq
    %v5901 = vshrl.u32 %v5900, 7
    %v5902 = vsub.s32 %v5899, %v5901
    %v5903 = vrot.slane %v5889, %v5902
    %v5904 = vcombine.low %v5896, %v5903
    %v5905 = vcombine.low %v3503, %v3507
    %v5906 = vcombine.low %v3511, %v3515
    %v5907 = vcombine.low %v3519, %v3523
    %v5908 = vcombine.low %v3527, %v3531
    %v5910 = vunpack.c.l.s4 1966171168
    %v5911 = vunpack.c.0.s8 %v5910
    %v5912 = vlaneseq
    %v5913 = vshrl.u32 %v5912, 7
    %v5914 = vsub.s32 %v5911, %v5913
    %v5915 = vrot.slane %v5905, %v5914
    %v5917 = vunpack.c.l.s4 1966171168
    %v5918 = vunpack.c.0.s8 %v5917
    %v5919 = vlaneseq
    %v5920 = vshrl.u32 %v5919, 7
    %v5921 = vsub.s32 %v5918, %v5920
    %v5922 = vrot.slane %v5906, %v5921
    %v5924 = vunpack.c.l.s4 1966171168
    %v5925 = vunpack.c.0.s8 %v5924
    %v5926 = vlaneseq
    %v5927 = vshrl.u32 %v5926, 7
    %v5928 = vsub.s32 %v5925, %v5927
    %v5929 = vrot.slane %v5907, %v5928
    %v5931 = vunpack.c.l.s4 1966171168
    %v5932 = vunpack.c.0.s8 %v5931
    %v5933 = vlaneseq
    %v5934 = vshrl.u32 %v5933, 7
    %v5935 = vsub.s32 %v5932, %v5934
    %v5936 = vrot.slane %v5908, %v5935
    %v5937 = vcombine.low %v5915, %v5922
    %v5938 = vcombine.low %v5929, %v5936
    %v5940 = vunpack.c.l.s4 1966171168
    %v5941 = vunpack.c.0.s8 %v5940
    %v5942 = vlaneseq
    %v5943 = vshrl.u32 %v5942, 7
    %v5944 = vsub.s32 %v5941, %v5943
    %v5945 = vrot.slane %v5937, %v5944
    %v5947 = vunpack.c.l.s4 1966171168
    %v5948 = vunpack.c.0.s8 %v5947
    %v5949 = vlaneseq
    %v5950 = vshrl.u32 %v5949, 7
    %v5951 = vsub.s32 %v5948, %v5950
    %v5952 = vrot.slane %v5938, %v5951
    %v5953 = vcombine.low %v5945, %v5952
    %v5954 = vcombine.low %v3535, %v3539
    %v5955 = vcombine.low %v3543, %v3547
    %v5956 = vcombine.low %v3551, %v3555
    %v5957 = vcombine.low %v3559, %v3563
    %v5959 = vunpack.c.l.s4 1966171168
    %v5960 = vunpack.c.0.s8 %v5959
    %v5961 = vlaneseq
    %v5962 = vshrl.u32 %v5961, 7
    %v5963 = vsub.s32 %v5960, %v5962
    %v5964 = vrot.slane %v5954, %v5963
    %v5966 = vunpack.c.l.s4 1966171168
    %v5967 = vunpack.c.0.s8 %v5966
    %v5968 = vlaneseq
    %v5969 = vshrl.u32 %v5968, 7
    %v5970 = vsub.s32 %v5967, %v5969
    %v5971 = vrot.slane %v5955, %v5970
    %v5973 = vunpack.c.l.s4 1966171168
    %v5974 = vunpack.c.0.s8 %v5973
    %v5975 = vlaneseq
    %v5976 = vshrl.u32 %v5975, 7
    %v5977 = vsub.s32 %v5974, %v5976
    %v5978 = vrot.slane %v5956, %v5977
    %v5980 = vunpack.c.l.s4 1966171168
    %v5981 = vunpack.c.0.s8 %v5980
    %v5982 = vlaneseq
    %v5983 = vshrl.u32 %v5982, 7
    %v5984 = vsub.s32 %v5981, %v5983
    %v5985 = vrot.slane %v5957, %v5984
    %v5986 = vcombine.low %v5964, %v5971
    %v5987 = vcombine.low %v5978, %v5985
    %v5989 = vunpack.c.l.s4 1966171168
    %v5990 = vunpack.c.0.s8 %v5989
    %v5991 = vlaneseq
    %v5992 = vshrl.u32 %v5991, 7
    %v5993 = vsub.s32 %v5990, %v5992
    %v5994 = vrot.slane %v5986, %v5993
    %v5996 = vunpack.c.l.s4 1966171168
    %v5997 = vunpack.c.0.s8 %v5996
    %v5998 = vlaneseq
    %v5999 = vshrl.u32 %v5998, 7
    %v6000 = vsub.s32 %v5997, %v5999
    %v6001 = vrot.slane %v5987, %v6000
    %v6002 = vcombine.low %v5994, %v6001
    %v6003 = vcombine.low %v3567, %v3571
    %v6004 = vcombine.low %v3575, %v3579
    %v6005 = vcombine.low %v3583, %v3587
    %v6006 = vcombine.low %v3591, %v3595
    %v6008 = vunpack.c.l.s4 1966171168
    %v6009 = vunpack.c.0.s8 %v6008
    %v6010 = vlaneseq
    %v6011 = vshrl.u32 %v6010, 7
    %v6012 = vsub.s32 %v6009, %v6011
    %v6013 = vrot.slane %v6003, %v6012
    %v6015 = vunpack.c.l.s4 1966171168
    %v6016 = vunpack.c.0.s8 %v6015
    %v6017 = vlaneseq
    %v6018 = vshrl.u32 %v6017, 7
    %v6019 = vsub.s32 %v6016, %v6018
    %v6020 = vrot.slane %v6004, %v6019
    %v6022 = vunpack.c.l.s4 1966171168
    %v6023 = vunpack.c.0.s8 %v6022
    %v6024 = vlaneseq
    %v6025 = vshrl.u32 %v6024, 7
    %v6026 = vsub.s32 %v6023, %v6025
    %v6027 = vrot.slane %v6005, %v6026
    %v6029 = vunpack.c.l.s4 1966171168
    %v6030 = vunpack.c.0.s8 %v6029
    %v6031 = vlaneseq
    %v6032 = vshrl.u32 %v6031, 7
    %v6033 = vsub.s32 %v6030, %v6032
    %v6034 = vrot.slane %v6006, %v6033
    %v6035 = vcombine.low %v6013, %v6020
    %v6036 = vcombine.low %v6027, %v6034
    %v6038 = vunpack.c.l.s4 1966171168
    %v6039 = vunpack.c.0.s8 %v6038
    %v6040 = vlaneseq
    %v6041 = vshrl.u32 %v6040, 7
    %v6042 = vsub.s32 %v6039, %v6041
    %v6043 = vrot.slane %v6035, %v6042
    %v6045 = vunpack.c.l.s4 1966171168
    %v6046 = vunpack.c.0.s8 %v6045
    %v6047 = vlaneseq
    %v6048 = vshrl.u32 %v6047, 7
    %v6049 = vsub.s32 %v6046, %v6048
    %v6050 = vrot.slane %v6036, %v6049
    %v6051 = vcombine.low %v6043, %v6050
    %v6052 = vcombine.low %v3599, %v3603
    %v6053 = vcombine.low %v3607, %v3611
    %v6054 = vcombine.low %v3615, %v3619
    %v6055 = vcombine.low %v3623, %v3627
    %v6057 = vunpack.c.l.s4 1966171168
    %v6058 = vunpack.c.0.s8 %v6057
    %v6059 = vlaneseq
    %v6060 = vshrl.u32 %v6059, 7
    %v6061 = vsub.s32 %v6058, %v6060
    %v6062 = vrot.slane %v6052, %v6061
    %v6064 = vunpack.c.l.s4 1966171168
    %v6065 = vunpack.c.0.s8 %v6064
    %v6066 = vlaneseq
    %v6067 = vshrl.u32 %v6066, 7
    %v6068 = vsub.s32 %v6065, %v6067
    %v6069 = vrot.slane %v6053, %v6068
    %v6071 = vunpack.c.l.s4 1966171168
    %v6072 = vunpack.c.0.s8 %v6071
    %v6073 = vlaneseq
    %v6074 = vshrl.u32 %v6073, 7
    %v6075 = vsub.s32 %v6072, %v6074
    %v6076 = vrot.slane %v6054, %v6075
    %v6078 = vunpack.c.l.s4 1966171168
    %v6079 = vunpack.c.0.s8 %v6078
    %v6080 = vlaneseq
    %v6081 = vshrl.u32 %v6080, 7
    %v6082 = vsub.s32 %v6079, %v6081
    %v6083 = vrot.slane %v6055, %v6082
    %v6084 = vcombine.low %v6062, %v6069
    %v6085 = vcombine.low %v6076, %v6083
    %v6087 = vunpack.c.l.s4 1966171168
    %v6088 = vunpack.c.0.s8 %v6087
    %v6089 = vlaneseq
    %v6090 = vshrl.u32 %v6089, 7
    %v6091 = vsub.s32 %v6088, %v6090
    %v6092 = vrot.slane %v6084, %v6091
    %v6094 = vunpack.c.l.s4 1966171168
    %v6095 = vunpack.c.0.s8 %v6094
    %v6096 = vlaneseq
    %v6097 = vshrl.u32 %v6096, 7
    %v6098 = vsub.s32 %v6095, %v6097
    %v6099 = vrot.slane %v6085, %v6098
    %v6100 = vcombine.low %v6092, %v6099
    %v6101 = vcombine.low %v3631, %v3635
    %v6102 = vcombine.low %v3639, %v3643
    %v6103 = vcombine.low %v3647, %v3651
    %v6104 = vcombine.low %v3655, %v3659
    %v6106 = vunpack.c.l.s4 1966171168
    %v6107 = vunpack.c.0.s8 %v6106
    %v6108 = vlaneseq
    %v6109 = vshrl.u32 %v6108, 7
    %v6110 = vsub.s32 %v6107, %v6109
    %v6111 = vrot.slane %v6101, %v6110
    %v6113 = vunpack.c.l.s4 1966171168
    %v6114 = vunpack.c.0.s8 %v6113
    %v6115 = vlaneseq
    %v6116 = vshrl.u32 %v6115, 7
    %v6117 = vsub.s32 %v6114, %v6116
    %v6118 = vrot.slane %v6102, %v6117
    %v6120 = vunpack.c.l.s4 1966171168
    %v6121 = vunpack.c.0.s8 %v6120
    %v6122 = vlaneseq
    %v6123 = vshrl.u32 %v6122, 7
    %v6124 = vsub.s32 %v6121, %v6123
    %v6125 = vrot.slane %v6103, %v6124
    %v6127 = vunpack.c.l.s4 1966171168
    %v6128 = vunpack.c.0.s8 %v6127
    %v6129 = vlaneseq
    %v6130 = vshrl.u32 %v6129, 7
    %v6131 = vsub.s32 %v6128, %v6130
    %v6132 = vrot.slane %v6104, %v6131
    %v6133 = vcombine.low %v6111, %v6118
    %v6134 = vcombine.low %v6125, %v6132
    %v6136 = vunpack.c.l.s4 1966171168
    %v6137 = vunpack.c.0.s8 %v6136
    %v6138 = vlaneseq
    %v6139 = vshrl.u32 %v6138, 7
    %v6140 = vsub.s32 %v6137, %v6139
    %v6141 = vrot.slane %v6133, %v6140
    %v6143 = vunpack.c.l.s4 1966171168
    %v6144 = vunpack.c.0.s8 %v6143
    %v6145 = vlaneseq
    %v6146 = vshrl.u32 %v6145, 7
    %v6147 = vsub.s32 %v6144, %v6146
    %v6148 = vrot.slane %v6134, %v6147
    %v6149 = vcombine.low %v6141, %v6148
    %v6150 = vcombine.low %v3663, %v3667
    %v6151 = vcombine.low %v3671, %v3675
    %v6152 = vcombine.low %v3679, %v3683
    %v6153 = vcombine.low %v3687, %v3691
    %v6155 = vunpack.c.l.s4 1966171168
    %v6156 = vunpack.c.0.s8 %v6155
    %v6157 = vlaneseq
    %v6158 = vshrl.u32 %v6157, 7
    %v6159 = vsub.s32 %v6156, %v6158
    %v6160 = vrot.slane %v6150, %v6159
    %v6162 = vunpack.c.l.s4 1966171168
    %v6163 = vunpack.c.0.s8 %v6162
    %v6164 = vlaneseq
    %v6165 = vshrl.u32 %v6164, 7
    %v6166 = vsub.s32 %v6163, %v6165
    %v6167 = vrot.slane %v6151, %v6166
    %v6169 = vunpack.c.l.s4 1966171168
    %v6170 = vunpack.c.0.s8 %v6169
    %v6171 = vlaneseq
    %v6172 = vshrl.u32 %v6171, 7
    %v6173 = vsub.s32 %v6170, %v6172
    %v6174 = vrot.slane %v6152, %v6173
    %v6176 = vunpack.c.l.s4 1966171168
    %v6177 = vunpack.c.0.s8 %v6176
    %v6178 = vlaneseq
    %v6179 = vshrl.u32 %v6178, 7
    %v6180 = vsub.s32 %v6177, %v6179
    %v6181 = vrot.slane %v6153, %v6180
    %v6182 = vcombine.low %v6160, %v6167
    %v6183 = vcombine.low %v6174, %v6181
    %v6185 = vunpack.c.l.s4 1966171168
    %v6186 = vunpack.c.0.s8 %v6185
    %v6187 = vlaneseq
    %v6188 = vshrl.u32 %v6187, 7
    %v6189 = vsub.s32 %v6186, %v6188
    %v6190 = vrot.slane %v6182, %v6189
    %v6192 = vunpack.c.l.s4 1966171168
    %v6193 = vunpack.c.0.s8 %v6192
    %v6194 = vlaneseq
    %v6195 = vshrl.u32 %v6194, 7
    %v6196 = vsub.s32 %v6193, %v6195
    %v6197 = vrot.slane %v6183, %v6196
    %v6198 = vcombine.low %v6190, %v6197
    %v6199 = vcombine.low %v3695, %v3699
    %v6200 = vcombine.low %v3703, %v3707
    %v6201 = vcombine.low %v3711, %v3715
    %v6202 = vcombine.low %v3719, %v3723
    %v6204 = vunpack.c.l.s4 1966171168
    %v6205 = vunpack.c.0.s8 %v6204
    %v6206 = vlaneseq
    %v6207 = vshrl.u32 %v6206, 7
    %v6208 = vsub.s32 %v6205, %v6207
    %v6209 = vrot.slane %v6199, %v6208
    %v6211 = vunpack.c.l.s4 1966171168
    %v6212 = vunpack.c.0.s8 %v6211
    %v6213 = vlaneseq
    %v6214 = vshrl.u32 %v6213, 7
    %v6215 = vsub.s32 %v6212, %v6214
    %v6216 = vrot.slane %v6200, %v6215
    %v6218 = vunpack.c.l.s4 1966171168
    %v6219 = vunpack.c.0.s8 %v6218
    %v6220 = vlaneseq
    %v6221 = vshrl.u32 %v6220, 7
    %v6222 = vsub.s32 %v6219, %v6221
    %v6223 = vrot.slane %v6201, %v6222
    %v6225 = vunpack.c.l.s4 1966171168
    %v6226 = vunpack.c.0.s8 %v6225
    %v6227 = vlaneseq
    %v6228 = vshrl.u32 %v6227, 7
    %v6229 = vsub.s32 %v6226, %v6228
    %v6230 = vrot.slane %v6202, %v6229
    %v6231 = vcombine.low %v6209, %v6216
    %v6232 = vcombine.low %v6223, %v6230
    %v6234 = vunpack.c.l.s4 1966171168
    %v6235 = vunpack.c.0.s8 %v6234
    %v6236 = vlaneseq
    %v6237 = vshrl.u32 %v6236, 7
    %v6238 = vsub.s32 %v6235, %v6237
    %v6239 = vrot.slane %v6231, %v6238
    %v6241 = vunpack.c.l.s4 1966171168
    %v6242 = vunpack.c.0.s8 %v6241
    %v6243 = vlaneseq
    %v6244 = vshrl.u32 %v6243, 7
    %v6245 = vsub.s32 %v6242, %v6244
    %v6246 = vrot.slane %v6232, %v6245
    %v6247 = vcombine.low %v6239, %v6246
    %v6248 = vcombine.low %v3727, %v3731
    %v6249 = vcombine.low %v3735, %v3739
    %v6250 = vcombine.low %v3743, %v3747
    %v6251 = vcombine.low %v3751, %v3755
    %v6253 = vunpack.c.l.s4 1966171168
    %v6254 = vunpack.c.0.s8 %v6253
    %v6255 = vlaneseq
    %v6256 = vshrl.u32 %v6255, 7
    %v6257 = vsub.s32 %v6254, %v6256
    %v6258 = vrot.slane %v6248, %v6257
    %v6260 = vunpack.c.l.s4 1966171168
    %v6261 = vunpack.c.0.s8 %v6260
    %v6262 = vlaneseq
    %v6263 = vshrl.u32 %v6262, 7
    %v6264 = vsub.s32 %v6261, %v6263
    %v6265 = vrot.slane %v6249, %v6264
    %v6267 = vunpack.c.l.s4 1966171168
    %v6268 = vunpack.c.0.s8 %v6267
    %v6269 = vlaneseq
    %v6270 = vshrl.u32 %v6269, 7
    %v6271 = vsub.s32 %v6268, %v6270
    %v6272 = vrot.slane %v6250, %v6271
    %v6274 = vunpack.c.l.s4 1966171168
    %v6275 = vunpack.c.0.s8 %v6274
    %v6276 = vlaneseq
    %v6277 = vshrl.u32 %v6276, 7
    %v6278 = vsub.s32 %v6275, %v6277
    %v6279 = vrot.slane %v6251, %v6278
    %v6280 = vcombine.low %v6258, %v6265
    %v6281 = vcombine.low %v6272, %v6279
    %v6283 = vunpack.c.l.s4 1966171168
    %v6284 = vunpack.c.0.s8 %v6283
    %v6285 = vlaneseq
    %v6286 = vshrl.u32 %v6285, 7
    %v6287 = vsub.s32 %v6284, %v6286
    %v6288 = vrot.slane %v6280, %v6287
    %v6290 = vunpack.c.l.s4 1966171168
    %v6291 = vunpack.c.0.s8 %v6290
    %v6292 = vlaneseq
    %v6293 = vshrl.u32 %v6292, 7
    %v6294 = vsub.s32 %v6291, %v6293
    %v6295 = vrot.slane %v6281, %v6294
    %v6296 = vcombine.low %v6288, %v6295
    %v6297 = vcombine.low %v3759, %v3763
    %v6298 = vcombine.low %v3767, %v3771
    %v6299 = vcombine.low %v3775, %v3779
    %v6300 = vcombine.low %v3783, %v3787
    %v6302 = vunpack.c.l.s4 1966171168
    %v6303 = vunpack.c.0.s8 %v6302
    %v6304 = vlaneseq
    %v6305 = vshrl.u32 %v6304, 7
    %v6306 = vsub.s32 %v6303, %v6305
    %v6307 = vrot.slane %v6297, %v6306
    %v6309 = vunpack.c.l.s4 1966171168
    %v6310 = vunpack.c.0.s8 %v6309
    %v6311 = vlaneseq
    %v6312 = vshrl.u32 %v6311, 7
    %v6313 = vsub.s32 %v6310, %v6312
    %v6314 = vrot.slane %v6298, %v6313
    %v6316 = vunpack.c.l.s4 1966171168
    %v6317 = vunpack.c.0.s8 %v6316
    %v6318 = vlaneseq
    %v6319 = vshrl.u32 %v6318, 7
    %v6320 = vsub.s32 %v6317, %v6319
    %v6321 = vrot.slane %v6299, %v6320
    %v6323 = vunpack.c.l.s4 1966171168
    %v6324 = vunpack.c.0.s8 %v6323
    %v6325 = vlaneseq
    %v6326 = vshrl.u32 %v6325, 7
    %v6327 = vsub.s32 %v6324, %v6326
    %v6328 = vrot.slane %v6300, %v6327
    %v6329 = vcombine.low %v6307, %v6314
    %v6330 = vcombine.low %v6321, %v6328
    %v6332 = vunpack.c.l.s4 1966171168
    %v6333 = vunpack.c.0.s8 %v6332
    %v6334 = vlaneseq
    %v6335 = vshrl.u32 %v6334, 7
    %v6336 = vsub.s32 %v6333, %v6335
    %v6337 = vrot.slane %v6329, %v6336
    %v6339 = vunpack.c.l.s4 1966171168
    %v6340 = vunpack.c.0.s8 %v6339
    %v6341 = vlaneseq
    %v6342 = vshrl.u32 %v6341, 7
    %v6343 = vsub.s32 %v6340, %v6342
    %v6344 = vrot.slane %v6330, %v6343
    %v6345 = vcombine.low %v6337, %v6344
    %v6346 = vcombine.low %v3791, %v3795
    %v6347 = vcombine.low %v3799, %v3803
    %v6348 = vcombine.low %v3807, %v3811
    %v6349 = vcombine.low %v3815, %v3819
    %v6351 = vunpack.c.l.s4 1966171168
    %v6352 = vunpack.c.0.s8 %v6351
    %v6353 = vlaneseq
    %v6354 = vshrl.u32 %v6353, 7
    %v6355 = vsub.s32 %v6352, %v6354
    %v6356 = vrot.slane %v6346, %v6355
    %v6358 = vunpack.c.l.s4 1966171168
    %v6359 = vunpack.c.0.s8 %v6358
    %v6360 = vlaneseq
    %v6361 = vshrl.u32 %v6360, 7
    %v6362 = vsub.s32 %v6359, %v6361
    %v6363 = vrot.slane %v6347, %v6362
    %v6365 = vunpack.c.l.s4 1966171168
    %v6366 = vunpack.c.0.s8 %v6365
    %v6367 = vlaneseq
    %v6368 = vshrl.u32 %v6367, 7
    %v6369 = vsub.s32 %v6366, %v6368
    %v6370 = vrot.slane %v6348, %v6369
    %v6372 = vunpack.c.l.s4 1966171168
    %v6373 = vunpack.c.0.s8 %v6372
    %v6374 = vlaneseq
    %v6375 = vshrl.u32 %v6374, 7
    %v6376 = vsub.s32 %v6373, %v6375
    %v6377 = vrot.slane %v6349, %v6376
    %v6378 = vcombine.low %v6356, %v6363
    %v6379 = vcombine.low %v6370, %v6377
    %v6381 = vunpack.c.l.s4 1966171168
    %v6382 = vunpack.c.0.s8 %v6381
    %v6383 = vlaneseq
    %v6384 = vshrl.u32 %v6383, 7
    %v6385 = vsub.s32 %v6382, %v6384
    %v6386 = vrot.slane %v6378, %v6385
    %v6388 = vunpack.c.l.s4 1966171168
    %v6389 = vunpack.c.0.s8 %v6388
    %v6390 = vlaneseq
    %v6391 = vshrl.u32 %v6390, 7
    %v6392 = vsub.s32 %v6389, %v6391
    %v6393 = vrot.slane %v6379, %v6392
    %v6394 = vcombine.low %v6386, %v6393
    %v6395 = vcombine.low %v3823, %v3827
    %v6396 = vcombine.low %v3831, %v3835
    %v6397 = vcombine.low %v3839, %v3843
    %v6398 = vcombine.low %v3847, %v3851
    %v6400 = vunpack.c.l.s4 1966171168
    %v6401 = vunpack.c.0.s8 %v6400
    %v6402 = vlaneseq
    %v6403 = vshrl.u32 %v6402, 7
    %v6404 = vsub.s32 %v6401, %v6403
    %v6405 = vrot.slane %v6395, %v6404
    %v6407 = vunpack.c.l.s4 1966171168
    %v6408 = vunpack.c.0.s8 %v6407
    %v6409 = vlaneseq
    %v6410 = vshrl.u32 %v6409, 7
    %v6411 = vsub.s32 %v6408, %v6410
    %v6412 = vrot.slane %v6396, %v6411
    %v6414 = vunpack.c.l.s4 1966171168
    %v6415 = vunpack.c.0.s8 %v6414
    %v6416 = vlaneseq
    %v6417 = vshrl.u32 %v6416, 7
    %v6418 = vsub.s32 %v6415, %v6417
    %v6419 = vrot.slane %v6397, %v6418
    %v6421 = vunpack.c.l.s4 1966171168
    %v6422 = vunpack.c.0.s8 %v6421
    %v6423 = vlaneseq
    %v6424 = vshrl.u32 %v6423, 7
    %v6425 = vsub.s32 %v6422, %v6424
    %v6426 = vrot.slane %v6398, %v6425
    %v6427 = vcombine.low %v6405, %v6412
    %v6428 = vcombine.low %v6419, %v6426
    %v6430 = vunpack.c.l.s4 1966171168
    %v6431 = vunpack.c.0.s8 %v6430
    %v6432 = vlaneseq
    %v6433 = vshrl.u32 %v6432, 7
    %v6434 = vsub.s32 %v6431, %v6433
    %v6435 = vrot.slane %v6427, %v6434
    %v6437 = vunpack.c.l.s4 1966171168
    %v6438 = vunpack.c.0.s8 %v6437
    %v6439 = vlaneseq
    %v6440 = vshrl.u32 %v6439, 7
    %v6441 = vsub.s32 %v6438, %v6440
    %v6442 = vrot.slane %v6428, %v6441
    %v6443 = vcombine.low %v6435, %v6442
    %v6444 = vcombine.low %v3855, %v3859
    %v6445 = vcombine.low %v3863, %v3867
    %v6446 = vcombine.low %v3871, %v3875
    %v6447 = vcombine.low %v3879, %v3883
    %v6449 = vunpack.c.l.s4 1966171168
    %v6450 = vunpack.c.0.s8 %v6449
    %v6451 = vlaneseq
    %v6452 = vshrl.u32 %v6451, 7
    %v6453 = vsub.s32 %v6450, %v6452
    %v6454 = vrot.slane %v6444, %v6453
    %v6456 = vunpack.c.l.s4 1966171168
    %v6457 = vunpack.c.0.s8 %v6456
    %v6458 = vlaneseq
    %v6459 = vshrl.u32 %v6458, 7
    %v6460 = vsub.s32 %v6457, %v6459
    %v6461 = vrot.slane %v6445, %v6460
    %v6463 = vunpack.c.l.s4 1966171168
    %v6464 = vunpack.c.0.s8 %v6463
    %v6465 = vlaneseq
    %v6466 = vshrl.u32 %v6465, 7
    %v6467 = vsub.s32 %v6464, %v6466
    %v6468 = vrot.slane %v6446, %v6467
    %v6470 = vunpack.c.l.s4 1966171168
    %v6471 = vunpack.c.0.s8 %v6470
    %v6472 = vlaneseq
    %v6473 = vshrl.u32 %v6472, 7
    %v6474 = vsub.s32 %v6471, %v6473
    %v6475 = vrot.slane %v6447, %v6474
    %v6476 = vcombine.low %v6454, %v6461
    %v6477 = vcombine.low %v6468, %v6475
    %v6479 = vunpack.c.l.s4 1966171168
    %v6480 = vunpack.c.0.s8 %v6479
    %v6481 = vlaneseq
    %v6482 = vshrl.u32 %v6481, 7
    %v6483 = vsub.s32 %v6480, %v6482
    %v6484 = vrot.slane %v6476, %v6483
    %v6486 = vunpack.c.l.s4 1966171168
    %v6487 = vunpack.c.0.s8 %v6486
    %v6488 = vlaneseq
    %v6489 = vshrl.u32 %v6488, 7
    %v6490 = vsub.s32 %v6487, %v6489
    %v6491 = vrot.slane %v6477, %v6490
    %v6492 = vcombine.low %v6484, %v6491
    %v6493 = vcombine.low %v3887, %v3891
    %v6494 = vcombine.low %v3895, %v3899
    %v6495 = vcombine.low %v3903, %v3907
    %v6496 = vcombine.low %v3911, %v3915
    %v6498 = vunpack.c.l.s4 1966171168
    %v6499 = vunpack.c.0.s8 %v6498
    %v6500 = vlaneseq
    %v6501 = vshrl.u32 %v6500, 7
    %v6502 = vsub.s32 %v6499, %v6501
    %v6503 = vrot.slane %v6493, %v6502
    %v6505 = vunpack.c.l.s4 1966171168
    %v6506 = vunpack.c.0.s8 %v6505
    %v6507 = vlaneseq
    %v6508 = vshrl.u32 %v6507, 7
    %v6509 = vsub.s32 %v6506, %v6508
    %v6510 = vrot.slane %v6494, %v6509
    %v6512 = vunpack.c.l.s4 1966171168
    %v6513 = vunpack.c.0.s8 %v6512
    %v6514 = vlaneseq
    %v6515 = vshrl.u32 %v6514, 7
    %v6516 = vsub.s32 %v6513, %v6515
    %v6517 = vrot.slane %v6495, %v6516
    %v6519 = vunpack.c.l.s4 1966171168
    %v6520 = vunpack.c.0.s8 %v6519
    %v6521 = vlaneseq
    %v6522 = vshrl.u32 %v6521, 7
    %v6523 = vsub.s32 %v6520, %v6522
    %v6524 = vrot.slane %v6496, %v6523
    %v6525 = vcombine.low %v6503, %v6510
    %v6526 = vcombine.low %v6517, %v6524
    %v6528 = vunpack.c.l.s4 1966171168
    %v6529 = vunpack.c.0.s8 %v6528
    %v6530 = vlaneseq
    %v6531 = vshrl.u32 %v6530, 7
    %v6532 = vsub.s32 %v6529, %v6531
    %v6533 = vrot.slane %v6525, %v6532
    %v6535 = vunpack.c.l.s4 1966171168
    %v6536 = vunpack.c.0.s8 %v6535
    %v6537 = vlaneseq
    %v6538 = vshrl.u32 %v6537, 7
    %v6539 = vsub.s32 %v6536, %v6538
    %v6540 = vrot.slane %v6526, %v6539
    %v6541 = vcombine.low %v6533, %v6540
    %v6542 = vcombine.low %v3919, %v3923
    %v6543 = vcombine.low %v3927, %v3931
    %v6544 = vcombine.low %v3935, %v3939
    %v6545 = vcombine.low %v3943, %v3947
    %v6547 = vunpack.c.l.s4 1966171168
    %v6548 = vunpack.c.0.s8 %v6547
    %v6549 = vlaneseq
    %v6550 = vshrl.u32 %v6549, 7
    %v6551 = vsub.s32 %v6548, %v6550
    %v6552 = vrot.slane %v6542, %v6551
    %v6554 = vunpack.c.l.s4 1966171168
    %v6555 = vunpack.c.0.s8 %v6554
    %v6556 = vlaneseq
    %v6557 = vshrl.u32 %v6556, 7
    %v6558 = vsub.s32 %v6555, %v6557
    %v6559 = vrot.slane %v6543, %v6558
    %v6561 = vunpack.c.l.s4 1966171168
    %v6562 = vunpack.c.0.s8 %v6561
    %v6563 = vlaneseq
    %v6564 = vshrl.u32 %v6563, 7
    %v6565 = vsub.s32 %v6562, %v6564
    %v6566 = vrot.slane %v6544, %v6565
    %v6568 = vunpack.c.l.s4 1966171168
    %v6569 = vunpack.c.0.s8 %v6568
    %v6570 = vlaneseq
    %v6571 = vshrl.u32 %v6570, 7
    %v6572 = vsub.s32 %v6569, %v6571
    %v6573 = vrot.slane %v6545, %v6572
    %v6574 = vcombine.low %v6552, %v6559
    %v6575 = vcombine.low %v6566, %v6573
    %v6577 = vunpack.c.l.s4 1966171168
    %v6578 = vunpack.c.0.s8 %v6577
    %v6579 = vlaneseq
    %v6580 = vshrl.u32 %v6579, 7
    %v6581 = vsub.s32 %v6578, %v6580
    %v6582 = vrot.slane %v6574, %v6581
    %v6584 = vunpack.c.l.s4 1966171168
    %v6585 = vunpack.c.0.s8 %v6584
    %v6586 = vlaneseq
    %v6587 = vshrl.u32 %v6586, 7
    %v6588 = vsub.s32 %v6585, %v6587
    %v6589 = vrot.slane %v6575, %v6588
    %v6590 = vcombine.low %v6582, %v6589
    %v6591 = vcombine.low %v3951, %v3955
    %v6592 = vcombine.low %v3959, %v3963
    %v6593 = vcombine.low %v3967, %v3971
    %v6594 = vcombine.low %v3975, %v3979
    %v6596 = vunpack.c.l.s4 1966171168
    %v6597 = vunpack.c.0.s8 %v6596
    %v6598 = vlaneseq
    %v6599 = vshrl.u32 %v6598, 7
    %v6600 = vsub.s32 %v6597, %v6599
    %v6601 = vrot.slane %v6591, %v6600
    %v6603 = vunpack.c.l.s4 1966171168
    %v6604 = vunpack.c.0.s8 %v6603
    %v6605 = vlaneseq
    %v6606 = vshrl.u32 %v6605, 7
    %v6607 = vsub.s32 %v6604, %v6606
    %v6608 = vrot.slane %v6592, %v6607
    %v6610 = vunpack.c.l.s4 1966171168
    %v6611 = vunpack.c.0.s8 %v6610
    %v6612 = vlaneseq
    %v6613 = vshrl.u32 %v6612, 7
    %v6614 = vsub.s32 %v6611, %v6613
    %v6615 = vrot.slane %v6593, %v6614
    %v6617 = vunpack.c.l.s4 1966171168
    %v6618 = vunpack.c.0.s8 %v6617
    %v6619 = vlaneseq
    %v6620 = vshrl.u32 %v6619, 7
    %v6621 = vsub.s32 %v6618, %v6620
    %v6622 = vrot.slane %v6594, %v6621
    %v6623 = vcombine.low %v6601, %v6608
    %v6624 = vcombine.low %v6615, %v6622
    %v6626 = vunpack.c.l.s4 1966171168
    %v6627 = vunpack.c.0.s8 %v6626
    %v6628 = vlaneseq
    %v6629 = vshrl.u32 %v6628, 7
    %v6630 = vsub.s32 %v6627, %v6629
    %v6631 = vrot.slane %v6623, %v6630
    %v6633 = vunpack.c.l.s4 1966171168
    %v6634 = vunpack.c.0.s8 %v6633
    %v6635 = vlaneseq
    %v6636 = vshrl.u32 %v6635, 7
    %v6637 = vsub.s32 %v6634, %v6636
    %v6638 = vrot.slane %v6624, %v6637
    %v6639 = vcombine.low %v6631, %v6638
    %v6640 = vcombine.low %v3983, %v3987
    %v6641 = vcombine.low %v3991, %v3995
    %v6642 = vcombine.low %v3999, %v4003
    %v6643 = vcombine.low %v4007, %v4011
    %v6645 = vunpack.c.l.s4 1966171168
    %v6646 = vunpack.c.0.s8 %v6645
    %v6647 = vlaneseq
    %v6648 = vshrl.u32 %v6647, 7
    %v6649 = vsub.s32 %v6646, %v6648
    %v6650 = vrot.slane %v6640, %v6649
    %v6652 = vunpack.c.l.s4 1966171168
    %v6653 = vunpack.c.0.s8 %v6652
    %v6654 = vlaneseq
    %v6655 = vshrl.u32 %v6654, 7
    %v6656 = vsub.s32 %v6653, %v6655
    %v6657 = vrot.slane %v6641, %v6656
    %v6659 = vunpack.c.l.s4 1966171168
    %v6660 = vunpack.c.0.s8 %v6659
    %v6661 = vlaneseq
    %v6662 = vshrl.u32 %v6661, 7
    %v6663 = vsub.s32 %v6660, %v6662
    %v6664 = vrot.slane %v6642, %v6663
    %v6666 = vunpack.c.l.s4 1966171168
    %v6667 = vunpack.c.0.s8 %v6666
    %v6668 = vlaneseq
    %v6669 = vshrl.u32 %v6668, 7
    %v6670 = vsub.s32 %v6667, %v6669
    %v6671 = vrot.slane %v6643, %v6670
    %v6672 = vcombine.low %v6650, %v6657
    %v6673 = vcombine.low %v6664, %v6671
    %v6675 = vunpack.c.l.s4 1966171168
    %v6676 = vunpack.c.0.s8 %v6675
    %v6677 = vlaneseq
    %v6678 = vshrl.u32 %v6677, 7
    %v6679 = vsub.s32 %v6676, %v6678
    %v6680 = vrot.slane %v6672, %v6679
    %v6682 = vunpack.c.l.s4 1966171168
    %v6683 = vunpack.c.0.s8 %v6682
    %v6684 = vlaneseq
    %v6685 = vshrl.u32 %v6684, 7
    %v6686 = vsub.s32 %v6683, %v6685
    %v6687 = vrot.slane %v6673, %v6686
    %v6688 = vcombine.low %v6680, %v6687
    %v6689 = vcombine.low %v4015, %v4019
    %v6690 = vcombine.low %v4023, %v4027
    %v6691 = vcombine.low %v4031, %v4035
    %v6692 = vcombine.low %v4039, %v4043
    %v6694 = vunpack.c.l.s4 1966171168
    %v6695 = vunpack.c.0.s8 %v6694
    %v6696 = vlaneseq
    %v6697 = vshrl.u32 %v6696, 7
    %v6698 = vsub.s32 %v6695, %v6697
    %v6699 = vrot.slane %v6689, %v6698
    %v6701 = vunpack.c.l.s4 1966171168
    %v6702 = vunpack.c.0.s8 %v6701
    %v6703 = vlaneseq
    %v6704 = vshrl.u32 %v6703, 7
    %v6705 = vsub.s32 %v6702, %v6704
    %v6706 = vrot.slane %v6690, %v6705
    %v6708 = vunpack.c.l.s4 1966171168
    %v6709 = vunpack.c.0.s8 %v6708
    %v6710 = vlaneseq
    %v6711 = vshrl.u32 %v6710, 7
    %v6712 = vsub.s32 %v6709, %v6711
    %v6713 = vrot.slane %v6691, %v6712
    %v6715 = vunpack.c.l.s4 1966171168
    %v6716 = vunpack.c.0.s8 %v6715
    %v6717 = vlaneseq
    %v6718 = vshrl.u32 %v6717, 7
    %v6719 = vsub.s32 %v6716, %v6718
    %v6720 = vrot.slane %v6692, %v6719
    %v6721 = vcombine.low %v6699, %v6706
    %v6722 = vcombine.low %v6713, %v6720
    %v6724 = vunpack.c.l.s4 1966171168
    %v6725 = vunpack.c.0.s8 %v6724
    %v6726 = vlaneseq
    %v6727 = vshrl.u32 %v6726, 7
    %v6728 = vsub.s32 %v6725, %v6727
    %v6729 = vrot.slane %v6721, %v6728
    %v6731 = vunpack.c.l.s4 1966171168
    %v6732 = vunpack.c.0.s8 %v6731
    %v6733 = vlaneseq
    %v6734 = vshrl.u32 %v6733, 7
    %v6735 = vsub.s32 %v6732, %v6734
    %v6736 = vrot.slane %v6722, %v6735
    %v6737 = vcombine.low %v6729, %v6736
    %v6738 = vcombine.low %v4047, %v4051
    %v6739 = vcombine.low %v4055, %v4059
    %v6740 = vcombine.low %v4063, %v4067
    %v6741 = vcombine.low %v4071, %v4075
    %v6743 = vunpack.c.l.s4 1966171168
    %v6744 = vunpack.c.0.s8 %v6743
    %v6745 = vlaneseq
    %v6746 = vshrl.u32 %v6745, 7
    %v6747 = vsub.s32 %v6744, %v6746
    %v6748 = vrot.slane %v6738, %v6747
    %v6750 = vunpack.c.l.s4 1966171168
    %v6751 = vunpack.c.0.s8 %v6750
    %v6752 = vlaneseq
    %v6753 = vshrl.u32 %v6752, 7
    %v6754 = vsub.s32 %v6751, %v6753
    %v6755 = vrot.slane %v6739, %v6754
    %v6757 = vunpack.c.l.s4 1966171168
    %v6758 = vunpack.c.0.s8 %v6757
    %v6759 = vlaneseq
    %v6760 = vshrl.u32 %v6759, 7
    %v6761 = vsub.s32 %v6758, %v6760
    %v6762 = vrot.slane %v6740, %v6761
    %v6764 = vunpack.c.l.s4 1966171168
    %v6765 = vunpack.c.0.s8 %v6764
    %v6766 = vlaneseq
    %v6767 = vshrl.u32 %v6766, 7
    %v6768 = vsub.s32 %v6765, %v6767
    %v6769 = vrot.slane %v6741, %v6768
    %v6770 = vcombine.low %v6748, %v6755
    %v6771 = vcombine.low %v6762, %v6769
    %v6773 = vunpack.c.l.s4 1966171168
    %v6774 = vunpack.c.0.s8 %v6773
    %v6775 = vlaneseq
    %v6776 = vshrl.u32 %v6775, 7
    %v6777 = vsub.s32 %v6774, %v6776
    %v6778 = vrot.slane %v6770, %v6777
    %v6780 = vunpack.c.l.s4 1966171168
    %v6781 = vunpack.c.0.s8 %v6780
    %v6782 = vlaneseq
    %v6783 = vshrl.u32 %v6782, 7
    %v6784 = vsub.s32 %v6781, %v6783
    %v6785 = vrot.slane %v6771, %v6784
    %v6786 = vcombine.low %v6778, %v6785
    %v6787 = vcombine.low %v4079, %v4083
    %v6788 = vcombine.low %v4087, %v4091
    %v6789 = vcombine.low %v4095, %v4099
    %v6790 = vcombine.low %v4103, %v4107
    %v6792 = vunpack.c.l.s4 1966171168
    %v6793 = vunpack.c.0.s8 %v6792
    %v6794 = vlaneseq
    %v6795 = vshrl.u32 %v6794, 7
    %v6796 = vsub.s32 %v6793, %v6795
    %v6797 = vrot.slane %v6787, %v6796
    %v6799 = vunpack.c.l.s4 1966171168
    %v6800 = vunpack.c.0.s8 %v6799
    %v6801 = vlaneseq
    %v6802 = vshrl.u32 %v6801, 7
    %v6803 = vsub.s32 %v6800, %v6802
    %v6804 = vrot.slane %v6788, %v6803
    %v6806 = vunpack.c.l.s4 1966171168
    %v6807 = vunpack.c.0.s8 %v6806
    %v6808 = vlaneseq
    %v6809 = vshrl.u32 %v6808, 7
    %v6810 = vsub.s32 %v6807, %v6809
    %v6811 = vrot.slane %v6789, %v6810
    %v6813 = vunpack.c.l.s4 1966171168
    %v6814 = vunpack.c.0.s8 %v6813
    %v6815 = vlaneseq
    %v6816 = vshrl.u32 %v6815, 7
    %v6817 = vsub.s32 %v6814, %v6816
    %v6818 = vrot.slane %v6790, %v6817
    %v6819 = vcombine.low %v6797, %v6804
    %v6820 = vcombine.low %v6811, %v6818
    %v6822 = vunpack.c.l.s4 1966171168
    %v6823 = vunpack.c.0.s8 %v6822
    %v6824 = vlaneseq
    %v6825 = vshrl.u32 %v6824, 7
    %v6826 = vsub.s32 %v6823, %v6825
    %v6827 = vrot.slane %v6819, %v6826
    %v6829 = vunpack.c.l.s4 1966171168
    %v6830 = vunpack.c.0.s8 %v6829
    %v6831 = vlaneseq
    %v6832 = vshrl.u32 %v6831, 7
    %v6833 = vsub.s32 %v6830, %v6832
    %v6834 = vrot.slane %v6820, %v6833
    %v6835 = vcombine.low %v6827, %v6834
    %v6836 = vcombine.low %v4111, %v4115
    %v6837 = vcombine.low %v4119, %v4123
    %v6838 = vcombine.low %v4127, %v4131
    %v6839 = vcombine.low %v4135, %v4139
    %v6841 = vunpack.c.l.s4 1966171168
    %v6842 = vunpack.c.0.s8 %v6841
    %v6843 = vlaneseq
    %v6844 = vshrl.u32 %v6843, 7
    %v6845 = vsub.s32 %v6842, %v6844
    %v6846 = vrot.slane %v6836, %v6845
    %v6848 = vunpack.c.l.s4 1966171168
    %v6849 = vunpack.c.0.s8 %v6848
    %v6850 = vlaneseq
    %v6851 = vshrl.u32 %v6850, 7
    %v6852 = vsub.s32 %v6849, %v6851
    %v6853 = vrot.slane %v6837, %v6852
    %v6855 = vunpack.c.l.s4 1966171168
    %v6856 = vunpack.c.0.s8 %v6855
    %v6857 = vlaneseq
    %v6858 = vshrl.u32 %v6857, 7
    %v6859 = vsub.s32 %v6856, %v6858
    %v6860 = vrot.slane %v6838, %v6859
    %v6862 = vunpack.c.l.s4 1966171168
    %v6863 = vunpack.c.0.s8 %v6862
    %v6864 = vlaneseq
    %v6865 = vshrl.u32 %v6864, 7
    %v6866 = vsub.s32 %v6863, %v6865
    %v6867 = vrot.slane %v6839, %v6866
    %v6868 = vcombine.low %v6846, %v6853
    %v6869 = vcombine.low %v6860, %v6867
    %v6871 = vunpack.c.l.s4 1966171168
    %v6872 = vunpack.c.0.s8 %v6871
    %v6873 = vlaneseq
    %v6874 = vshrl.u32 %v6873, 7
    %v6875 = vsub.s32 %v6872, %v6874
    %v6876 = vrot.slane %v6868, %v6875
    %v6878 = vunpack.c.l.s4 1966171168
    %v6879 = vunpack.c.0.s8 %v6878
    %v6880 = vlaneseq
    %v6881 = vshrl.u32 %v6880, 7
    %v6882 = vsub.s32 %v6879, %v6881
    %v6883 = vrot.slane %v6869, %v6882
    %v6884 = vcombine.low %v6876, %v6883
    %v6885 = vcombine.low %v4143, %v4147
    %v6886 = vcombine.low %v4151, %v4155
    %v6887 = vcombine.low %v4159, %v4163
    %v6888 = vcombine.low %v4167, %v4171
    %v6890 = vunpack.c.l.s4 1966171168
    %v6891 = vunpack.c.0.s8 %v6890
    %v6892 = vlaneseq
    %v6893 = vshrl.u32 %v6892, 7
    %v6894 = vsub.s32 %v6891, %v6893
    %v6895 = vrot.slane %v6885, %v6894
    %v6897 = vunpack.c.l.s4 1966171168
    %v6898 = vunpack.c.0.s8 %v6897
    %v6899 = vlaneseq
    %v6900 = vshrl.u32 %v6899, 7
    %v6901 = vsub.s32 %v6898, %v6900
    %v6902 = vrot.slane %v6886, %v6901
    %v6904 = vunpack.c.l.s4 1966171168
    %v6905 = vunpack.c.0.s8 %v6904
    %v6906 = vlaneseq
    %v6907 = vshrl.u32 %v6906, 7
    %v6908 = vsub.s32 %v6905, %v6907
    %v6909 = vrot.slane %v6887, %v6908
    %v6911 = vunpack.c.l.s4 1966171168
    %v6912 = vunpack.c.0.s8 %v6911
    %v6913 = vlaneseq
    %v6914 = vshrl.u32 %v6913, 7
    %v6915 = vsub.s32 %v6912, %v6914
    %v6916 = vrot.slane %v6888, %v6915
    %v6917 = vcombine.low %v6895, %v6902
    %v6918 = vcombine.low %v6909, %v6916
    %v6920 = vunpack.c.l.s4 1966171168
    %v6921 = vunpack.c.0.s8 %v6920
    %v6922 = vlaneseq
    %v6923 = vshrl.u32 %v6922, 7
    %v6924 = vsub.s32 %v6921, %v6923
    %v6925 = vrot.slane %v6917, %v6924
    %v6927 = vunpack.c.l.s4 1966171168
    %v6928 = vunpack.c.0.s8 %v6927
    %v6929 = vlaneseq
    %v6930 = vshrl.u32 %v6929, 7
    %v6931 = vsub.s32 %v6928, %v6930
    %v6932 = vrot.slane %v6918, %v6931
    %v6933 = vcombine.low %v6925, %v6932
    %v6934 = vcombine.low %v4175, %v4179
    %v6935 = vcombine.low %v4183, %v4187
    %v6936 = vcombine.low %v4191, %v4195
    %v6937 = vcombine.low %v4199, %v4203
    %v6939 = vunpack.c.l.s4 1966171168
    %v6940 = vunpack.c.0.s8 %v6939
    %v6941 = vlaneseq
    %v6942 = vshrl.u32 %v6941, 7
    %v6943 = vsub.s32 %v6940, %v6942
    %v6944 = vrot.slane %v6934, %v6943
    %v6946 = vunpack.c.l.s4 1966171168
    %v6947 = vunpack.c.0.s8 %v6946
    %v6948 = vlaneseq
    %v6949 = vshrl.u32 %v6948, 7
    %v6950 = vsub.s32 %v6947, %v6949
    %v6951 = vrot.slane %v6935, %v6950
    %v6953 = vunpack.c.l.s4 1966171168
    %v6954 = vunpack.c.0.s8 %v6953
    %v6955 = vlaneseq
    %v6956 = vshrl.u32 %v6955, 7
    %v6957 = vsub.s32 %v6954, %v6956
    %v6958 = vrot.slane %v6936, %v6957
    %v6960 = vunpack.c.l.s4 1966171168
    %v6961 = vunpack.c.0.s8 %v6960
    %v6962 = vlaneseq
    %v6963 = vshrl.u32 %v6962, 7
    %v6964 = vsub.s32 %v6961, %v6963
    %v6965 = vrot.slane %v6937, %v6964
    %v6966 = vcombine.low %v6944, %v6951
    %v6967 = vcombine.low %v6958, %v6965
    %v6969 = vunpack.c.l.s4 1966171168
    %v6970 = vunpack.c.0.s8 %v6969
    %v6971 = vlaneseq
    %v6972 = vshrl.u32 %v6971, 7
    %v6973 = vsub.s32 %v6970, %v6972
    %v6974 = vrot.slane %v6966, %v6973
    %v6976 = vunpack.c.l.s4 1966171168
    %v6977 = vunpack.c.0.s8 %v6976
    %v6978 = vlaneseq
    %v6979 = vshrl.u32 %v6978, 7
    %v6980 = vsub.s32 %v6977, %v6979
    %v6981 = vrot.slane %v6967, %v6980
    %v6982 = vcombine.low %v6974, %v6981
    %v6983 = vcombine.low %v4207, %v4211
    %v6984 = vcombine.low %v4215, %v4219
    %v6985 = vcombine.low %v4223, %v4227
    %v6986 = vcombine.low %v4231, %v4235
    %v6988 = vunpack.c.l.s4 1966171168
    %v6989 = vunpack.c.0.s8 %v6988
    %v6990 = vlaneseq
    %v6991 = vshrl.u32 %v6990, 7
    %v6992 = vsub.s32 %v6989, %v6991
    %v6993 = vrot.slane %v6983, %v6992
    %v6995 = vunpack.c.l.s4 1966171168
    %v6996 = vunpack.c.0.s8 %v6995
    %v6997 = vlaneseq
    %v6998 = vshrl.u32 %v6997, 7
    %v6999 = vsub.s32 %v6996, %v6998
    %v7000 = vrot.slane %v6984, %v6999
    %v7002 = vunpack.c.l.s4 1966171168
    %v7003 = vunpack.c.0.s8 %v7002
    %v7004 = vlaneseq
    %v7005 = vshrl.u32 %v7004, 7
    %v7006 = vsub.s32 %v7003, %v7005
    %v7007 = vrot.slane %v6985, %v7006
    %v7009 = vunpack.c.l.s4 1966171168
    %v7010 = vunpack.c.0.s8 %v7009
    %v7011 = vlaneseq
    %v7012 = vshrl.u32 %v7011, 7
    %v7013 = vsub.s32 %v7010, %v7012
    %v7014 = vrot.slane %v6986, %v7013
    %v7015 = vcombine.low %v6993, %v7000
    %v7016 = vcombine.low %v7007, %v7014
    %v7018 = vunpack.c.l.s4 1966171168
    %v7019 = vunpack.c.0.s8 %v7018
    %v7020 = vlaneseq
    %v7021 = vshrl.u32 %v7020, 7
    %v7022 = vsub.s32 %v7019, %v7021
    %v7023 = vrot.slane %v7015, %v7022
    %v7025 = vunpack.c.l.s4 1966171168
    %v7026 = vunpack.c.0.s8 %v7025
    %v7027 = vlaneseq
    %v7028 = vshrl.u32 %v7027, 7
    %v7029 = vsub.s32 %v7026, %v7028
    %v7030 = vrot.slane %v7016, %v7029
    %v7031 = vcombine.low %v7023, %v7030
    %v7032 = vcombine.low %v4239, %v4243
    %v7033 = vcombine.low %v4247, %v4251
    %v7034 = vcombine.low %v4255, %v4259
    %v7035 = vcombine.low %v4263, %v4267
    %v7037 = vunpack.c.l.s4 1966171168
    %v7038 = vunpack.c.0.s8 %v7037
    %v7039 = vlaneseq
    %v7040 = vshrl.u32 %v7039, 7
    %v7041 = vsub.s32 %v7038, %v7040
    %v7042 = vrot.slane %v7032, %v7041
    %v7044 = vunpack.c.l.s4 1966171168
    %v7045 = vunpack.c.0.s8 %v7044
    %v7046 = vlaneseq
    %v7047 = vshrl.u32 %v7046, 7
    %v7048 = vsub.s32 %v7045, %v7047
    %v7049 = vrot.slane %v7033, %v7048
    %v7051 = vunpack.c.l.s4 1966171168
    %v7052 = vunpack.c.0.s8 %v7051
    %v7053 = vlaneseq
    %v7054 = vshrl.u32 %v7053, 7
    %v7055 = vsub.s32 %v7052, %v7054
    %v7056 = vrot.slane %v7034, %v7055
    %v7058 = vunpack.c.l.s4 1966171168
    %v7059 = vunpack.c.0.s8 %v7058
    %v7060 = vlaneseq
    %v7061 = vshrl.u32 %v7060, 7
    %v7062 = vsub.s32 %v7059, %v7061
    %v7063 = vrot.slane %v7035, %v7062
    %v7064 = vcombine.low %v7042, %v7049
    %v7065 = vcombine.low %v7056, %v7063
    %v7067 = vunpack.c.l.s4 1966171168
    %v7068 = vunpack.c.0.s8 %v7067
    %v7069 = vlaneseq
    %v7070 = vshrl.u32 %v7069, 7
    %v7071 = vsub.s32 %v7068, %v7070
    %v7072 = vrot.slane %v7064, %v7071
    %v7074 = vunpack.c.l.s4 1966171168
    %v7075 = vunpack.c.0.s8 %v7074
    %v7076 = vlaneseq
    %v7077 = vshrl.u32 %v7076, 7
    %v7078 = vsub.s32 %v7075, %v7077
    %v7079 = vrot.slane %v7065, %v7078
    %v7080 = vcombine.low %v7072, %v7079
    %v7081 = vcombine.low %v4271, %v4275
    %v7082 = vcombine.low %v4279, %v4283
    %v7083 = vcombine.low %v4287, %v4291
    %v7084 = vcombine.low %v4295, %v4299
    %v7086 = vunpack.c.l.s4 1966171168
    %v7087 = vunpack.c.0.s8 %v7086
    %v7088 = vlaneseq
    %v7089 = vshrl.u32 %v7088, 7
    %v7090 = vsub.s32 %v7087, %v7089
    %v7091 = vrot.slane %v7081, %v7090
    %v7093 = vunpack.c.l.s4 1966171168
    %v7094 = vunpack.c.0.s8 %v7093
    %v7095 = vlaneseq
    %v7096 = vshrl.u32 %v7095, 7
    %v7097 = vsub.s32 %v7094, %v7096
    %v7098 = vrot.slane %v7082, %v7097
    %v7100 = vunpack.c.l.s4 1966171168
    %v7101 = vunpack.c.0.s8 %v7100
    %v7102 = vlaneseq
    %v7103 = vshrl.u32 %v7102, 7
    %v7104 = vsub.s32 %v7101, %v7103
    %v7105 = vrot.slane %v7083, %v7104
    %v7107 = vunpack.c.l.s4 1966171168
    %v7108 = vunpack.c.0.s8 %v7107
    %v7109 = vlaneseq
    %v7110 = vshrl.u32 %v7109, 7
    %v7111 = vsub.s32 %v7108, %v7110
    %v7112 = vrot.slane %v7084, %v7111
    %v7113 = vcombine.low %v7091, %v7098
    %v7114 = vcombine.low %v7105, %v7112
    %v7116 = vunpack.c.l.s4 1966171168
    %v7117 = vunpack.c.0.s8 %v7116
    %v7118 = vlaneseq
    %v7119 = vshrl.u32 %v7118, 7
    %v7120 = vsub.s32 %v7117, %v7119
    %v7121 = vrot.slane %v7113, %v7120
    %v7123 = vunpack.c.l.s4 1966171168
    %v7124 = vunpack.c.0.s8 %v7123
    %v7125 = vlaneseq
    %v7126 = vshrl.u32 %v7125, 7
    %v7127 = vsub.s32 %v7124, %v7126
    %v7128 = vrot.slane %v7114, %v7127
    %v7129 = vcombine.low %v7121, %v7128
    %v7130 = vcombine.low %v4303, %v4307
    %v7131 = vcombine.low %v4311, %v4315
    %v7132 = vcombine.low %v4319, %v4323
    %v7133 = vcombine.low %v4327, %v4331
    %v7135 = vunpack.c.l.s4 1966171168
    %v7136 = vunpack.c.0.s8 %v7135
    %v7137 = vlaneseq
    %v7138 = vshrl.u32 %v7137, 7
    %v7139 = vsub.s32 %v7136, %v7138
    %v7140 = vrot.slane %v7130, %v7139
    %v7142 = vunpack.c.l.s4 1966171168
    %v7143 = vunpack.c.0.s8 %v7142
    %v7144 = vlaneseq
    %v7145 = vshrl.u32 %v7144, 7
    %v7146 = vsub.s32 %v7143, %v7145
    %v7147 = vrot.slane %v7131, %v7146
    %v7149 = vunpack.c.l.s4 1966171168
    %v7150 = vunpack.c.0.s8 %v7149
    %v7151 = vlaneseq
    %v7152 = vshrl.u32 %v7151, 7
    %v7153 = vsub.s32 %v7150, %v7152
    %v7154 = vrot.slane %v7132, %v7153
    %v7156 = vunpack.c.l.s4 1966171168
    %v7157 = vunpack.c.0.s8 %v7156
    %v7158 = vlaneseq
    %v7159 = vshrl.u32 %v7158, 7
    %v7160 = vsub.s32 %v7157, %v7159
    %v7161 = vrot.slane %v7133, %v7160
    %v7162 = vcombine.low %v7140, %v7147
    %v7163 = vcombine.low %v7154, %v7161
    %v7165 = vunpack.c.l.s4 1966171168
    %v7166 = vunpack.c.0.s8 %v7165
    %v7167 = vlaneseq
    %v7168 = vshrl.u32 %v7167, 7
    %v7169 = vsub.s32 %v7166, %v7168
    %v7170 = vrot.slane %v7162, %v7169
    %v7172 = vunpack.c.l.s4 1966171168
    %v7173 = vunpack.c.0.s8 %v7172
    %v7174 = vlaneseq
    %v7175 = vshrl.u32 %v7174, 7
    %v7176 = vsub.s32 %v7173, %v7175
    %v7177 = vrot.slane %v7163, %v7176
    %v7178 = vcombine.low %v7170, %v7177
    %v7179 = vcombine.low %v4335, %v4339
    %v7180 = vcombine.low %v4343, %v4347
    %v7181 = vcombine.low %v4351, %v4355
    %v7182 = vcombine.low %v4359, %v4363
    %v7184 = vunpack.c.l.s4 1966171168
    %v7185 = vunpack.c.0.s8 %v7184
    %v7186 = vlaneseq
    %v7187 = vshrl.u32 %v7186, 7
    %v7188 = vsub.s32 %v7185, %v7187
    %v7189 = vrot.slane %v7179, %v7188
    %v7191 = vunpack.c.l.s4 1966171168
    %v7192 = vunpack.c.0.s8 %v7191
    %v7193 = vlaneseq
    %v7194 = vshrl.u32 %v7193, 7
    %v7195 = vsub.s32 %v7192, %v7194
    %v7196 = vrot.slane %v7180, %v7195
    %v7198 = vunpack.c.l.s4 1966171168
    %v7199 = vunpack.c.0.s8 %v7198
    %v7200 = vlaneseq
    %v7201 = vshrl.u32 %v7200, 7
    %v7202 = vsub.s32 %v7199, %v7201
    %v7203 = vrot.slane %v7181, %v7202
    %v7205 = vunpack.c.l.s4 1966171168
    %v7206 = vunpack.c.0.s8 %v7205
    %v7207 = vlaneseq
    %v7208 = vshrl.u32 %v7207, 7
    %v7209 = vsub.s32 %v7206, %v7208
    %v7210 = vrot.slane %v7182, %v7209
    %v7211 = vcombine.low %v7189, %v7196
    %v7212 = vcombine.low %v7203, %v7210
    %v7214 = vunpack.c.l.s4 1966171168
    %v7215 = vunpack.c.0.s8 %v7214
    %v7216 = vlaneseq
    %v7217 = vshrl.u32 %v7216, 7
    %v7218 = vsub.s32 %v7215, %v7217
    %v7219 = vrot.slane %v7211, %v7218
    %v7221 = vunpack.c.l.s4 1966171168
    %v7222 = vunpack.c.0.s8 %v7221
    %v7223 = vlaneseq
    %v7224 = vshrl.u32 %v7223, 7
    %v7225 = vsub.s32 %v7222, %v7224
    %v7226 = vrot.slane %v7212, %v7225
    %v7227 = vcombine.low %v7219, %v7226
    %v7228 = vcombine.low %v4367, %v4371
    %v7229 = vcombine.low %v4375, %v4379
    %v7230 = vcombine.low %v4383, %v4387
    %v7231 = vcombine.low %v4391, %v4395
    %v7233 = vunpack.c.l.s4 1966171168
    %v7234 = vunpack.c.0.s8 %v7233
    %v7235 = vlaneseq
    %v7236 = vshrl.u32 %v7235, 7
    %v7237 = vsub.s32 %v7234, %v7236
    %v7238 = vrot.slane %v7228, %v7237
    %v7240 = vunpack.c.l.s4 1966171168
    %v7241 = vunpack.c.0.s8 %v7240
    %v7242 = vlaneseq
    %v7243 = vshrl.u32 %v7242, 7
    %v7244 = vsub.s32 %v7241, %v7243
    %v7245 = vrot.slane %v7229, %v7244
    %v7247 = vunpack.c.l.s4 1966171168
    %v7248 = vunpack.c.0.s8 %v7247
    %v7249 = vlaneseq
    %v7250 = vshrl.u32 %v7249, 7
    %v7251 = vsub.s32 %v7248, %v7250
    %v7252 = vrot.slane %v7230, %v7251
    %v7254 = vunpack.c.l.s4 1966171168
    %v7255 = vunpack.c.0.s8 %v7254
    %v7256 = vlaneseq
    %v7257 = vshrl.u32 %v7256, 7
    %v7258 = vsub.s32 %v7255, %v7257
    %v7259 = vrot.slane %v7231, %v7258
    %v7260 = vcombine.low %v7238, %v7245
    %v7261 = vcombine.low %v7252, %v7259
    %v7263 = vunpack.c.l.s4 1966171168
    %v7264 = vunpack.c.0.s8 %v7263
    %v7265 = vlaneseq
    %v7266 = vshrl.u32 %v7265, 7
    %v7267 = vsub.s32 %v7264, %v7266
    %v7268 = vrot.slane %v7260, %v7267
    %v7270 = vunpack.c.l.s4 1966171168
    %v7271 = vunpack.c.0.s8 %v7270
    %v7272 = vlaneseq
    %v7273 = vshrl.u32 %v7272, 7
    %v7274 = vsub.s32 %v7271, %v7273
    %v7275 = vrot.slane %v7261, %v7274
    %v7276 = vcombine.low %v7268, %v7275
    %v7277 = vcombine.low %v4399, %v4403
    %v7278 = vcombine.low %v4407, %v4411
    %v7279 = vcombine.low %v4415, %v4419
    %v7280 = vcombine.low %v4423, %v4427
    %v7282 = vunpack.c.l.s4 1966171168
    %v7283 = vunpack.c.0.s8 %v7282
    %v7284 = vlaneseq
    %v7285 = vshrl.u32 %v7284, 7
    %v7286 = vsub.s32 %v7283, %v7285
    %v7287 = vrot.slane %v7277, %v7286
    %v7289 = vunpack.c.l.s4 1966171168
    %v7290 = vunpack.c.0.s8 %v7289
    %v7291 = vlaneseq
    %v7292 = vshrl.u32 %v7291, 7
    %v7293 = vsub.s32 %v7290, %v7292
    %v7294 = vrot.slane %v7278, %v7293
    %v7296 = vunpack.c.l.s4 1966171168
    %v7297 = vunpack.c.0.s8 %v7296
    %v7298 = vlaneseq
    %v7299 = vshrl.u32 %v7298, 7
    %v7300 = vsub.s32 %v7297, %v7299
    %v7301 = vrot.slane %v7279, %v7300
    %v7303 = vunpack.c.l.s4 1966171168
    %v7304 = vunpack.c.0.s8 %v7303
    %v7305 = vlaneseq
    %v7306 = vshrl.u32 %v7305, 7
    %v7307 = vsub.s32 %v7304, %v7306
    %v7308 = vrot.slane %v7280, %v7307
    %v7309 = vcombine.low %v7287, %v7294
    %v7310 = vcombine.low %v7301, %v7308
    %v7312 = vunpack.c.l.s4 1966171168
    %v7313 = vunpack.c.0.s8 %v7312
    %v7314 = vlaneseq
    %v7315 = vshrl.u32 %v7314, 7
    %v7316 = vsub.s32 %v7313, %v7315
    %v7317 = vrot.slane %v7309, %v7316
    %v7319 = vunpack.c.l.s4 1966171168
    %v7320 = vunpack.c.0.s8 %v7319
    %v7321 = vlaneseq
    %v7322 = vshrl.u32 %v7321, 7
    %v7323 = vsub.s32 %v7320, %v7322
    %v7324 = vrot.slane %v7310, %v7323
    %v7325 = vcombine.low %v7317, %v7324
    %v7326 = vcombine.low %v4431, %v4435
    %v7327 = vcombine.low %v4439, %v4443
    %v7328 = vcombine.low %v4447, %v4451
    %v7329 = vcombine.low %v4455, %v4459
    %v7331 = vunpack.c.l.s4 1966171168
    %v7332 = vunpack.c.0.s8 %v7331
    %v7333 = vlaneseq
    %v7334 = vshrl.u32 %v7333, 7
    %v7335 = vsub.s32 %v7332, %v7334
    %v7336 = vrot.slane %v7326, %v7335
    %v7338 = vunpack.c.l.s4 1966171168
    %v7339 = vunpack.c.0.s8 %v7338
    %v7340 = vlaneseq
    %v7341 = vshrl.u32 %v7340, 7
    %v7342 = vsub.s32 %v7339, %v7341
    %v7343 = vrot.slane %v7327, %v7342
    %v7345 = vunpack.c.l.s4 1966171168
    %v7346 = vunpack.c.0.s8 %v7345
    %v7347 = vlaneseq
    %v7348 = vshrl.u32 %v7347, 7
    %v7349 = vsub.s32 %v7346, %v7348
    %v7350 = vrot.slane %v7328, %v7349
    %v7352 = vunpack.c.l.s4 1966171168
    %v7353 = vunpack.c.0.s8 %v7352
    %v7354 = vlaneseq
    %v7355 = vshrl.u32 %v7354, 7
    %v7356 = vsub.s32 %v7353, %v7355
    %v7357 = vrot.slane %v7329, %v7356
    %v7358 = vcombine.low %v7336, %v7343
    %v7359 = vcombine.low %v7350, %v7357
    %v7361 = vunpack.c.l.s4 1966171168
    %v7362 = vunpack.c.0.s8 %v7361
    %v7363 = vlaneseq
    %v7364 = vshrl.u32 %v7363, 7
    %v7365 = vsub.s32 %v7362, %v7364
    %v7366 = vrot.slane %v7358, %v7365
    %v7368 = vunpack.c.l.s4 1966171168
    %v7369 = vunpack.c.0.s8 %v7368
    %v7370 = vlaneseq
    %v7371 = vshrl.u32 %v7370, 7
    %v7372 = vsub.s32 %v7369, %v7371
    %v7373 = vrot.slane %v7359, %v7372
    %v7374 = vcombine.low %v7366, %v7373
    %v7375 = vcombine.low %v4463, %v4467
    %v7376 = vcombine.low %v4471, %v4475
    %v7377 = vcombine.low %v4479, %v4483
    %v7378 = vcombine.low %v4487, %v4491
    %v7380 = vunpack.c.l.s4 1966171168
    %v7381 = vunpack.c.0.s8 %v7380
    %v7382 = vlaneseq
    %v7383 = vshrl.u32 %v7382, 7
    %v7384 = vsub.s32 %v7381, %v7383
    %v7385 = vrot.slane %v7375, %v7384
    %v7387 = vunpack.c.l.s4 1966171168
    %v7388 = vunpack.c.0.s8 %v7387
    %v7389 = vlaneseq
    %v7390 = vshrl.u32 %v7389, 7
    %v7391 = vsub.s32 %v7388, %v7390
    %v7392 = vrot.slane %v7376, %v7391
    %v7394 = vunpack.c.l.s4 1966171168
    %v7395 = vunpack.c.0.s8 %v7394
    %v7396 = vlaneseq
    %v7397 = vshrl.u32 %v7396, 7
    %v7398 = vsub.s32 %v7395, %v7397
    %v7399 = vrot.slane %v7377, %v7398
    %v7401 = vunpack.c.l.s4 1966171168
    %v7402 = vunpack.c.0.s8 %v7401
    %v7403 = vlaneseq
    %v7404 = vshrl.u32 %v7403, 7
    %v7405 = vsub.s32 %v7402, %v7404
    %v7406 = vrot.slane %v7378, %v7405
    %v7407 = vcombine.low %v7385, %v7392
    %v7408 = vcombine.low %v7399, %v7406
    %v7410 = vunpack.c.l.s4 1966171168
    %v7411 = vunpack.c.0.s8 %v7410
    %v7412 = vlaneseq
    %v7413 = vshrl.u32 %v7412, 7
    %v7414 = vsub.s32 %v7411, %v7413
    %v7415 = vrot.slane %v7407, %v7414
    %v7417 = vunpack.c.l.s4 1966171168
    %v7418 = vunpack.c.0.s8 %v7417
    %v7419 = vlaneseq
    %v7420 = vshrl.u32 %v7419, 7
    %v7421 = vsub.s32 %v7418, %v7420
    %v7422 = vrot.slane %v7408, %v7421
    %v7423 = vcombine.low %v7415, %v7422
    %v7424 = vcombine.low %v4495, %v4499
    %v7425 = vcombine.low %v4503, %v4507
    %v7426 = vcombine.low %v4511, %v4515
    %v7427 = vcombine.low %v4519, %v4523
    %v7429 = vunpack.c.l.s4 1966171168
    %v7430 = vunpack.c.0.s8 %v7429
    %v7431 = vlaneseq
    %v7432 = vshrl.u32 %v7431, 7
    %v7433 = vsub.s32 %v7430, %v7432
    %v7434 = vrot.slane %v7424, %v7433
    %v7436 = vunpack.c.l.s4 1966171168
    %v7437 = vunpack.c.0.s8 %v7436
    %v7438 = vlaneseq
    %v7439 = vshrl.u32 %v7438, 7
    %v7440 = vsub.s32 %v7437, %v7439
    %v7441 = vrot.slane %v7425, %v7440
    %v7443 = vunpack.c.l.s4 1966171168
    %v7444 = vunpack.c.0.s8 %v7443
    %v7445 = vlaneseq
    %v7446 = vshrl.u32 %v7445, 7
    %v7447 = vsub.s32 %v7444, %v7446
    %v7448 = vrot.slane %v7426, %v7447
    %v7450 = vunpack.c.l.s4 1966171168
    %v7451 = vunpack.c.0.s8 %v7450
    %v7452 = vlaneseq
    %v7453 = vshrl.u32 %v7452, 7
    %v7454 = vsub.s32 %v7451, %v7453
    %v7455 = vrot.slane %v7427, %v7454
    %v7456 = vcombine.low %v7434, %v7441
    %v7457 = vcombine.low %v7448, %v7455
    %v7459 = vunpack.c.l.s4 1966171168
    %v7460 = vunpack.c.0.s8 %v7459
    %v7461 = vlaneseq
    %v7462 = vshrl.u32 %v7461, 7
    %v7463 = vsub.s32 %v7460, %v7462
    %v7464 = vrot.slane %v7456, %v7463
    %v7466 = vunpack.c.l.s4 1966171168
    %v7467 = vunpack.c.0.s8 %v7466
    %v7468 = vlaneseq
    %v7469 = vshrl.u32 %v7468, 7
    %v7470 = vsub.s32 %v7467, %v7469
    %v7471 = vrot.slane %v7457, %v7470
    %v7472 = vcombine.low %v7464, %v7471
    %v7473 = vcombine.low %v4527, %v4531
    %v7474 = vcombine.low %v4535, %v4539
    %v7475 = vcombine.low %v4543, %v4547
    %v7476 = vcombine.low %v4551, %v4555
    %v7478 = vunpack.c.l.s4 1966171168
    %v7479 = vunpack.c.0.s8 %v7478
    %v7480 = vlaneseq
    %v7481 = vshrl.u32 %v7480, 7
    %v7482 = vsub.s32 %v7479, %v7481
    %v7483 = vrot.slane %v7473, %v7482
    %v7485 = vunpack.c.l.s4 1966171168
    %v7486 = vunpack.c.0.s8 %v7485
    %v7487 = vlaneseq
    %v7488 = vshrl.u32 %v7487, 7
    %v7489 = vsub.s32 %v7486, %v7488
    %v7490 = vrot.slane %v7474, %v7489
    %v7492 = vunpack.c.l.s4 1966171168
    %v7493 = vunpack.c.0.s8 %v7492
    %v7494 = vlaneseq
    %v7495 = vshrl.u32 %v7494, 7
    %v7496 = vsub.s32 %v7493, %v7495
    %v7497 = vrot.slane %v7475, %v7496
    %v7499 = vunpack.c.l.s4 1966171168
    %v7500 = vunpack.c.0.s8 %v7499
    %v7501 = vlaneseq
    %v7502 = vshrl.u32 %v7501, 7
    %v7503 = vsub.s32 %v7500, %v7502
    %v7504 = vrot.slane %v7476, %v7503
    %v7505 = vcombine.low %v7483, %v7490
    %v7506 = vcombine.low %v7497, %v7504
    %v7508 = vunpack.c.l.s4 1966171168
    %v7509 = vunpack.c.0.s8 %v7508
    %v7510 = vlaneseq
    %v7511 = vshrl.u32 %v7510, 7
    %v7512 = vsub.s32 %v7509, %v7511
    %v7513 = vrot.slane %v7505, %v7512
    %v7515 = vunpack.c.l.s4 1966171168
    %v7516 = vunpack.c.0.s8 %v7515
    %v7517 = vlaneseq
    %v7518 = vshrl.u32 %v7517, 7
    %v7519 = vsub.s32 %v7516, %v7518
    %v7520 = vrot.slane %v7506, %v7519
    %v7521 = vcombine.low %v7513, %v7520
    %v7522 = vcombine.low %v4559, %v4563
    %v7523 = vcombine.low %v4567, %v4571
    %v7524 = vcombine.low %v4575, %v4579
    %v7525 = vcombine.low %v4583, %v4587
    %v7527 = vunpack.c.l.s4 1966171168
    %v7528 = vunpack.c.0.s8 %v7527
    %v7529 = vlaneseq
    %v7530 = vshrl.u32 %v7529, 7
    %v7531 = vsub.s32 %v7528, %v7530
    %v7532 = vrot.slane %v7522, %v7531
    %v7534 = vunpack.c.l.s4 1966171168
    %v7535 = vunpack.c.0.s8 %v7534
    %v7536 = vlaneseq
    %v7537 = vshrl.u32 %v7536, 7
    %v7538 = vsub.s32 %v7535, %v7537
    %v7539 = vrot.slane %v7523, %v7538
    %v7541 = vunpack.c.l.s4 1966171168
    %v7542 = vunpack.c.0.s8 %v7541
    %v7543 = vlaneseq
    %v7544 = vshrl.u32 %v7543, 7
    %v7545 = vsub.s32 %v7542, %v7544
    %v7546 = vrot.slane %v7524, %v7545
    %v7548 = vunpack.c.l.s4 1966171168
    %v7549 = vunpack.c.0.s8 %v7548
    %v7550 = vlaneseq
    %v7551 = vshrl.u32 %v7550, 7
    %v7552 = vsub.s32 %v7549, %v7551
    %v7553 = vrot.slane %v7525, %v7552
    %v7554 = vcombine.low %v7532, %v7539
    %v7555 = vcombine.low %v7546, %v7553
    %v7557 = vunpack.c.l.s4 1966171168
    %v7558 = vunpack.c.0.s8 %v7557
    %v7559 = vlaneseq
    %v7560 = vshrl.u32 %v7559, 7
    %v7561 = vsub.s32 %v7558, %v7560
    %v7562 = vrot.slane %v7554, %v7561
    %v7564 = vunpack.c.l.s4 1966171168
    %v7565 = vunpack.c.0.s8 %v7564
    %v7566 = vlaneseq
    %v7567 = vshrl.u32 %v7566, 7
    %v7568 = vsub.s32 %v7565, %v7567
    %v7569 = vrot.slane %v7555, %v7568
    %v7570 = vcombine.low %v7562, %v7569
    %v7571 = vcombine.low %v4591, %v4595
    %v7572 = vcombine.low %v4599, %v4603
    %v7573 = vcombine.low %v4607, %v4611
    %v7574 = vcombine.low %v4615, %v4619
    %v7576 = vunpack.c.l.s4 1966171168
    %v7577 = vunpack.c.0.s8 %v7576
    %v7578 = vlaneseq
    %v7579 = vshrl.u32 %v7578, 7
    %v7580 = vsub.s32 %v7577, %v7579
    %v7581 = vrot.slane %v7571, %v7580
    %v7583 = vunpack.c.l.s4 1966171168
    %v7584 = vunpack.c.0.s8 %v7583
    %v7585 = vlaneseq
    %v7586 = vshrl.u32 %v7585, 7
    %v7587 = vsub.s32 %v7584, %v7586
    %v7588 = vrot.slane %v7572, %v7587
    %v7590 = vunpack.c.l.s4 1966171168
    %v7591 = vunpack.c.0.s8 %v7590
    %v7592 = vlaneseq
    %v7593 = vshrl.u32 %v7592, 7
    %v7594 = vsub.s32 %v7591, %v7593
    %v7595 = vrot.slane %v7573, %v7594
    %v7597 = vunpack.c.l.s4 1966171168
    %v7598 = vunpack.c.0.s8 %v7597
    %v7599 = vlaneseq
    %v7600 = vshrl.u32 %v7599, 7
    %v7601 = vsub.s32 %v7598, %v7600
    %v7602 = vrot.slane %v7574, %v7601
    %v7603 = vcombine.low %v7581, %v7588
    %v7604 = vcombine.low %v7595, %v7602
    %v7606 = vunpack.c.l.s4 1966171168
    %v7607 = vunpack.c.0.s8 %v7606
    %v7608 = vlaneseq
    %v7609 = vshrl.u32 %v7608, 7
    %v7610 = vsub.s32 %v7607, %v7609
    %v7611 = vrot.slane %v7603, %v7610
    %v7613 = vunpack.c.l.s4 1966171168
    %v7614 = vunpack.c.0.s8 %v7613
    %v7615 = vlaneseq
    %v7616 = vshrl.u32 %v7615, 7
    %v7617 = vsub.s32 %v7614, %v7616
    %v7618 = vrot.slane %v7604, %v7617
    %v7619 = vcombine.low %v7611, %v7618
    %v7620 = vcombine.low %v4623, %v4627
    %v7621 = vcombine.low %v4631, %v4635
    %v7622 = vcombine.low %v4639, %v4643
    %v7623 = vcombine.low %v4647, %v4651
    %v7625 = vunpack.c.l.s4 1966171168
    %v7626 = vunpack.c.0.s8 %v7625
    %v7627 = vlaneseq
    %v7628 = vshrl.u32 %v7627, 7
    %v7629 = vsub.s32 %v7626, %v7628
    %v7630 = vrot.slane %v7620, %v7629
    %v7632 = vunpack.c.l.s4 1966171168
    %v7633 = vunpack.c.0.s8 %v7632
    %v7634 = vlaneseq
    %v7635 = vshrl.u32 %v7634, 7
    %v7636 = vsub.s32 %v7633, %v7635
    %v7637 = vrot.slane %v7621, %v7636
    %v7639 = vunpack.c.l.s4 1966171168
    %v7640 = vunpack.c.0.s8 %v7639
    %v7641 = vlaneseq
    %v7642 = vshrl.u32 %v7641, 7
    %v7643 = vsub.s32 %v7640, %v7642
    %v7644 = vrot.slane %v7622, %v7643
    %v7646 = vunpack.c.l.s4 1966171168
    %v7647 = vunpack.c.0.s8 %v7646
    %v7648 = vlaneseq
    %v7649 = vshrl.u32 %v7648, 7
    %v7650 = vsub.s32 %v7647, %v7649
    %v7651 = vrot.slane %v7623, %v7650
    %v7652 = vcombine.low %v7630, %v7637
    %v7653 = vcombine.low %v7644, %v7651
    %v7655 = vunpack.c.l.s4 1966171168
    %v7656 = vunpack.c.0.s8 %v7655
    %v7657 = vlaneseq
    %v7658 = vshrl.u32 %v7657, 7
    %v7659 = vsub.s32 %v7656, %v7658
    %v7660 = vrot.slane %v7652, %v7659
    %v7662 = vunpack.c.l.s4 1966171168
    %v7663 = vunpack.c.0.s8 %v7662
    %v7664 = vlaneseq
    %v7665 = vshrl.u32 %v7664, 7
    %v7666 = vsub.s32 %v7663, %v7665
    %v7667 = vrot.slane %v7653, %v7666
    %v7668 = vcombine.low %v7660, %v7667
    %v7669 = vcombine.low %v4655, %v4659
    %v7670 = vcombine.low %v4663, %v4667
    %v7671 = vcombine.low %v4671, %v4675
    %v7672 = vcombine.low %v4679, %v4683
    %v7674 = vunpack.c.l.s4 1966171168
    %v7675 = vunpack.c.0.s8 %v7674
    %v7676 = vlaneseq
    %v7677 = vshrl.u32 %v7676, 7
    %v7678 = vsub.s32 %v7675, %v7677
    %v7679 = vrot.slane %v7669, %v7678
    %v7681 = vunpack.c.l.s4 1966171168
    %v7682 = vunpack.c.0.s8 %v7681
    %v7683 = vlaneseq
    %v7684 = vshrl.u32 %v7683, 7
    %v7685 = vsub.s32 %v7682, %v7684
    %v7686 = vrot.slane %v7670, %v7685
    %v7688 = vunpack.c.l.s4 1966171168
    %v7689 = vunpack.c.0.s8 %v7688
    %v7690 = vlaneseq
    %v7691 = vshrl.u32 %v7690, 7
    %v7692 = vsub.s32 %v7689, %v7691
    %v7693 = vrot.slane %v7671, %v7692
    %v7695 = vunpack.c.l.s4 1966171168
    %v7696 = vunpack.c.0.s8 %v7695
    %v7697 = vlaneseq
    %v7698 = vshrl.u32 %v7697, 7
    %v7699 = vsub.s32 %v7696, %v7698
    %v7700 = vrot.slane %v7672, %v7699
    %v7701 = vcombine.low %v7679, %v7686
    %v7702 = vcombine.low %v7693, %v7700
    %v7704 = vunpack.c.l.s4 1966171168
    %v7705 = vunpack.c.0.s8 %v7704
    %v7706 = vlaneseq
    %v7707 = vshrl.u32 %v7706, 7
    %v7708 = vsub.s32 %v7705, %v7707
    %v7709 = vrot.slane %v7701, %v7708
    %v7711 = vunpack.c.l.s4 1966171168
    %v7712 = vunpack.c.0.s8 %v7711
    %v7713 = vlaneseq
    %v7714 = vshrl.u32 %v7713, 7
    %v7715 = vsub.s32 %v7712, %v7714
    %v7716 = vrot.slane %v7702, %v7715
    %v7717 = vcombine.low %v7709, %v7716
    %v7718 = vcombine.low %v4687, %v4691
    %v7719 = vcombine.low %v4695, %v4699
    %v7720 = vcombine.low %v4703, %v4707
    %v7721 = vcombine.low %v4711, %v4715
    %v7723 = vunpack.c.l.s4 1966171168
    %v7724 = vunpack.c.0.s8 %v7723
    %v7725 = vlaneseq
    %v7726 = vshrl.u32 %v7725, 7
    %v7727 = vsub.s32 %v7724, %v7726
    %v7728 = vrot.slane %v7718, %v7727
    %v7730 = vunpack.c.l.s4 1966171168
    %v7731 = vunpack.c.0.s8 %v7730
    %v7732 = vlaneseq
    %v7733 = vshrl.u32 %v7732, 7
    %v7734 = vsub.s32 %v7731, %v7733
    %v7735 = vrot.slane %v7719, %v7734
    %v7737 = vunpack.c.l.s4 1966171168
    %v7738 = vunpack.c.0.s8 %v7737
    %v7739 = vlaneseq
    %v7740 = vshrl.u32 %v7739, 7
    %v7741 = vsub.s32 %v7738, %v7740
    %v7742 = vrot.slane %v7720, %v7741
    %v7744 = vunpack.c.l.s4 1966171168
    %v7745 = vunpack.c.0.s8 %v7744
    %v7746 = vlaneseq
    %v7747 = vshrl.u32 %v7746, 7
    %v7748 = vsub.s32 %v7745, %v7747
    %v7749 = vrot.slane %v7721, %v7748
    %v7750 = vcombine.low %v7728, %v7735
    %v7751 = vcombine.low %v7742, %v7749
    %v7753 = vunpack.c.l.s4 1966171168
    %v7754 = vunpack.c.0.s8 %v7753
    %v7755 = vlaneseq
    %v7756 = vshrl.u32 %v7755, 7
    %v7757 = vsub.s32 %v7754, %v7756
    %v7758 = vrot.slane %v7750, %v7757
    %v7760 = vunpack.c.l.s4 1966171168
    %v7761 = vunpack.c.0.s8 %v7760
    %v7762 = vlaneseq
    %v7763 = vshrl.u32 %v7762, 7
    %v7764 = vsub.s32 %v7761, %v7763
    %v7765 = vrot.slane %v7751, %v7764
    %v7766 = vcombine.low %v7758, %v7765
    %v7767 = vcombine.low %v4719, %v4723
    %v7768 = vcombine.low %v4727, %v4731
    %v7769 = vcombine.low %v4735, %v4739
    %v7770 = vcombine.low %v4743, %v4747
    %v7772 = vunpack.c.l.s4 1966171168
    %v7773 = vunpack.c.0.s8 %v7772
    %v7774 = vlaneseq
    %v7775 = vshrl.u32 %v7774, 7
    %v7776 = vsub.s32 %v7773, %v7775
    %v7777 = vrot.slane %v7767, %v7776
    %v7779 = vunpack.c.l.s4 1966171168
    %v7780 = vunpack.c.0.s8 %v7779
    %v7781 = vlaneseq
    %v7782 = vshrl.u32 %v7781, 7
    %v7783 = vsub.s32 %v7780, %v7782
    %v7784 = vrot.slane %v7768, %v7783
    %v7786 = vunpack.c.l.s4 1966171168
    %v7787 = vunpack.c.0.s8 %v7786
    %v7788 = vlaneseq
    %v7789 = vshrl.u32 %v7788, 7
    %v7790 = vsub.s32 %v7787, %v7789
    %v7791 = vrot.slane %v7769, %v7790
    %v7793 = vunpack.c.l.s4 1966171168
    %v7794 = vunpack.c.0.s8 %v7793
    %v7795 = vlaneseq
    %v7796 = vshrl.u32 %v7795, 7
    %v7797 = vsub.s32 %v7794, %v7796
    %v7798 = vrot.slane %v7770, %v7797
    %v7799 = vcombine.low %v7777, %v7784
    %v7800 = vcombine.low %v7791, %v7798
    %v7802 = vunpack.c.l.s4 1966171168
    %v7803 = vunpack.c.0.s8 %v7802
    %v7804 = vlaneseq
    %v7805 = vshrl.u32 %v7804, 7
    %v7806 = vsub.s32 %v7803, %v7805
    %v7807 = vrot.slane %v7799, %v7806
    %v7809 = vunpack.c.l.s4 1966171168
    %v7810 = vunpack.c.0.s8 %v7809
    %v7811 = vlaneseq
    %v7812 = vshrl.u32 %v7811, 7
    %v7813 = vsub.s32 %v7810, %v7812
    %v7814 = vrot.slane %v7800, %v7813
    %v7815 = vcombine.low %v7807, %v7814
    %v7816 = vcombine.low %v4751, %v4755
    %v7817 = vcombine.low %v4759, %v4763
    %v7818 = vcombine.low %v4767, %v4771
    %v7819 = vcombine.low %v4775, %v4779
    %v7821 = vunpack.c.l.s4 1966171168
    %v7822 = vunpack.c.0.s8 %v7821
    %v7823 = vlaneseq
    %v7824 = vshrl.u32 %v7823, 7
    %v7825 = vsub.s32 %v7822, %v7824
    %v7826 = vrot.slane %v7816, %v7825
    %v7828 = vunpack.c.l.s4 1966171168
    %v7829 = vunpack.c.0.s8 %v7828
    %v7830 = vlaneseq
    %v7831 = vshrl.u32 %v7830, 7
    %v7832 = vsub.s32 %v7829, %v7831
    %v7833 = vrot.slane %v7817, %v7832
    %v7835 = vunpack.c.l.s4 1966171168
    %v7836 = vunpack.c.0.s8 %v7835
    %v7837 = vlaneseq
    %v7838 = vshrl.u32 %v7837, 7
    %v7839 = vsub.s32 %v7836, %v7838
    %v7840 = vrot.slane %v7818, %v7839
    %v7842 = vunpack.c.l.s4 1966171168
    %v7843 = vunpack.c.0.s8 %v7842
    %v7844 = vlaneseq
    %v7845 = vshrl.u32 %v7844, 7
    %v7846 = vsub.s32 %v7843, %v7845
    %v7847 = vrot.slane %v7819, %v7846
    %v7848 = vcombine.low %v7826, %v7833
    %v7849 = vcombine.low %v7840, %v7847
    %v7851 = vunpack.c.l.s4 1966171168
    %v7852 = vunpack.c.0.s8 %v7851
    %v7853 = vlaneseq
    %v7854 = vshrl.u32 %v7853, 7
    %v7855 = vsub.s32 %v7852, %v7854
    %v7856 = vrot.slane %v7848, %v7855
    %v7858 = vunpack.c.l.s4 1966171168
    %v7859 = vunpack.c.0.s8 %v7858
    %v7860 = vlaneseq
    %v7861 = vshrl.u32 %v7860, 7
    %v7862 = vsub.s32 %v7859, %v7861
    %v7863 = vrot.slane %v7849, %v7862
    %v7864 = vcombine.low %v7856, %v7863
    %v7865 = vcombine.low %v4783, %v4787
    %v7866 = vcombine.low %v4791, %v4795
    %v7867 = vcombine.low %v4799, %v4803
    %v7868 = vcombine.low %v4807, %v4811
    %v7870 = vunpack.c.l.s4 1966171168
    %v7871 = vunpack.c.0.s8 %v7870
    %v7872 = vlaneseq
    %v7873 = vshrl.u32 %v7872, 7
    %v7874 = vsub.s32 %v7871, %v7873
    %v7875 = vrot.slane %v7865, %v7874
    %v7877 = vunpack.c.l.s4 1966171168
    %v7878 = vunpack.c.0.s8 %v7877
    %v7879 = vlaneseq
    %v7880 = vshrl.u32 %v7879, 7
    %v7881 = vsub.s32 %v7878, %v7880
    %v7882 = vrot.slane %v7866, %v7881
    %v7884 = vunpack.c.l.s4 1966171168
    %v7885 = vunpack.c.0.s8 %v7884
    %v7886 = vlaneseq
    %v7887 = vshrl.u32 %v7886, 7
    %v7888 = vsub.s32 %v7885, %v7887
    %v7889 = vrot.slane %v7867, %v7888
    %v7891 = vunpack.c.l.s4 1966171168
    %v7892 = vunpack.c.0.s8 %v7891
    %v7893 = vlaneseq
    %v7894 = vshrl.u32 %v7893, 7
    %v7895 = vsub.s32 %v7892, %v7894
    %v7896 = vrot.slane %v7868, %v7895
    %v7897 = vcombine.low %v7875, %v7882
    %v7898 = vcombine.low %v7889, %v7896
    %v7900 = vunpack.c.l.s4 1966171168
    %v7901 = vunpack.c.0.s8 %v7900
    %v7902 = vlaneseq
    %v7903 = vshrl.u32 %v7902, 7
    %v7904 = vsub.s32 %v7901, %v7903
    %v7905 = vrot.slane %v7897, %v7904
    %v7907 = vunpack.c.l.s4 1966171168
    %v7908 = vunpack.c.0.s8 %v7907
    %v7909 = vlaneseq
    %v7910 = vshrl.u32 %v7909, 7
    %v7911 = vsub.s32 %v7908, %v7910
    %v7912 = vrot.slane %v7898, %v7911
    %v7913 = vcombine.low %v7905, %v7912
    %v7914 = vcombine.low %v4815, %v4819
    %v7915 = vcombine.low %v4823, %v4827
    %v7916 = vcombine.low %v4831, %v4835
    %v7917 = vcombine.low %v4839, %v4843
    %v7919 = vunpack.c.l.s4 1966171168
    %v7920 = vunpack.c.0.s8 %v7919
    %v7921 = vlaneseq
    %v7922 = vshrl.u32 %v7921, 7
    %v7923 = vsub.s32 %v7920, %v7922
    %v7924 = vrot.slane %v7914, %v7923
    %v7926 = vunpack.c.l.s4 1966171168
    %v7927 = vunpack.c.0.s8 %v7926
    %v7928 = vlaneseq
    %v7929 = vshrl.u32 %v7928, 7
    %v7930 = vsub.s32 %v7927, %v7929
    %v7931 = vrot.slane %v7915, %v7930
    %v7933 = vunpack.c.l.s4 1966171168
    %v7934 = vunpack.c.0.s8 %v7933
    %v7935 = vlaneseq
    %v7936 = vshrl.u32 %v7935, 7
    %v7937 = vsub.s32 %v7934, %v7936
    %v7938 = vrot.slane %v7916, %v7937
    %v7940 = vunpack.c.l.s4 1966171168
    %v7941 = vunpack.c.0.s8 %v7940
    %v7942 = vlaneseq
    %v7943 = vshrl.u32 %v7942, 7
    %v7944 = vsub.s32 %v7941, %v7943
    %v7945 = vrot.slane %v7917, %v7944
    %v7946 = vcombine.low %v7924, %v7931
    %v7947 = vcombine.low %v7938, %v7945
    %v7949 = vunpack.c.l.s4 1966171168
    %v7950 = vunpack.c.0.s8 %v7949
    %v7951 = vlaneseq
    %v7952 = vshrl.u32 %v7951, 7
    %v7953 = vsub.s32 %v7950, %v7952
    %v7954 = vrot.slane %v7946, %v7953
    %v7956 = vunpack.c.l.s4 1966171168
    %v7957 = vunpack.c.0.s8 %v7956
    %v7958 = vlaneseq
    %v7959 = vshrl.u32 %v7958, 7
    %v7960 = vsub.s32 %v7957, %v7959
    %v7961 = vrot.slane %v7947, %v7960
    %v7962 = vcombine.low %v7954, %v7961
    %v7963 = vcombine.low %v4847, %v4851
    %v7964 = vcombine.low %v4855, %v4859
    %v7965 = vcombine.low %v4863, %v4867
    %v7966 = vcombine.low %v4871, %v4875
    %v7968 = vunpack.c.l.s4 1966171168
    %v7969 = vunpack.c.0.s8 %v7968
    %v7970 = vlaneseq
    %v7971 = vshrl.u32 %v7970, 7
    %v7972 = vsub.s32 %v7969, %v7971
    %v7973 = vrot.slane %v7963, %v7972
    %v7975 = vunpack.c.l.s4 1966171168
    %v7976 = vunpack.c.0.s8 %v7975
    %v7977 = vlaneseq
    %v7978 = vshrl.u32 %v7977, 7
    %v7979 = vsub.s32 %v7976, %v7978
    %v7980 = vrot.slane %v7964, %v7979
    %v7982 = vunpack.c.l.s4 1966171168
    %v7983 = vunpack.c.0.s8 %v7982
    %v7984 = vlaneseq
    %v7985 = vshrl.u32 %v7984, 7
    %v7986 = vsub.s32 %v7983, %v7985
    %v7987 = vrot.slane %v7965, %v7986
    %v7989 = vunpack.c.l.s4 1966171168
    %v7990 = vunpack.c.0.s8 %v7989
    %v7991 = vlaneseq
    %v7992 = vshrl.u32 %v7991, 7
    %v7993 = vsub.s32 %v7990, %v7992
    %v7994 = vrot.slane %v7966, %v7993
    %v7995 = vcombine.low %v7973, %v7980
    %v7996 = vcombine.low %v7987, %v7994
    %v7998 = vunpack.c.l.s4 1966171168
    %v7999 = vunpack.c.0.s8 %v7998
    %v8000 = vlaneseq
    %v8001 = vshrl.u32 %v8000, 7
    %v8002 = vsub.s32 %v7999, %v8001
    %v8003 = vrot.slane %v7995, %v8002
    %v8005 = vunpack.c.l.s4 1966171168
    %v8006 = vunpack.c.0.s8 %v8005
    %v8007 = vlaneseq
    %v8008 = vshrl.u32 %v8007, 7
    %v8009 = vsub.s32 %v8006, %v8008
    %v8010 = vrot.slane %v7996, %v8009
    %v8011 = vcombine.low %v8003, %v8010
    %8012 = vset.pattern.permute.xlu0 0
    %8013 = vperm.xlu0 %8012, %v4924
    %v8014 = vpop.permute.xlu0 %8013
    %8015 = vset.pattern.permute.xlu0 0
    %8016 = vperm.xlu0 %8015, %v4973
    %v8017 = vpop.permute.xlu0 %8016
    %8018 = vset.pattern.permute.xlu0 0
    %8019 = vperm.xlu0 %8018, %v5022
    %v8020 = vpop.permute.xlu0 %8019
    %8021 = vset.pattern.permute.xlu0 0
    %8022 = vperm.xlu0 %8021, %v5071
    %v8023 = vpop.permute.xlu0 %8022
    %8024 = vset.pattern.permute.xlu0 0
    %8025 = vperm.xlu0 %8024, %v5120
    %v8026 = vpop.permute.xlu0 %8025
    %8027 = vset.pattern.permute.xlu0 0
    %8028 = vperm.xlu0 %8027, %v5169
    %v8029 = vpop.permute.xlu0 %8028
    %8030 = vset.pattern.permute.xlu0 0
    %8031 = vperm.xlu0 %8030, %v5218
    %v8032 = vpop.permute.xlu0 %8031
    %8033 = vset.pattern.permute.xlu0 0
    %8034 = vperm.xlu0 %8033, %v5267
    %v8035 = vpop.permute.xlu0 %8034
    %8036 = vset.pattern.permute.xlu0 0
    %8037 = vperm.xlu0 %8036, %v5316
    %v8038 = vpop.permute.xlu0 %8037
    %8039 = vset.pattern.permute.xlu0 0
    %8040 = vperm.xlu0 %8039, %v5365
    %v8041 = vpop.permute.xlu0 %8040
    %8042 = vset.pattern.permute.xlu0 0
    %8043 = vperm.xlu0 %8042, %v5414
    %v8044 = vpop.permute.xlu0 %8043
    %8045 = vset.pattern.permute.xlu0 0
    %8046 = vperm.xlu0 %8045, %v5463
    %v8047 = vpop.permute.xlu0 %8046
    %8048 = vset.pattern.permute.xlu0 0
    %8049 = vperm.xlu0 %8048, %v5512
    %v8050 = vpop.permute.xlu0 %8049
    %8051 = vset.pattern.permute.xlu0 0
    %8052 = vperm.xlu0 %8051, %v5561
    %v8053 = vpop.permute.xlu0 %8052
    %8054 = vset.pattern.permute.xlu0 0
    %8055 = vperm.xlu0 %8054, %v5610
    %v8056 = vpop.permute.xlu0 %8055
    %8057 = vset.pattern.permute.xlu0 0
    %8058 = vperm.xlu0 %8057, %v5659
    %v8059 = vpop.permute.xlu0 %8058
    %8060 = vset.pattern.permute.xlu0 0
    %8061 = vperm.xlu0 %8060, %v5708
    %v8062 = vpop.permute.xlu0 %8061
    %8063 = vset.pattern.permute.xlu0 0
    %8064 = vperm.xlu0 %8063, %v5757
    %v8065 = vpop.permute.xlu0 %8064
    %8066 = vset.pattern.permute.xlu0 0
    %8067 = vperm.xlu0 %8066, %v5806
    %v8068 = vpop.permute.xlu0 %8067
    %8069 = vset.pattern.permute.xlu0 0
    %8070 = vperm.xlu0 %8069, %v5855
    %v8071 = vpop.permute.xlu0 %8070
    %8072 = vset.pattern.permute.xlu0 0
    %8073 = vperm.xlu0 %8072, %v5904
    %v8074 = vpop.permute.xlu0 %8073
    %8075 = vset.pattern.permute.xlu0 0
    %8076 = vperm.xlu0 %8075, %v5953
    %v8077 = vpop.permute.xlu0 %8076
    %8078 = vset.pattern.permute.xlu0 0
    %8079 = vperm.xlu0 %8078, %v6002
    %v8080 = vpop.permute.xlu0 %8079
    %8081 = vset.pattern.permute.xlu0 0
    %8082 = vperm.xlu0 %8081, %v6051
    %v8083 = vpop.permute.xlu0 %8082
    %8084 = vset.pattern.permute.xlu0 0
    %8085 = vperm.xlu0 %8084, %v6100
    %v8086 = vpop.permute.xlu0 %8085
    %8087 = vset.pattern.permute.xlu0 0
    %8088 = vperm.xlu0 %8087, %v6149
    %v8089 = vpop.permute.xlu0 %8088
    %8090 = vset.pattern.permute.xlu0 0
    %8091 = vperm.xlu0 %8090, %v6198
    %v8092 = vpop.permute.xlu0 %8091
    %8093 = vset.pattern.permute.xlu0 0
    %8094 = vperm.xlu0 %8093, %v6247
    %v8095 = vpop.permute.xlu0 %8094
    %8096 = vset.pattern.permute.xlu0 0
    %8097 = vperm.xlu0 %8096, %v6296
    %v8098 = vpop.permute.xlu0 %8097
    %8099 = vset.pattern.permute.xlu0 0
    %8100 = vperm.xlu0 %8099, %v6345
    %v8101 = vpop.permute.xlu0 %8100
    %8102 = vset.pattern.permute.xlu0 0
    %8103 = vperm.xlu0 %8102, %v6394
    %v8104 = vpop.permute.xlu0 %8103
    %8105 = vset.pattern.permute.xlu0 0
    %8106 = vperm.xlu0 %8105, %v6443
    %v8107 = vpop.permute.xlu0 %8106
    %8108 = vset.pattern.permute.xlu0 0
    %8109 = vperm.xlu0 %8108, %v6492
    %v8110 = vpop.permute.xlu0 %8109
    %8111 = vset.pattern.permute.xlu0 0
    %8112 = vperm.xlu0 %8111, %v6541
    %v8113 = vpop.permute.xlu0 %8112
    %8114 = vset.pattern.permute.xlu0 0
    %8115 = vperm.xlu0 %8114, %v6590
    %v8116 = vpop.permute.xlu0 %8115
    %8117 = vset.pattern.permute.xlu0 0
    %8118 = vperm.xlu0 %8117, %v6639
    %v8119 = vpop.permute.xlu0 %8118
    %8120 = vset.pattern.permute.xlu0 0
    %8121 = vperm.xlu0 %8120, %v6688
    %v8122 = vpop.permute.xlu0 %8121
    %8123 = vset.pattern.permute.xlu0 0
    %8124 = vperm.xlu0 %8123, %v6737
    %v8125 = vpop.permute.xlu0 %8124
    %8126 = vset.pattern.permute.xlu0 0
    %8127 = vperm.xlu0 %8126, %v6786
    %v8128 = vpop.permute.xlu0 %8127
    %8129 = vset.pattern.permute.xlu0 0
    %8130 = vperm.xlu0 %8129, %v6835
    %v8131 = vpop.permute.xlu0 %8130
    %8132 = vset.pattern.permute.xlu0 0
    %8133 = vperm.xlu0 %8132, %v6884
    %v8134 = vpop.permute.xlu0 %8133
    %8135 = vset.pattern.permute.xlu0 0
    %8136 = vperm.xlu0 %8135, %v6933
    %v8137 = vpop.permute.xlu0 %8136
    %8138 = vset.pattern.permute.xlu0 0
    %8139 = vperm.xlu0 %8138, %v6982
    %v8140 = vpop.permute.xlu0 %8139
    %8141 = vset.pattern.permute.xlu0 0
    %8142 = vperm.xlu0 %8141, %v7031
    %v8143 = vpop.permute.xlu0 %8142
    %8144 = vset.pattern.permute.xlu0 0
    %8145 = vperm.xlu0 %8144, %v7080
    %v8146 = vpop.permute.xlu0 %8145
    %8147 = vset.pattern.permute.xlu0 0
    %8148 = vperm.xlu0 %8147, %v7129
    %v8149 = vpop.permute.xlu0 %8148
    %8150 = vset.pattern.permute.xlu0 0
    %8151 = vperm.xlu0 %8150, %v7178
    %v8152 = vpop.permute.xlu0 %8151
    %8153 = vset.pattern.permute.xlu0 0
    %8154 = vperm.xlu0 %8153, %v7227
    %v8155 = vpop.permute.xlu0 %8154
    %8156 = vset.pattern.permute.xlu0 0
    %8157 = vperm.xlu0 %8156, %v7276
    %v8158 = vpop.permute.xlu0 %8157
    %8159 = vset.pattern.permute.xlu0 0
    %8160 = vperm.xlu0 %8159, %v7325
    %v8161 = vpop.permute.xlu0 %8160
    %8162 = vset.pattern.permute.xlu0 0
    %8163 = vperm.xlu0 %8162, %v7374
    %v8164 = vpop.permute.xlu0 %8163
    %8165 = vset.pattern.permute.xlu0 0
    %8166 = vperm.xlu0 %8165, %v7423
    %v8167 = vpop.permute.xlu0 %8166
    %8168 = vset.pattern.permute.xlu0 0
    %8169 = vperm.xlu0 %8168, %v7472
    %v8170 = vpop.permute.xlu0 %8169
    %8171 = vset.pattern.permute.xlu0 0
    %8172 = vperm.xlu0 %8171, %v7521
    %v8173 = vpop.permute.xlu0 %8172
    %8174 = vset.pattern.permute.xlu0 0
    %8175 = vperm.xlu0 %8174, %v7570
    %v8176 = vpop.permute.xlu0 %8175
    %8177 = vset.pattern.permute.xlu0 0
    %8178 = vperm.xlu0 %8177, %v7619
    %v8179 = vpop.permute.xlu0 %8178
    %8180 = vset.pattern.permute.xlu0 0
    %8181 = vperm.xlu0 %8180, %v7668
    %v8182 = vpop.permute.xlu0 %8181
    %8183 = vset.pattern.permute.xlu0 0
    %8184 = vperm.xlu0 %8183, %v7717
    %v8185 = vpop.permute.xlu0 %8184
    %8186 = vset.pattern.permute.xlu0 0
    %8187 = vperm.xlu0 %8186, %v7766
    %v8188 = vpop.permute.xlu0 %8187
    %8189 = vset.pattern.permute.xlu0 0
    %8190 = vperm.xlu0 %8189, %v7815
    %v8191 = vpop.permute.xlu0 %8190
    %8192 = vset.pattern.permute.xlu0 0
    %8193 = vperm.xlu0 %8192, %v7864
    %v8194 = vpop.permute.xlu0 %8193
    %8195 = vset.pattern.permute.xlu0 0
    %8196 = vperm.xlu0 %8195, %v7913
    %v8197 = vpop.permute.xlu0 %8196
    %8198 = vset.pattern.permute.xlu0 0
    %8199 = vperm.xlu0 %8198, %v7962
    %v8200 = vpop.permute.xlu0 %8199
    %8201 = vset.pattern.permute.xlu0 0
    %8202 = vperm.xlu0 %8201, %v8011
    %v8203 = vpop.permute.xlu0 %8202
    %v8204 = vlaneseq
    %v8205 = vand.u32 %v8204, 127
    %v8206 = vlaneseq
    %v8207 = vshrl.u32 %v8206, 7
    %v8208 = vsub.s32 %v8205, %v8207
    %v8209 = vrot.slane %v8014, %v8208
    %v8210 = vadd.s32 %v8205, 4294967288
    %v8211 = vlaneseq
    %v8212 = vshrl.u32 %v8211, 7
    %v8213 = vsub.s32 %v8210, %v8212
    %v8214 = vrot.slane %v8017, %v8213
    %vm8215 = vcmask 130112
    %v8216 = vsel %vm8215, %v8214, %v8209
    %v8217 = vadd.s32 %v8205, 4294967280
    %v8218 = vlaneseq
    %v8219 = vshrl.u32 %v8218, 7
    %v8220 = vsub.s32 %v8217, %v8219
    %v8221 = vrot.slane %v8020, %v8220
    %vm8222 = vcmask 195712
    %v8223 = vsel %vm8222, %v8221, %v8216
    %v8224 = vadd.s32 %v8205, 4294967272
    %v8225 = vlaneseq
    %v8226 = vshrl.u32 %v8225, 7
    %v8227 = vsub.s32 %v8224, %v8226
    %v8228 = vrot.slane %v8023, %v8227
    %vm8229 = vcmask 261312
    %v8230 = vsel %vm8229, %v8228, %v8223
    %v8231 = vadd.s32 %v8205, 4294967264
    %v8232 = vlaneseq
    %v8233 = vshrl.u32 %v8232, 7
    %v8234 = vsub.s32 %v8231, %v8233
    %v8235 = vrot.slane %v8026, %v8234
    %vm8236 = vcmask 326912
    %v8237 = vsel %vm8236, %v8235, %v8230
    %v8238 = vadd.s32 %v8205, 4294967256
    %v8239 = vlaneseq
    %v8240 = vshrl.u32 %v8239, 7
    %v8241 = vsub.s32 %v8238, %v8240
    %v8242 = vrot.slane %v8029, %v8241
    %vm8243 = vcmask 392512
    %v8244 = vsel %vm8243, %v8242, %v8237
    %v8245 = vadd.s32 %v8205, 4294967248
    %v8246 = vlaneseq
    %v8247 = vshrl.u32 %v8246, 7
    %v8248 = vsub.s32 %v8245, %v8247
    %v8249 = vrot.slane %v8032, %v8248
    %vm8250 = vcmask 458112
    %v8251 = vsel %vm8250, %v8249, %v8244
    %v8252 = vadd.s32 %v8205, 4294967240
    %v8253 = vlaneseq
    %v8254 = vshrl.u32 %v8253, 7
    %v8255 = vsub.s32 %v8252, %v8254
    %v8256 = vrot.slane %v8035, %v8255
    %vm8257 = vcmask 523712
    %v8258 = vsel %vm8257, %v8256, %v8251
    %v8259 = vadd.s32 %v8205, 4294967232
    %v8260 = vlaneseq
    %v8261 = vshrl.u32 %v8260, 7
    %v8262 = vsub.s32 %v8259, %v8261
    %v8263 = vrot.slane %v8038, %v8262
    %vm8264 = vcmask 589312
    %v8265 = vsel %vm8264, %v8263, %v8258
    %v8266 = vadd.s32 %v8205, 4294967224
    %v8267 = vlaneseq
    %v8268 = vshrl.u32 %v8267, 7
    %v8269 = vsub.s32 %v8266, %v8268
    %v8270 = vrot.slane %v8041, %v8269
    %vm8271 = vcmask 654912
    %v8272 = vsel %vm8271, %v8270, %v8265
    %v8273 = vadd.s32 %v8205, 4294967216
    %v8274 = vlaneseq
    %v8275 = vshrl.u32 %v8274, 7
    %v8276 = vsub.s32 %v8273, %v8275
    %v8277 = vrot.slane %v8044, %v8276
    %vm8278 = vcmask 720512
    %v8279 = vsel %vm8278, %v8277, %v8272
    %v8280 = vadd.s32 %v8205, 4294967208
    %v8281 = vlaneseq
    %v8282 = vshrl.u32 %v8281, 7
    %v8283 = vsub.s32 %v8280, %v8282
    %v8284 = vrot.slane %v8047, %v8283
    %vm8285 = vcmask 786112
    %v8286 = vsel %vm8285, %v8284, %v8279
    %v8287 = vadd.s32 %v8205, 4294967200
    %v8288 = vlaneseq
    %v8289 = vshrl.u32 %v8288, 7
    %v8290 = vsub.s32 %v8287, %v8289
    %v8291 = vrot.slane %v8050, %v8290
    %vm8292 = vcmask 851712
    %v8293 = vsel %vm8292, %v8291, %v8286
    %v8294 = vadd.s32 %v8205, 4294967192
    %v8295 = vlaneseq
    %v8296 = vshrl.u32 %v8295, 7
    %v8297 = vsub.s32 %v8294, %v8296
    %v8298 = vrot.slane %v8053, %v8297
    %vm8299 = vcmask 917312
    %v8300 = vsel %vm8299, %v8298, %v8293
    %v8301 = vadd.s32 %v8205, 4294967184
    %v8302 = vlaneseq
    %v8303 = vshrl.u32 %v8302, 7
    %v8304 = vsub.s32 %v8301, %v8303
    %v8305 = vrot.slane %v8056, %v8304
    %vm8306 = vcmask 982912
    %v8307 = vsel %vm8306, %v8305, %v8300
    %v8308 = vadd.s32 %v8205, 4294967176
    %v8309 = vlaneseq
    %v8310 = vshrl.u32 %v8309, 7
    %v8311 = vsub.s32 %v8308, %v8310
    %v8312 = vrot.slane %v8059, %v8311
    %vm8313 = vcmask 1048512
    %v8314 = vsel %vm8313, %v8312, %v8307
    %v8315 = vlaneseq
    %v8316 = vshrl.u32 %v8315, 7
    %v8317 = vsub.s32 %v8205, %v8316
    %v8318 = vrot.slane %v8062, %v8317
    %v8319 = vlaneseq
    %v8320 = vshrl.u32 %v8319, 7
    %v8321 = vsub.s32 %v8210, %v8320
    %v8322 = vrot.slane %v8065, %v8321
    %v8323 = vsel %vm8215, %v8322, %v8318
    %v8324 = vlaneseq
    %v8325 = vshrl.u32 %v8324, 7
    %v8326 = vsub.s32 %v8217, %v8325
    %v8327 = vrot.slane %v8068, %v8326
    %v8328 = vsel %vm8222, %v8327, %v8323
    %v8329 = vlaneseq
    %v8330 = vshrl.u32 %v8329, 7
    %v8331 = vsub.s32 %v8224, %v8330
    %v8332 = vrot.slane %v8071, %v8331
    %v8333 = vsel %vm8229, %v8332, %v8328
    %v8334 = vlaneseq
    %v8335 = vshrl.u32 %v8334, 7
    %v8336 = vsub.s32 %v8231, %v8335
    %v8337 = vrot.slane %v8074, %v8336
    %v8338 = vsel %vm8236, %v8337, %v8333
    %v8339 = vlaneseq
    %v8340 = vshrl.u32 %v8339, 7
    %v8341 = vsub.s32 %v8238, %v8340
    %v8342 = vrot.slane %v8077, %v8341
    %v8343 = vsel %vm8243, %v8342, %v8338
    %v8344 = vlaneseq
    %v8345 = vshrl.u32 %v8344, 7
    %v8346 = vsub.s32 %v8245, %v8345
    %v8347 = vrot.slane %v8080, %v8346
    %v8348 = vsel %vm8250, %v8347, %v8343
    %v8349 = vlaneseq
    %v8350 = vshrl.u32 %v8349, 7
    %v8351 = vsub.s32 %v8252, %v8350
    %v8352 = vrot.slane %v8083, %v8351
    %v8353 = vsel %vm8257, %v8352, %v8348
    %v8354 = vlaneseq
    %v8355 = vshrl.u32 %v8354, 7
    %v8356 = vsub.s32 %v8259, %v8355
    %v8357 = vrot.slane %v8086, %v8356
    %v8358 = vsel %vm8264, %v8357, %v8353
    %v8359 = vlaneseq
    %v8360 = vshrl.u32 %v8359, 7
    %v8361 = vsub.s32 %v8266, %v8360
    %v8362 = vrot.slane %v8089, %v8361
    %v8363 = vsel %vm8271, %v8362, %v8358
    %v8364 = vlaneseq
    %v8365 = vshrl.u32 %v8364, 7
    %v8366 = vsub.s32 %v8273, %v8365
    %v8367 = vrot.slane %v8092, %v8366
    %v8368 = vsel %vm8278, %v8367, %v8363
    %v8369 = vlaneseq
    %v8370 = vshrl.u32 %v8369, 7
    %v8371 = vsub.s32 %v8280, %v8370
    %v8372 = vrot.slane %v8095, %v8371
    %v8373 = vsel %vm8285, %v8372, %v8368
    %v8374 = vlaneseq
    %v8375 = vshrl.u32 %v8374, 7
    %v8376 = vsub.s32 %v8287, %v8375
    %v8377 = vrot.slane %v8098, %v8376
    %v8378 = vsel %vm8292, %v8377, %v8373
    %v8379 = vlaneseq
    %v8380 = vshrl.u32 %v8379, 7
    %v8381 = vsub.s32 %v8294, %v8380
    %v8382 = vrot.slane %v8101, %v8381
    %v8383 = vsel %vm8299, %v8382, %v8378
    %v8384 = vlaneseq
    %v8385 = vshrl.u32 %v8384, 7
    %v8386 = vsub.s32 %v8301, %v8385
    %v8387 = vrot.slane %v8104, %v8386
    %v8388 = vsel %vm8306, %v8387, %v8383
    %v8389 = vlaneseq
    %v8390 = vshrl.u32 %v8389, 7
    %v8391 = vsub.s32 %v8308, %v8390
    %v8392 = vrot.slane %v8107, %v8391
    %v8393 = vsel %vm8313, %v8392, %v8388
    %v8394 = vlaneseq
    %v8395 = vshrl.u32 %v8394, 7
    %v8396 = vsub.s32 %v8205, %v8395
    %v8397 = vrot.slane %v8110, %v8396
    %v8398 = vlaneseq
    %v8399 = vshrl.u32 %v8398, 7
    %v8400 = vsub.s32 %v8210, %v8399
    %v8401 = vrot.slane %v8113, %v8400
    %v8402 = vsel %vm8215, %v8401, %v8397
    %v8403 = vlaneseq
    %v8404 = vshrl.u32 %v8403, 7
    %v8405 = vsub.s32 %v8217, %v8404
    %v8406 = vrot.slane %v8116, %v8405
    %v8407 = vsel %vm8222, %v8406, %v8402
    %v8408 = vlaneseq
    %v8409 = vshrl.u32 %v8408, 7
    %v8410 = vsub.s32 %v8224, %v8409
    %v8411 = vrot.slane %v8119, %v8410
    %v8412 = vsel %vm8229, %v8411, %v8407
    %v8413 = vlaneseq
    %v8414 = vshrl.u32 %v8413, 7
    %v8415 = vsub.s32 %v8231, %v8414
    %v8416 = vrot.slane %v8122, %v8415
    %v8417 = vsel %vm8236, %v8416, %v8412
    %v8418 = vlaneseq
    %v8419 = vshrl.u32 %v8418, 7
    %v8420 = vsub.s32 %v8238, %v8419
    %v8421 = vrot.slane %v8125, %v8420
    %v8422 = vsel %vm8243, %v8421, %v8417
    %v8423 = vlaneseq
    %v8424 = vshrl.u32 %v8423, 7
    %v8425 = vsub.s32 %v8245, %v8424
    %v8426 = vrot.slane %v8128, %v8425
    %v8427 = vsel %vm8250, %v8426, %v8422
    %v8428 = vlaneseq
    %v8429 = vshrl.u32 %v8428, 7
    %v8430 = vsub.s32 %v8252, %v8429
    %v8431 = vrot.slane %v8131, %v8430
    %v8432 = vsel %vm8257, %v8431, %v8427
    %v8433 = vlaneseq
    %v8434 = vshrl.u32 %v8433, 7
    %v8435 = vsub.s32 %v8259, %v8434
    %v8436 = vrot.slane %v8134, %v8435
    %v8437 = vsel %vm8264, %v8436, %v8432
    %v8438 = vlaneseq
    %v8439 = vshrl.u32 %v8438, 7
    %v8440 = vsub.s32 %v8266, %v8439
    %v8441 = vrot.slane %v8137, %v8440
    %v8442 = vsel %vm8271, %v8441, %v8437
    %v8443 = vlaneseq
    %v8444 = vshrl.u32 %v8443, 7
    %v8445 = vsub.s32 %v8273, %v8444
    %v8446 = vrot.slane %v8140, %v8445
    %v8447 = vsel %vm8278, %v8446, %v8442
    %v8448 = vlaneseq
    %v8449 = vshrl.u32 %v8448, 7
    %v8450 = vsub.s32 %v8280, %v8449
    %v8451 = vrot.slane %v8143, %v8450
    %v8452 = vsel %vm8285, %v8451, %v8447
    %v8453 = vlaneseq
    %v8454 = vshrl.u32 %v8453, 7
    %v8455 = vsub.s32 %v8287, %v8454
    %v8456 = vrot.slane %v8146, %v8455
    %v8457 = vsel %vm8292, %v8456, %v8452
    %v8458 = vlaneseq
    %v8459 = vshrl.u32 %v8458, 7
    %v8460 = vsub.s32 %v8294, %v8459
    %v8461 = vrot.slane %v8149, %v8460
    %v8462 = vsel %vm8299, %v8461, %v8457
    %v8463 = vlaneseq
    %v8464 = vshrl.u32 %v8463, 7
    %v8465 = vsub.s32 %v8301, %v8464
    %v8466 = vrot.slane %v8152, %v8465
    %v8467 = vsel %vm8306, %v8466, %v8462
    %v8468 = vlaneseq
    %v8469 = vshrl.u32 %v8468, 7
    %v8470 = vsub.s32 %v8308, %v8469
    %v8471 = vrot.slane %v8155, %v8470
    %v8472 = vsel %vm8313, %v8471, %v8467
    %v8473 = vlaneseq
    %v8474 = vshrl.u32 %v8473, 7
    %v8475 = vsub.s32 %v8205, %v8474
    %v8476 = vrot.slane %v8158, %v8475
    %v8477 = vlaneseq
    %v8478 = vshrl.u32 %v8477, 7
    %v8479 = vsub.s32 %v8210, %v8478
    %v8480 = vrot.slane %v8161, %v8479
    %v8481 = vsel %vm8215, %v8480, %v8476
    %v8482 = vlaneseq
    %v8483 = vshrl.u32 %v8482, 7
    %v8484 = vsub.s32 %v8217, %v8483
    %v8485 = vrot.slane %v8164, %v8484
    %v8486 = vsel %vm8222, %v8485, %v8481
    %v8487 = vlaneseq
    %v8488 = vshrl.u32 %v8487, 7
    %v8489 = vsub.s32 %v8224, %v8488
    %v8490 = vrot.slane %v8167, %v8489
    %v8491 = vsel %vm8229, %v8490, %v8486
    %v8492 = vlaneseq
    %v8493 = vshrl.u32 %v8492, 7
    %v8494 = vsub.s32 %v8231, %v8493
    %v8495 = vrot.slane %v8170, %v8494
    %v8496 = vsel %vm8236, %v8495, %v8491
    %v8497 = vlaneseq
    %v8498 = vshrl.u32 %v8497, 7
    %v8499 = vsub.s32 %v8238, %v8498
    %v8500 = vrot.slane %v8173, %v8499
    %v8501 = vsel %vm8243, %v8500, %v8496
    %v8502 = vlaneseq
    %v8503 = vshrl.u32 %v8502, 7
    %v8504 = vsub.s32 %v8245, %v8503
    %v8505 = vrot.slane %v8176, %v8504
    %v8506 = vsel %vm8250, %v8505, %v8501
    %v8507 = vlaneseq
    %v8508 = vshrl.u32 %v8507, 7
    %v8509 = vsub.s32 %v8252, %v8508
    %v8510 = vrot.slane %v8179, %v8509
    %v8511 = vsel %vm8257, %v8510, %v8506
    %v8512 = vlaneseq
    %v8513 = vshrl.u32 %v8512, 7
    %v8514 = vsub.s32 %v8259, %v8513
    %v8515 = vrot.slane %v8182, %v8514
    %v8516 = vsel %vm8264, %v8515, %v8511
    %v8517 = vlaneseq
    %v8518 = vshrl.u32 %v8517, 7
    %v8519 = vsub.s32 %v8266, %v8518
    %v8520 = vrot.slane %v8185, %v8519
    %v8521 = vsel %vm8271, %v8520, %v8516
    %v8522 = vlaneseq
    %v8523 = vshrl.u32 %v8522, 7
    %v8524 = vsub.s32 %v8273, %v8523
    %v8525 = vrot.slane %v8188, %v8524
    %v8526 = vsel %vm8278, %v8525, %v8521
    %v8527 = vlaneseq
    %v8528 = vshrl.u32 %v8527, 7
    %v8529 = vsub.s32 %v8280, %v8528
    %v8530 = vrot.slane %v8191, %v8529
    %v8531 = vsel %vm8285, %v8530, %v8526
    %v8532 = vlaneseq
    %v8533 = vshrl.u32 %v8532, 7
    %v8534 = vsub.s32 %v8287, %v8533
    %v8535 = vrot.slane %v8194, %v8534
    %v8536 = vsel %vm8292, %v8535, %v8531
    %v8537 = vlaneseq
    %v8538 = vshrl.u32 %v8537, 7
    %v8539 = vsub.s32 %v8294, %v8538
    %v8540 = vrot.slane %v8197, %v8539
    %v8541 = vsel %vm8299, %v8540, %v8536
    %v8542 = vlaneseq
    %v8543 = vshrl.u32 %v8542, 7
    %v8544 = vsub.s32 %v8301, %v8543
    %v8545 = vrot.slane %v8200, %v8544
    %v8546 = vsel %vm8306, %v8545, %v8541
    %v8547 = vlaneseq
    %v8548 = vshrl.u32 %v8547, 7
    %v8549 = vsub.s32 %v8308, %v8548
    %v8550 = vrot.slane %v8203, %v8549
    %v8551 = vsel %vm8313, %v8550, %v8546
    %v8552 = vcombine.low %v8314, %v8393
    %v8553 = vcombine.low %v8472, %v8551
    %v8555 = vunpack.c.l.s4 1966171168
    %v8556 = vunpack.c.0.s8 %v8555
    %v8557 = vlaneseq
    %v8558 = vshrl.u32 %v8557, 7
    %v8559 = vsub.s32 %v8556, %v8558
    %v8560 = vrot.slane %v8552, %v8559
    %v8562 = vunpack.c.l.s4 1966171168
    %v8563 = vunpack.c.0.s8 %v8562
    %v8564 = vlaneseq
    %v8565 = vshrl.u32 %v8564, 7
    %v8566 = vsub.s32 %v8563, %v8565
    %v8567 = vrot.slane %v8553, %v8566
    %v8568 = vcombine.low %v8560, %v8567
    %v8570 = vunpack.c.l.s4 1966171168
    %v8571 = vunpack.c.0.s8 %v8570
    %v8572 = vlaneseq
    %v8573 = vshrl.u32 %v8572, 7
    %v8574 = vsub.s32 %v8571, %v8573
    %v8575 = vrot.slane %v8568, %v8574
    %v8577 = vlaneseq
    %vm8578 = vcmp.ge.s32.totalorder %v8577, 0
    %vm8579 = vcmp.lt.s32.totalorder %v8577, 512
    %vm8580 = vmand %vm8578, %vm8579
    %8581 = vst.msk [vmem:[#allocation3] sm:$0xf] %vm8580, %v8575
    // Predicated region
    $region46: #{tpu_custom_call.1} parent=1 // pred_check
      _
    $region47: #{tpu_custom_call.1} parent=1 // pred_check_branch
      %8583 = sbr.rel (0) target = $region49
    $region48: #{tpu_custom_call.1} parent=1 // pred_region
      %s8585 = ssub.s32 64, 64
      %8586 = vsyncadd [#allocation4], %s8585
      %s8588 = sshll.u32 [#allocation3], 4
      %s8589 = int_to_ptr.vmem [resolvable:$true] %s8588
      %8591 = dma.vmem_to_hbm [thread:$0]  %s8589, 64, %s11, [#allocation4]
    $region49: #{tpu_custom_call.1} parent=1 // pred_fallthru
      _
    // Predicated region
    $region50: #{tpu_custom_call.1} parent=1 // pred_check
      _
    $region51: #{tpu_custom_call.1} parent=1 // pred_check_branch
      %8593 = sbr.rel (0) target = $region53
    $region52: #{tpu_custom_call.1} parent=1 // pred_region
      %8594 = dma.done [#allocation4], 64
    $region53: #{tpu_custom_call.1} parent=1 // pred_fallthru
      _
    %8595 = vsyncpa [#allocation4], 1

</llo_original>
